<compile_context>
chip_gen: v6e
topology: v6e:2x2x1
jax: 0.10.0
libtpu: 0.0.40
codegen_flags: <defaults>
</compile_context>

<pallas_src>
import jax
import jax.numpy as jnp
import numpy as np
from jax.experimental import pallas as pl
from jax.experimental.pallas import tpu as pltpu

# Module defaults (torch: c_dim=128, dim=3, hidden_dim=128).
POINT_DIM = 3
HIDDEN = 128
C_DIM = 128
N_BLOCKS = 5
N_SPLIT_BLOCKS = N_BLOCKS - 1  # blocks 1..4 take the [net | pooled] concat as input

_VMEM_LIMIT_BYTES = 48 * 1024 * 1024   # raised scoped-VMEM cap (<= v7x 64 MiB physical)
_ACT_BYTES_PER_ROW = 4608              # est. live f32 activations + lane-padded input block / row
_ACT_VMEM_BUDGET = 24 * 1024 * 1024    # activation budget used when picking the batch tile


# ----------------------------- Pallas kernel --------------------------------

def resnet_pointnet_kernel(p_ref, *refs):
    # refs = (fc_pos_w, fc_pos_b,                                   f32 (VPU FMA path)
    #         block_0:   [fc0_w, fc0_b, fc1_w, fc1_b, sc_w],        (5)  weights bf16, biases f32
    #         block_1..4:[fc0_w_top, fc0_w_bot, fc0_b, fc1_w, fc1_b,
    #                     sc_w_top, sc_w_bot],                      (7 each)
    #         fc_c_w, fc_c_b,
    #         out_ref)
    out_ref = refs[-1]
    refs = refs[:-1]
    fc_pos_w, fc_pos_b = refs[0], refs[1]
    blk0 = refs[2:7]
    split_refs = refs[7:7 + 7 * N_SPLIT_BLOCKS]
    fc_c_w, fc_c_b = refs[-2], refs[-1]

    Bt = out_ref.shape[0]          # clouds per grid step
    R = p_ref.shape[0]             # Bt * T rows per grid step
    T = R // Bt

    def relu(v):
        return jnp.maximum(v, 0.0)

    def lin(x, w_ref, b_ref=None):
        # bf16 operands, f32 accumulation on the MXU; bias add stays f32.
        y = jnp.dot(x.astype(jnp.bfloat16), w_ref[...],
                    preferred_element_type=jnp.float32)
        if b_ref is not None:
            y = y + b_ref[...]
        return y

    def pool(flat):  # (R, H) -> per-cloud max (Bt, H); free relabel since T % 8 == 0
        return jnp.max(flat.reshape(Bt, T, flat.shape[-1]), axis=1)

    def badd(flat, per_cloud):  # (R, O) + broadcast of (Bt, O) over each cloud's T rows
        o = flat.shape[-1]
        return (flat.reshape(Bt, T, o) + per_cloud[:, None, :]).reshape(R, o)

    # ---- fc_pos: K=3 contraction as 3 VPU broadcast-FMAs in f32 (no MXU pass) ----
    x = p_ref[...]                                   # (R, D) f32
    wp = fc_pos_w[...]                               # (D, 2H) f32
    net = fc_pos_b[...] + x[:, 0:1] * wp[0:1, :]
    for d in range(1, x.shape[1]):
        net = net + x[:, d:d + 1] * wp[d:d + 1, :]   # (R, 2H) f32

    # ---- block 0: plain ResnetBlockFC(2H -> H) on the fc_pos output ----
    w0, b0, w1, b1, sc = blk0
    h = lin(relu(net), w0, b0)                       # (R, H)
    dx = lin(relu(h), w1, b1)                        # (R, H)
    net = lin(net, sc) + dx                          # shortcut (bias=False) + dx

    # ---- blocks 1..4: input is concat([net, pooled]) -> split-weight form ----
    for i in range(N_SPLIT_BLOCKS):
        w0a, w0b, b0, w1, b1, sca, scb = split_refs[7 * i:7 * (i + 1)]
        pooled = pool(net)                           # (Bt, H)  max over points, f32
        ax, axp = relu(net), relu(pooled)            # relu(concat) == [relu(net)|relu(pooled)]
        h = badd(lin(ax, w0a, b0), lin(axp, w0b))    # fc_0(concat)          (R, H)
        dx = lin(relu(h), w1, b1)                    # fc_1                  (R, H)
        xs = badd(lin(net, sca), lin(pooled, scb))   # shortcut(concat)      (R, H)
        net = xs + dx

    # ---- final pool over points, LeakyReLU(0.2), fc_c — batched over Bt clouds ----
    pooled = pool(net)                                       # (Bt, H)
    act = jnp.where(pooled > 0, pooled, 0.2 * pooled)        # LeakyReLU(0.2), f32
    out_ref[...] = lin(act, fc_c_w, fc_c_b).astype(out_ref.dtype)  # (Bt, C)


# ----------------------------- wrapper ---------------------------------------

def _default_num_cores():
    """Best-effort TensorCores-per-chip (v5e/v6e: 1; v4/v5p/v7x: 2). Harmless if wrong:
    an extra grid step on a 1-TC chip costs ~0.35 us, a 1-step grid idles a TC on 2-TC chips."""
    try:
        kind = jax.devices()[0].device_kind.lower()
    except Exception:
        return 2
    if "lite" in kind or "v5e" in kind or "v6e" in kind:
        return 1
    return 2


def _pick_batch_tile(B, T, num_cores):
    """Largest VMEM-feasible batch tile; keep >= num_cores grid steps only when each
    step retains >= 512 rows (enough M to amortize the serial matmul chain)."""
    bt_cap = max(_ACT_VMEM_BUDGET // (_ACT_BYTES_PER_ROW * T), 1)
    # Candidates keep the (Bt, C) output block sublane-aligned (Bt % 8 == 0) or equal
    # to the full batch (block == full array dim is always layout-legal).
    cands = [d for d in range(8, B, 8) if B % d == 0] + [B]
    fit = [d for d in cands if d <= bt_cap] or [min(cands)]
    multi = [d for d in fit if B // d >= num_cores and d * T >= 512]
    if num_cores > 1 and multi:
        return max(multi)
    return max(fit)


def resnet_pointnet_forward(p, params, *, batch_tile=None, num_cores=None):
    B, T, D = p.shape
    # TODO(synk): if T is ever padded to a non-multiple of 8, padded rows must be filled
    # with -inf before the per-cloud max-pool; here we require T % 8 == 0 directly so the
    # (R, H) -> (Bt, T, H) reshapes stay zero-cost relabels (no VMEM copies).
    assert T % 8 == 0, "num_points T must be a multiple of 8"
    if num_cores is None:
        num_cores = _default_num_cores()
    Bt = _pick_batch_tile(B, T, num_cores) if batch_tile is None else batch_tile
    assert B % Bt == 0
    R = Bt * T

    H = params["fc_c_w"].shape[0]
    C = params["fc_c_w"].shape[1]
    bf16 = jnp.bfloat16

    # Flatten weights. MXU-facing weights are cast to bf16 (operands only; accumulation
    # stays f32 in-kernel); biases and the VPU-path fc_pos stay f32. fc0_w / sc_w of
    # blocks 1..4 are split along their 2H input dim ([net | pooled] halves) so the
    # kernel never materializes the concat.
    flat = [params["fc_pos_w"], params["fc_pos_b"]]
    blk = params["block_0"]
    flat += [blk["fc0_w"].astype(bf16), blk["fc0_b"],
             blk["fc1_w"].astype(bf16), blk["fc1_b"],
             blk["sc_w"].astype(bf16)]
    for i in range(1, N_BLOCKS):
        blk = params[f"block_{i}"]
        w0, sc = blk["fc0_w"], blk["sc_w"]
        flat += [w0[:H].astype(bf16), w0[H:].astype(bf16), blk["fc0_b"],
                 blk["fc1_w"].astype(bf16), blk["fc1_b"],
                 sc[:H].astype(bf16), sc[H:].astype(bf16)]
    flat += [params["fc_c_w"].astype(bf16), params["fc_c_b"]]

    # Flatten (B, T) -> rows at the XLA level (free), so the kernel block is a dense
    # (Bt*T, D) slab and no in-kernel reshape of the input is needed.
    p_flat = p.reshape(B * T, D)

    def full_spec(a):  # grid-invariant, resident full-array weight block
        nd = a.ndim
        return pl.BlockSpec(a.shape, lambda b, _nd=nd: (0,) * _nd)

    in_specs = [pl.BlockSpec((R, D), lambda b: (b, 0))]
    in_specs += [full_spec(a) for a in flat]

    # Advisory cost hint for XLA scheduling around the custom call.
    flops = int(2 * B * T * (D * 2 * H + 5 * H * H + N_SPLIT_BLOCKS * 3 * H * H)
                + 2 * B * (N_SPLIT_BLOCKS * 2 * H * H + H * C))
    w_bytes = sum(int(np.prod(a.shape)) * a.dtype.itemsize for a in flat)
    cost = pl.CostEstimate(flops=flops, transcendentals=0,
                           bytes_accessed=int(p.size * 4 + B * C * 4 + w_bytes))

    out = pl.pallas_call(
        resnet_pointnet_kernel,
        out_shape=jax.ShapeDtypeStruct((B, C), jnp.float32),
        grid_spec=pltpu.PrefetchScalarGridSpec(
            num_scalar_prefetch=0,
            grid=(B // Bt,),
            in_specs=in_specs,
            out_specs=pl.BlockSpec((Bt, C), lambda b: (b, 0)),
        ),
        compiler_params=pltpu.CompilerParams(
            dimension_semantics=("parallel",),
            vmem_limit_bytes=_VMEM_LIMIT_BYTES,
        ),
        cost_estimate=cost,
    )(p_flat, *flat)
    return out                                            # (B, C)


# ----------------------------- parameters ------------------------------------

def init_params(key):
    """Deterministic synthetic init (mimics torch Linear uniform(-1/sqrt(fan_in), ...)).

    NOTE: torch's ResnetBlockFC zero-initializes fc_1.weight; here fc_1 gets random
    weights so the test exercises the full path (forward semantics don't depend on init)."""
    def nxt():
        nonlocal key
        key, sub = jax.random.split(key)
        return sub

    def lin(fan_in, fan_out, bias=True):
        s = 1.0 / np.sqrt(fan_in)
        w = jax.random.uniform(nxt(), (fan_in, fan_out), jnp.float32, -s, s)
        b = (jax.random.uniform(nxt(), (1, fan_out), jnp.float32, -s, s)
             if bias else None)
        return w, b

    params = {}
    params["fc_pos_w"], params["fc_pos_b"] = lin(POINT_DIM, 2 * HIDDEN)
    for i in range(N_BLOCKS):
        fc0_w, fc0_b = lin(2 * HIDDEN, HIDDEN)
        fc1_w, fc1_b = lin(HIDDEN, HIDDEN)
        sc_w, _ = lin(2 * HIDDEN, HIDDEN, bias=False)      # shortcut, bias=False
        params[f"block_{i}"] = dict(fc0_w=fc0_w, fc0_b=fc0_b,
                                    fc1_w=fc1_w, fc1_b=fc1_b, sc_w=sc_w)
    params["fc_c_w"], params["fc_c_b"] = lin(HIDDEN, C_DIM)
    return params


# ----------------------------- pure-JAX reference ----------------------------

def reference_forward(p, params, *, mm_dtype=jnp.float32):
    """Pure-JAX reference. mm_dtype=bfloat16 reproduces the kernel's matmul numerics
    (bf16 operands, f32 accumulation); mm_dtype=float32 is the torch-equivalent forward."""
    hi = jax.lax.Precision.HIGHEST

    def linear(x, w, b=None, dtype=None):
        dt = mm_dtype if dtype is None else dtype
        y = jnp.dot(x.astype(dt), w.astype(dt), precision=hi,
                    preferred_element_type=jnp.float32)
        return y + b if b is not None else y

    def resblock(x, blk):
        net = linear(jnp.maximum(x, 0.0), blk["fc0_w"], blk["fc0_b"])
        dx = linear(jnp.maximum(net, 0.0), blk["fc1_w"], blk["fc1_b"])
        return linear(x, blk["sc_w"]) + dx

    # fc_pos is computed in f32 in the kernel (VPU FMA path) -> keep it f32 here too.
    net = linear(p, params["fc_pos_w"], params["fc_pos_b"], dtype=jnp.float32)
    for i in range(N_BLOCKS):
        net = resblock(net, params[f"block_{i}"])
        if i < N_BLOCKS - 1:
            pooled = jnp.max(net, axis=1, keepdims=True)
            pooled = jnp.broadcast_to(pooled, net.shape)
            net = jnp.concatenate([net, pooled], axis=-1)
    net = jnp.max(net, axis=1)
    act = jnp.where(net > 0, net, 0.2 * net)               # LeakyReLU(0.2)
    return linear(act, params["fc_c_w"], params["fc_c_b"])


# ----------------------------- main -------------------------------------------

if __name__ == "__main__":
    key = jax.random.PRNGKey(0)
    k_p, k_w = jax.random.split(key)

    B, T = 8, 64
    p = jax.random.normal(k_p, (B, T, POINT_DIM), jnp.float32)
    params = init_params(k_w)

    out = resnet_pointnet_forward(p, params)
    out = jax.block_until_ready(out)

    # Structural check: reference using the same bf16-operand / f32-accumulate matmuls.
    ref_bf16 = reference_forward(p, params, mm_dtype=jnp.bfloat16)
    np.testing.assert_allclose(np.asarray(out), np.asarray(ref_bf16), rtol=2e-3, atol=2e-3)

    # Fidelity check vs the full-f32 torch-equivalent forward (bf16 rounding accumulated
    # across 5 residual blocks -> loose tolerance).
    ref_f32 = reference_forward(p, params, mm_dtype=jnp.float32)
    np.testing.assert_allclose(np.asarray(out), np.asarray(ref_f32), rtol=5e-2, atol=5e-2)

    print("KERNEL_OK")
</pallas_src>

<mosaic_0001>
module attributes {stable_mosaic.version = 11 : i64} {
  func.func @resnet_pointnet_kernel(%arg0: i32, %arg1: memref<512x3xf32, #tpu.memory_space<vmem>>, %arg2: memref<3x256xf32, #tpu.memory_space<vmem>>, %arg3: memref<1x256xf32, #tpu.memory_space<vmem>>, %arg4: memref<256x128xbf16, #tpu.memory_space<vmem>>, %arg5: memref<1x128xf32, #tpu.memory_space<vmem>>, %arg6: memref<128x128xbf16, #tpu.memory_space<vmem>>, %arg7: memref<1x128xf32, #tpu.memory_space<vmem>>, %arg8: memref<256x128xbf16, #tpu.memory_space<vmem>>, %arg9: memref<128x128xbf16, #tpu.memory_space<vmem>>, %arg10: memref<128x128xbf16, #tpu.memory_space<vmem>>, %arg11: memref<1x128xf32, #tpu.memory_space<vmem>>, %arg12: memref<128x128xbf16, #tpu.memory_space<vmem>>, %arg13: memref<1x128xf32, #tpu.memory_space<vmem>>, %arg14: memref<128x128xbf16, #tpu.memory_space<vmem>>, %arg15: memref<128x128xbf16, #tpu.memory_space<vmem>>, %arg16: memref<128x128xbf16, #tpu.memory_space<vmem>>, %arg17: memref<128x128xbf16, #tpu.memory_space<vmem>>, %arg18: memref<1x128xf32, #tpu.memory_space<vmem>>, %arg19: memref<128x128xbf16, #tpu.memory_space<vmem>>, %arg20: memref<1x128xf32, #tpu.memory_space<vmem>>, %arg21: memref<128x128xbf16, #tpu.memory_space<vmem>>, %arg22: memref<128x128xbf16, #tpu.memory_space<vmem>>, %arg23: memref<128x128xbf16, #tpu.memory_space<vmem>>, %arg24: memref<128x128xbf16, #tpu.memory_space<vmem>>, %arg25: memref<1x128xf32, #tpu.memory_space<vmem>>, %arg26: memref<128x128xbf16, #tpu.memory_space<vmem>>, %arg27: memref<1x128xf32, #tpu.memory_space<vmem>>, %arg28: memref<128x128xbf16, #tpu.memory_space<vmem>>, %arg29: memref<128x128xbf16, #tpu.memory_space<vmem>>, %arg30: memref<128x128xbf16, #tpu.memory_space<vmem>>, %arg31: memref<128x128xbf16, #tpu.memory_space<vmem>>, %arg32: memref<1x128xf32, #tpu.memory_space<vmem>>, %arg33: memref<128x128xbf16, #tpu.memory_space<vmem>>, %arg34: memref<1x128xf32, #tpu.memory_space<vmem>>, %arg35: memref<128x128xbf16, #tpu.memory_space<vmem>>, %arg36: memref<128x128xbf16, #tpu.memory_space<vmem>>, %arg37: memref<128x128xbf16, #tpu.memory_space<vmem>>, %arg38: memref<1x128xf32, #tpu.memory_space<vmem>>, %arg39: memref<8x128xf32, #tpu.memory_space<vmem>>) attributes {dimension_semantics = [#tpu.dimension_semantics<parallel>], iteration_bounds = array<i64: 1>, scalar_prefetch = 0 : i64, scratch_operands = 0 : i64, tpu.core_type = #tpu.core_type<tc>, window_params = [{transform_indices = @transform_0, window_bounds = array<i64: 512, 3>}, {pipeline_mode = #tpu.pipeline_mode<synchronous>, transform_indices = @transform_1, window_bounds = array<i64: 3, 256>}, {pipeline_mode = #tpu.pipeline_mode<synchronous>, transform_indices = @transform_2, window_bounds = array<i64: 1, 256>}, {pipeline_mode = #tpu.pipeline_mode<synchronous>, transform_indices = @transform_3, window_bounds = array<i64: 256, 128>}, {pipeline_mode = #tpu.pipeline_mode<synchronous>, transform_indices = @transform_4, window_bounds = array<i64: 1, 128>}, {pipeline_mode = #tpu.pipeline_mode<synchronous>, transform_indices = @transform_5, window_bounds = array<i64: 128, 128>}, {pipeline_mode = #tpu.pipeline_mode<synchronous>, transform_indices = @transform_6, window_bounds = array<i64: 1, 128>}, {pipeline_mode = #tpu.pipeline_mode<synchronous>, transform_indices = @transform_7, window_bounds = array<i64: 256, 128>}, {pipeline_mode = #tpu.pipeline_mode<synchronous>, transform_indices = @transform_8, window_bounds = array<i64: 128, 128>}, {pipeline_mode = #tpu.pipeline_mode<synchronous>, transform_indices = @transform_9, window_bounds = array<i64: 128, 128>}, {pipeline_mode = #tpu.pipeline_mode<synchronous>, transform_indices = @transform_10, window_bounds = array<i64: 1, 128>}, {pipeline_mode = #tpu.pipeline_mode<synchronous>, transform_indices = @transform_11, window_bounds = array<i64: 128, 128>}, {pipeline_mode = #tpu.pipeline_mode<synchronous>, transform_indices = @transform_12, window_bounds = array<i64: 1, 128>}, {pipeline_mode = #tpu.pipeline_mode<synchronous>, transform_indices = @transform_13, window_bounds = array<i64: 128, 128>}, {pipeline_mode = #tpu.pipeline_mode<synchronous>, transform_indices = @transform_14, window_bounds = array<i64: 128, 128>}, {pipeline_mode = #tpu.pipeline_mode<synchronous>, transform_indices = @transform_15, window_bounds = array<i64: 128, 128>}, {pipeline_mode = #tpu.pipeline_mode<synchronous>, transform_indices = @transform_16, window_bounds = array<i64: 128, 128>}, {pipeline_mode = #tpu.pipeline_mode<synchronous>, transform_indices = @transform_17, window_bounds = array<i64: 1, 128>}, {pipeline_mode = #tpu.pipeline_mode<synchronous>, transform_indices = @transform_18, window_bounds = array<i64: 128, 128>}, {pipeline_mode = #tpu.pipeline_mode<synchronous>, transform_indices = @transform_19, window_bounds = array<i64: 1, 128>}, {pipeline_mode = #tpu.pipeline_mode<synchronous>, transform_indices = @transform_20, window_bounds = array<i64: 128, 128>}, {pipeline_mode = #tpu.pipeline_mode<synchronous>, transform_indices = @transform_21, window_bounds = array<i64: 128, 128>}, {pipeline_mode = #tpu.pipeline_mode<synchronous>, transform_indices = @transform_22, window_bounds = array<i64: 128, 128>}, {pipeline_mode = #tpu.pipeline_mode<synchronous>, transform_indices = @transform_23, window_bounds = array<i64: 128, 128>}, {pipeline_mode = #tpu.pipeline_mode<synchronous>, transform_indices = @transform_24, window_bounds = array<i64: 1, 128>}, {pipeline_mode = #tpu.pipeline_mode<synchronous>, transform_indices = @transform_25, window_bounds = array<i64: 128, 128>}, {pipeline_mode = #tpu.pipeline_mode<synchronous>, transform_indices = @transform_26, window_bounds = array<i64: 1, 128>}, {pipeline_mode = #tpu.pipeline_mode<synchronous>, transform_indices = @transform_27, window_bounds = array<i64: 128, 128>}, {pipeline_mode = #tpu.pipeline_mode<synchronous>, transform_indices = @transform_28, window_bounds = array<i64: 128, 128>}, {pipeline_mode = #tpu.pipeline_mode<synchronous>, transform_indices = @transform_29, window_bounds = array<i64: 128, 128>}, {pipeline_mode = #tpu.pipeline_mode<synchronous>, transform_indices = @transform_30, window_bounds = array<i64: 128, 128>}, {pipeline_mode = #tpu.pipeline_mode<synchronous>, transform_indices = @transform_31, window_bounds = array<i64: 1, 128>}, {pipeline_mode = #tpu.pipeline_mode<synchronous>, transform_indices = @transform_32, window_bounds = array<i64: 128, 128>}, {pipeline_mode = #tpu.pipeline_mode<synchronous>, transform_indices = @transform_33, window_bounds = array<i64: 1, 128>}, {pipeline_mode = #tpu.pipeline_mode<synchronous>, transform_indices = @transform_34, window_bounds = array<i64: 128, 128>}, {pipeline_mode = #tpu.pipeline_mode<synchronous>, transform_indices = @transform_35, window_bounds = array<i64: 128, 128>}, {pipeline_mode = #tpu.pipeline_mode<synchronous>, transform_indices = @transform_36, window_bounds = array<i64: 128, 128>}, {pipeline_mode = #tpu.pipeline_mode<synchronous>, transform_indices = @transform_37, window_bounds = array<i64: 1, 128>}, {transform_indices = @transform_38, window_bounds = array<i64: 8, 128>}]} {
    %c0 = arith.constant 0 : index
    %c0_0 = arith.constant 0 : index
    %0 = vector.load %arg1[%c0, %c0_0] : memref<512x3xf32, #tpu.memory_space<vmem>>, vector<512x3xf32>
    %c0_1 = arith.constant 0 : index
    %c0_2 = arith.constant 0 : index
    %1 = vector.load %arg2[%c0_1, %c0_2] : memref<3x256xf32, #tpu.memory_space<vmem>>, vector<3x256xf32>
    %c0_3 = arith.constant 0 : index
    %c0_4 = arith.constant 0 : index
    %2 = vector.load %arg3[%c0_3, %c0_4] : memref<1x256xf32, #tpu.memory_space<vmem>>, vector<1x256xf32>
    %3 = vector.extract_strided_slice %0 {offsets = [0, 0], sizes = [512, 1], strides = [1, 1]} : vector<512x3xf32> to vector<512x1xf32>
    %4 = vector.extract_strided_slice %1 {offsets = [0, 0], sizes = [1, 256], strides = [1, 1]} : vector<3x256xf32> to vector<1x256xf32>
    %5 = vector.broadcast %3 : vector<512x1xf32> to vector<512x256xf32>
    %6 = vector.broadcast %4 : vector<1x256xf32> to vector<512x256xf32>
    %7 = arith.mulf %5, %6 : vector<512x256xf32>
    %8 = vector.broadcast %2 : vector<1x256xf32> to vector<512x256xf32>
    %9 = arith.addf %8, %7 : vector<512x256xf32>
    %10 = vector.extract_strided_slice %0 {offsets = [0, 1], sizes = [512, 1], strides = [1, 1]} : vector<512x3xf32> to vector<512x1xf32>
    %11 = vector.extract_strided_slice %1 {offsets = [1, 0], sizes = [1, 256], strides = [1, 1]} : vector<3x256xf32> to vector<1x256xf32>
    %12 = vector.broadcast %10 : vector<512x1xf32> to vector<512x256xf32>
    %13 = vector.broadcast %11 : vector<1x256xf32> to vector<512x256xf32>
    %14 = arith.mulf %12, %13 : vector<512x256xf32>
    %15 = arith.addf %9, %14 : vector<512x256xf32>
    %16 = vector.extract_strided_slice %0 {offsets = [0, 2], sizes = [512, 1], strides = [1, 1]} : vector<512x3xf32> to vector<512x1xf32>
    %17 = vector.extract_strided_slice %1 {offsets = [2, 0], sizes = [1, 256], strides = [1, 1]} : vector<3x256xf32> to vector<1x256xf32>
    %18 = vector.broadcast %16 : vector<512x1xf32> to vector<512x256xf32>
    %19 = vector.broadcast %17 : vector<1x256xf32> to vector<512x256xf32>
    %20 = arith.mulf %18, %19 : vector<512x256xf32>
    %21 = arith.addf %15, %20 : vector<512x256xf32>
    %cst = arith.constant 0.000000e+00 : f32
    %22 = vector.broadcast %cst : f32 to vector<512x256xf32>
    %23 = arith.maximumf %21, %22 : vector<512x256xf32>
    %24 = arith.truncf %23 : vector<512x256xf32> to vector<512x256xbf16>
    %c0_5 = arith.constant 0 : index
    %c0_6 = arith.constant 0 : index
    %25 = vector.load %arg4[%c0_5, %c0_6] : memref<256x128xbf16, #tpu.memory_space<vmem>>, vector<256x128xbf16>
    %cst_7 = arith.constant dense<0.000000e+00> : vector<512x128xf32>
    %26 = tpu.matmul %24, %25, %cst_7 {dimension_numbers = #tpu.dot_dimension_numbers<[1], [0], [0], [1], [0, 0, 1, 1], [], []>} : vector<512x256xbf16>, vector<256x128xbf16>, vector<512x128xf32> -> vector<512x128xf32>
    %c0_8 = arith.constant 0 : index
    %c0_9 = arith.constant 0 : index
    %27 = vector.load %arg5[%c0_8, %c0_9] : memref<1x128xf32, #tpu.memory_space<vmem>>, vector<1x128xf32>
    %28 = vector.broadcast %27 : vector<1x128xf32> to vector<512x128xf32>
    %29 = arith.addf %26, %28 : vector<512x128xf32>
    %cst_10 = arith.constant 0.000000e+00 : f32
    %30 = vector.broadcast %cst_10 : f32 to vector<512x128xf32>
    %31 = arith.maximumf %29, %30 : vector<512x128xf32>
    %32 = arith.truncf %31 : vector<512x128xf32> to vector<512x128xbf16>
    %c0_11 = arith.constant 0 : index
    %c0_12 = arith.constant 0 : index
    %33 = vector.load %arg6[%c0_11, %c0_12] : memref<128x128xbf16, #tpu.memory_space<vmem>>, vector<128x128xbf16>
    %cst_13 = arith.constant dense<0.000000e+00> : vector<512x128xf32>
    %34 = tpu.matmul %32, %33, %cst_13 {dimension_numbers = #tpu.dot_dimension_numbers<[1], [0], [0], [1], [0, 0, 1, 1], [], []>} : vector<512x128xbf16>, vector<128x128xbf16>, vector<512x128xf32> -> vector<512x128xf32>
    %c0_14 = arith.constant 0 : index
    %c0_15 = arith.constant 0 : index
    %35 = vector.load %arg7[%c0_14, %c0_15] : memref<1x128xf32, #tpu.memory_space<vmem>>, vector<1x128xf32>
    %36 = vector.broadcast %35 : vector<1x128xf32> to vector<512x128xf32>
    %37 = arith.addf %34, %36 : vector<512x128xf32>
    %38 = arith.truncf %21 : vector<512x256xf32> to vector<512x256xbf16>
    %c0_16 = arith.constant 0 : index
    %c0_17 = arith.constant 0 : index
    %39 = vector.load %arg8[%c0_16, %c0_17] : memref<256x128xbf16, #tpu.memory_space<vmem>>, vector<256x128xbf16>
    %cst_18 = arith.constant dense<0.000000e+00> : vector<512x128xf32>
    %40 = tpu.matmul %38, %39, %cst_18 {dimension_numbers = #tpu.dot_dimension_numbers<[1], [0], [0], [1], [0, 0, 1, 1], [], []>} : vector<512x256xbf16>, vector<256x128xbf16>, vector<512x128xf32> -> vector<512x128xf32>
    %41 = arith.addf %40, %37 : vector<512x128xf32>
    %42 = vector.shape_cast %41 : vector<512x128xf32> to vector<8x64x128xf32>
    %cst_19 = arith.constant dense<0xFF800000> : vector<8x128xf32>
    %43 = vector.multi_reduction <maximumf>, %42, %cst_19 [1] : vector<8x64x128xf32> to vector<8x128xf32>
    %cst_20 = arith.constant 0.000000e+00 : f32
    %44 = vector.broadcast %cst_20 : f32 to vector<512x128xf32>
    %45 = arith.maximumf %41, %44 : vector<512x128xf32>
    %cst_21 = arith.constant 0.000000e+00 : f32
    %46 = vector.broadcast %cst_21 : f32 to vector<8x128xf32>
    %47 = arith.maximumf %43, %46 : vector<8x128xf32>
    %48 = arith.truncf %45 : vector<512x128xf32> to vector<512x128xbf16>
    %c0_22 = arith.constant 0 : index
    %c0_23 = arith.constant 0 : index
    %49 = vector.load %arg9[%c0_22, %c0_23] : memref<128x128xbf16, #tpu.memory_space<vmem>>, vector<128x128xbf16>
    %cst_24 = arith.constant dense<0.000000e+00> : vector<512x128xf32>
    %50 = tpu.matmul %48, %49, %cst_24 {dimension_numbers = #tpu.dot_dimension_numbers<[1], [0], [0], [1], [0, 0, 1, 1], [], []>} : vector<512x128xbf16>, vector<128x128xbf16>, vector<512x128xf32> -> vector<512x128xf32>
    %c0_25 = arith.constant 0 : index
    %c0_26 = arith.constant 0 : index
    %51 = vector.load %arg11[%c0_25, %c0_26] : memref<1x128xf32, #tpu.memory_space<vmem>>, vector<1x128xf32>
    %52 = vector.broadcast %51 : vector<1x128xf32> to vector<512x128xf32>
    %53 = arith.addf %50, %52 : vector<512x128xf32>
    %54 = arith.truncf %47 : vector<8x128xf32> to vector<8x128xbf16>
    %c0_27 = arith.constant 0 : index
    %c0_28 = arith.constant 0 : index
    %55 = vector.load %arg10[%c0_27, %c0_28] : memref<128x128xbf16, #tpu.memory_space<vmem>>, vector<128x128xbf16>
    %cst_29 = arith.constant dense<0.000000e+00> : vector<8x128xf32>
    %56 = tpu.matmul %54, %55, %cst_29 {dimension_numbers = #tpu.dot_dimension_numbers<[1], [0], [0], [1], [0, 0, 1, 1], [], []>} : vector<8x128xbf16>, vector<128x128xbf16>, vector<8x128xf32> -> vector<8x128xf32>
    %57 = vector.shape_cast %53 : vector<512x128xf32> to vector<8x64x128xf32>
    %58 = vector.shape_cast %56 : vector<8x128xf32> to vector<8x1x128xf32>
    %59 = vector.broadcast %58 : vector<8x1x128xf32> to vector<8x64x128xf32>
    %60 = arith.addf %57, %59 : vector<8x64x128xf32>
    %61 = vector.shape_cast %60 : vector<8x64x128xf32> to vector<512x128xf32>
    %cst_30 = arith.constant 0.000000e+00 : f32
    %62 = vector.broadcast %cst_30 : f32 to vector<512x128xf32>
    %63 = arith.maximumf %61, %62 : vector<512x128xf32>
    %64 = arith.truncf %63 : vector<512x128xf32> to vector<512x128xbf16>
    %c0_31 = arith.constant 0 : index
    %c0_32 = arith.constant 0 : index
    %65 = vector.load %arg12[%c0_31, %c0_32] : memref<128x128xbf16, #tpu.memory_space<vmem>>, vector<128x128xbf16>
    %cst_33 = arith.constant dense<0.000000e+00> : vector<512x128xf32>
    %66 = tpu.matmul %64, %65, %cst_33 {dimension_numbers = #tpu.dot_dimension_numbers<[1], [0], [0], [1], [0, 0, 1, 1], [], []>} : vector<512x128xbf16>, vector<128x128xbf16>, vector<512x128xf32> -> vector<512x128xf32>
    %c0_34 = arith.constant 0 : index
    %c0_35 = arith.constant 0 : index
    %67 = vector.load %arg13[%c0_34, %c0_35] : memref<1x128xf32, #tpu.memory_space<vmem>>, vector<1x128xf32>
    %68 = vector.broadcast %67 : vector<1x128xf32> to vector<512x128xf32>
    %69 = arith.addf %66, %68 : vector<512x128xf32>
    %70 = arith.truncf %41 : vector<512x128xf32> to vector<512x128xbf16>
    %c0_36 = arith.constant 0 : index
    %c0_37 = arith.constant 0 : index
    %71 = vector.load %arg14[%c0_36, %c0_37] : memref<128x128xbf16, #tpu.memory_space<vmem>>, vector<128x128xbf16>
    %cst_38 = arith.constant dense<0.000000e+00> : vector<512x128xf32>
    %72 = tpu.matmul %70, %71, %cst_38 {dimension_numbers = #tpu.dot_dimension_numbers<[1], [0], [0], [1], [0, 0, 1, 1], [], []>} : vector<512x128xbf16>, vector<128x128xbf16>, vector<512x128xf32> -> vector<512x128xf32>
    %73 = arith.truncf %43 : vector<8x128xf32> to vector<8x128xbf16>
    %c0_39 = arith.constant 0 : index
    %c0_40 = arith.constant 0 : index
    %74 = vector.load %arg15[%c0_39, %c0_40] : memref<128x128xbf16, #tpu.memory_space<vmem>>, vector<128x128xbf16>
    %cst_41 = arith.constant dense<0.000000e+00> : vector<8x128xf32>
    %75 = tpu.matmul %73, %74, %cst_41 {dimension_numbers = #tpu.dot_dimension_numbers<[1], [0], [0], [1], [0, 0, 1, 1], [], []>} : vector<8x128xbf16>, vector<128x128xbf16>, vector<8x128xf32> -> vector<8x128xf32>
    %76 = vector.shape_cast %72 : vector<512x128xf32> to vector<8x64x128xf32>
    %77 = vector.shape_cast %75 : vector<8x128xf32> to vector<8x1x128xf32>
    %78 = vector.broadcast %77 : vector<8x1x128xf32> to vector<8x64x128xf32>
    %79 = arith.addf %76, %78 : vector<8x64x128xf32>
    %80 = vector.shape_cast %79 : vector<8x64x128xf32> to vector<512x128xf32>
    %81 = arith.addf %80, %69 : vector<512x128xf32>
    %82 = vector.shape_cast %81 : vector<512x128xf32> to vector<8x64x128xf32>
    %cst_42 = arith.constant dense<0xFF800000> : vector<8x128xf32>
    %83 = vector.multi_reduction <maximumf>, %82, %cst_42 [1] : vector<8x64x128xf32> to vector<8x128xf32>
    %cst_43 = arith.constant 0.000000e+00 : f32
    %84 = vector.broadcast %cst_43 : f32 to vector<512x128xf32>
    %85 = arith.maximumf %81, %84 : vector<512x128xf32>
    %cst_44 = arith.constant 0.000000e+00 : f32
    %86 = vector.broadcast %cst_44 : f32 to vector<8x128xf32>
    %87 = arith.maximumf %83, %86 : vector<8x128xf32>
    %88 = arith.truncf %85 : vector<512x128xf32> to vector<512x128xbf16>
    %c0_45 = arith.constant 0 : index
    %c0_46 = arith.constant 0 : index
    %89 = vector.load %arg16[%c0_45, %c0_46] : memref<128x128xbf16, #tpu.memory_space<vmem>>, vector<128x128xbf16>
    %cst_47 = arith.constant dense<0.000000e+00> : vector<512x128xf32>
    %90 = tpu.matmul %88, %89, %cst_47 {dimension_numbers = #tpu.dot_dimension_numbers<[1], [0], [0], [1], [0, 0, 1, 1], [], []>} : vector<512x128xbf16>, vector<128x128xbf16>, vector<512x128xf32> -> vector<512x128xf32>
    %c0_48 = arith.constant 0 : index
    %c0_49 = arith.constant 0 : index
    %91 = vector.load %arg18[%c0_48, %c0_49] : memref<1x128xf32, #tpu.memory_space<vmem>>, vector<1x128xf32>
    %92 = vector.broadcast %91 : vector<1x128xf32> to vector<512x128xf32>
    %93 = arith.addf %90, %92 : vector<512x128xf32>
    %94 = arith.truncf %87 : vector<8x128xf32> to vector<8x128xbf16>
    %c0_50 = arith.constant 0 : index
    %c0_51 = arith.constant 0 : index
    %95 = vector.load %arg17[%c0_50, %c0_51] : memref<128x128xbf16, #tpu.memory_space<vmem>>, vector<128x128xbf16>
    %cst_52 = arith.constant dense<0.000000e+00> : vector<8x128xf32>
    %96 = tpu.matmul %94, %95, %cst_52 {dimension_numbers = #tpu.dot_dimension_numbers<[1], [0], [0], [1], [0, 0, 1, 1], [], []>} : vector<8x128xbf16>, vector<128x128xbf16>, vector<8x128xf32> -> vector<8x128xf32>
    %97 = vector.shape_cast %93 : vector<512x128xf32> to vector<8x64x128xf32>
    %98 = vector.shape_cast %96 : vector<8x128xf32> to vector<8x1x128xf32>
    %99 = vector.broadcast %98 : vector<8x1x128xf32> to vector<8x64x128xf32>
    %100 = arith.addf %97, %99 : vector<8x64x128xf32>
    %101 = vector.shape_cast %100 : vector<8x64x128xf32> to vector<512x128xf32>
    %cst_53 = arith.constant 0.000000e+00 : f32
    %102 = vector.broadcast %cst_53 : f32 to vector<512x128xf32>
    %103 = arith.maximumf %101, %102 : vector<512x128xf32>
    %104 = arith.truncf %103 : vector<512x128xf32> to vector<512x128xbf16>
    %c0_54 = arith.constant 0 : index
    %c0_55 = arith.constant 0 : index
    %105 = vector.load %arg19[%c0_54, %c0_55] : memref<128x128xbf16, #tpu.memory_space<vmem>>, vector<128x128xbf16>
    %cst_56 = arith.constant dense<0.000000e+00> : vector<512x128xf32>
    %106 = tpu.matmul %104, %105, %cst_56 {dimension_numbers = #tpu.dot_dimension_numbers<[1], [0], [0], [1], [0, 0, 1, 1], [], []>} : vector<512x128xbf16>, vector<128x128xbf16>, vector<512x128xf32> -> vector<512x128xf32>
    %c0_57 = arith.constant 0 : index
    %c0_58 = arith.constant 0 : index
    %107 = vector.load %arg20[%c0_57, %c0_58] : memref<1x128xf32, #tpu.memory_space<vmem>>, vector<1x128xf32>
    %108 = vector.broadcast %107 : vector<1x128xf32> to vector<512x128xf32>
    %109 = arith.addf %106, %108 : vector<512x128xf32>
    %110 = arith.truncf %81 : vector<512x128xf32> to vector<512x128xbf16>
    %c0_59 = arith.constant 0 : index
    %c0_60 = arith.constant 0 : index
    %111 = vector.load %arg21[%c0_59, %c0_60] : memref<128x128xbf16, #tpu.memory_space<vmem>>, vector<128x128xbf16>
    %cst_61 = arith.constant dense<0.000000e+00> : vector<512x128xf32>
    %112 = tpu.matmul %110, %111, %cst_61 {dimension_numbers = #tpu.dot_dimension_numbers<[1], [0], [0], [1], [0, 0, 1, 1], [], []>} : vector<512x128xbf16>, vector<128x128xbf16>, vector<512x128xf32> -> vector<512x128xf32>
    %113 = arith.truncf %83 : vector<8x128xf32> to vector<8x128xbf16>
    %c0_62 = arith.constant 0 : index
    %c0_63 = arith.constant 0 : index
    %114 = vector.load %arg22[%c0_62, %c0_63] : memref<128x128xbf16, #tpu.memory_space<vmem>>, vector<128x128xbf16>
    %cst_64 = arith.constant dense<0.000000e+00> : vector<8x128xf32>
    %115 = tpu.matmul %113, %114, %cst_64 {dimension_numbers = #tpu.dot_dimension_numbers<[1], [0], [0], [1], [0, 0, 1, 1], [], []>} : vector<8x128xbf16>, vector<128x128xbf16>, vector<8x128xf32> -> vector<8x128xf32>
    %116 = vector.shape_cast %112 : vector<512x128xf32> to vector<8x64x128xf32>
    %117 = vector.shape_cast %115 : vector<8x128xf32> to vector<8x1x128xf32>
    %118 = vector.broadcast %117 : vector<8x1x128xf32> to vector<8x64x128xf32>
    %119 = arith.addf %116, %118 : vector<8x64x128xf32>
    %120 = vector.shape_cast %119 : vector<8x64x128xf32> to vector<512x128xf32>
    %121 = arith.addf %120, %109 : vector<512x128xf32>
    %122 = vector.shape_cast %121 : vector<512x128xf32> to vector<8x64x128xf32>
    %cst_65 = arith.constant dense<0xFF800000> : vector<8x128xf32>
    %123 = vector.multi_reduction <maximumf>, %122, %cst_65 [1] : vector<8x64x128xf32> to vector<8x128xf32>
    %cst_66 = arith.constant 0.000000e+00 : f32
    %124 = vector.broadcast %cst_66 : f32 to vector<512x128xf32>
    %125 = arith.maximumf %121, %124 : vector<512x128xf32>
    %cst_67 = arith.constant 0.000000e+00 : f32
    %126 = vector.broadcast %cst_67 : f32 to vector<8x128xf32>
    %127 = arith.maximumf %123, %126 : vector<8x128xf32>
    %128 = arith.truncf %125 : vector<512x128xf32> to vector<512x128xbf16>
    %c0_68 = arith.constant 0 : index
    %c0_69 = arith.constant 0 : index
    %129 = vector.load %arg23[%c0_68, %c0_69] : memref<128x128xbf16, #tpu.memory_space<vmem>>, vector<128x128xbf16>
    %cst_70 = arith.constant dense<0.000000e+00> : vector<512x128xf32>
    %130 = tpu.matmul %128, %129, %cst_70 {dimension_numbers = #tpu.dot_dimension_numbers<[1], [0], [0], [1], [0, 0, 1, 1], [], []>} : vector<512x128xbf16>, vector<128x128xbf16>, vector<512x128xf32> -> vector<512x128xf32>
    %c0_71 = arith.constant 0 : index
    %c0_72 = arith.constant 0 : index
    %131 = vector.load %arg25[%c0_71, %c0_72] : memref<1x128xf32, #tpu.memory_space<vmem>>, vector<1x128xf32>
    %132 = vector.broadcast %131 : vector<1x128xf32> to vector<512x128xf32>
    %133 = arith.addf %130, %132 : vector<512x128xf32>
    %134 = arith.truncf %127 : vector<8x128xf32> to vector<8x128xbf16>
    %c0_73 = arith.constant 0 : index
    %c0_74 = arith.constant 0 : index
    %135 = vector.load %arg24[%c0_73, %c0_74] : memref<128x128xbf16, #tpu.memory_space<vmem>>, vector<128x128xbf16>
    %cst_75 = arith.constant dense<0.000000e+00> : vector<8x128xf32>
    %136 = tpu.matmul %134, %135, %cst_75 {dimension_numbers = #tpu.dot_dimension_numbers<[1], [0], [0], [1], [0, 0, 1, 1], [], []>} : vector<8x128xbf16>, vector<128x128xbf16>, vector<8x128xf32> -> vector<8x128xf32>
    %137 = vector.shape_cast %133 : vector<512x128xf32> to vector<8x64x128xf32>
    %138 = vector.shape_cast %136 : vector<8x128xf32> to vector<8x1x128xf32>
    %139 = vector.broadcast %138 : vector<8x1x128xf32> to vector<8x64x128xf32>
    %140 = arith.addf %137, %139 : vector<8x64x128xf32>
    %141 = vector.shape_cast %140 : vector<8x64x128xf32> to vector<512x128xf32>
    %cst_76 = arith.constant 0.000000e+00 : f32
    %142 = vector.broadcast %cst_76 : f32 to vector<512x128xf32>
    %143 = arith.maximumf %141, %142 : vector<512x128xf32>
    %144 = arith.truncf %143 : vector<512x128xf32> to vector<512x128xbf16>
    %c0_77 = arith.constant 0 : index
    %c0_78 = arith.constant 0 : index
    %145 = vector.load %arg26[%c0_77, %c0_78] : memref<128x128xbf16, #tpu.memory_space<vmem>>, vector<128x128xbf16>
    %cst_79 = arith.constant dense<0.000000e+00> : vector<512x128xf32>
    %146 = tpu.matmul %144, %145, %cst_79 {dimension_numbers = #tpu.dot_dimension_numbers<[1], [0], [0], [1], [0, 0, 1, 1], [], []>} : vector<512x128xbf16>, vector<128x128xbf16>, vector<512x128xf32> -> vector<512x128xf32>
    %c0_80 = arith.constant 0 : index
    %c0_81 = arith.constant 0 : index
    %147 = vector.load %arg27[%c0_80, %c0_81] : memref<1x128xf32, #tpu.memory_space<vmem>>, vector<1x128xf32>
    %148 = vector.broadcast %147 : vector<1x128xf32> to vector<512x128xf32>
    %149 = arith.addf %146, %148 : vector<512x128xf32>
    %150 = arith.truncf %121 : vector<512x128xf32> to vector<512x128xbf16>
    %c0_82 = arith.constant 0 : index
    %c0_83 = arith.constant 0 : index
    %151 = vector.load %arg28[%c0_82, %c0_83] : memref<128x128xbf16, #tpu.memory_space<vmem>>, vector<128x128xbf16>
    %cst_84 = arith.constant dense<0.000000e+00> : vector<512x128xf32>
    %152 = tpu.matmul %150, %151, %cst_84 {dimension_numbers = #tpu.dot_dimension_numbers<[1], [0], [0], [1], [0, 0, 1, 1], [], []>} : vector<512x128xbf16>, vector<128x128xbf16>, vector<512x128xf32> -> vector<512x128xf32>
    %153 = arith.truncf %123 : vector<8x128xf32> to vector<8x128xbf16>
    %c0_85 = arith.constant 0 : index
    %c0_86 = arith.constant 0 : index
    %154 = vector.load %arg29[%c0_85, %c0_86] : memref<128x128xbf16, #tpu.memory_space<vmem>>, vector<128x128xbf16>
    %cst_87 = arith.constant dense<0.000000e+00> : vector<8x128xf32>
    %155 = tpu.matmul %153, %154, %cst_87 {dimension_numbers = #tpu.dot_dimension_numbers<[1], [0], [0], [1], [0, 0, 1, 1], [], []>} : vector<8x128xbf16>, vector<128x128xbf16>, vector<8x128xf32> -> vector<8x128xf32>
    %156 = vector.shape_cast %152 : vector<512x128xf32> to vector<8x64x128xf32>
    %157 = vector.shape_cast %155 : vector<8x128xf32> to vector<8x1x128xf32>
    %158 = vector.broadcast %157 : vector<8x1x128xf32> to vector<8x64x128xf32>
    %159 = arith.addf %156, %158 : vector<8x64x128xf32>
    %160 = vector.shape_cast %159 : vector<8x64x128xf32> to vector<512x128xf32>
    %161 = arith.addf %160, %149 : vector<512x128xf32>
    %162 = vector.shape_cast %161 : vector<512x128xf32> to vector<8x64x128xf32>
    %cst_88 = arith.constant dense<0xFF800000> : vector<8x128xf32>
    %163 = vector.multi_reduction <maximumf>, %162, %cst_88 [1] : vector<8x64x128xf32> to vector<8x128xf32>
    %cst_89 = arith.constant 0.000000e+00 : f32
    %164 = vector.broadcast %cst_89 : f32 to vector<512x128xf32>
    %165 = arith.maximumf %161, %164 : vector<512x128xf32>
    %cst_90 = arith.constant 0.000000e+00 : f32
    %166 = vector.broadcast %cst_90 : f32 to vector<8x128xf32>
    %167 = arith.maximumf %163, %166 : vector<8x128xf32>
    %168 = arith.truncf %165 : vector<512x128xf32> to vector<512x128xbf16>
    %c0_91 = arith.constant 0 : index
    %c0_92 = arith.constant 0 : index
    %169 = vector.load %arg30[%c0_91, %c0_92] : memref<128x128xbf16, #tpu.memory_space<vmem>>, vector<128x128xbf16>
    %cst_93 = arith.constant dense<0.000000e+00> : vector<512x128xf32>
    %170 = tpu.matmul %168, %169, %cst_93 {dimension_numbers = #tpu.dot_dimension_numbers<[1], [0], [0], [1], [0, 0, 1, 1], [], []>} : vector<512x128xbf16>, vector<128x128xbf16>, vector<512x128xf32> -> vector<512x128xf32>
    %c0_94 = arith.constant 0 : index
    %c0_95 = arith.constant 0 : index
    %171 = vector.load %arg32[%c0_94, %c0_95] : memref<1x128xf32, #tpu.memory_space<vmem>>, vector<1x128xf32>
    %172 = vector.broadcast %171 : vector<1x128xf32> to vector<512x128xf32>
    %173 = arith.addf %170, %172 : vector<512x128xf32>
    %174 = arith.truncf %167 : vector<8x128xf32> to vector<8x128xbf16>
    %c0_96 = arith.constant 0 : index
    %c0_97 = arith.constant 0 : index
    %175 = vector.load %arg31[%c0_96, %c0_97] : memref<128x128xbf16, #tpu.memory_space<vmem>>, vector<128x128xbf16>
    %cst_98 = arith.constant dense<0.000000e+00> : vector<8x128xf32>
    %176 = tpu.matmul %174, %175, %cst_98 {dimension_numbers = #tpu.dot_dimension_numbers<[1], [0], [0], [1], [0, 0, 1, 1], [], []>} : vector<8x128xbf16>, vector<128x128xbf16>, vector<8x128xf32> -> vector<8x128xf32>
    %177 = vector.shape_cast %173 : vector<512x128xf32> to vector<8x64x128xf32>
    %178 = vector.shape_cast %176 : vector<8x128xf32> to vector<8x1x128xf32>
    %179 = vector.broadcast %178 : vector<8x1x128xf32> to vector<8x64x128xf32>
    %180 = arith.addf %177, %179 : vector<8x64x128xf32>
    %181 = vector.shape_cast %180 : vector<8x64x128xf32> to vector<512x128xf32>
    %cst_99 = arith.constant 0.000000e+00 : f32
    %182 = vector.broadcast %cst_99 : f32 to vector<512x128xf32>
    %183 = arith.maximumf %181, %182 : vector<512x128xf32>
    %184 = arith.truncf %183 : vector<512x128xf32> to vector<512x128xbf16>
    %c0_100 = arith.constant 0 : index
    %c0_101 = arith.constant 0 : index
    %185 = vector.load %arg33[%c0_100, %c0_101] : memref<128x128xbf16, #tpu.memory_space<vmem>>, vector<128x128xbf16>
    %cst_102 = arith.constant dense<0.000000e+00> : vector<512x128xf32>
    %186 = tpu.matmul %184, %185, %cst_102 {dimension_numbers = #tpu.dot_dimension_numbers<[1], [0], [0], [1], [0, 0, 1, 1], [], []>} : vector<512x128xbf16>, vector<128x128xbf16>, vector<512x128xf32> -> vector<512x128xf32>
    %c0_103 = arith.constant 0 : index
    %c0_104 = arith.constant 0 : index
    %187 = vector.load %arg34[%c0_103, %c0_104] : memref<1x128xf32, #tpu.memory_space<vmem>>, vector<1x128xf32>
    %188 = vector.broadcast %187 : vector<1x128xf32> to vector<512x128xf32>
    %189 = arith.addf %186, %188 : vector<512x128xf32>
    %190 = arith.truncf %161 : vector<512x128xf32> to vector<512x128xbf16>
    %c0_105 = arith.constant 0 : index
    %c0_106 = arith.constant 0 : index
    %191 = vector.load %arg35[%c0_105, %c0_106] : memref<128x128xbf16, #tpu.memory_space<vmem>>, vector<128x128xbf16>
    %cst_107 = arith.constant dense<0.000000e+00> : vector<512x128xf32>
    %192 = tpu.matmul %190, %191, %cst_107 {dimension_numbers = #tpu.dot_dimension_numbers<[1], [0], [0], [1], [0, 0, 1, 1], [], []>} : vector<512x128xbf16>, vector<128x128xbf16>, vector<512x128xf32> -> vector<512x128xf32>
    %193 = arith.truncf %163 : vector<8x128xf32> to vector<8x128xbf16>
    %c0_108 = arith.constant 0 : index
    %c0_109 = arith.constant 0 : index
    %194 = vector.load %arg36[%c0_108, %c0_109] : memref<128x128xbf16, #tpu.memory_space<vmem>>, vector<128x128xbf16>
    %cst_110 = arith.constant dense<0.000000e+00> : vector<8x128xf32>
    %195 = tpu.matmul %193, %194, %cst_110 {dimension_numbers = #tpu.dot_dimension_numbers<[1], [0], [0], [1], [0, 0, 1, 1], [], []>} : vector<8x128xbf16>, vector<128x128xbf16>, vector<8x128xf32> -> vector<8x128xf32>
    %196 = vector.shape_cast %192 : vector<512x128xf32> to vector<8x64x128xf32>
    %197 = vector.shape_cast %195 : vector<8x128xf32> to vector<8x1x128xf32>
    %198 = vector.broadcast %197 : vector<8x1x128xf32> to vector<8x64x128xf32>
    %199 = arith.addf %196, %198 : vector<8x64x128xf32>
    %200 = vector.shape_cast %199 : vector<8x64x128xf32> to vector<512x128xf32>
    %201 = arith.addf %200, %189 : vector<512x128xf32>
    %202 = vector.shape_cast %201 : vector<512x128xf32> to vector<8x64x128xf32>
    %cst_111 = arith.constant dense<0xFF800000> : vector<8x128xf32>
    %203 = vector.multi_reduction <maximumf>, %202, %cst_111 [1] : vector<8x64x128xf32> to vector<8x128xf32>
    %cst_112 = arith.constant 0.000000e+00 : f32
    %204 = vector.broadcast %cst_112 : f32 to vector<8x128xf32>
    %205 = arith.cmpf ogt, %203, %204 : vector<8x128xf32>
    %cst_113 = arith.constant 2.000000e-01 : f32
    %206 = vector.broadcast %cst_113 : f32 to vector<8x128xf32>
    %207 = arith.mulf %206, %203 : vector<8x128xf32>
    %208 = arith.select %205, %203, %207 : vector<8x128xi1>, vector<8x128xf32>
    %209 = arith.truncf %208 : vector<8x128xf32> to vector<8x128xbf16>
    %c0_114 = arith.constant 0 : index
    %c0_115 = arith.constant 0 : index
    %210 = vector.load %arg37[%c0_114, %c0_115] : memref<128x128xbf16, #tpu.memory_space<vmem>>, vector<128x128xbf16>
    %cst_116 = arith.constant dense<0.000000e+00> : vector<8x128xf32>
    %211 = tpu.matmul %209, %210, %cst_116 {dimension_numbers = #tpu.dot_dimension_numbers<[1], [0], [0], [1], [0, 0, 1, 1], [], []>} : vector<8x128xbf16>, vector<128x128xbf16>, vector<8x128xf32> -> vector<8x128xf32>
    %c0_117 = arith.constant 0 : index
    %c0_118 = arith.constant 0 : index
    %212 = vector.load %arg38[%c0_117, %c0_118] : memref<1x128xf32, #tpu.memory_space<vmem>>, vector<1x128xf32>
    %213 = vector.broadcast %212 : vector<1x128xf32> to vector<8x128xf32>
    %214 = arith.addf %211, %213 : vector<8x128xf32>
    %c0_119 = arith.constant 0 : index
    %c0_120 = arith.constant 0 : index
    %215 = vector.load %arg39[%c0_119, %c0_120] : memref<8x128xf32, #tpu.memory_space<vmem>>, vector<8x128xf32>
    tpu.vector_store %arg39[%c0_119, %c0_120], %214 {strides = array<i32>} : memref<8x128xf32, #tpu.memory_space<vmem>>, vector<8x128xf32>,
    return
  }
  func.func @transform_0(%arg0: i32) -> (i32, i32) {
    %c0_i32 = arith.constant 0 : i32
    %c0_i32_0 = arith.constant 0 : i32
    return %arg0, %c0_i32 : i32, i32
  }
  func.func @transform_1(%arg0: i32) -> (i32, i32) {
    %c0_i32 = arith.constant 0 : i32
    %c0_i32_0 = arith.constant 0 : i32
    %c0_i32_1 = arith.constant 0 : i32
    return %c0_i32, %c0_i32_0 : i32, i32
  }
  func.func @transform_2(%arg0: i32) -> (i32, i32) {
    %c0_i32 = arith.constant 0 : i32
    %c0_i32_0 = arith.constant 0 : i32
    %c0_i32_1 = arith.constant 0 : i32
    return %c0_i32, %c0_i32_0 : i32, i32
  }
  func.func @transform_3(%arg0: i32) -> (i32, i32) {
    %c0_i32 = arith.constant 0 : i32
    %c0_i32_0 = arith.constant 0 : i32
    %c0_i32_1 = arith.constant 0 : i32
    return %c0_i32, %c0_i32_0 : i32, i32
  }
  func.func @transform_4(%arg0: i32) -> (i32, i32) {
    %c0_i32 = arith.constant 0 : i32
    %c0_i32_0 = arith.constant 0 : i32
    %c0_i32_1 = arith.constant 0 : i32
    return %c0_i32, %c0_i32_0 : i32, i32
  }
  func.func @transform_5(%arg0: i32) -> (i32, i32) {
    %c0_i32 = arith.constant 0 : i32
    %c0_i32_0 = arith.constant 0 : i32
    %c0_i32_1 = arith.constant 0 : i32
    return %c0_i32, %c0_i32_0 : i32, i32
  }
  func.func @transform_6(%arg0: i32) -> (i32, i32) {
    %c0_i32 = arith.constant 0 : i32
    %c0_i32_0 = arith.constant 0 : i32
    %c0_i32_1 = arith.constant 0 : i32
    return %c0_i32, %c0_i32_0 : i32, i32
  }
  func.func @transform_7(%arg0: i32) -> (i32, i32) {
    %c0_i32 = arith.constant 0 : i32
    %c0_i32_0 = arith.constant 0 : i32
    %c0_i32_1 = arith.constant 0 : i32
    return %c0_i32, %c0_i32_0 : i32, i32
  }
  func.func @transform_8(%arg0: i32) -> (i32, i32) {
    %c0_i32 = arith.constant 0 : i32
    %c0_i32_0 = arith.constant 0 : i32
    %c0_i32_1 = arith.constant 0 : i32
    return %c0_i32, %c0_i32_0 : i32, i32
  }
  func.func @transform_9(%arg0: i32) -> (i32, i32) {
    %c0_i32 = arith.constant 0 : i32
    %c0_i32_0 = arith.constant 0 : i32
    %c0_i32_1 = arith.constant 0 : i32
    return %c0_i32, %c0_i32_0 : i32, i32
  }
  func.func @transform_10(%arg0: i32) -> (i32, i32) {
    %c0_i32 = arith.constant 0 : i32
    %c0_i32_0 = arith.constant 0 : i32
    %c0_i32_1 = arith.constant 0 : i32
    return %c0_i32, %c0_i32_0 : i32, i32
  }
  func.func @transform_11(%arg0: i32) -> (i32, i32) {
    %c0_i32 = arith.constant 0 : i32
    %c0_i32_0 = arith.constant 0 : i32
    %c0_i32_1 = arith.constant 0 : i32
    return %c0_i32, %c0_i32_0 : i32, i32
  }
  func.func @transform_12(%arg0: i32) -> (i32, i32) {
    %c0_i32 = arith.constant 0 : i32
    %c0_i32_0 = arith.constant 0 : i32
    %c0_i32_1 = arith.constant 0 : i32
    return %c0_i32, %c0_i32_0 : i32, i32
  }
  func.func @transform_13(%arg0: i32) -> (i32, i32) {
    %c0_i32 = arith.constant 0 : i32
    %c0_i32_0 = arith.constant 0 : i32
    %c0_i32_1 = arith.constant 0 : i32
    return %c0_i32, %c0_i32_0 : i32, i32
  }
  func.func @transform_14(%arg0: i32) -> (i32, i32) {
    %c0_i32 = arith.constant 0 : i32
    %c0_i32_0 = arith.constant 0 : i32
    %c0_i32_1 = arith.constant 0 : i32
    return %c0_i32, %c0_i32_0 : i32, i32
  }
  func.func @transform_15(%arg0: i32) -> (i32, i32) {
    %c0_i32 = arith.constant 0 : i32
    %c0_i32_0 = arith.constant 0 : i32
    %c0_i32_1 = arith.constant 0 : i32
    return %c0_i32, %c0_i32_0 : i32, i32
  }
  func.func @transform_16(%arg0: i32) -> (i32, i32) {
    %c0_i32 = arith.constant 0 : i32
    %c0_i32_0 = arith.constant 0 : i32
    %c0_i32_1 = arith.constant 0 : i32
    return %c0_i32, %c0_i32_0 : i32, i32
  }
  func.func @transform_17(%arg0: i32) -> (i32, i32) {
    %c0_i32 = arith.constant 0 : i32
    %c0_i32_0 = arith.constant 0 : i32
    %c0_i32_1 = arith.constant 0 : i32
    return %c0_i32, %c0_i32_0 : i32, i32
  }
  func.func @transform_18(%arg0: i32) -> (i32, i32) {
    %c0_i32 = arith.constant 0 : i32
    %c0_i32_0 = arith.constant 0 : i32
    %c0_i32_1 = arith.constant 0 : i32
    return %c0_i32, %c0_i32_0 : i32, i32
  }
  func.func @transform_19(%arg0: i32) -> (i32, i32) {
    %c0_i32 = arith.constant 0 : i32
    %c0_i32_0 = arith.constant 0 : i32
    %c0_i32_1 = arith.constant 0 : i32
    return %c0_i32, %c0_i32_0 : i32, i32
  }
  func.func @transform_20(%arg0: i32) -> (i32, i32) {
    %c0_i32 = arith.constant 0 : i32
    %c0_i32_0 = arith.constant 0 : i32
    %c0_i32_1 = arith.constant 0 : i32
    return %c0_i32, %c0_i32_0 : i32, i32
  }
  func.func @transform_21(%arg0: i32) -> (i32, i32) {
    %c0_i32 = arith.constant 0 : i32
    %c0_i32_0 = arith.constant 0 : i32
    %c0_i32_1 = arith.constant 0 : i32
    return %c0_i32, %c0_i32_0 : i32, i32
  }
  func.func @transform_22(%arg0: i32) -> (i32, i32) {
    %c0_i32 = arith.constant 0 : i32
    %c0_i32_0 = arith.constant 0 : i32
    %c0_i32_1 = arith.constant 0 : i32
    return %c0_i32, %c0_i32_0 : i32, i32
  }
  func.func @transform_23(%arg0: i32) -> (i32, i32) {
    %c0_i32 = arith.constant 0 : i32
    %c0_i32_0 = arith.constant 0 : i32
    %c0_i32_1 = arith.constant 0 : i32
    return %c0_i32, %c0_i32_0 : i32, i32
  }
  func.func @transform_24(%arg0: i32) -> (i32, i32) {
    %c0_i32 = arith.constant 0 : i32
    %c0_i32_0 = arith.constant 0 : i32
    %c0_i32_1 = arith.constant 0 : i32
    return %c0_i32, %c0_i32_0 : i32, i32
  }
  func.func @transform_25(%arg0: i32) -> (i32, i32) {
    %c0_i32 = arith.constant 0 : i32
    %c0_i32_0 = arith.constant 0 : i32
    %c0_i32_1 = arith.constant 0 : i32
    return %c0_i32, %c0_i32_0 : i32, i32
  }
  func.func @transform_26(%arg0: i32) -> (i32, i32) {
    %c0_i32 = arith.constant 0 : i32
    %c0_i32_0 = arith.constant 0 : i32
    %c0_i32_1 = arith.constant 0 : i32
    return %c0_i32, %c0_i32_0 : i32, i32
  }
  func.func @transform_27(%arg0: i32) -> (i32, i32) {
    %c0_i32 = arith.constant 0 : i32
    %c0_i32_0 = arith.constant 0 : i32
    %c0_i32_1 = arith.constant 0 : i32
    return %c0_i32, %c0_i32_0 : i32, i32
  }
  func.func @transform_28(%arg0: i32) -> (i32, i32) {
    %c0_i32 = arith.constant 0 : i32
    %c0_i32_0 = arith.constant 0 : i32
    %c0_i32_1 = arith.constant 0 : i32
    return %c0_i32, %c0_i32_0 : i32, i32
  }
  func.func @transform_29(%arg0: i32) -> (i32, i32) {
    %c0_i32 = arith.constant 0 : i32
    %c0_i32_0 = arith.constant 0 : i32
    %c0_i32_1 = arith.constant 0 : i32
    return %c0_i32, %c0_i32_0 : i32, i32
  }
  func.func @transform_30(%arg0: i32) -> (i32, i32) {
    %c0_i32 = arith.constant 0 : i32
    %c0_i32_0 = arith.constant 0 : i32
    %c0_i32_1 = arith.constant 0 : i32
    return %c0_i32, %c0_i32_0 : i32, i32
  }
  func.func @transform_31(%arg0: i32) -> (i32, i32) {
    %c0_i32 = arith.constant 0 : i32
    %c0_i32_0 = arith.constant 0 : i32
    %c0_i32_1 = arith.constant 0 : i32
    return %c0_i32, %c0_i32_0 : i32, i32
  }
  func.func @transform_32(%arg0: i32) -> (i32, i32) {
    %c0_i32 = arith.constant 0 : i32
    %c0_i32_0 = arith.constant 0 : i32
    %c0_i32_1 = arith.constant 0 : i32
    return %c0_i32, %c0_i32_0 : i32, i32
  }
  func.func @transform_33(%arg0: i32) -> (i32, i32) {
    %c0_i32 = arith.constant 0 : i32
    %c0_i32_0 = arith.constant 0 : i32
    %c0_i32_1 = arith.constant 0 : i32
    return %c0_i32, %c0_i32_0 : i32, i32
  }
  func.func @transform_34(%arg0: i32) -> (i32, i32) {
    %c0_i32 = arith.constant 0 : i32
    %c0_i32_0 = arith.constant 0 : i32
    %c0_i32_1 = arith.constant 0 : i32
    return %c0_i32, %c0_i32_0 : i32, i32
  }
  func.func @transform_35(%arg0: i32) -> (i32, i32) {
    %c0_i32 = arith.constant 0 : i32
    %c0_i32_0 = arith.constant 0 : i32
    %c0_i32_1 = arith.constant 0 : i32
    return %c0_i32, %c0_i32_0 : i32, i32
  }
  func.func @transform_36(%arg0: i32) -> (i32, i32) {
    %c0_i32 = arith.constant 0 : i32
    %c0_i32_0 = arith.constant 0 : i32
    %c0_i32_1 = arith.constant 0 : i32
    return %c0_i32, %c0_i32_0 : i32, i32
  }
  func.func @transform_37(%arg0: i32) -> (i32, i32) {
    %c0_i32 = arith.constant 0 : i32
    %c0_i32_0 = arith.constant 0 : i32
    %c0_i32_1 = arith.constant 0 : i32
    return %c0_i32, %c0_i32_0 : i32, i32
  }
  func.func @transform_38(%arg0: i32) -> (i32, i32) {
    %c0_i32 = arith.constant 0 : i32
    %c0_i32_0 = arith.constant 0 : i32
    return %arg0, %c0_i32 : i32, i32
  }
}

</mosaic_0001>

<llo_original>
// kernel: tpu_custom_call.1
$region0: #{tpu_custom_call.1}
  #allocation0 [shape = 'u32[]', space=smem, size = 0x4, offset = 0x4, fixed_abs, tag = 'smem constant byte address 0x4 - core index']
  #allocation1 [shape = 'u32[144,128]{1,0:T(1,128)}', space=vmem, size = 0x12000, scoped, tag = 'internal scratch']
  %s0 = inlined_call_operand.smem [shape: u32[39], index: -1, kind: input, shape index: {}]
  %s1 = sld [smem:[%s0]]
  %s2 = scalar_lea.smem %s0, 1
  %s3 = sld [smem:[%s2]]
  %s4 = scalar_lea.smem %s0, 2
  %s5 = sld [smem:[%s4]]
  %s6 = scalar_lea.smem %s0, 3
  %s7 = sld [smem:[%s6]]
  %s8 = scalar_lea.smem %s0, 4
  %s9 = sld [smem:[%s8]]
  %s10 = scalar_lea.smem %s0, 5
  %s11 = sld [smem:[%s10]]
  %s12 = scalar_lea.smem %s0, 6
  %s13 = sld [smem:[%s12]]
  %s14 = scalar_lea.smem %s0, 7
  %s15 = sld [smem:[%s14]]
  %s16 = scalar_lea.smem %s0, 8
  %s17 = sld [smem:[%s16]]
  %s18 = scalar_lea.smem %s0, 9
  %s19 = sld [smem:[%s18]]
  %s20 = scalar_lea.smem %s0, 10
  %s21 = sld [smem:[%s20]]
  %s22 = scalar_lea.smem %s0, 11
  %s23 = sld [smem:[%s22]]
  %s24 = scalar_lea.smem %s0, 12
  %s25 = sld [smem:[%s24]]
  %s26 = scalar_lea.smem %s0, 13
  %s27 = sld [smem:[%s26]]
  %s28 = scalar_lea.smem %s0, 14
  %s29 = sld [smem:[%s28]]
  %s30 = scalar_lea.smem %s0, 15
  %s31 = sld [smem:[%s30]]
  %s32 = scalar_lea.smem %s0, 16
  %s33 = sld [smem:[%s32]]
  %s34 = scalar_lea.smem %s0, 17
  %s35 = sld [smem:[%s34]]
  %s36 = scalar_lea.smem %s0, 18
  %s37 = sld [smem:[%s36]]
  %s38 = scalar_lea.smem %s0, 19
  %s39 = sld [smem:[%s38]]
  %s40 = scalar_lea.smem %s0, 20
  %s41 = sld [smem:[%s40]]
  %s42 = scalar_lea.smem %s0, 21
  %s43 = sld [smem:[%s42]]
  %s44 = scalar_lea.smem %s0, 22
  %s45 = sld [smem:[%s44]]
  %s46 = scalar_lea.smem %s0, 23
  %s47 = sld [smem:[%s46]]
  %s48 = scalar_lea.smem %s0, 24
  %s49 = sld [smem:[%s48]]
  %s50 = scalar_lea.smem %s0, 25
  %s51 = sld [smem:[%s50]]
  %s52 = scalar_lea.smem %s0, 26
  %s53 = sld [smem:[%s52]]
  %s54 = scalar_lea.smem %s0, 27
  %s55 = sld [smem:[%s54]]
  %s56 = scalar_lea.smem %s0, 28
  %s57 = sld [smem:[%s56]]
  %s58 = scalar_lea.smem %s0, 29
  %s59 = sld [smem:[%s58]]
  %s60 = scalar_lea.smem %s0, 30
  %s61 = sld [smem:[%s60]]
  %s62 = scalar_lea.smem %s0, 31
  %s63 = sld [smem:[%s62]]
  %s64 = scalar_lea.smem %s0, 32
  %s65 = sld [smem:[%s64]]
  %s66 = scalar_lea.smem %s0, 33
  %s67 = sld [smem:[%s66]]
  %s68 = scalar_lea.smem %s0, 34
  %s69 = sld [smem:[%s68]]
  %s70 = scalar_lea.smem %s0, 35
  %s71 = sld [smem:[%s70]]
  %s72 = scalar_lea.smem %s0, 36
  %s73 = sld [smem:[%s72]]
  %s74 = scalar_lea.smem %s0, 37
  %s75 = sld [smem:[%s74]]
  %s76 = scalar_lea.smem %s0, 38
  %s77 = sld [smem:[%s76]]
  %s78 = sld [smem:[#allocation0]]
  $region266: #{tpu_custom_call.1} parent=0
    _
  %s80 = ssub.s32 1, %s78
  %s81 = scalar_select 0, %s80, %s78
  $region1: #{tpu_custom_call.1} parent=0
    #allocation2 [shape = 'u8[4096]{0}', space=vmem, size = 0x1000, scoped, tag = 'input window, operand 1, single buffered']
    #allocation3 [shape = 's32[1]{0}', space=sflag, size = 0x4, scoped, tag = 'scoped memory for tpu_custom_call.1']
    #allocation4 [shape = 's32[1]{0}', space=sflag, size = 0x4, scoped, tag = 'scoped memory for tpu_custom_call.1']
    #allocation5 [shape = 'u8[512]{0}', space=vmem, size = 0x400, scoped, tag = 'input window, operand 6, single buffered']
    #allocation6 [shape = 's32[1]{0}', space=sflag, size = 0x4, scoped, tag = 'scoped memory for tpu_custom_call.1']
    #allocation7 [shape = 'u8[512]{0}', space=vmem, size = 0x400, scoped, tag = 'input window, operand 10, single buffered']
    #allocation8 [shape = 'u8[512]{0}', space=vmem, size = 0x400, scoped, tag = 'input window, operand 12, single buffered']
    #allocation9 [shape = 's32[1]{0}', space=sflag, size = 0x4, scoped, tag = 'scoped memory for tpu_custom_call.1']
    #allocation10 [shape = 'u8[32768]{0}', space=vmem, size = 0x8000, scoped, tag = 'input window, operand 13, single buffered']
    #allocation11 [shape = 'u8[32768]{0}', space=vmem, size = 0x8000, scoped, tag = 'input window, operand 14, single buffered']
    #allocation12 [shape = 's32[1]{0}', space=sflag, size = 0x4, scoped, tag = 'scoped memory for tpu_custom_call.1']
    #allocation13 [shape = 'u8[32768]{0}', space=vmem, size = 0x8000, scoped, tag = 'input window, operand 15, single buffered']
    #allocation14 [shape = 'u8[32768]{0}', space=vmem, size = 0x8000, scoped, tag = 'input window, operand 16, single buffered']
    #allocation15 [shape = 's32[1]{0}', space=sflag, size = 0x4, scoped, tag = 'scoped memory for tpu_custom_call.1']
    #allocation16 [shape = 'u8[512]{0}', space=vmem, size = 0x400, scoped, tag = 'input window, operand 17, single buffered']
    #allocation17 [shape = 'u8[32768]{0}', space=vmem, size = 0x8000, scoped, tag = 'input window, operand 18, single buffered']
    #allocation18 [shape = 's32[1]{0}', space=sflag, size = 0x4, scoped, tag = 'scoped memory for tpu_custom_call.1']
    #allocation19 [shape = 'u8[512]{0}', space=vmem, size = 0x400, scoped, tag = 'input window, operand 19, single buffered']
    #allocation20 [shape = 'u8[32768]{0}', space=vmem, size = 0x8000, scoped, tag = 'input window, operand 20, single buffered']
    #allocation21 [shape = 's32[1]{0}', space=sflag, size = 0x4, scoped, tag = 'scoped memory for tpu_custom_call.1']
    #allocation22 [shape = 'u8[32768]{0}', space=vmem, size = 0x8000, scoped, tag = 'input window, operand 21, single buffered']
    #allocation23 [shape = 'u8[32768]{0}', space=vmem, size = 0x8000, scoped, tag = 'input window, operand 22, single buffered']
    #allocation24 [shape = 's32[1]{0}', space=sflag, size = 0x4, scoped, tag = 'scoped memory for tpu_custom_call.1']
    #allocation25 [shape = 'u8[32768]{0}', space=vmem, size = 0x8000, scoped, tag = 'input window, operand 23, single buffered']
    #allocation26 [shape = 'u8[512]{0}', space=vmem, size = 0x400, scoped, tag = 'input window, operand 24, single buffered']
    #allocation27 [shape = 's32[1]{0}', space=sflag, size = 0x4, scoped, tag = 'scoped memory for tpu_custom_call.1']
    #allocation28 [shape = 'u8[32768]{0}', space=vmem, size = 0x8000, scoped, tag = 'input window, operand 25, single buffered']
    #allocation29 [shape = 'u8[512]{0}', space=vmem, size = 0x400, scoped, tag = 'input window, operand 26, single buffered']
    #allocation30 [shape = 's32[1]{0}', space=sflag, size = 0x4, scoped, tag = 'scoped memory for tpu_custom_call.1']
    #allocation31 [shape = 'u8[32768]{0}', space=vmem, size = 0x8000, scoped, tag = 'input window, operand 27, single buffered']
    #allocation32 [shape = 'u8[32768]{0}', space=vmem, size = 0x8000, scoped, tag = 'input window, operand 29, single buffered']
    #allocation33 [shape = 's32[1]{0}', space=sflag, size = 0x4, scoped, tag = 'scoped memory for tpu_custom_call.1']
    #allocation34 [shape = 'u8[32768]{0}', space=vmem, size = 0x8000, scoped, tag = 'input window, operand 30, single buffered']
    #allocation35 [shape = 'u8[512]{0}', space=vmem, size = 0x400, scoped, tag = 'input window, operand 31, single buffered']
    #allocation36 [shape = 's32[1]{0}', space=sflag, size = 0x4, scoped, tag = 'scoped memory for tpu_custom_call.1']
    #allocation37 [shape = 'u8[32768]{0}', space=vmem, size = 0x8000, scoped, tag = 'input window, operand 32, single buffered']
    #allocation38 [shape = 'u8[32768]{0}', space=vmem, size = 0x8000, scoped, tag = 'input window, operand 34, single buffered']
    #allocation39 [shape = 's32[1]{0}', space=sflag, size = 0x4, scoped, tag = 'scoped memory for tpu_custom_call.1']
    #allocation40 [shape = 'u8[32768]{0}', space=vmem, size = 0x8000, scoped, tag = 'input window, operand 35, single buffered']
    #allocation41 [shape = 'u8[32768]{0}', space=vmem, size = 0x8000, scoped, tag = 'input window, operand 36, single buffered']
    #allocation42 [shape = 's32[1]{0}', space=sflag, size = 0x4, scoped, tag = 'scoped memory for tpu_custom_call.1']
    #allocation43 [shape = 'u8[4096]{0}', space=vmem, size = 0x1000, scoped, tag = 'output window, operand 0, single buffered']
    %82 = vsyncpa [#allocation3], 0
    %83 = vsyncpa [#allocation6], 0
    %84 = vsyncpa [#allocation9], 0
    %85 = vsyncpa [#allocation12], 0
    %86 = vsyncpa [#allocation15], 0
    %87 = vsyncpa [#allocation18], 0
    %88 = vsyncpa [#allocation21], 0
    %89 = vsyncpa [#allocation24], 0
    %90 = vsyncpa [#allocation27], 0
    %91 = vsyncpa [#allocation30], 0
    %92 = vsyncpa [#allocation33], 0
    %93 = vsyncpa [#allocation36], 0
    %94 = vsyncpa [#allocation39], 0
    %95 = vsyncpa [#allocation42], 0
    %96 = vsyncpa [#allocation4], 0
    // Predicated region
    $region2: #{tpu_custom_call.1} parent=1 // pred_check
      _
    $region3: #{tpu_custom_call.1} parent=1 // pred_check_branch
      %98 = sbr.rel (0) target = $region5
    $region4: #{tpu_custom_call.1} parent=1 // pred_region
      _
    $region5: #{tpu_custom_call.1} parent=1 // pred_fallthru
      _
    // Predicated region
    $region6: #{tpu_custom_call.1} parent=1 // pred_check
      _
    $region7: #{tpu_custom_call.1} parent=1 // pred_check_branch
      %100 = sbr.rel (0) target = $region9
    $region8: #{tpu_custom_call.1} parent=1 // pred_region
      %s102 = ssub.s32 128, 128
      %103 = vsyncadd [#allocation3], %s102
      %s105 = sshll.u32 [#allocation2], 4
      %s106 = int_to_ptr.vmem [resolvable:$true] %s105
      %108 = dma.hbm_to_vmem [thread:$0]  %s3, 128, %s106, [#allocation3]
    $region9: #{tpu_custom_call.1} parent=1 // pred_fallthru
      _
    // Predicated region
    $region10: #{tpu_custom_call.1} parent=1 // pred_check
      _
    $region11: #{tpu_custom_call.1} parent=1 // pred_check_branch
      %110 = sbr.rel (0) target = $region13
    $region12: #{tpu_custom_call.1} parent=1 // pred_region
      _
    $region13: #{tpu_custom_call.1} parent=1 // pred_fallthru
      _
    // Predicated region
    $region14: #{tpu_custom_call.1} parent=1 // pred_check
      _
    $region15: #{tpu_custom_call.1} parent=1 // pred_check_branch
      %112 = sbr.rel (0) target = $region17
    $region16: #{tpu_custom_call.1} parent=1 // pred_region
      _
    $region17: #{tpu_custom_call.1} parent=1 // pred_fallthru
      _
    // Predicated region
    $region18: #{tpu_custom_call.1} parent=1 // pred_check
      _
    $region19: #{tpu_custom_call.1} parent=1 // pred_check_branch
      %114 = sbr.rel (0) target = $region21
    $region20: #{tpu_custom_call.1} parent=1 // pred_region
      _
    $region21: #{tpu_custom_call.1} parent=1 // pred_fallthru
      _
    // Predicated region
    $region22: #{tpu_custom_call.1} parent=1 // pred_check
      _
    $region23: #{tpu_custom_call.1} parent=1 // pred_check_branch
      %116 = sbr.rel (0) target = $region25
    $region24: #{tpu_custom_call.1} parent=1 // pred_region
      _
    $region25: #{tpu_custom_call.1} parent=1 // pred_fallthru
      _
    // Predicated region
    $region26: #{tpu_custom_call.1} parent=1 // pred_check
      _
    $region27: #{tpu_custom_call.1} parent=1 // pred_check_branch
      %118 = sbr.rel (0) target = $region29
    $region28: #{tpu_custom_call.1} parent=1 // pred_region
      %s120 = ssub.s32 16, 16
      %121 = vsyncadd [#allocation6], %s120
      %s123 = sshll.u32 [#allocation5], 4
      %s124 = int_to_ptr.vmem [resolvable:$true] %s123
      %126 = dma.hbm_to_vmem [thread:$0]  %s13, 16, %s124, [#allocation6]
    $region29: #{tpu_custom_call.1} parent=1 // pred_fallthru
      _
    // Predicated region
    $region30: #{tpu_custom_call.1} parent=1 // pred_check
      _
    $region31: #{tpu_custom_call.1} parent=1 // pred_check_branch
      %128 = sbr.rel (0) target = $region33
    $region32: #{tpu_custom_call.1} parent=1 // pred_region
      _
    $region33: #{tpu_custom_call.1} parent=1 // pred_fallthru
      _
    // Predicated region
    $region34: #{tpu_custom_call.1} parent=1 // pred_check
      _
    $region35: #{tpu_custom_call.1} parent=1 // pred_check_branch
      %130 = sbr.rel (0) target = $region37
    $region36: #{tpu_custom_call.1} parent=1 // pred_region
      _
    $region37: #{tpu_custom_call.1} parent=1 // pred_fallthru
      _
    // Predicated region
    $region38: #{tpu_custom_call.1} parent=1 // pred_check
      _
    $region39: #{tpu_custom_call.1} parent=1 // pred_check_branch
      %132 = sbr.rel (0) target = $region41
    $region40: #{tpu_custom_call.1} parent=1 // pred_region
      _
    $region41: #{tpu_custom_call.1} parent=1 // pred_fallthru
      _
    // Predicated region
    $region42: #{tpu_custom_call.1} parent=1 // pred_check
      _
    $region43: #{tpu_custom_call.1} parent=1 // pred_check_branch
      %134 = sbr.rel (0) target = $region45
    $region44: #{tpu_custom_call.1} parent=1 // pred_region
      %s136 = ssub.s32 16, 16
      %137 = vsyncadd [#allocation6], %s136
      %s139 = sshll.u32 [#allocation7], 4
      %s140 = int_to_ptr.vmem [resolvable:$true] %s139
      %142 = dma.hbm_to_vmem [thread:$0]  %s21, 16, %s140, [#allocation6]
    $region45: #{tpu_custom_call.1} parent=1 // pred_fallthru
      _
    // Predicated region
    $region46: #{tpu_custom_call.1} parent=1 // pred_check
      _
    $region47: #{tpu_custom_call.1} parent=1 // pred_check_branch
      %144 = sbr.rel (0) target = $region49
    $region48: #{tpu_custom_call.1} parent=1 // pred_region
      _
    $region49: #{tpu_custom_call.1} parent=1 // pred_fallthru
      _
    // Predicated region
    $region50: #{tpu_custom_call.1} parent=1 // pred_check
      _
    $region51: #{tpu_custom_call.1} parent=1 // pred_check_branch
      %146 = sbr.rel (0) target = $region53
    $region52: #{tpu_custom_call.1} parent=1 // pred_region
      %s148 = ssub.s32 16, 16
      %149 = vsyncadd [#allocation9], %s148
      %s151 = sshll.u32 [#allocation8], 4
      %s152 = int_to_ptr.vmem [resolvable:$true] %s151
      %154 = dma.hbm_to_vmem [thread:$0]  %s25, 16, %s152, [#allocation9]
    $region53: #{tpu_custom_call.1} parent=1 // pred_fallthru
      _
    // Predicated region
    $region54: #{tpu_custom_call.1} parent=1 // pred_check
      _
    $region55: #{tpu_custom_call.1} parent=1 // pred_check_branch
      %156 = sbr.rel (0) target = $region57
    $region56: #{tpu_custom_call.1} parent=1 // pred_region
      %s158 = ssub.s32 1024, 1024
      %159 = vsyncadd [#allocation9], %s158
      %s160 = sshll.u32 [#allocation10], 4
      %s161 = int_to_ptr.vmem [resolvable:$true] %s160
      %166 = dma.hbm_to_vmem [thread:$0]  %s27, 1024, %s161, [#allocation9], 64, 64, 4
    $region57: #{tpu_custom_call.1} parent=1 // pred_fallthru
      _
    // Predicated region
    $region58: #{tpu_custom_call.1} parent=1 // pred_check
      _
    $region59: #{tpu_custom_call.1} parent=1 // pred_check_branch
      %168 = sbr.rel (0) target = $region61
    $region60: #{tpu_custom_call.1} parent=1 // pred_region
      %s170 = ssub.s32 1024, 1024
      %171 = vsyncadd [#allocation12], %s170
      %s172 = sshll.u32 [#allocation11], 4
      %s173 = int_to_ptr.vmem [resolvable:$true] %s172
      %178 = dma.hbm_to_vmem [thread:$0]  %s29, 1024, %s173, [#allocation12], 64, 64, 4
    $region61: #{tpu_custom_call.1} parent=1 // pred_fallthru
      _
    // Predicated region
    $region62: #{tpu_custom_call.1} parent=1 // pred_check
      _
    $region63: #{tpu_custom_call.1} parent=1 // pred_check_branch
      %180 = sbr.rel (0) target = $region65
    $region64: #{tpu_custom_call.1} parent=1 // pred_region
      %s182 = ssub.s32 1024, 1024
      %183 = vsyncadd [#allocation12], %s182
      %s184 = sshll.u32 [#allocation13], 4
      %s185 = int_to_ptr.vmem [resolvable:$true] %s184
      %190 = dma.hbm_to_vmem [thread:$0]  %s31, 1024, %s185, [#allocation12], 64, 64, 4
    $region65: #{tpu_custom_call.1} parent=1 // pred_fallthru
      _
    // Predicated region
    $region66: #{tpu_custom_call.1} parent=1 // pred_check
      _
    $region67: #{tpu_custom_call.1} parent=1 // pred_check_branch
      %192 = sbr.rel (0) target = $region69
    $region68: #{tpu_custom_call.1} parent=1 // pred_region
      %s194 = ssub.s32 1024, 1024
      %195 = vsyncadd [#allocation15], %s194
      %s196 = sshll.u32 [#allocation14], 4
      %s197 = int_to_ptr.vmem [resolvable:$true] %s196
      %202 = dma.hbm_to_vmem [thread:$0]  %s33, 1024, %s197, [#allocation15], 64, 64, 4
    $region69: #{tpu_custom_call.1} parent=1 // pred_fallthru
      _
    // Predicated region
    $region70: #{tpu_custom_call.1} parent=1 // pred_check
      _
    $region71: #{tpu_custom_call.1} parent=1 // pred_check_branch
      %204 = sbr.rel (0) target = $region73
    $region72: #{tpu_custom_call.1} parent=1 // pred_region
      %s206 = ssub.s32 16, 16
      %207 = vsyncadd [#allocation15], %s206
      %s209 = sshll.u32 [#allocation16], 4
      %s210 = int_to_ptr.vmem [resolvable:$true] %s209
      %212 = dma.hbm_to_vmem [thread:$0]  %s35, 16, %s210, [#allocation15]
    $region73: #{tpu_custom_call.1} parent=1 // pred_fallthru
      _
    // Predicated region
    $region74: #{tpu_custom_call.1} parent=1 // pred_check
      _
    $region75: #{tpu_custom_call.1} parent=1 // pred_check_branch
      %214 = sbr.rel (0) target = $region77
    $region76: #{tpu_custom_call.1} parent=1 // pred_region
      %s216 = ssub.s32 1024, 1024
      %217 = vsyncadd [#allocation18], %s216
      %s218 = sshll.u32 [#allocation17], 4
      %s219 = int_to_ptr.vmem [resolvable:$true] %s218
      %224 = dma.hbm_to_vmem [thread:$0]  %s37, 1024, %s219, [#allocation18], 64, 64, 4
    $region77: #{tpu_custom_call.1} parent=1 // pred_fallthru
      _
    // Predicated region
    $region78: #{tpu_custom_call.1} parent=1 // pred_check
      _
    $region79: #{tpu_custom_call.1} parent=1 // pred_check_branch
      %226 = sbr.rel (0) target = $region81
    $region80: #{tpu_custom_call.1} parent=1 // pred_region
      %s228 = ssub.s32 16, 16
      %229 = vsyncadd [#allocation18], %s228
      %s231 = sshll.u32 [#allocation19], 4
      %s232 = int_to_ptr.vmem [resolvable:$true] %s231
      %234 = dma.hbm_to_vmem [thread:$0]  %s39, 16, %s232, [#allocation18]
    $region81: #{tpu_custom_call.1} parent=1 // pred_fallthru
      _
    // Predicated region
    $region82: #{tpu_custom_call.1} parent=1 // pred_check
      _
    $region83: #{tpu_custom_call.1} parent=1 // pred_check_branch
      %236 = sbr.rel (0) target = $region85
    $region84: #{tpu_custom_call.1} parent=1 // pred_region
      %s238 = ssub.s32 1024, 1024
      %239 = vsyncadd [#allocation21], %s238
      %s240 = sshll.u32 [#allocation20], 4
      %s241 = int_to_ptr.vmem [resolvable:$true] %s240
      %246 = dma.hbm_to_vmem [thread:$0]  %s41, 1024, %s241, [#allocation21], 64, 64, 4
    $region85: #{tpu_custom_call.1} parent=1 // pred_fallthru
      _
    // Predicated region
    $region86: #{tpu_custom_call.1} parent=1 // pred_check
      _
    $region87: #{tpu_custom_call.1} parent=1 // pred_check_branch
      %248 = sbr.rel (0) target = $region89
    $region88: #{tpu_custom_call.1} parent=1 // pred_region
      %s250 = ssub.s32 1024, 1024
      %251 = vsyncadd [#allocation21], %s250
      %s252 = sshll.u32 [#allocation22], 4
      %s253 = int_to_ptr.vmem [resolvable:$true] %s252
      %258 = dma.hbm_to_vmem [thread:$0]  %s43, 1024, %s253, [#allocation21], 64, 64, 4
    $region89: #{tpu_custom_call.1} parent=1 // pred_fallthru
      _
    // Predicated region
    $region90: #{tpu_custom_call.1} parent=1 // pred_check
      _
    $region91: #{tpu_custom_call.1} parent=1 // pred_check_branch
      %260 = sbr.rel (0) target = $region93
    $region92: #{tpu_custom_call.1} parent=1 // pred_region
      %s262 = ssub.s32 1024, 1024
      %263 = vsyncadd [#allocation24], %s262
      %s264 = sshll.u32 [#allocation23], 4
      %s265 = int_to_ptr.vmem [resolvable:$true] %s264
      %270 = dma.hbm_to_vmem [thread:$0]  %s45, 1024, %s265, [#allocation24], 64, 64, 4
    $region93: #{tpu_custom_call.1} parent=1 // pred_fallthru
      _
    // Predicated region
    $region94: #{tpu_custom_call.1} parent=1 // pred_check
      _
    $region95: #{tpu_custom_call.1} parent=1 // pred_check_branch
      %272 = sbr.rel (0) target = $region97
    $region96: #{tpu_custom_call.1} parent=1 // pred_region
      %s274 = ssub.s32 1024, 1024
      %275 = vsyncadd [#allocation24], %s274
      %s276 = sshll.u32 [#allocation25], 4
      %s277 = int_to_ptr.vmem [resolvable:$true] %s276
      %282 = dma.hbm_to_vmem [thread:$0]  %s47, 1024, %s277, [#allocation24], 64, 64, 4
    $region97: #{tpu_custom_call.1} parent=1 // pred_fallthru
      _
    // Predicated region
    $region98: #{tpu_custom_call.1} parent=1 // pred_check
      _
    $region99: #{tpu_custom_call.1} parent=1 // pred_check_branch
      %284 = sbr.rel (0) target = $region101
    $region100: #{tpu_custom_call.1} parent=1 // pred_region
      %s286 = ssub.s32 16, 16
      %287 = vsyncadd [#allocation27], %s286
      %s289 = sshll.u32 [#allocation26], 4
      %s290 = int_to_ptr.vmem [resolvable:$true] %s289
      %292 = dma.hbm_to_vmem [thread:$0]  %s49, 16, %s290, [#allocation27]
    $region101: #{tpu_custom_call.1} parent=1 // pred_fallthru
      _
    // Predicated region
    $region102: #{tpu_custom_call.1} parent=1 // pred_check
      _
    $region103: #{tpu_custom_call.1} parent=1 // pred_check_branch
      %294 = sbr.rel (0) target = $region105
    $region104: #{tpu_custom_call.1} parent=1 // pred_region
      %s296 = ssub.s32 1024, 1024
      %297 = vsyncadd [#allocation27], %s296
      %s298 = sshll.u32 [#allocation28], 4
      %s299 = int_to_ptr.vmem [resolvable:$true] %s298
      %304 = dma.hbm_to_vmem [thread:$0]  %s51, 1024, %s299, [#allocation27], 64, 64, 4
    $region105: #{tpu_custom_call.1} parent=1 // pred_fallthru
      _
    // Predicated region
    $region106: #{tpu_custom_call.1} parent=1 // pred_check
      _
    $region107: #{tpu_custom_call.1} parent=1 // pred_check_branch
      %306 = sbr.rel (0) target = $region109
    $region108: #{tpu_custom_call.1} parent=1 // pred_region
      %s308 = ssub.s32 16, 16
      %309 = vsyncadd [#allocation30], %s308
      %s311 = sshll.u32 [#allocation29], 4
      %s312 = int_to_ptr.vmem [resolvable:$true] %s311
      %314 = dma.hbm_to_vmem [thread:$0]  %s53, 16, %s312, [#allocation30]
    $region109: #{tpu_custom_call.1} parent=1 // pred_fallthru
      _
    // Predicated region
    $region110: #{tpu_custom_call.1} parent=1 // pred_check
      _
    $region111: #{tpu_custom_call.1} parent=1 // pred_check_branch
      %316 = sbr.rel (0) target = $region113
    $region112: #{tpu_custom_call.1} parent=1 // pred_region
      %s318 = ssub.s32 1024, 1024
      %319 = vsyncadd [#allocation30], %s318
      %s320 = sshll.u32 [#allocation31], 4
      %s321 = int_to_ptr.vmem [resolvable:$true] %s320
      %326 = dma.hbm_to_vmem [thread:$0]  %s55, 1024, %s321, [#allocation30], 64, 64, 4
    $region113: #{tpu_custom_call.1} parent=1 // pred_fallthru
      _
    // Predicated region
    $region114: #{tpu_custom_call.1} parent=1 // pred_check
      _
    $region115: #{tpu_custom_call.1} parent=1 // pred_check_branch
      %328 = sbr.rel (0) target = $region117
    $region116: #{tpu_custom_call.1} parent=1 // pred_region
      _
    $region117: #{tpu_custom_call.1} parent=1 // pred_fallthru
      _
    // Predicated region
    $region118: #{tpu_custom_call.1} parent=1 // pred_check
      _
    $region119: #{tpu_custom_call.1} parent=1 // pred_check_branch
      %330 = sbr.rel (0) target = $region121
    $region120: #{tpu_custom_call.1} parent=1 // pred_region
      %s332 = ssub.s32 1024, 1024
      %333 = vsyncadd [#allocation33], %s332
      %s334 = sshll.u32 [#allocation32], 4
      %s335 = int_to_ptr.vmem [resolvable:$true] %s334
      %340 = dma.hbm_to_vmem [thread:$0]  %s59, 1024, %s335, [#allocation33], 64, 64, 4
    $region121: #{tpu_custom_call.1} parent=1 // pred_fallthru
      _
    // Predicated region
    $region122: #{tpu_custom_call.1} parent=1 // pred_check
      _
    $region123: #{tpu_custom_call.1} parent=1 // pred_check_branch
      %342 = sbr.rel (0) target = $region125
    $region124: #{tpu_custom_call.1} parent=1 // pred_region
      %s344 = ssub.s32 1024, 1024
      %345 = vsyncadd [#allocation33], %s344
      %s346 = sshll.u32 [#allocation34], 4
      %s347 = int_to_ptr.vmem [resolvable:$true] %s346
      %352 = dma.hbm_to_vmem [thread:$0]  %s61, 1024, %s347, [#allocation33], 64, 64, 4
    $region125: #{tpu_custom_call.1} parent=1 // pred_fallthru
      _
    // Predicated region
    $region126: #{tpu_custom_call.1} parent=1 // pred_check
      _
    $region127: #{tpu_custom_call.1} parent=1 // pred_check_branch
      %354 = sbr.rel (0) target = $region129
    $region128: #{tpu_custom_call.1} parent=1 // pred_region
      %s356 = ssub.s32 16, 16
      %357 = vsyncadd [#allocation36], %s356
      %s359 = sshll.u32 [#allocation35], 4
      %s360 = int_to_ptr.vmem [resolvable:$true] %s359
      %362 = dma.hbm_to_vmem [thread:$0]  %s63, 16, %s360, [#allocation36]
    $region129: #{tpu_custom_call.1} parent=1 // pred_fallthru
      _
    // Predicated region
    $region130: #{tpu_custom_call.1} parent=1 // pred_check
      _
    $region131: #{tpu_custom_call.1} parent=1 // pred_check_branch
      %364 = sbr.rel (0) target = $region133
    $region132: #{tpu_custom_call.1} parent=1 // pred_region
      %s366 = ssub.s32 1024, 1024
      %367 = vsyncadd [#allocation36], %s366
      %s368 = sshll.u32 [#allocation37], 4
      %s369 = int_to_ptr.vmem [resolvable:$true] %s368
      %374 = dma.hbm_to_vmem [thread:$0]  %s65, 1024, %s369, [#allocation36], 64, 64, 4
    $region133: #{tpu_custom_call.1} parent=1 // pred_fallthru
      _
    // Predicated region
    $region134: #{tpu_custom_call.1} parent=1 // pred_check
      _
    $region135: #{tpu_custom_call.1} parent=1 // pred_check_branch
      %376 = sbr.rel (0) target = $region137
    $region136: #{tpu_custom_call.1} parent=1 // pred_region
      _
    $region137: #{tpu_custom_call.1} parent=1 // pred_fallthru
      _
    // Predicated region
    $region138: #{tpu_custom_call.1} parent=1 // pred_check
      _
    $region139: #{tpu_custom_call.1} parent=1 // pred_check_branch
      %378 = sbr.rel (0) target = $region141
    $region140: #{tpu_custom_call.1} parent=1 // pred_region
      %s380 = ssub.s32 1024, 1024
      %381 = vsyncadd [#allocation39], %s380
      %s382 = sshll.u32 [#allocation38], 4
      %s383 = int_to_ptr.vmem [resolvable:$true] %s382
      %388 = dma.hbm_to_vmem [thread:$0]  %s69, 1024, %s383, [#allocation39], 64, 64, 4
    $region141: #{tpu_custom_call.1} parent=1 // pred_fallthru
      _
    // Predicated region
    $region142: #{tpu_custom_call.1} parent=1 // pred_check
      _
    $region143: #{tpu_custom_call.1} parent=1 // pred_check_branch
      %390 = sbr.rel (0) target = $region145
    $region144: #{tpu_custom_call.1} parent=1 // pred_region
      %s392 = ssub.s32 1024, 1024
      %393 = vsyncadd [#allocation39], %s392
      %s394 = sshll.u32 [#allocation40], 4
      %s395 = int_to_ptr.vmem [resolvable:$true] %s394
      %400 = dma.hbm_to_vmem [thread:$0]  %s71, 1024, %s395, [#allocation39], 64, 64, 4
    $region145: #{tpu_custom_call.1} parent=1 // pred_fallthru
      _
    // Predicated region
    $region146: #{tpu_custom_call.1} parent=1 // pred_check
      _
    $region147: #{tpu_custom_call.1} parent=1 // pred_check_branch
      %402 = sbr.rel (0) target = $region149
    $region148: #{tpu_custom_call.1} parent=1 // pred_region
      %s404 = ssub.s32 1024, 1024
      %405 = vsyncadd [#allocation42], %s404
      %s406 = sshll.u32 [#allocation41], 4
      %s407 = int_to_ptr.vmem [resolvable:$true] %s406
      %412 = dma.hbm_to_vmem [thread:$0]  %s73, 1024, %s407, [#allocation42], 64, 64, 4
    $region149: #{tpu_custom_call.1} parent=1 // pred_fallthru
      _
    // Predicated region
    $region150: #{tpu_custom_call.1} parent=1 // pred_check
      _
    $region151: #{tpu_custom_call.1} parent=1 // pred_check_branch
      %414 = sbr.rel (0) target = $region153
    $region152: #{tpu_custom_call.1} parent=1 // pred_region
      _
    $region153: #{tpu_custom_call.1} parent=1 // pred_fallthru
      _
    // Predicated region
    $region154: #{tpu_custom_call.1} parent=1 // pred_check
      _
    $region155: #{tpu_custom_call.1} parent=1 // pred_check_branch
      %416 = sbr.rel (0) target = $region157
    $region156: #{tpu_custom_call.1} parent=1 // pred_region
      %417 = dma.done [#allocation3], 128
    $region157: #{tpu_custom_call.1} parent=1 // pred_fallthru
      _
    // Predicated region
    $region158: #{tpu_custom_call.1} parent=1 // pred_check
      _
    $region159: #{tpu_custom_call.1} parent=1 // pred_check_branch
      %419 = sbr.rel (0) target = $region161
    $region160: #{tpu_custom_call.1} parent=1 // pred_region
      %420 = dma.done [#allocation6], 16
    $region161: #{tpu_custom_call.1} parent=1 // pred_fallthru
      _
    // Predicated region
    $region162: #{tpu_custom_call.1} parent=1 // pred_check
      _
    $region163: #{tpu_custom_call.1} parent=1 // pred_check_branch
      %422 = sbr.rel (0) target = $region165
    $region164: #{tpu_custom_call.1} parent=1 // pred_region
      %423 = dma.done [#allocation6], 16
    $region165: #{tpu_custom_call.1} parent=1 // pred_fallthru
      _
    // Predicated region
    $region166: #{tpu_custom_call.1} parent=1 // pred_check
      _
    $region167: #{tpu_custom_call.1} parent=1 // pred_check_branch
      %425 = sbr.rel (0) target = $region169
    $region168: #{tpu_custom_call.1} parent=1 // pred_region
      %426 = dma.done [#allocation9], 16
    $region169: #{tpu_custom_call.1} parent=1 // pred_fallthru
      _
    // Predicated region
    $region170: #{tpu_custom_call.1} parent=1 // pred_check
      _
    $region171: #{tpu_custom_call.1} parent=1 // pred_check_branch
      %428 = sbr.rel (0) target = $region173
    $region172: #{tpu_custom_call.1} parent=1 // pred_region
      %429 = dma.done [#allocation9], 1024
    $region173: #{tpu_custom_call.1} parent=1 // pred_fallthru
      _
    // Predicated region
    $region174: #{tpu_custom_call.1} parent=1 // pred_check
      _
    $region175: #{tpu_custom_call.1} parent=1 // pred_check_branch
      %431 = sbr.rel (0) target = $region177
    $region176: #{tpu_custom_call.1} parent=1 // pred_region
      %432 = dma.done [#allocation12], 1024
    $region177: #{tpu_custom_call.1} parent=1 // pred_fallthru
      _
    // Predicated region
    $region178: #{tpu_custom_call.1} parent=1 // pred_check
      _
    $region179: #{tpu_custom_call.1} parent=1 // pred_check_branch
      %434 = sbr.rel (0) target = $region181
    $region180: #{tpu_custom_call.1} parent=1 // pred_region
      %435 = dma.done [#allocation12], 1024
    $region181: #{tpu_custom_call.1} parent=1 // pred_fallthru
      _
    // Predicated region
    $region182: #{tpu_custom_call.1} parent=1 // pred_check
      _
    $region183: #{tpu_custom_call.1} parent=1 // pred_check_branch
      %437 = sbr.rel (0) target = $region185
    $region184: #{tpu_custom_call.1} parent=1 // pred_region
      %438 = dma.done [#allocation15], 1024
    $region185: #{tpu_custom_call.1} parent=1 // pred_fallthru
      _
    // Predicated region
    $region186: #{tpu_custom_call.1} parent=1 // pred_check
      _
    $region187: #{tpu_custom_call.1} parent=1 // pred_check_branch
      %440 = sbr.rel (0) target = $region189
    $region188: #{tpu_custom_call.1} parent=1 // pred_region
      %441 = dma.done [#allocation15], 16
    $region189: #{tpu_custom_call.1} parent=1 // pred_fallthru
      _
    // Predicated region
    $region190: #{tpu_custom_call.1} parent=1 // pred_check
      _
    $region191: #{tpu_custom_call.1} parent=1 // pred_check_branch
      %443 = sbr.rel (0) target = $region193
    $region192: #{tpu_custom_call.1} parent=1 // pred_region
      %444 = dma.done [#allocation18], 1024
    $region193: #{tpu_custom_call.1} parent=1 // pred_fallthru
      _
    // Predicated region
    $region194: #{tpu_custom_call.1} parent=1 // pred_check
      _
    $region195: #{tpu_custom_call.1} parent=1 // pred_check_branch
      %446 = sbr.rel (0) target = $region197
    $region196: #{tpu_custom_call.1} parent=1 // pred_region
      %447 = dma.done [#allocation18], 16
    $region197: #{tpu_custom_call.1} parent=1 // pred_fallthru
      _
    // Predicated region
    $region198: #{tpu_custom_call.1} parent=1 // pred_check
      _
    $region199: #{tpu_custom_call.1} parent=1 // pred_check_branch
      %449 = sbr.rel (0) target = $region201
    $region200: #{tpu_custom_call.1} parent=1 // pred_region
      %450 = dma.done [#allocation21], 1024
    $region201: #{tpu_custom_call.1} parent=1 // pred_fallthru
      _
    // Predicated region
    $region202: #{tpu_custom_call.1} parent=1 // pred_check
      _
    $region203: #{tpu_custom_call.1} parent=1 // pred_check_branch
      %452 = sbr.rel (0) target = $region205
    $region204: #{tpu_custom_call.1} parent=1 // pred_region
      %453 = dma.done [#allocation21], 1024
    $region205: #{tpu_custom_call.1} parent=1 // pred_fallthru
      _
    // Predicated region
    $region206: #{tpu_custom_call.1} parent=1 // pred_check
      _
    $region207: #{tpu_custom_call.1} parent=1 // pred_check_branch
      %455 = sbr.rel (0) target = $region209
    $region208: #{tpu_custom_call.1} parent=1 // pred_region
      %456 = dma.done [#allocation24], 1024
    $region209: #{tpu_custom_call.1} parent=1 // pred_fallthru
      _
    // Predicated region
    $region210: #{tpu_custom_call.1} parent=1 // pred_check
      _
    $region211: #{tpu_custom_call.1} parent=1 // pred_check_branch
      %458 = sbr.rel (0) target = $region213
    $region212: #{tpu_custom_call.1} parent=1 // pred_region
      %459 = dma.done [#allocation24], 1024
    $region213: #{tpu_custom_call.1} parent=1 // pred_fallthru
      _
    // Predicated region
    $region214: #{tpu_custom_call.1} parent=1 // pred_check
      _
    $region215: #{tpu_custom_call.1} parent=1 // pred_check_branch
      %461 = sbr.rel (0) target = $region217
    $region216: #{tpu_custom_call.1} parent=1 // pred_region
      %462 = dma.done [#allocation27], 16
    $region217: #{tpu_custom_call.1} parent=1 // pred_fallthru
      _
    // Predicated region
    $region218: #{tpu_custom_call.1} parent=1 // pred_check
      _
    $region219: #{tpu_custom_call.1} parent=1 // pred_check_branch
      %464 = sbr.rel (0) target = $region221
    $region220: #{tpu_custom_call.1} parent=1 // pred_region
      %465 = dma.done [#allocation27], 1024
    $region221: #{tpu_custom_call.1} parent=1 // pred_fallthru
      _
    // Predicated region
    $region222: #{tpu_custom_call.1} parent=1 // pred_check
      _
    $region223: #{tpu_custom_call.1} parent=1 // pred_check_branch
      %467 = sbr.rel (0) target = $region225
    $region224: #{tpu_custom_call.1} parent=1 // pred_region
      %468 = dma.done [#allocation30], 16
    $region225: #{tpu_custom_call.1} parent=1 // pred_fallthru
      _
    // Predicated region
    $region226: #{tpu_custom_call.1} parent=1 // pred_check
      _
    $region227: #{tpu_custom_call.1} parent=1 // pred_check_branch
      %470 = sbr.rel (0) target = $region229
    $region228: #{tpu_custom_call.1} parent=1 // pred_region
      %471 = dma.done [#allocation30], 1024
    $region229: #{tpu_custom_call.1} parent=1 // pred_fallthru
      _
    // Predicated region
    $region230: #{tpu_custom_call.1} parent=1 // pred_check
      _
    $region231: #{tpu_custom_call.1} parent=1 // pred_check_branch
      %473 = sbr.rel (0) target = $region233
    $region232: #{tpu_custom_call.1} parent=1 // pred_region
      %474 = dma.done [#allocation33], 1024
    $region233: #{tpu_custom_call.1} parent=1 // pred_fallthru
      _
    // Predicated region
    $region234: #{tpu_custom_call.1} parent=1 // pred_check
      _
    $region235: #{tpu_custom_call.1} parent=1 // pred_check_branch
      %476 = sbr.rel (0) target = $region237
    $region236: #{tpu_custom_call.1} parent=1 // pred_region
      %477 = dma.done [#allocation33], 1024
    $region237: #{tpu_custom_call.1} parent=1 // pred_fallthru
      _
    // Predicated region
    $region238: #{tpu_custom_call.1} parent=1 // pred_check
      _
    $region239: #{tpu_custom_call.1} parent=1 // pred_check_branch
      %479 = sbr.rel (0) target = $region241
    $region240: #{tpu_custom_call.1} parent=1 // pred_region
      %480 = dma.done [#allocation36], 16
    $region241: #{tpu_custom_call.1} parent=1 // pred_fallthru
      _
    // Predicated region
    $region242: #{tpu_custom_call.1} parent=1 // pred_check
      _
    $region243: #{tpu_custom_call.1} parent=1 // pred_check_branch
      %482 = sbr.rel (0) target = $region245
    $region244: #{tpu_custom_call.1} parent=1 // pred_region
      %483 = dma.done [#allocation36], 1024
    $region245: #{tpu_custom_call.1} parent=1 // pred_fallthru
      _
    // Predicated region
    $region246: #{tpu_custom_call.1} parent=1 // pred_check
      _
    $region247: #{tpu_custom_call.1} parent=1 // pred_check_branch
      %485 = sbr.rel (0) target = $region249
    $region248: #{tpu_custom_call.1} parent=1 // pred_region
      %486 = dma.done [#allocation39], 1024
    $region249: #{tpu_custom_call.1} parent=1 // pred_fallthru
      _
    // Predicated region
    $region250: #{tpu_custom_call.1} parent=1 // pred_check
      _
    $region251: #{tpu_custom_call.1} parent=1 // pred_check_branch
      %488 = sbr.rel (0) target = $region253
    $region252: #{tpu_custom_call.1} parent=1 // pred_region
      %489 = dma.done [#allocation39], 1024
    $region253: #{tpu_custom_call.1} parent=1 // pred_fallthru
      _
    // Predicated region
    $region254: #{tpu_custom_call.1} parent=1 // pred_check
      _
    $region255: #{tpu_custom_call.1} parent=1 // pred_check_branch
      %491 = sbr.rel (0) target = $region257
    $region256: #{tpu_custom_call.1} parent=1 // pred_region
      %492 = dma.done [#allocation42], 1024
    $region257: #{tpu_custom_call.1} parent=1 // pred_fallthru
      _
    %v494 = vld [vmem:[%s1] sm:$0xff]
    %v495 = vld [vmem:[%s1 + $0x8] sm:$0xff]
    %v496 = vld [vmem:[%s1 + $0x10] sm:$0xff]
    %v497 = vld [vmem:[%s1 + $0x18] sm:$0xff]
    %v498 = vld [vmem:[%s1 + $0x20] sm:$0xff]
    %v499 = vld [vmem:[%s1 + $0x28] sm:$0xff]
    %v500 = vld [vmem:[%s1 + $0x30] sm:$0xff]
    %v501 = vld [vmem:[%s1 + $0x38] sm:$0xff]
    %v502 = vld [vmem:[%s1 + $0x40] sm:$0xff]
    %v503 = vld [vmem:[%s1 + $0x48] sm:$0xff]
    %v504 = vld [vmem:[%s1 + $0x50] sm:$0xff]
    %v505 = vld [vmem:[%s1 + $0x58] sm:$0xff]
    %v506 = vld [vmem:[%s1 + $0x60] sm:$0xff]
    %v507 = vld [vmem:[%s1 + $0x68] sm:$0xff]
    %v508 = vld [vmem:[%s1 + $0x70] sm:$0xff]
    %v509 = vld [vmem:[%s1 + $0x78] sm:$0xff]
    %v510 = vld [vmem:[%s1 + $0x80] sm:$0xff]
    %v511 = vld [vmem:[%s1 + $0x88] sm:$0xff]
    %v512 = vld [vmem:[%s1 + $0x90] sm:$0xff]
    %v513 = vld [vmem:[%s1 + $0x98] sm:$0xff]
    %v514 = vld [vmem:[%s1 + $0xa0] sm:$0xff]
    %v515 = vld [vmem:[%s1 + $0xa8] sm:$0xff]
    %v516 = vld [vmem:[%s1 + $0xb0] sm:$0xff]
    %v517 = vld [vmem:[%s1 + $0xb8] sm:$0xff]
    %v518 = vld [vmem:[%s1 + $0xc0] sm:$0xff]
    %v519 = vld [vmem:[%s1 + $0xc8] sm:$0xff]
    %v520 = vld [vmem:[%s1 + $0xd0] sm:$0xff]
    %v521 = vld [vmem:[%s1 + $0xd8] sm:$0xff]
    %v522 = vld [vmem:[%s1 + $0xe0] sm:$0xff]
    %v523 = vld [vmem:[%s1 + $0xe8] sm:$0xff]
    %v524 = vld [vmem:[%s1 + $0xf0] sm:$0xff]
    %v525 = vld [vmem:[%s1 + $0xf8] sm:$0xff]
    %v526 = vld [vmem:[%s1 + $0x100] sm:$0xff]
    %v527 = vld [vmem:[%s1 + $0x108] sm:$0xff]
    %v528 = vld [vmem:[%s1 + $0x110] sm:$0xff]
    %v529 = vld [vmem:[%s1 + $0x118] sm:$0xff]
    %v530 = vld [vmem:[%s1 + $0x120] sm:$0xff]
    %v531 = vld [vmem:[%s1 + $0x128] sm:$0xff]
    %v532 = vld [vmem:[%s1 + $0x130] sm:$0xff]
    %v533 = vld [vmem:[%s1 + $0x138] sm:$0xff]
    %v534 = vld [vmem:[%s1 + $0x140] sm:$0xff]
    %v535 = vld [vmem:[%s1 + $0x148] sm:$0xff]
    %v536 = vld [vmem:[%s1 + $0x150] sm:$0xff]
    %v537 = vld [vmem:[%s1 + $0x158] sm:$0xff]
    %v538 = vld [vmem:[%s1 + $0x160] sm:$0xff]
    %v539 = vld [vmem:[%s1 + $0x168] sm:$0xff]
    %v540 = vld [vmem:[%s1 + $0x170] sm:$0xff]
    %v541 = vld [vmem:[%s1 + $0x178] sm:$0xff]
    %v542 = vld [vmem:[%s1 + $0x180] sm:$0xff]
    %v543 = vld [vmem:[%s1 + $0x188] sm:$0xff]
    %v544 = vld [vmem:[%s1 + $0x190] sm:$0xff]
    %v545 = vld [vmem:[%s1 + $0x198] sm:$0xff]
    %v546 = vld [vmem:[%s1 + $0x1a0] sm:$0xff]
    %v547 = vld [vmem:[%s1 + $0x1a8] sm:$0xff]
    %v548 = vld [vmem:[%s1 + $0x1b0] sm:$0xff]
    %v549 = vld [vmem:[%s1 + $0x1b8] sm:$0xff]
    %v550 = vld [vmem:[%s1 + $0x1c0] sm:$0xff]
    %v551 = vld [vmem:[%s1 + $0x1c8] sm:$0xff]
    %v552 = vld [vmem:[%s1 + $0x1d0] sm:$0xff]
    %v553 = vld [vmem:[%s1 + $0x1d8] sm:$0xff]
    %v554 = vld [vmem:[%s1 + $0x1e0] sm:$0xff]
    %v555 = vld [vmem:[%s1 + $0x1e8] sm:$0xff]
    %v556 = vld [vmem:[%s1 + $0x1f0] sm:$0xff]
    %v557 = vld [vmem:[%s1 + $0x1f8] sm:$0xff]
    %v558 = vld [vmem:[#allocation2] sm:$0x77]
    %v559 = vld [vmem:[%s5] sm:$0x3]
    %561 = vset.pattern.permute.xlu0 0
    %562 = vperm.xlu0 %561, %v494
    %v563 = vpop.permute.xlu0 %562
    %566 = vset.pattern.permute.xlu0 0
    %567 = vperm.xlu0 %566, %v495
    %v568 = vpop.permute.xlu0 %567
    %571 = vset.pattern.permute.xlu0 0
    %572 = vperm.xlu0 %571, %v496
    %v573 = vpop.permute.xlu0 %572
    %576 = vset.pattern.permute.xlu0 0
    %577 = vperm.xlu0 %576, %v497
    %v578 = vpop.permute.xlu0 %577
    %581 = vset.pattern.permute.xlu0 0
    %582 = vperm.xlu0 %581, %v498
    %v583 = vpop.permute.xlu0 %582
    %586 = vset.pattern.permute.xlu0 0
    %587 = vperm.xlu0 %586, %v499
    %v588 = vpop.permute.xlu0 %587
    %591 = vset.pattern.permute.xlu0 0
    %592 = vperm.xlu0 %591, %v500
    %v593 = vpop.permute.xlu0 %592
    %596 = vset.pattern.permute.xlu0 0
    %597 = vperm.xlu0 %596, %v501
    %v598 = vpop.permute.xlu0 %597
    %601 = vset.pattern.permute.xlu0 0
    %602 = vperm.xlu0 %601, %v502
    %v603 = vpop.permute.xlu0 %602
    %606 = vset.pattern.permute.xlu0 0
    %607 = vperm.xlu0 %606, %v503
    %v608 = vpop.permute.xlu0 %607
    %611 = vset.pattern.permute.xlu0 0
    %612 = vperm.xlu0 %611, %v504
    %v613 = vpop.permute.xlu0 %612
    %616 = vset.pattern.permute.xlu0 0
    %617 = vperm.xlu0 %616, %v505
    %v618 = vpop.permute.xlu0 %617
    %621 = vset.pattern.permute.xlu0 0
    %622 = vperm.xlu0 %621, %v506
    %v623 = vpop.permute.xlu0 %622
    %626 = vset.pattern.permute.xlu0 0
    %627 = vperm.xlu0 %626, %v507
    %v628 = vpop.permute.xlu0 %627
    %631 = vset.pattern.permute.xlu0 0
    %632 = vperm.xlu0 %631, %v508
    %v633 = vpop.permute.xlu0 %632
    %636 = vset.pattern.permute.xlu0 0
    %637 = vperm.xlu0 %636, %v509
    %v638 = vpop.permute.xlu0 %637
    %641 = vset.pattern.permute.xlu0 0
    %642 = vperm.xlu0 %641, %v510
    %v643 = vpop.permute.xlu0 %642
    %646 = vset.pattern.permute.xlu0 0
    %647 = vperm.xlu0 %646, %v511
    %v648 = vpop.permute.xlu0 %647
    %651 = vset.pattern.permute.xlu0 0
    %652 = vperm.xlu0 %651, %v512
    %v653 = vpop.permute.xlu0 %652
    %656 = vset.pattern.permute.xlu0 0
    %657 = vperm.xlu0 %656, %v513
    %v658 = vpop.permute.xlu0 %657
    %661 = vset.pattern.permute.xlu0 0
    %662 = vperm.xlu0 %661, %v514
    %v663 = vpop.permute.xlu0 %662
    %666 = vset.pattern.permute.xlu0 0
    %667 = vperm.xlu0 %666, %v515
    %v668 = vpop.permute.xlu0 %667
    %671 = vset.pattern.permute.xlu0 0
    %672 = vperm.xlu0 %671, %v516
    %v673 = vpop.permute.xlu0 %672
    %676 = vset.pattern.permute.xlu0 0
    %677 = vperm.xlu0 %676, %v517
    %v678 = vpop.permute.xlu0 %677
    %681 = vset.pattern.permute.xlu0 0
    %682 = vperm.xlu0 %681, %v518
    %v683 = vpop.permute.xlu0 %682
    %686 = vset.pattern.permute.xlu0 0
    %687 = vperm.xlu0 %686, %v519
    %v688 = vpop.permute.xlu0 %687
    %691 = vset.pattern.permute.xlu0 0
    %692 = vperm.xlu0 %691, %v520
    %v693 = vpop.permute.xlu0 %692
    %696 = vset.pattern.permute.xlu0 0
    %697 = vperm.xlu0 %696, %v521
    %v698 = vpop.permute.xlu0 %697
    %701 = vset.pattern.permute.xlu0 0
    %702 = vperm.xlu0 %701, %v522
    %v703 = vpop.permute.xlu0 %702
    %706 = vset.pattern.permute.xlu0 0
    %707 = vperm.xlu0 %706, %v523
    %v708 = vpop.permute.xlu0 %707
    %711 = vset.pattern.permute.xlu0 0
    %712 = vperm.xlu0 %711, %v524
    %v713 = vpop.permute.xlu0 %712
    %716 = vset.pattern.permute.xlu0 0
    %717 = vperm.xlu0 %716, %v525
    %v718 = vpop.permute.xlu0 %717
    %721 = vset.pattern.permute.xlu0 0
    %722 = vperm.xlu0 %721, %v526
    %v723 = vpop.permute.xlu0 %722
    %726 = vset.pattern.permute.xlu0 0
    %727 = vperm.xlu0 %726, %v527
    %v728 = vpop.permute.xlu0 %727
    %731 = vset.pattern.permute.xlu0 0
    %732 = vperm.xlu0 %731, %v528
    %v733 = vpop.permute.xlu0 %732
    %736 = vset.pattern.permute.xlu0 0
    %737 = vperm.xlu0 %736, %v529
    %v738 = vpop.permute.xlu0 %737
    %741 = vset.pattern.permute.xlu0 0
    %742 = vperm.xlu0 %741, %v530
    %v743 = vpop.permute.xlu0 %742
    %746 = vset.pattern.permute.xlu0 0
    %747 = vperm.xlu0 %746, %v531
    %v748 = vpop.permute.xlu0 %747
    %751 = vset.pattern.permute.xlu0 0
    %752 = vperm.xlu0 %751, %v532
    %v753 = vpop.permute.xlu0 %752
    %756 = vset.pattern.permute.xlu0 0
    %757 = vperm.xlu0 %756, %v533
    %v758 = vpop.permute.xlu0 %757
    %761 = vset.pattern.permute.xlu0 0
    %762 = vperm.xlu0 %761, %v534
    %v763 = vpop.permute.xlu0 %762
    %766 = vset.pattern.permute.xlu0 0
    %767 = vperm.xlu0 %766, %v535
    %v768 = vpop.permute.xlu0 %767
    %771 = vset.pattern.permute.xlu0 0
    %772 = vperm.xlu0 %771, %v536
    %v773 = vpop.permute.xlu0 %772
    %776 = vset.pattern.permute.xlu0 0
    %777 = vperm.xlu0 %776, %v537
    %v778 = vpop.permute.xlu0 %777
    %781 = vset.pattern.permute.xlu0 0
    %782 = vperm.xlu0 %781, %v538
    %v783 = vpop.permute.xlu0 %782
    %786 = vset.pattern.permute.xlu0 0
    %787 = vperm.xlu0 %786, %v539
    %v788 = vpop.permute.xlu0 %787
    %791 = vset.pattern.permute.xlu0 0
    %792 = vperm.xlu0 %791, %v540
    %v793 = vpop.permute.xlu0 %792
    %796 = vset.pattern.permute.xlu0 0
    %797 = vperm.xlu0 %796, %v541
    %v798 = vpop.permute.xlu0 %797
    %801 = vset.pattern.permute.xlu0 0
    %802 = vperm.xlu0 %801, %v542
    %v803 = vpop.permute.xlu0 %802
    %806 = vset.pattern.permute.xlu0 0
    %807 = vperm.xlu0 %806, %v543
    %v808 = vpop.permute.xlu0 %807
    %811 = vset.pattern.permute.xlu0 0
    %812 = vperm.xlu0 %811, %v544
    %v813 = vpop.permute.xlu0 %812
    %816 = vset.pattern.permute.xlu0 0
    %817 = vperm.xlu0 %816, %v545
    %v818 = vpop.permute.xlu0 %817
    %821 = vset.pattern.permute.xlu0 0
    %822 = vperm.xlu0 %821, %v546
    %v823 = vpop.permute.xlu0 %822
    %826 = vset.pattern.permute.xlu0 0
    %827 = vperm.xlu0 %826, %v547
    %v828 = vpop.permute.xlu0 %827
    %831 = vset.pattern.permute.xlu0 0
    %832 = vperm.xlu0 %831, %v548
    %v833 = vpop.permute.xlu0 %832
    %836 = vset.pattern.permute.xlu0 0
    %837 = vperm.xlu0 %836, %v549
    %v838 = vpop.permute.xlu0 %837
    %841 = vset.pattern.permute.xlu0 0
    %842 = vperm.xlu0 %841, %v550
    %v843 = vpop.permute.xlu0 %842
    %846 = vset.pattern.permute.xlu0 0
    %847 = vperm.xlu0 %846, %v551
    %v848 = vpop.permute.xlu0 %847
    %851 = vset.pattern.permute.xlu0 0
    %852 = vperm.xlu0 %851, %v552
    %v853 = vpop.permute.xlu0 %852
    %856 = vset.pattern.permute.xlu0 0
    %857 = vperm.xlu0 %856, %v553
    %v858 = vpop.permute.xlu0 %857
    %861 = vset.pattern.permute.xlu0 0
    %862 = vperm.xlu0 %861, %v554
    %v863 = vpop.permute.xlu0 %862
    %866 = vset.pattern.permute.xlu0 0
    %867 = vperm.xlu0 %866, %v555
    %v868 = vpop.permute.xlu0 %867
    %871 = vset.pattern.permute.xlu0 0
    %872 = vperm.xlu0 %871, %v556
    %v873 = vpop.permute.xlu0 %872
    %876 = vset.pattern.permute.xlu0 0
    %877 = vperm.xlu0 %876, %v557
    %v878 = vpop.permute.xlu0 %877
    %v881 = vlaneseq
    %v882 = vshrl.u32 %v881, 7
    %v883 = vsub.s32 0, %v882
    %v884 = vrot.slane %v558, %v883
    %v885 = vlaneseq
    %v886 = vshrl.u32 %v885, 7
    %v887 = vsub.s32 4, %v886
    %v888 = vrot.slane %v558, %v887
    %v891 = vlaneseq
    %v892 = vshrl.u32 %v891, 7
    %v893 = vsub.s32 0, %v892
    %v894 = vrot.slane %v884, %v893
    %v895 = vlaneseq
    %v896 = vshrl.u32 %v895, 7
    %v897 = vsub.s32 0, %v896
    %v898 = vrot.slane %v888, %v897
    %v899 = vmul.f32 %v563, %v894
    %v900 = vmul.f32 %v563, %v898
    %v901 = vmul.f32 %v568, %v894
    %v902 = vmul.f32 %v568, %v898
    %v903 = vmul.f32 %v573, %v894
    %v904 = vmul.f32 %v573, %v898
    %v905 = vmul.f32 %v578, %v894
    %v906 = vmul.f32 %v578, %v898
    %v907 = vmul.f32 %v583, %v894
    %v908 = vmul.f32 %v583, %v898
    %v909 = vmul.f32 %v588, %v894
    %v910 = vmul.f32 %v588, %v898
    %v911 = vmul.f32 %v593, %v894
    %v912 = vmul.f32 %v593, %v898
    %v913 = vmul.f32 %v598, %v894
    %v914 = vmul.f32 %v598, %v898
    %v915 = vmul.f32 %v603, %v894
    %v916 = vmul.f32 %v603, %v898
    %v917 = vmul.f32 %v608, %v894
    %v918 = vmul.f32 %v608, %v898
    %v919 = vmul.f32 %v613, %v894
    %v920 = vmul.f32 %v613, %v898
    %v921 = vmul.f32 %v618, %v894
    %v922 = vmul.f32 %v618, %v898
    %v923 = vmul.f32 %v623, %v894
    %v924 = vmul.f32 %v623, %v898
    %v925 = vmul.f32 %v628, %v894
    %v926 = vmul.f32 %v628, %v898
    %v927 = vmul.f32 %v633, %v894
    %v928 = vmul.f32 %v633, %v898
    %v929 = vmul.f32 %v638, %v894
    %v930 = vmul.f32 %v638, %v898
    %v931 = vmul.f32 %v643, %v894
    %v932 = vmul.f32 %v643, %v898
    %v933 = vmul.f32 %v648, %v894
    %v934 = vmul.f32 %v648, %v898
    %v935 = vmul.f32 %v653, %v894
    %v936 = vmul.f32 %v653, %v898
    %v937 = vmul.f32 %v658, %v894
    %v938 = vmul.f32 %v658, %v898
    %v939 = vmul.f32 %v663, %v894
    %v940 = vmul.f32 %v663, %v898
    %v941 = vmul.f32 %v668, %v894
    %v942 = vmul.f32 %v668, %v898
    %v943 = vmul.f32 %v673, %v894
    %v944 = vmul.f32 %v673, %v898
    %v945 = vmul.f32 %v678, %v894
    %v946 = vmul.f32 %v678, %v898
    %v947 = vmul.f32 %v683, %v894
    %v948 = vmul.f32 %v683, %v898
    %v949 = vmul.f32 %v688, %v894
    %v950 = vmul.f32 %v688, %v898
    %v951 = vmul.f32 %v693, %v894
    %v952 = vmul.f32 %v693, %v898
    %v953 = vmul.f32 %v698, %v894
    %v954 = vmul.f32 %v698, %v898
    %v955 = vmul.f32 %v703, %v894
    %v956 = vmul.f32 %v703, %v898
    %v957 = vmul.f32 %v708, %v894
    %v958 = vmul.f32 %v708, %v898
    %v959 = vmul.f32 %v713, %v894
    %v960 = vmul.f32 %v713, %v898
    %v961 = vmul.f32 %v718, %v894
    %v962 = vmul.f32 %v718, %v898
    %v963 = vmul.f32 %v723, %v894
    %v964 = vmul.f32 %v723, %v898
    %v965 = vmul.f32 %v728, %v894
    %v966 = vmul.f32 %v728, %v898
    %v967 = vmul.f32 %v733, %v894
    %v968 = vmul.f32 %v733, %v898
    %v969 = vmul.f32 %v738, %v894
    %v970 = vmul.f32 %v738, %v898
    %v971 = vmul.f32 %v743, %v894
    %v972 = vmul.f32 %v743, %v898
    %v973 = vmul.f32 %v748, %v894
    %v974 = vmul.f32 %v748, %v898
    %v975 = vmul.f32 %v753, %v894
    %v976 = vmul.f32 %v753, %v898
    %v977 = vmul.f32 %v758, %v894
    %v978 = vmul.f32 %v758, %v898
    %v979 = vmul.f32 %v763, %v894
    %v980 = vmul.f32 %v763, %v898
    %v981 = vmul.f32 %v768, %v894
    %v982 = vmul.f32 %v768, %v898
    %v983 = vmul.f32 %v773, %v894
    %v984 = vmul.f32 %v773, %v898
    %v985 = vmul.f32 %v778, %v894
    %v986 = vmul.f32 %v778, %v898
    %v987 = vmul.f32 %v783, %v894
    %v988 = vmul.f32 %v783, %v898
    %v989 = vmul.f32 %v788, %v894
    %v990 = vmul.f32 %v788, %v898
    %v991 = vmul.f32 %v793, %v894
    %v992 = vmul.f32 %v793, %v898
    %v993 = vmul.f32 %v798, %v894
    %v994 = vmul.f32 %v798, %v898
    %v995 = vmul.f32 %v803, %v894
    %v996 = vmul.f32 %v803, %v898
    %v997 = vmul.f32 %v808, %v894
    %v998 = vmul.f32 %v808, %v898
    %v999 = vmul.f32 %v813, %v894
    %v1000 = vmul.f32 %v813, %v898
    %v1001 = vmul.f32 %v818, %v894
    %v1002 = vmul.f32 %v818, %v898
    %v1003 = vmul.f32 %v823, %v894
    %v1004 = vmul.f32 %v823, %v898
    %v1005 = vmul.f32 %v828, %v894
    %v1006 = vmul.f32 %v828, %v898
    %v1007 = vmul.f32 %v833, %v894
    %v1008 = vmul.f32 %v833, %v898
    %v1009 = vmul.f32 %v838, %v894
    %v1010 = vmul.f32 %v838, %v898
    %v1011 = vmul.f32 %v843, %v894
    %v1012 = vmul.f32 %v843, %v898
    %v1013 = vmul.f32 %v848, %v894
    %v1014 = vmul.f32 %v848, %v898
    %v1015 = vmul.f32 %v853, %v894
    %v1016 = vmul.f32 %v853, %v898
    %v1017 = vmul.f32 %v858, %v894
    %v1018 = vmul.f32 %v858, %v898
    %v1019 = vmul.f32 %v863, %v894
    %v1020 = vmul.f32 %v863, %v898
    %v1021 = vmul.f32 %v868, %v894
    %v1022 = vmul.f32 %v868, %v898
    %v1023 = vmul.f32 %v873, %v894
    %v1024 = vmul.f32 %v873, %v898
    %v1025 = vmul.f32 %v878, %v894
    %v1026 = vmul.f32 %v878, %v898
    %v1028 = vlaneseq
    %v1029 = vshrl.u32 %v1028, 7
    %v1030 = vsub.s32 0, %v1029
    %v1031 = vrot.slane %v559, %v1030
    %v1032 = vlaneseq
    %v1033 = vshrl.u32 %v1032, 7
    %v1034 = vsub.s32 1, %v1033
    %v1035 = vrot.slane %v559, %v1034
    %v1038 = vadd.f32 %v1031, %v899
    %v1039 = vadd.f32 %v1035, %v900
    %v1040 = vadd.f32 %v1031, %v901
    %v1041 = vadd.f32 %v1035, %v902
    %v1042 = vadd.f32 %v1031, %v903
    %v1043 = vadd.f32 %v1035, %v904
    %v1044 = vadd.f32 %v1031, %v905
    %v1045 = vadd.f32 %v1035, %v906
    %v1046 = vadd.f32 %v1031, %v907
    %v1047 = vadd.f32 %v1035, %v908
    %v1048 = vadd.f32 %v1031, %v909
    %v1049 = vadd.f32 %v1035, %v910
    %v1050 = vadd.f32 %v1031, %v911
    %v1051 = vadd.f32 %v1035, %v912
    %v1052 = vadd.f32 %v1031, %v913
    %v1053 = vadd.f32 %v1035, %v914
    %v1054 = vadd.f32 %v1031, %v915
    %v1055 = vadd.f32 %v1035, %v916
    %v1056 = vadd.f32 %v1031, %v917
    %v1057 = vadd.f32 %v1035, %v918
    %v1058 = vadd.f32 %v1031, %v919
    %v1059 = vadd.f32 %v1035, %v920
    %v1060 = vadd.f32 %v1031, %v921
    %v1061 = vadd.f32 %v1035, %v922
    %v1062 = vadd.f32 %v1031, %v923
    %v1063 = vadd.f32 %v1035, %v924
    %v1064 = vadd.f32 %v1031, %v925
    %v1065 = vadd.f32 %v1035, %v926
    %v1066 = vadd.f32 %v1031, %v927
    %v1067 = vadd.f32 %v1035, %v928
    %v1068 = vadd.f32 %v1031, %v929
    %v1069 = vadd.f32 %v1035, %v930
    %v1070 = vadd.f32 %v1031, %v931
    %v1071 = vadd.f32 %v1035, %v932
    %v1072 = vadd.f32 %v1031, %v933
    %v1073 = vadd.f32 %v1035, %v934
    %v1074 = vadd.f32 %v1031, %v935
    %v1075 = vadd.f32 %v1035, %v936
    %v1076 = vadd.f32 %v1031, %v937
    %v1077 = vadd.f32 %v1035, %v938
    %v1078 = vadd.f32 %v1031, %v939
    %v1079 = vadd.f32 %v1035, %v940
    %v1080 = vadd.f32 %v1031, %v941
    %v1081 = vadd.f32 %v1035, %v942
    %v1082 = vadd.f32 %v1031, %v943
    %v1083 = vadd.f32 %v1035, %v944
    %v1084 = vadd.f32 %v1031, %v945
    %v1085 = vadd.f32 %v1035, %v946
    %v1086 = vadd.f32 %v1031, %v947
    %v1087 = vadd.f32 %v1035, %v948
    %v1088 = vadd.f32 %v1031, %v949
    %v1089 = vadd.f32 %v1035, %v950
    %v1090 = vadd.f32 %v1031, %v951
    %v1091 = vadd.f32 %v1035, %v952
    %v1092 = vadd.f32 %v1031, %v953
    %v1093 = vadd.f32 %v1035, %v954
    %v1094 = vadd.f32 %v1031, %v955
    %v1095 = vadd.f32 %v1035, %v956
    %v1096 = vadd.f32 %v1031, %v957
    %v1097 = vadd.f32 %v1035, %v958
    %v1098 = vadd.f32 %v1031, %v959
    %v1099 = vadd.f32 %v1035, %v960
    %v1100 = vadd.f32 %v1031, %v961
    %v1101 = vadd.f32 %v1035, %v962
    %v1102 = vadd.f32 %v1031, %v963
    %v1103 = vadd.f32 %v1035, %v964
    %v1104 = vadd.f32 %v1031, %v965
    %v1105 = vadd.f32 %v1035, %v966
    %v1106 = vadd.f32 %v1031, %v967
    %v1107 = vadd.f32 %v1035, %v968
    %v1108 = vadd.f32 %v1031, %v969
    %v1109 = vadd.f32 %v1035, %v970
    %v1110 = vadd.f32 %v1031, %v971
    %v1111 = vadd.f32 %v1035, %v972
    %v1112 = vadd.f32 %v1031, %v973
    %v1113 = vadd.f32 %v1035, %v974
    %v1114 = vadd.f32 %v1031, %v975
    %v1115 = vadd.f32 %v1035, %v976
    %v1116 = vadd.f32 %v1031, %v977
    %v1117 = vadd.f32 %v1035, %v978
    %v1118 = vadd.f32 %v1031, %v979
    %v1119 = vadd.f32 %v1035, %v980
    %v1120 = vadd.f32 %v1031, %v981
    %v1121 = vadd.f32 %v1035, %v982
    %v1122 = vadd.f32 %v1031, %v983
    %v1123 = vadd.f32 %v1035, %v984
    %v1124 = vadd.f32 %v1031, %v985
    %v1125 = vadd.f32 %v1035, %v986
    %v1126 = vadd.f32 %v1031, %v987
    %v1127 = vadd.f32 %v1035, %v988
    %v1128 = vadd.f32 %v1031, %v989
    %v1129 = vadd.f32 %v1035, %v990
    %v1130 = vadd.f32 %v1031, %v991
    %v1131 = vadd.f32 %v1035, %v992
    %v1132 = vadd.f32 %v1031, %v993
    %v1133 = vadd.f32 %v1035, %v994
    %v1134 = vadd.f32 %v1031, %v995
    %v1135 = vadd.f32 %v1035, %v996
    %v1136 = vadd.f32 %v1031, %v997
    %v1137 = vadd.f32 %v1035, %v998
    %v1138 = vadd.f32 %v1031, %v999
    %v1139 = vadd.f32 %v1035, %v1000
    %v1140 = vadd.f32 %v1031, %v1001
    %v1141 = vadd.f32 %v1035, %v1002
    %v1142 = vadd.f32 %v1031, %v1003
    %v1143 = vadd.f32 %v1035, %v1004
    %v1144 = vadd.f32 %v1031, %v1005
    %v1145 = vadd.f32 %v1035, %v1006
    %v1146 = vadd.f32 %v1031, %v1007
    %v1147 = vadd.f32 %v1035, %v1008
    %v1148 = vadd.f32 %v1031, %v1009
    %v1149 = vadd.f32 %v1035, %v1010
    %v1150 = vadd.f32 %v1031, %v1011
    %v1151 = vadd.f32 %v1035, %v1012
    %v1152 = vadd.f32 %v1031, %v1013
    %v1153 = vadd.f32 %v1035, %v1014
    %v1154 = vadd.f32 %v1031, %v1015
    %v1155 = vadd.f32 %v1035, %v1016
    %v1156 = vadd.f32 %v1031, %v1017
    %v1157 = vadd.f32 %v1035, %v1018
    %v1158 = vadd.f32 %v1031, %v1019
    %v1159 = vadd.f32 %v1035, %v1020
    %v1160 = vadd.f32 %v1031, %v1021
    %v1161 = vadd.f32 %v1035, %v1022
    %v1162 = vadd.f32 %v1031, %v1023
    %v1163 = vadd.f32 %v1035, %v1024
    %v1164 = vadd.f32 %v1031, %v1025
    %v1165 = vadd.f32 %v1035, %v1026
    %1166 = vset.pattern.permute.xlu0 1
    %1167 = vperm.xlu0 %1166, %v494
    %v1168 = vpop.permute.xlu0 %1167
    %1170 = vset.pattern.permute.xlu0 1
    %1171 = vperm.xlu0 %1170, %v495
    %v1172 = vpop.permute.xlu0 %1171
    %1174 = vset.pattern.permute.xlu0 1
    %1175 = vperm.xlu0 %1174, %v496
    %v1176 = vpop.permute.xlu0 %1175
    %1178 = vset.pattern.permute.xlu0 1
    %1179 = vperm.xlu0 %1178, %v497
    %v1180 = vpop.permute.xlu0 %1179
    %1182 = vset.pattern.permute.xlu0 1
    %1183 = vperm.xlu0 %1182, %v498
    %v1184 = vpop.permute.xlu0 %1183
    %1186 = vset.pattern.permute.xlu0 1
    %1187 = vperm.xlu0 %1186, %v499
    %v1188 = vpop.permute.xlu0 %1187
    %1190 = vset.pattern.permute.xlu0 1
    %1191 = vperm.xlu0 %1190, %v500
    %v1192 = vpop.permute.xlu0 %1191
    %1194 = vset.pattern.permute.xlu0 1
    %1195 = vperm.xlu0 %1194, %v501
    %v1196 = vpop.permute.xlu0 %1195
    %1198 = vset.pattern.permute.xlu0 1
    %1199 = vperm.xlu0 %1198, %v502
    %v1200 = vpop.permute.xlu0 %1199
    %1202 = vset.pattern.permute.xlu0 1
    %1203 = vperm.xlu0 %1202, %v503
    %v1204 = vpop.permute.xlu0 %1203
    %1206 = vset.pattern.permute.xlu0 1
    %1207 = vperm.xlu0 %1206, %v504
    %v1208 = vpop.permute.xlu0 %1207
    %1210 = vset.pattern.permute.xlu0 1
    %1211 = vperm.xlu0 %1210, %v505
    %v1212 = vpop.permute.xlu0 %1211
    %1214 = vset.pattern.permute.xlu0 1
    %1215 = vperm.xlu0 %1214, %v506
    %v1216 = vpop.permute.xlu0 %1215
    %1218 = vset.pattern.permute.xlu0 1
    %1219 = vperm.xlu0 %1218, %v507
    %v1220 = vpop.permute.xlu0 %1219
    %1222 = vset.pattern.permute.xlu0 1
    %1223 = vperm.xlu0 %1222, %v508
    %v1224 = vpop.permute.xlu0 %1223
    %1226 = vset.pattern.permute.xlu0 1
    %1227 = vperm.xlu0 %1226, %v509
    %v1228 = vpop.permute.xlu0 %1227
    %1230 = vset.pattern.permute.xlu0 1
    %1231 = vperm.xlu0 %1230, %v510
    %v1232 = vpop.permute.xlu0 %1231
    %1234 = vset.pattern.permute.xlu0 1
    %1235 = vperm.xlu0 %1234, %v511
    %v1236 = vpop.permute.xlu0 %1235
    %1238 = vset.pattern.permute.xlu0 1
    %1239 = vperm.xlu0 %1238, %v512
    %v1240 = vpop.permute.xlu0 %1239
    %1242 = vset.pattern.permute.xlu0 1
    %1243 = vperm.xlu0 %1242, %v513
    %v1244 = vpop.permute.xlu0 %1243
    %1246 = vset.pattern.permute.xlu0 1
    %1247 = vperm.xlu0 %1246, %v514
    %v1248 = vpop.permute.xlu0 %1247
    %1250 = vset.pattern.permute.xlu0 1
    %1251 = vperm.xlu0 %1250, %v515
    %v1252 = vpop.permute.xlu0 %1251
    %1254 = vset.pattern.permute.xlu0 1
    %1255 = vperm.xlu0 %1254, %v516
    %v1256 = vpop.permute.xlu0 %1255
    %1258 = vset.pattern.permute.xlu0 1
    %1259 = vperm.xlu0 %1258, %v517
    %v1260 = vpop.permute.xlu0 %1259
    %1262 = vset.pattern.permute.xlu0 1
    %1263 = vperm.xlu0 %1262, %v518
    %v1264 = vpop.permute.xlu0 %1263
    %1266 = vset.pattern.permute.xlu0 1
    %1267 = vperm.xlu0 %1266, %v519
    %v1268 = vpop.permute.xlu0 %1267
    %1270 = vset.pattern.permute.xlu0 1
    %1271 = vperm.xlu0 %1270, %v520
    %v1272 = vpop.permute.xlu0 %1271
    %1274 = vset.pattern.permute.xlu0 1
    %1275 = vperm.xlu0 %1274, %v521
    %v1276 = vpop.permute.xlu0 %1275
    %1278 = vset.pattern.permute.xlu0 1
    %1279 = vperm.xlu0 %1278, %v522
    %v1280 = vpop.permute.xlu0 %1279
    %1282 = vset.pattern.permute.xlu0 1
    %1283 = vperm.xlu0 %1282, %v523
    %v1284 = vpop.permute.xlu0 %1283
    %1286 = vset.pattern.permute.xlu0 1
    %1287 = vperm.xlu0 %1286, %v524
    %v1288 = vpop.permute.xlu0 %1287
    %1290 = vset.pattern.permute.xlu0 1
    %1291 = vperm.xlu0 %1290, %v525
    %v1292 = vpop.permute.xlu0 %1291
    %1294 = vset.pattern.permute.xlu0 1
    %1295 = vperm.xlu0 %1294, %v526
    %v1296 = vpop.permute.xlu0 %1295
    %1298 = vset.pattern.permute.xlu0 1
    %1299 = vperm.xlu0 %1298, %v527
    %v1300 = vpop.permute.xlu0 %1299
    %1302 = vset.pattern.permute.xlu0 1
    %1303 = vperm.xlu0 %1302, %v528
    %v1304 = vpop.permute.xlu0 %1303
    %1306 = vset.pattern.permute.xlu0 1
    %1307 = vperm.xlu0 %1306, %v529
    %v1308 = vpop.permute.xlu0 %1307
    %1310 = vset.pattern.permute.xlu0 1
    %1311 = vperm.xlu0 %1310, %v530
    %v1312 = vpop.permute.xlu0 %1311
    %1314 = vset.pattern.permute.xlu0 1
    %1315 = vperm.xlu0 %1314, %v531
    %v1316 = vpop.permute.xlu0 %1315
    %1318 = vset.pattern.permute.xlu0 1
    %1319 = vperm.xlu0 %1318, %v532
    %v1320 = vpop.permute.xlu0 %1319
    %1322 = vset.pattern.permute.xlu0 1
    %1323 = vperm.xlu0 %1322, %v533
    %v1324 = vpop.permute.xlu0 %1323
    %1326 = vset.pattern.permute.xlu0 1
    %1327 = vperm.xlu0 %1326, %v534
    %v1328 = vpop.permute.xlu0 %1327
    %1330 = vset.pattern.permute.xlu0 1
    %1331 = vperm.xlu0 %1330, %v535
    %v1332 = vpop.permute.xlu0 %1331
    %1334 = vset.pattern.permute.xlu0 1
    %1335 = vperm.xlu0 %1334, %v536
    %v1336 = vpop.permute.xlu0 %1335
    %1338 = vset.pattern.permute.xlu0 1
    %1339 = vperm.xlu0 %1338, %v537
    %v1340 = vpop.permute.xlu0 %1339
    %1342 = vset.pattern.permute.xlu0 1
    %1343 = vperm.xlu0 %1342, %v538
    %v1344 = vpop.permute.xlu0 %1343
    %1346 = vset.pattern.permute.xlu0 1
    %1347 = vperm.xlu0 %1346, %v539
    %v1348 = vpop.permute.xlu0 %1347
    %1350 = vset.pattern.permute.xlu0 1
    %1351 = vperm.xlu0 %1350, %v540
    %v1352 = vpop.permute.xlu0 %1351
    %1354 = vset.pattern.permute.xlu0 1
    %1355 = vperm.xlu0 %1354, %v541
    %v1356 = vpop.permute.xlu0 %1355
    %1358 = vset.pattern.permute.xlu0 1
    %1359 = vperm.xlu0 %1358, %v542
    %v1360 = vpop.permute.xlu0 %1359
    %1362 = vset.pattern.permute.xlu0 1
    %1363 = vperm.xlu0 %1362, %v543
    %v1364 = vpop.permute.xlu0 %1363
    %1366 = vset.pattern.permute.xlu0 1
    %1367 = vperm.xlu0 %1366, %v544
    %v1368 = vpop.permute.xlu0 %1367
    %1370 = vset.pattern.permute.xlu0 1
    %1371 = vperm.xlu0 %1370, %v545
    %v1372 = vpop.permute.xlu0 %1371
    %1374 = vset.pattern.permute.xlu0 1
    %1375 = vperm.xlu0 %1374, %v546
    %v1376 = vpop.permute.xlu0 %1375
    %1378 = vset.pattern.permute.xlu0 1
    %1379 = vperm.xlu0 %1378, %v547
    %v1380 = vpop.permute.xlu0 %1379
    %1382 = vset.pattern.permute.xlu0 1
    %1383 = vperm.xlu0 %1382, %v548
    %v1384 = vpop.permute.xlu0 %1383
    %1386 = vset.pattern.permute.xlu0 1
    %1387 = vperm.xlu0 %1386, %v549
    %v1388 = vpop.permute.xlu0 %1387
    %1390 = vset.pattern.permute.xlu0 1
    %1391 = vperm.xlu0 %1390, %v550
    %v1392 = vpop.permute.xlu0 %1391
    %1394 = vset.pattern.permute.xlu0 1
    %1395 = vperm.xlu0 %1394, %v551
    %v1396 = vpop.permute.xlu0 %1395
    %1398 = vset.pattern.permute.xlu0 1
    %1399 = vperm.xlu0 %1398, %v552
    %v1400 = vpop.permute.xlu0 %1399
    %1402 = vset.pattern.permute.xlu0 1
    %1403 = vperm.xlu0 %1402, %v553
    %v1404 = vpop.permute.xlu0 %1403
    %1406 = vset.pattern.permute.xlu0 1
    %1407 = vperm.xlu0 %1406, %v554
    %v1408 = vpop.permute.xlu0 %1407
    %1410 = vset.pattern.permute.xlu0 1
    %1411 = vperm.xlu0 %1410, %v555
    %v1412 = vpop.permute.xlu0 %1411
    %1414 = vset.pattern.permute.xlu0 1
    %1415 = vperm.xlu0 %1414, %v556
    %v1416 = vpop.permute.xlu0 %1415
    %1418 = vset.pattern.permute.xlu0 1
    %1419 = vperm.xlu0 %1418, %v557
    %v1420 = vpop.permute.xlu0 %1419
    %v1422 = vlaneseq
    %v1423 = vshrl.u32 %v1422, 7
    %v1424 = vsub.s32 1, %v1423
    %v1425 = vrot.slane %v558, %v1424
    %v1426 = vlaneseq
    %v1427 = vshrl.u32 %v1426, 7
    %v1428 = vsub.s32 5, %v1427
    %v1429 = vrot.slane %v558, %v1428
    %v1432 = vlaneseq
    %v1433 = vshrl.u32 %v1432, 7
    %v1434 = vsub.s32 1, %v1433
    %v1435 = vrot.slane %v1425, %v1434
    %v1436 = vlaneseq
    %v1437 = vshrl.u32 %v1436, 7
    %v1438 = vsub.s32 1, %v1437
    %v1439 = vrot.slane %v1429, %v1438
    %v1440 = vmul.f32 %v1168, %v1435
    %v1441 = vmul.f32 %v1168, %v1439
    %v1442 = vmul.f32 %v1172, %v1435
    %v1443 = vmul.f32 %v1172, %v1439
    %v1444 = vmul.f32 %v1176, %v1435
    %v1445 = vmul.f32 %v1176, %v1439
    %v1446 = vmul.f32 %v1180, %v1435
    %v1447 = vmul.f32 %v1180, %v1439
    %v1448 = vmul.f32 %v1184, %v1435
    %v1449 = vmul.f32 %v1184, %v1439
    %v1450 = vmul.f32 %v1188, %v1435
    %v1451 = vmul.f32 %v1188, %v1439
    %v1452 = vmul.f32 %v1192, %v1435
    %v1453 = vmul.f32 %v1192, %v1439
    %v1454 = vmul.f32 %v1196, %v1435
    %v1455 = vmul.f32 %v1196, %v1439
    %v1456 = vmul.f32 %v1200, %v1435
    %v1457 = vmul.f32 %v1200, %v1439
    %v1458 = vmul.f32 %v1204, %v1435
    %v1459 = vmul.f32 %v1204, %v1439
    %v1460 = vmul.f32 %v1208, %v1435
    %v1461 = vmul.f32 %v1208, %v1439
    %v1462 = vmul.f32 %v1212, %v1435
    %v1463 = vmul.f32 %v1212, %v1439
    %v1464 = vmul.f32 %v1216, %v1435
    %v1465 = vmul.f32 %v1216, %v1439
    %v1466 = vmul.f32 %v1220, %v1435
    %v1467 = vmul.f32 %v1220, %v1439
    %v1468 = vmul.f32 %v1224, %v1435
    %v1469 = vmul.f32 %v1224, %v1439
    %v1470 = vmul.f32 %v1228, %v1435
    %v1471 = vmul.f32 %v1228, %v1439
    %v1472 = vmul.f32 %v1232, %v1435
    %v1473 = vmul.f32 %v1232, %v1439
    %v1474 = vmul.f32 %v1236, %v1435
    %v1475 = vmul.f32 %v1236, %v1439
    %v1476 = vmul.f32 %v1240, %v1435
    %v1477 = vmul.f32 %v1240, %v1439
    %v1478 = vmul.f32 %v1244, %v1435
    %v1479 = vmul.f32 %v1244, %v1439
    %v1480 = vmul.f32 %v1248, %v1435
    %v1481 = vmul.f32 %v1248, %v1439
    %v1482 = vmul.f32 %v1252, %v1435
    %v1483 = vmul.f32 %v1252, %v1439
    %v1484 = vmul.f32 %v1256, %v1435
    %v1485 = vmul.f32 %v1256, %v1439
    %v1486 = vmul.f32 %v1260, %v1435
    %v1487 = vmul.f32 %v1260, %v1439
    %v1488 = vmul.f32 %v1264, %v1435
    %v1489 = vmul.f32 %v1264, %v1439
    %v1490 = vmul.f32 %v1268, %v1435
    %v1491 = vmul.f32 %v1268, %v1439
    %v1492 = vmul.f32 %v1272, %v1435
    %v1493 = vmul.f32 %v1272, %v1439
    %v1494 = vmul.f32 %v1276, %v1435
    %v1495 = vmul.f32 %v1276, %v1439
    %v1496 = vmul.f32 %v1280, %v1435
    %v1497 = vmul.f32 %v1280, %v1439
    %v1498 = vmul.f32 %v1284, %v1435
    %v1499 = vmul.f32 %v1284, %v1439
    %v1500 = vmul.f32 %v1288, %v1435
    %v1501 = vmul.f32 %v1288, %v1439
    %v1502 = vmul.f32 %v1292, %v1435
    %v1503 = vmul.f32 %v1292, %v1439
    %v1504 = vmul.f32 %v1296, %v1435
    %v1505 = vmul.f32 %v1296, %v1439
    %v1506 = vmul.f32 %v1300, %v1435
    %v1507 = vmul.f32 %v1300, %v1439
    %v1508 = vmul.f32 %v1304, %v1435
    %v1509 = vmul.f32 %v1304, %v1439
    %v1510 = vmul.f32 %v1308, %v1435
    %v1511 = vmul.f32 %v1308, %v1439
    %v1512 = vmul.f32 %v1312, %v1435
    %v1513 = vmul.f32 %v1312, %v1439
    %v1514 = vmul.f32 %v1316, %v1435
    %v1515 = vmul.f32 %v1316, %v1439
    %v1516 = vmul.f32 %v1320, %v1435
    %v1517 = vmul.f32 %v1320, %v1439
    %v1518 = vmul.f32 %v1324, %v1435
    %v1519 = vmul.f32 %v1324, %v1439
    %v1520 = vmul.f32 %v1328, %v1435
    %v1521 = vmul.f32 %v1328, %v1439
    %v1522 = vmul.f32 %v1332, %v1435
    %v1523 = vmul.f32 %v1332, %v1439
    %v1524 = vmul.f32 %v1336, %v1435
    %v1525 = vmul.f32 %v1336, %v1439
    %v1526 = vmul.f32 %v1340, %v1435
    %v1527 = vmul.f32 %v1340, %v1439
    %v1528 = vmul.f32 %v1344, %v1435
    %v1529 = vmul.f32 %v1344, %v1439
    %v1530 = vmul.f32 %v1348, %v1435
    %v1531 = vmul.f32 %v1348, %v1439
    %v1532 = vmul.f32 %v1352, %v1435
    %v1533 = vmul.f32 %v1352, %v1439
    %v1534 = vmul.f32 %v1356, %v1435
    %v1535 = vmul.f32 %v1356, %v1439
    %v1536 = vmul.f32 %v1360, %v1435
    %v1537 = vmul.f32 %v1360, %v1439
    %v1538 = vmul.f32 %v1364, %v1435
    %v1539 = vmul.f32 %v1364, %v1439
    %v1540 = vmul.f32 %v1368, %v1435
    %v1541 = vmul.f32 %v1368, %v1439
    %v1542 = vmul.f32 %v1372, %v1435
    %v1543 = vmul.f32 %v1372, %v1439
    %v1544 = vmul.f32 %v1376, %v1435
    %v1545 = vmul.f32 %v1376, %v1439
    %v1546 = vmul.f32 %v1380, %v1435
    %v1547 = vmul.f32 %v1380, %v1439
    %v1548 = vmul.f32 %v1384, %v1435
    %v1549 = vmul.f32 %v1384, %v1439
    %v1550 = vmul.f32 %v1388, %v1435
    %v1551 = vmul.f32 %v1388, %v1439
    %v1552 = vmul.f32 %v1392, %v1435
    %v1553 = vmul.f32 %v1392, %v1439
    %v1554 = vmul.f32 %v1396, %v1435
    %v1555 = vmul.f32 %v1396, %v1439
    %v1556 = vmul.f32 %v1400, %v1435
    %v1557 = vmul.f32 %v1400, %v1439
    %v1558 = vmul.f32 %v1404, %v1435
    %v1559 = vmul.f32 %v1404, %v1439
    %v1560 = vmul.f32 %v1408, %v1435
    %v1561 = vmul.f32 %v1408, %v1439
    %v1562 = vmul.f32 %v1412, %v1435
    %v1563 = vmul.f32 %v1412, %v1439
    %v1564 = vmul.f32 %v1416, %v1435
    %v1565 = vmul.f32 %v1416, %v1439
    %v1566 = vmul.f32 %v1420, %v1435
    %v1567 = vmul.f32 %v1420, %v1439
    %v1568 = vadd.f32 %v1038, %v1440
    %v1569 = vadd.f32 %v1039, %v1441
    %v1570 = vadd.f32 %v1040, %v1442
    %v1571 = vadd.f32 %v1041, %v1443
    %v1572 = vadd.f32 %v1042, %v1444
    %v1573 = vadd.f32 %v1043, %v1445
    %v1574 = vadd.f32 %v1044, %v1446
    %v1575 = vadd.f32 %v1045, %v1447
    %v1576 = vadd.f32 %v1046, %v1448
    %v1577 = vadd.f32 %v1047, %v1449
    %v1578 = vadd.f32 %v1048, %v1450
    %v1579 = vadd.f32 %v1049, %v1451
    %v1580 = vadd.f32 %v1050, %v1452
    %v1581 = vadd.f32 %v1051, %v1453
    %v1582 = vadd.f32 %v1052, %v1454
    %v1583 = vadd.f32 %v1053, %v1455
    %v1584 = vadd.f32 %v1054, %v1456
    %v1585 = vadd.f32 %v1055, %v1457
    %v1586 = vadd.f32 %v1056, %v1458
    %v1587 = vadd.f32 %v1057, %v1459
    %v1588 = vadd.f32 %v1058, %v1460
    %v1589 = vadd.f32 %v1059, %v1461
    %v1590 = vadd.f32 %v1060, %v1462
    %v1591 = vadd.f32 %v1061, %v1463
    %v1592 = vadd.f32 %v1062, %v1464
    %v1593 = vadd.f32 %v1063, %v1465
    %v1594 = vadd.f32 %v1064, %v1466
    %v1595 = vadd.f32 %v1065, %v1467
    %v1596 = vadd.f32 %v1066, %v1468
    %v1597 = vadd.f32 %v1067, %v1469
    %v1598 = vadd.f32 %v1068, %v1470
    %v1599 = vadd.f32 %v1069, %v1471
    %v1600 = vadd.f32 %v1070, %v1472
    %v1601 = vadd.f32 %v1071, %v1473
    %v1602 = vadd.f32 %v1072, %v1474
    %v1603 = vadd.f32 %v1073, %v1475
    %v1604 = vadd.f32 %v1074, %v1476
    %v1605 = vadd.f32 %v1075, %v1477
    %v1606 = vadd.f32 %v1076, %v1478
    %v1607 = vadd.f32 %v1077, %v1479
    %v1608 = vadd.f32 %v1078, %v1480
    %v1609 = vadd.f32 %v1079, %v1481
    %v1610 = vadd.f32 %v1080, %v1482
    %v1611 = vadd.f32 %v1081, %v1483
    %v1612 = vadd.f32 %v1082, %v1484
    %v1613 = vadd.f32 %v1083, %v1485
    %v1614 = vadd.f32 %v1084, %v1486
    %v1615 = vadd.f32 %v1085, %v1487
    %v1616 = vadd.f32 %v1086, %v1488
    %v1617 = vadd.f32 %v1087, %v1489
    %v1618 = vadd.f32 %v1088, %v1490
    %v1619 = vadd.f32 %v1089, %v1491
    %v1620 = vadd.f32 %v1090, %v1492
    %v1621 = vadd.f32 %v1091, %v1493
    %v1622 = vadd.f32 %v1092, %v1494
    %v1623 = vadd.f32 %v1093, %v1495
    %v1624 = vadd.f32 %v1094, %v1496
    %v1625 = vadd.f32 %v1095, %v1497
    %v1626 = vadd.f32 %v1096, %v1498
    %v1627 = vadd.f32 %v1097, %v1499
    %v1628 = vadd.f32 %v1098, %v1500
    %v1629 = vadd.f32 %v1099, %v1501
    %v1630 = vadd.f32 %v1100, %v1502
    %v1631 = vadd.f32 %v1101, %v1503
    %v1632 = vadd.f32 %v1102, %v1504
    %v1633 = vadd.f32 %v1103, %v1505
    %v1634 = vadd.f32 %v1104, %v1506
    %v1635 = vadd.f32 %v1105, %v1507
    %v1636 = vadd.f32 %v1106, %v1508
    %v1637 = vadd.f32 %v1107, %v1509
    %v1638 = vadd.f32 %v1108, %v1510
    %v1639 = vadd.f32 %v1109, %v1511
    %v1640 = vadd.f32 %v1110, %v1512
    %v1641 = vadd.f32 %v1111, %v1513
    %v1642 = vadd.f32 %v1112, %v1514
    %v1643 = vadd.f32 %v1113, %v1515
    %v1644 = vadd.f32 %v1114, %v1516
    %v1645 = vadd.f32 %v1115, %v1517
    %v1646 = vadd.f32 %v1116, %v1518
    %v1647 = vadd.f32 %v1117, %v1519
    %v1648 = vadd.f32 %v1118, %v1520
    %v1649 = vadd.f32 %v1119, %v1521
    %v1650 = vadd.f32 %v1120, %v1522
    %v1651 = vadd.f32 %v1121, %v1523
    %v1652 = vadd.f32 %v1122, %v1524
    %v1653 = vadd.f32 %v1123, %v1525
    %v1654 = vadd.f32 %v1124, %v1526
    %v1655 = vadd.f32 %v1125, %v1527
    %v1656 = vadd.f32 %v1126, %v1528
    %v1657 = vadd.f32 %v1127, %v1529
    %v1658 = vadd.f32 %v1128, %v1530
    %v1659 = vadd.f32 %v1129, %v1531
    %v1660 = vadd.f32 %v1130, %v1532
    %v1661 = vadd.f32 %v1131, %v1533
    %v1662 = vadd.f32 %v1132, %v1534
    %v1663 = vadd.f32 %v1133, %v1535
    %v1664 = vadd.f32 %v1134, %v1536
    %v1665 = vadd.f32 %v1135, %v1537
    %v1666 = vadd.f32 %v1136, %v1538
    %v1667 = vadd.f32 %v1137, %v1539
    %v1668 = vadd.f32 %v1138, %v1540
    %v1669 = vadd.f32 %v1139, %v1541
    %v1670 = vadd.f32 %v1140, %v1542
    %v1671 = vadd.f32 %v1141, %v1543
    %v1672 = vadd.f32 %v1142, %v1544
    %v1673 = vadd.f32 %v1143, %v1545
    %v1674 = vadd.f32 %v1144, %v1546
    %v1675 = vadd.f32 %v1145, %v1547
    %v1676 = vadd.f32 %v1146, %v1548
    %v1677 = vadd.f32 %v1147, %v1549
    %v1678 = vadd.f32 %v1148, %v1550
    %v1679 = vadd.f32 %v1149, %v1551
    %v1680 = vadd.f32 %v1150, %v1552
    %v1681 = vadd.f32 %v1151, %v1553
    %v1682 = vadd.f32 %v1152, %v1554
    %v1683 = vadd.f32 %v1153, %v1555
    %v1684 = vadd.f32 %v1154, %v1556
    %v1685 = vadd.f32 %v1155, %v1557
    %v1686 = vadd.f32 %v1156, %v1558
    %v1687 = vadd.f32 %v1157, %v1559
    %v1688 = vadd.f32 %v1158, %v1560
    %v1689 = vadd.f32 %v1159, %v1561
    %v1690 = vadd.f32 %v1160, %v1562
    %v1691 = vadd.f32 %v1161, %v1563
    %v1692 = vadd.f32 %v1162, %v1564
    %v1693 = vadd.f32 %v1163, %v1565
    %v1694 = vadd.f32 %v1164, %v1566
    %v1695 = vadd.f32 %v1165, %v1567
    %1696 = vset.pattern.permute.xlu0 2
    %1697 = vperm.xlu0 %1696, %v494
    %v1698 = vpop.permute.xlu0 %1697
    %1700 = vset.pattern.permute.xlu0 2
    %1701 = vperm.xlu0 %1700, %v495
    %v1702 = vpop.permute.xlu0 %1701
    %1704 = vset.pattern.permute.xlu0 2
    %1705 = vperm.xlu0 %1704, %v496
    %v1706 = vpop.permute.xlu0 %1705
    %1708 = vset.pattern.permute.xlu0 2
    %1709 = vperm.xlu0 %1708, %v497
    %v1710 = vpop.permute.xlu0 %1709
    %1712 = vset.pattern.permute.xlu0 2
    %1713 = vperm.xlu0 %1712, %v498
    %v1714 = vpop.permute.xlu0 %1713
    %1716 = vset.pattern.permute.xlu0 2
    %1717 = vperm.xlu0 %1716, %v499
    %v1718 = vpop.permute.xlu0 %1717
    %1720 = vset.pattern.permute.xlu0 2
    %1721 = vperm.xlu0 %1720, %v500
    %v1722 = vpop.permute.xlu0 %1721
    %1724 = vset.pattern.permute.xlu0 2
    %1725 = vperm.xlu0 %1724, %v501
    %v1726 = vpop.permute.xlu0 %1725
    %1728 = vset.pattern.permute.xlu0 2
    %1729 = vperm.xlu0 %1728, %v502
    %v1730 = vpop.permute.xlu0 %1729
    %1732 = vset.pattern.permute.xlu0 2
    %1733 = vperm.xlu0 %1732, %v503
    %v1734 = vpop.permute.xlu0 %1733
    %1736 = vset.pattern.permute.xlu0 2
    %1737 = vperm.xlu0 %1736, %v504
    %v1738 = vpop.permute.xlu0 %1737
    %1740 = vset.pattern.permute.xlu0 2
    %1741 = vperm.xlu0 %1740, %v505
    %v1742 = vpop.permute.xlu0 %1741
    %1744 = vset.pattern.permute.xlu0 2
    %1745 = vperm.xlu0 %1744, %v506
    %v1746 = vpop.permute.xlu0 %1745
    %1748 = vset.pattern.permute.xlu0 2
    %1749 = vperm.xlu0 %1748, %v507
    %v1750 = vpop.permute.xlu0 %1749
    %1752 = vset.pattern.permute.xlu0 2
    %1753 = vperm.xlu0 %1752, %v508
    %v1754 = vpop.permute.xlu0 %1753
    %1756 = vset.pattern.permute.xlu0 2
    %1757 = vperm.xlu0 %1756, %v509
    %v1758 = vpop.permute.xlu0 %1757
    %1760 = vset.pattern.permute.xlu0 2
    %1761 = vperm.xlu0 %1760, %v510
    %v1762 = vpop.permute.xlu0 %1761
    %1764 = vset.pattern.permute.xlu0 2
    %1765 = vperm.xlu0 %1764, %v511
    %v1766 = vpop.permute.xlu0 %1765
    %1768 = vset.pattern.permute.xlu0 2
    %1769 = vperm.xlu0 %1768, %v512
    %v1770 = vpop.permute.xlu0 %1769
    %1772 = vset.pattern.permute.xlu0 2
    %1773 = vperm.xlu0 %1772, %v513
    %v1774 = vpop.permute.xlu0 %1773
    %1776 = vset.pattern.permute.xlu0 2
    %1777 = vperm.xlu0 %1776, %v514
    %v1778 = vpop.permute.xlu0 %1777
    %1780 = vset.pattern.permute.xlu0 2
    %1781 = vperm.xlu0 %1780, %v515
    %v1782 = vpop.permute.xlu0 %1781
    %1784 = vset.pattern.permute.xlu0 2
    %1785 = vperm.xlu0 %1784, %v516
    %v1786 = vpop.permute.xlu0 %1785
    %1788 = vset.pattern.permute.xlu0 2
    %1789 = vperm.xlu0 %1788, %v517
    %v1790 = vpop.permute.xlu0 %1789
    %1792 = vset.pattern.permute.xlu0 2
    %1793 = vperm.xlu0 %1792, %v518
    %v1794 = vpop.permute.xlu0 %1793
    %1796 = vset.pattern.permute.xlu0 2
    %1797 = vperm.xlu0 %1796, %v519
    %v1798 = vpop.permute.xlu0 %1797
    %1800 = vset.pattern.permute.xlu0 2
    %1801 = vperm.xlu0 %1800, %v520
    %v1802 = vpop.permute.xlu0 %1801
    %1804 = vset.pattern.permute.xlu0 2
    %1805 = vperm.xlu0 %1804, %v521
    %v1806 = vpop.permute.xlu0 %1805
    %1808 = vset.pattern.permute.xlu0 2
    %1809 = vperm.xlu0 %1808, %v522
    %v1810 = vpop.permute.xlu0 %1809
    %1812 = vset.pattern.permute.xlu0 2
    %1813 = vperm.xlu0 %1812, %v523
    %v1814 = vpop.permute.xlu0 %1813
    %1816 = vset.pattern.permute.xlu0 2
    %1817 = vperm.xlu0 %1816, %v524
    %v1818 = vpop.permute.xlu0 %1817
    %1820 = vset.pattern.permute.xlu0 2
    %1821 = vperm.xlu0 %1820, %v525
    %v1822 = vpop.permute.xlu0 %1821
    %1824 = vset.pattern.permute.xlu0 2
    %1825 = vperm.xlu0 %1824, %v526
    %v1826 = vpop.permute.xlu0 %1825
    %1828 = vset.pattern.permute.xlu0 2
    %1829 = vperm.xlu0 %1828, %v527
    %v1830 = vpop.permute.xlu0 %1829
    %1832 = vset.pattern.permute.xlu0 2
    %1833 = vperm.xlu0 %1832, %v528
    %v1834 = vpop.permute.xlu0 %1833
    %1836 = vset.pattern.permute.xlu0 2
    %1837 = vperm.xlu0 %1836, %v529
    %v1838 = vpop.permute.xlu0 %1837
    %1840 = vset.pattern.permute.xlu0 2
    %1841 = vperm.xlu0 %1840, %v530
    %v1842 = vpop.permute.xlu0 %1841
    %1844 = vset.pattern.permute.xlu0 2
    %1845 = vperm.xlu0 %1844, %v531
    %v1846 = vpop.permute.xlu0 %1845
    %1848 = vset.pattern.permute.xlu0 2
    %1849 = vperm.xlu0 %1848, %v532
    %v1850 = vpop.permute.xlu0 %1849
    %1852 = vset.pattern.permute.xlu0 2
    %1853 = vperm.xlu0 %1852, %v533
    %v1854 = vpop.permute.xlu0 %1853
    %1856 = vset.pattern.permute.xlu0 2
    %1857 = vperm.xlu0 %1856, %v534
    %v1858 = vpop.permute.xlu0 %1857
    %1860 = vset.pattern.permute.xlu0 2
    %1861 = vperm.xlu0 %1860, %v535
    %v1862 = vpop.permute.xlu0 %1861
    %1864 = vset.pattern.permute.xlu0 2
    %1865 = vperm.xlu0 %1864, %v536
    %v1866 = vpop.permute.xlu0 %1865
    %1868 = vset.pattern.permute.xlu0 2
    %1869 = vperm.xlu0 %1868, %v537
    %v1870 = vpop.permute.xlu0 %1869
    %1872 = vset.pattern.permute.xlu0 2
    %1873 = vperm.xlu0 %1872, %v538
    %v1874 = vpop.permute.xlu0 %1873
    %1876 = vset.pattern.permute.xlu0 2
    %1877 = vperm.xlu0 %1876, %v539
    %v1878 = vpop.permute.xlu0 %1877
    %1880 = vset.pattern.permute.xlu0 2
    %1881 = vperm.xlu0 %1880, %v540
    %v1882 = vpop.permute.xlu0 %1881
    %1884 = vset.pattern.permute.xlu0 2
    %1885 = vperm.xlu0 %1884, %v541
    %v1886 = vpop.permute.xlu0 %1885
    %1888 = vset.pattern.permute.xlu0 2
    %1889 = vperm.xlu0 %1888, %v542
    %v1890 = vpop.permute.xlu0 %1889
    %1892 = vset.pattern.permute.xlu0 2
    %1893 = vperm.xlu0 %1892, %v543
    %v1894 = vpop.permute.xlu0 %1893
    %1896 = vset.pattern.permute.xlu0 2
    %1897 = vperm.xlu0 %1896, %v544
    %v1898 = vpop.permute.xlu0 %1897
    %1900 = vset.pattern.permute.xlu0 2
    %1901 = vperm.xlu0 %1900, %v545
    %v1902 = vpop.permute.xlu0 %1901
    %1904 = vset.pattern.permute.xlu0 2
    %1905 = vperm.xlu0 %1904, %v546
    %v1906 = vpop.permute.xlu0 %1905
    %1908 = vset.pattern.permute.xlu0 2
    %1909 = vperm.xlu0 %1908, %v547
    %v1910 = vpop.permute.xlu0 %1909
    %1912 = vset.pattern.permute.xlu0 2
    %1913 = vperm.xlu0 %1912, %v548
    %v1914 = vpop.permute.xlu0 %1913
    %1916 = vset.pattern.permute.xlu0 2
    %1917 = vperm.xlu0 %1916, %v549
    %v1918 = vpop.permute.xlu0 %1917
    %1920 = vset.pattern.permute.xlu0 2
    %1921 = vperm.xlu0 %1920, %v550
    %v1922 = vpop.permute.xlu0 %1921
    %1924 = vset.pattern.permute.xlu0 2
    %1925 = vperm.xlu0 %1924, %v551
    %v1926 = vpop.permute.xlu0 %1925
    %1928 = vset.pattern.permute.xlu0 2
    %1929 = vperm.xlu0 %1928, %v552
    %v1930 = vpop.permute.xlu0 %1929
    %1932 = vset.pattern.permute.xlu0 2
    %1933 = vperm.xlu0 %1932, %v553
    %v1934 = vpop.permute.xlu0 %1933
    %1936 = vset.pattern.permute.xlu0 2
    %1937 = vperm.xlu0 %1936, %v554
    %v1938 = vpop.permute.xlu0 %1937
    %1940 = vset.pattern.permute.xlu0 2
    %1941 = vperm.xlu0 %1940, %v555
    %v1942 = vpop.permute.xlu0 %1941
    %1944 = vset.pattern.permute.xlu0 2
    %1945 = vperm.xlu0 %1944, %v556
    %v1946 = vpop.permute.xlu0 %1945
    %1948 = vset.pattern.permute.xlu0 2
    %1949 = vperm.xlu0 %1948, %v557
    %v1950 = vpop.permute.xlu0 %1949
    %v1952 = vlaneseq
    %v1953 = vshrl.u32 %v1952, 7
    %v1954 = vsub.s32 2, %v1953
    %v1955 = vrot.slane %v558, %v1954
    %v1956 = vlaneseq
    %v1957 = vshrl.u32 %v1956, 7
    %v1958 = vsub.s32 6, %v1957
    %v1959 = vrot.slane %v558, %v1958
    %v1962 = vlaneseq
    %v1963 = vshrl.u32 %v1962, 7
    %v1964 = vsub.s32 2, %v1963
    %v1965 = vrot.slane %v1955, %v1964
    %v1966 = vlaneseq
    %v1967 = vshrl.u32 %v1966, 7
    %v1968 = vsub.s32 2, %v1967
    %v1969 = vrot.slane %v1959, %v1968
    %v1970 = vmul.f32 %v1698, %v1965
    %v1971 = vmul.f32 %v1698, %v1969
    %v1972 = vmul.f32 %v1702, %v1965
    %v1973 = vmul.f32 %v1702, %v1969
    %v1974 = vmul.f32 %v1706, %v1965
    %v1975 = vmul.f32 %v1706, %v1969
    %v1976 = vmul.f32 %v1710, %v1965
    %v1977 = vmul.f32 %v1710, %v1969
    %v1978 = vmul.f32 %v1714, %v1965
    %v1979 = vmul.f32 %v1714, %v1969
    %v1980 = vmul.f32 %v1718, %v1965
    %v1981 = vmul.f32 %v1718, %v1969
    %v1982 = vmul.f32 %v1722, %v1965
    %v1983 = vmul.f32 %v1722, %v1969
    %v1984 = vmul.f32 %v1726, %v1965
    %v1985 = vmul.f32 %v1726, %v1969
    %v1986 = vmul.f32 %v1730, %v1965
    %v1987 = vmul.f32 %v1730, %v1969
    %v1988 = vmul.f32 %v1734, %v1965
    %v1989 = vmul.f32 %v1734, %v1969
    %v1990 = vmul.f32 %v1738, %v1965
    %v1991 = vmul.f32 %v1738, %v1969
    %v1992 = vmul.f32 %v1742, %v1965
    %v1993 = vmul.f32 %v1742, %v1969
    %v1994 = vmul.f32 %v1746, %v1965
    %v1995 = vmul.f32 %v1746, %v1969
    %v1996 = vmul.f32 %v1750, %v1965
    %v1997 = vmul.f32 %v1750, %v1969
    %v1998 = vmul.f32 %v1754, %v1965
    %v1999 = vmul.f32 %v1754, %v1969
    %v2000 = vmul.f32 %v1758, %v1965
    %v2001 = vmul.f32 %v1758, %v1969
    %v2002 = vmul.f32 %v1762, %v1965
    %v2003 = vmul.f32 %v1762, %v1969
    %v2004 = vmul.f32 %v1766, %v1965
    %v2005 = vmul.f32 %v1766, %v1969
    %v2006 = vmul.f32 %v1770, %v1965
    %v2007 = vmul.f32 %v1770, %v1969
    %v2008 = vmul.f32 %v1774, %v1965
    %v2009 = vmul.f32 %v1774, %v1969
    %v2010 = vmul.f32 %v1778, %v1965
    %v2011 = vmul.f32 %v1778, %v1969
    %v2012 = vmul.f32 %v1782, %v1965
    %v2013 = vmul.f32 %v1782, %v1969
    %v2014 = vmul.f32 %v1786, %v1965
    %v2015 = vmul.f32 %v1786, %v1969
    %v2016 = vmul.f32 %v1790, %v1965
    %v2017 = vmul.f32 %v1790, %v1969
    %v2018 = vmul.f32 %v1794, %v1965
    %v2019 = vmul.f32 %v1794, %v1969
    %v2020 = vmul.f32 %v1798, %v1965
    %v2021 = vmul.f32 %v1798, %v1969
    %v2022 = vmul.f32 %v1802, %v1965
    %v2023 = vmul.f32 %v1802, %v1969
    %v2024 = vmul.f32 %v1806, %v1965
    %v2025 = vmul.f32 %v1806, %v1969
    %v2026 = vmul.f32 %v1810, %v1965
    %v2027 = vmul.f32 %v1810, %v1969
    %v2028 = vmul.f32 %v1814, %v1965
    %v2029 = vmul.f32 %v1814, %v1969
    %v2030 = vmul.f32 %v1818, %v1965
    %v2031 = vmul.f32 %v1818, %v1969
    %v2032 = vmul.f32 %v1822, %v1965
    %v2033 = vmul.f32 %v1822, %v1969
    %v2034 = vmul.f32 %v1826, %v1965
    %v2035 = vmul.f32 %v1826, %v1969
    %v2036 = vmul.f32 %v1830, %v1965
    %v2037 = vmul.f32 %v1830, %v1969
    %v2038 = vmul.f32 %v1834, %v1965
    %v2039 = vmul.f32 %v1834, %v1969
    %v2040 = vmul.f32 %v1838, %v1965
    %v2041 = vmul.f32 %v1838, %v1969
    %v2042 = vmul.f32 %v1842, %v1965
    %v2043 = vmul.f32 %v1842, %v1969
    %v2044 = vmul.f32 %v1846, %v1965
    %v2045 = vmul.f32 %v1846, %v1969
    %v2046 = vmul.f32 %v1850, %v1965
    %v2047 = vmul.f32 %v1850, %v1969
    %v2048 = vmul.f32 %v1854, %v1965
    %v2049 = vmul.f32 %v1854, %v1969
    %v2050 = vmul.f32 %v1858, %v1965
    %v2051 = vmul.f32 %v1858, %v1969
    %v2052 = vmul.f32 %v1862, %v1965
    %v2053 = vmul.f32 %v1862, %v1969
    %v2054 = vmul.f32 %v1866, %v1965
    %v2055 = vmul.f32 %v1866, %v1969
    %v2056 = vmul.f32 %v1870, %v1965
    %v2057 = vmul.f32 %v1870, %v1969
    %v2058 = vmul.f32 %v1874, %v1965
    %v2059 = vmul.f32 %v1874, %v1969
    %v2060 = vmul.f32 %v1878, %v1965
    %v2061 = vmul.f32 %v1878, %v1969
    %v2062 = vmul.f32 %v1882, %v1965
    %v2063 = vmul.f32 %v1882, %v1969
    %v2064 = vmul.f32 %v1886, %v1965
    %v2065 = vmul.f32 %v1886, %v1969
    %v2066 = vmul.f32 %v1890, %v1965
    %v2067 = vmul.f32 %v1890, %v1969
    %v2068 = vmul.f32 %v1894, %v1965
    %v2069 = vmul.f32 %v1894, %v1969
    %v2070 = vmul.f32 %v1898, %v1965
    %v2071 = vmul.f32 %v1898, %v1969
    %v2072 = vmul.f32 %v1902, %v1965
    %v2073 = vmul.f32 %v1902, %v1969
    %v2074 = vmul.f32 %v1906, %v1965
    %v2075 = vmul.f32 %v1906, %v1969
    %v2076 = vmul.f32 %v1910, %v1965
    %v2077 = vmul.f32 %v1910, %v1969
    %v2078 = vmul.f32 %v1914, %v1965
    %v2079 = vmul.f32 %v1914, %v1969
    %v2080 = vmul.f32 %v1918, %v1965
    %v2081 = vmul.f32 %v1918, %v1969
    %v2082 = vmul.f32 %v1922, %v1965
    %v2083 = vmul.f32 %v1922, %v1969
    %v2084 = vmul.f32 %v1926, %v1965
    %v2085 = vmul.f32 %v1926, %v1969
    %v2086 = vmul.f32 %v1930, %v1965
    %v2087 = vmul.f32 %v1930, %v1969
    %v2088 = vmul.f32 %v1934, %v1965
    %v2089 = vmul.f32 %v1934, %v1969
    %v2090 = vmul.f32 %v1938, %v1965
    %v2091 = vmul.f32 %v1938, %v1969
    %v2092 = vmul.f32 %v1942, %v1965
    %v2093 = vmul.f32 %v1942, %v1969
    %v2094 = vmul.f32 %v1946, %v1965
    %v2095 = vmul.f32 %v1946, %v1969
    %v2096 = vmul.f32 %v1950, %v1965
    %v2097 = vmul.f32 %v1950, %v1969
    %v2098 = vadd.f32 %v1568, %v1970
    %v2099 = vadd.f32 %v1569, %v1971
    %v2100 = vadd.f32 %v1570, %v1972
    %v2101 = vadd.f32 %v1571, %v1973
    %v2102 = vadd.f32 %v1572, %v1974
    %v2103 = vadd.f32 %v1573, %v1975
    %v2104 = vadd.f32 %v1574, %v1976
    %v2105 = vadd.f32 %v1575, %v1977
    %v2106 = vadd.f32 %v1576, %v1978
    %v2107 = vadd.f32 %v1577, %v1979
    %v2108 = vadd.f32 %v1578, %v1980
    %v2109 = vadd.f32 %v1579, %v1981
    %v2110 = vadd.f32 %v1580, %v1982
    %v2111 = vadd.f32 %v1581, %v1983
    %v2112 = vadd.f32 %v1582, %v1984
    %v2113 = vadd.f32 %v1583, %v1985
    %v2114 = vadd.f32 %v1584, %v1986
    %v2115 = vadd.f32 %v1585, %v1987
    %v2116 = vadd.f32 %v1586, %v1988
    %v2117 = vadd.f32 %v1587, %v1989
    %v2118 = vadd.f32 %v1588, %v1990
    %v2119 = vadd.f32 %v1589, %v1991
    %v2120 = vadd.f32 %v1590, %v1992
    %v2121 = vadd.f32 %v1591, %v1993
    %v2122 = vadd.f32 %v1592, %v1994
    %v2123 = vadd.f32 %v1593, %v1995
    %v2124 = vadd.f32 %v1594, %v1996
    %v2125 = vadd.f32 %v1595, %v1997
    %v2126 = vadd.f32 %v1596, %v1998
    %v2127 = vadd.f32 %v1597, %v1999
    %v2128 = vadd.f32 %v1598, %v2000
    %v2129 = vadd.f32 %v1599, %v2001
    %v2130 = vadd.f32 %v1600, %v2002
    %v2131 = vadd.f32 %v1601, %v2003
    %v2132 = vadd.f32 %v1602, %v2004
    %v2133 = vadd.f32 %v1603, %v2005
    %v2134 = vadd.f32 %v1604, %v2006
    %v2135 = vadd.f32 %v1605, %v2007
    %v2136 = vadd.f32 %v1606, %v2008
    %v2137 = vadd.f32 %v1607, %v2009
    %v2138 = vadd.f32 %v1608, %v2010
    %v2139 = vadd.f32 %v1609, %v2011
    %v2140 = vadd.f32 %v1610, %v2012
    %v2141 = vadd.f32 %v1611, %v2013
    %v2142 = vadd.f32 %v1612, %v2014
    %v2143 = vadd.f32 %v1613, %v2015
    %v2144 = vadd.f32 %v1614, %v2016
    %v2145 = vadd.f32 %v1615, %v2017
    %v2146 = vadd.f32 %v1616, %v2018
    %v2147 = vadd.f32 %v1617, %v2019
    %v2148 = vadd.f32 %v1618, %v2020
    %v2149 = vadd.f32 %v1619, %v2021
    %v2150 = vadd.f32 %v1620, %v2022
    %v2151 = vadd.f32 %v1621, %v2023
    %v2152 = vadd.f32 %v1622, %v2024
    %v2153 = vadd.f32 %v1623, %v2025
    %v2154 = vadd.f32 %v1624, %v2026
    %v2155 = vadd.f32 %v1625, %v2027
    %v2156 = vadd.f32 %v1626, %v2028
    %v2157 = vadd.f32 %v1627, %v2029
    %v2158 = vadd.f32 %v1628, %v2030
    %v2159 = vadd.f32 %v1629, %v2031
    %v2160 = vadd.f32 %v1630, %v2032
    %v2161 = vadd.f32 %v1631, %v2033
    %v2162 = vadd.f32 %v1632, %v2034
    %v2163 = vadd.f32 %v1633, %v2035
    %v2164 = vadd.f32 %v1634, %v2036
    %v2165 = vadd.f32 %v1635, %v2037
    %v2166 = vadd.f32 %v1636, %v2038
    %v2167 = vadd.f32 %v1637, %v2039
    %v2168 = vadd.f32 %v1638, %v2040
    %v2169 = vadd.f32 %v1639, %v2041
    %v2170 = vadd.f32 %v1640, %v2042
    %v2171 = vadd.f32 %v1641, %v2043
    %v2172 = vadd.f32 %v1642, %v2044
    %v2173 = vadd.f32 %v1643, %v2045
    %v2174 = vadd.f32 %v1644, %v2046
    %v2175 = vadd.f32 %v1645, %v2047
    %v2176 = vadd.f32 %v1646, %v2048
    %v2177 = vadd.f32 %v1647, %v2049
    %v2178 = vadd.f32 %v1648, %v2050
    %v2179 = vadd.f32 %v1649, %v2051
    %v2180 = vadd.f32 %v1650, %v2052
    %v2181 = vadd.f32 %v1651, %v2053
    %v2182 = vadd.f32 %v1652, %v2054
    %v2183 = vadd.f32 %v1653, %v2055
    %v2184 = vadd.f32 %v1654, %v2056
    %v2185 = vadd.f32 %v1655, %v2057
    %v2186 = vadd.f32 %v1656, %v2058
    %v2187 = vadd.f32 %v1657, %v2059
    %v2188 = vadd.f32 %v1658, %v2060
    %v2189 = vadd.f32 %v1659, %v2061
    %v2190 = vadd.f32 %v1660, %v2062
    %v2191 = vadd.f32 %v1661, %v2063
    %v2192 = vadd.f32 %v1662, %v2064
    %v2193 = vadd.f32 %v1663, %v2065
    %v2194 = vadd.f32 %v1664, %v2066
    %v2195 = vadd.f32 %v1665, %v2067
    %v2196 = vadd.f32 %v1666, %v2068
    %v2197 = vadd.f32 %v1667, %v2069
    %v2198 = vadd.f32 %v1668, %v2070
    %v2199 = vadd.f32 %v1669, %v2071
    %v2200 = vadd.f32 %v1670, %v2072
    %v2201 = vadd.f32 %v1671, %v2073
    %v2202 = vadd.f32 %v1672, %v2074
    %v2203 = vadd.f32 %v1673, %v2075
    %v2204 = vadd.f32 %v1674, %v2076
    %v2205 = vadd.f32 %v1675, %v2077
    %v2206 = vadd.f32 %v1676, %v2078
    %v2207 = vadd.f32 %v1677, %v2079
    %v2208 = vadd.f32 %v1678, %v2080
    %v2209 = vadd.f32 %v1679, %v2081
    %v2210 = vadd.f32 %v1680, %v2082
    %v2211 = vadd.f32 %v1681, %v2083
    %v2212 = vadd.f32 %v1682, %v2084
    %v2213 = vadd.f32 %v1683, %v2085
    %v2214 = vadd.f32 %v1684, %v2086
    %v2215 = vadd.f32 %v1685, %v2087
    %v2216 = vadd.f32 %v1686, %v2088
    %v2217 = vadd.f32 %v1687, %v2089
    %v2218 = vadd.f32 %v1688, %v2090
    %v2219 = vadd.f32 %v1689, %v2091
    %v2220 = vadd.f32 %v1690, %v2092
    %v2221 = vadd.f32 %v1691, %v2093
    %v2222 = vadd.f32 %v1692, %v2094
    %v2223 = vadd.f32 %v1693, %v2095
    %v2224 = vadd.f32 %v1694, %v2096
    %v2225 = vadd.f32 %v1695, %v2097
    %v2226 = vmax.f32 %v2098, 0.0
    %v2227 = vmax.f32 %v2099, 0.0
    %v2228 = vmax.f32 %v2100, 0.0
    %v2229 = vmax.f32 %v2101, 0.0
    %v2230 = vmax.f32 %v2102, 0.0
    %v2231 = vmax.f32 %v2103, 0.0
    %v2232 = vmax.f32 %v2104, 0.0
    %v2233 = vmax.f32 %v2105, 0.0
    %v2234 = vmax.f32 %v2106, 0.0
    %v2235 = vmax.f32 %v2107, 0.0
    %v2236 = vmax.f32 %v2108, 0.0
    %v2237 = vmax.f32 %v2109, 0.0
    %v2238 = vmax.f32 %v2110, 0.0
    %v2239 = vmax.f32 %v2111, 0.0
    %v2240 = vmax.f32 %v2112, 0.0
    %v2241 = vmax.f32 %v2113, 0.0
    %v2242 = vmax.f32 %v2114, 0.0
    %v2243 = vmax.f32 %v2115, 0.0
    %v2244 = vmax.f32 %v2116, 0.0
    %v2245 = vmax.f32 %v2117, 0.0
    %v2246 = vmax.f32 %v2118, 0.0
    %v2247 = vmax.f32 %v2119, 0.0
    %v2248 = vmax.f32 %v2120, 0.0
    %v2249 = vmax.f32 %v2121, 0.0
    %v2250 = vmax.f32 %v2122, 0.0
    %v2251 = vmax.f32 %v2123, 0.0
    %v2252 = vmax.f32 %v2124, 0.0
    %v2253 = vmax.f32 %v2125, 0.0
    %v2254 = vmax.f32 %v2126, 0.0
    %v2255 = vmax.f32 %v2127, 0.0
    %v2256 = vmax.f32 %v2128, 0.0
    %v2257 = vmax.f32 %v2129, 0.0
    %v2258 = vmax.f32 %v2130, 0.0
    %v2259 = vmax.f32 %v2131, 0.0
    %v2260 = vmax.f32 %v2132, 0.0
    %v2261 = vmax.f32 %v2133, 0.0
    %v2262 = vmax.f32 %v2134, 0.0
    %v2263 = vmax.f32 %v2135, 0.0
    %v2264 = vmax.f32 %v2136, 0.0
    %v2265 = vmax.f32 %v2137, 0.0
    %v2266 = vmax.f32 %v2138, 0.0
    %v2267 = vmax.f32 %v2139, 0.0
    %v2268 = vmax.f32 %v2140, 0.0
    %v2269 = vmax.f32 %v2141, 0.0
    %v2270 = vmax.f32 %v2142, 0.0
    %v2271 = vmax.f32 %v2143, 0.0
    %v2272 = vmax.f32 %v2144, 0.0
    %v2273 = vmax.f32 %v2145, 0.0
    %v2274 = vmax.f32 %v2146, 0.0
    %v2275 = vmax.f32 %v2147, 0.0
    %v2276 = vmax.f32 %v2148, 0.0
    %v2277 = vmax.f32 %v2149, 0.0
    %v2278 = vmax.f32 %v2150, 0.0
    %v2279 = vmax.f32 %v2151, 0.0
    %v2280 = vmax.f32 %v2152, 0.0
    %v2281 = vmax.f32 %v2153, 0.0
    %v2282 = vmax.f32 %v2154, 0.0
    %v2283 = vmax.f32 %v2155, 0.0
    %v2284 = vmax.f32 %v2156, 0.0
    %v2285 = vmax.f32 %v2157, 0.0
    %v2286 = vmax.f32 %v2158, 0.0
    %v2287 = vmax.f32 %v2159, 0.0
    %v2288 = vmax.f32 %v2160, 0.0
    %v2289 = vmax.f32 %v2161, 0.0
    %v2290 = vmax.f32 %v2162, 0.0
    %v2291 = vmax.f32 %v2163, 0.0
    %v2292 = vmax.f32 %v2164, 0.0
    %v2293 = vmax.f32 %v2165, 0.0
    %v2294 = vmax.f32 %v2166, 0.0
    %v2295 = vmax.f32 %v2167, 0.0
    %v2296 = vmax.f32 %v2168, 0.0
    %v2297 = vmax.f32 %v2169, 0.0
    %v2298 = vmax.f32 %v2170, 0.0
    %v2299 = vmax.f32 %v2171, 0.0
    %v2300 = vmax.f32 %v2172, 0.0
    %v2301 = vmax.f32 %v2173, 0.0
    %v2302 = vmax.f32 %v2174, 0.0
    %v2303 = vmax.f32 %v2175, 0.0
    %v2304 = vmax.f32 %v2176, 0.0
    %v2305 = vmax.f32 %v2177, 0.0
    %v2306 = vmax.f32 %v2178, 0.0
    %v2307 = vmax.f32 %v2179, 0.0
    %v2308 = vmax.f32 %v2180, 0.0
    %v2309 = vmax.f32 %v2181, 0.0
    %v2310 = vmax.f32 %v2182, 0.0
    %v2311 = vmax.f32 %v2183, 0.0
    %v2312 = vmax.f32 %v2184, 0.0
    %v2313 = vmax.f32 %v2185, 0.0
    %v2314 = vmax.f32 %v2186, 0.0
    %v2315 = vmax.f32 %v2187, 0.0
    %v2316 = vmax.f32 %v2188, 0.0
    %v2317 = vmax.f32 %v2189, 0.0
    %v2318 = vmax.f32 %v2190, 0.0
    %v2319 = vmax.f32 %v2191, 0.0
    %v2320 = vmax.f32 %v2192, 0.0
    %v2321 = vmax.f32 %v2193, 0.0
    %v2322 = vmax.f32 %v2194, 0.0
    %v2323 = vmax.f32 %v2195, 0.0
    %v2324 = vmax.f32 %v2196, 0.0
    %v2325 = vmax.f32 %v2197, 0.0
    %v2326 = vmax.f32 %v2198, 0.0
    %v2327 = vmax.f32 %v2199, 0.0
    %v2328 = vmax.f32 %v2200, 0.0
    %v2329 = vmax.f32 %v2201, 0.0
    %v2330 = vmax.f32 %v2202, 0.0
    %v2331 = vmax.f32 %v2203, 0.0
    %v2332 = vmax.f32 %v2204, 0.0
    %v2333 = vmax.f32 %v2205, 0.0
    %v2334 = vmax.f32 %v2206, 0.0
    %v2335 = vmax.f32 %v2207, 0.0
    %v2336 = vmax.f32 %v2208, 0.0
    %v2337 = vmax.f32 %v2209, 0.0
    %v2338 = vmax.f32 %v2210, 0.0
    %v2339 = vmax.f32 %v2211, 0.0
    %v2340 = vmax.f32 %v2212, 0.0
    %v2341 = vmax.f32 %v2213, 0.0
    %v2342 = vmax.f32 %v2214, 0.0
    %v2343 = vmax.f32 %v2215, 0.0
    %v2344 = vmax.f32 %v2216, 0.0
    %v2345 = vmax.f32 %v2217, 0.0
    %v2346 = vmax.f32 %v2218, 0.0
    %v2347 = vmax.f32 %v2219, 0.0
    %v2348 = vmax.f32 %v2220, 0.0
    %v2349 = vmax.f32 %v2221, 0.0
    %v2350 = vmax.f32 %v2222, 0.0
    %v2351 = vmax.f32 %v2223, 0.0
    %v2352 = vmax.f32 %v2224, 0.0
    %v2353 = vmax.f32 %v2225, 0.0
    %v2354 = vpack.c.bf16 %v2228, %v2226
    %v2355 = vpack.c.bf16 %v2229, %v2227
    %v2356 = vpack.c.bf16 %v2232, %v2230
    %v2357 = vpack.c.bf16 %v2233, %v2231
    %v2358 = vpack.c.bf16 %v2236, %v2234
    %v2359 = vpack.c.bf16 %v2237, %v2235
    %v2360 = vpack.c.bf16 %v2240, %v2238
    %v2361 = vpack.c.bf16 %v2241, %v2239
    %v2362 = vpack.c.bf16 %v2244, %v2242
    %v2363 = vpack.c.bf16 %v2245, %v2243
    %v2364 = vpack.c.bf16 %v2248, %v2246
    %v2365 = vpack.c.bf16 %v2249, %v2247
    %v2366 = vpack.c.bf16 %v2252, %v2250
    %v2367 = vpack.c.bf16 %v2253, %v2251
    %v2368 = vpack.c.bf16 %v2256, %v2254
    %v2369 = vpack.c.bf16 %v2257, %v2255
    %v2370 = vpack.c.bf16 %v2260, %v2258
    %v2371 = vpack.c.bf16 %v2261, %v2259
    %v2372 = vpack.c.bf16 %v2264, %v2262
    %v2373 = vpack.c.bf16 %v2265, %v2263
    %v2374 = vpack.c.bf16 %v2268, %v2266
    %v2375 = vpack.c.bf16 %v2269, %v2267
    %v2376 = vpack.c.bf16 %v2272, %v2270
    %v2377 = vpack.c.bf16 %v2273, %v2271
    %v2378 = vpack.c.bf16 %v2276, %v2274
    %v2379 = vpack.c.bf16 %v2277, %v2275
    %v2380 = vpack.c.bf16 %v2280, %v2278
    %v2381 = vpack.c.bf16 %v2281, %v2279
    %v2382 = vpack.c.bf16 %v2284, %v2282
    %v2383 = vpack.c.bf16 %v2285, %v2283
    %v2384 = vpack.c.bf16 %v2288, %v2286
    %v2385 = vpack.c.bf16 %v2289, %v2287
    %v2386 = vpack.c.bf16 %v2292, %v2290
    %v2387 = vpack.c.bf16 %v2293, %v2291
    %v2388 = vpack.c.bf16 %v2296, %v2294
    %v2389 = vpack.c.bf16 %v2297, %v2295
    %v2390 = vpack.c.bf16 %v2300, %v2298
    %v2391 = vpack.c.bf16 %v2301, %v2299
    %v2392 = vpack.c.bf16 %v2304, %v2302
    %v2393 = vpack.c.bf16 %v2305, %v2303
    %v2394 = vpack.c.bf16 %v2308, %v2306
    %v2395 = vpack.c.bf16 %v2309, %v2307
    %v2396 = vpack.c.bf16 %v2312, %v2310
    %v2397 = vpack.c.bf16 %v2313, %v2311
    %v2398 = vpack.c.bf16 %v2316, %v2314
    %v2399 = vpack.c.bf16 %v2317, %v2315
    %v2400 = vpack.c.bf16 %v2320, %v2318
    %v2401 = vpack.c.bf16 %v2321, %v2319
    %v2402 = vpack.c.bf16 %v2324, %v2322
    %v2403 = vpack.c.bf16 %v2325, %v2323
    %v2404 = vpack.c.bf16 %v2328, %v2326
    %v2405 = vpack.c.bf16 %v2329, %v2327
    %v2406 = vpack.c.bf16 %v2332, %v2330
    %v2407 = vpack.c.bf16 %v2333, %v2331
    %v2408 = vpack.c.bf16 %v2336, %v2334
    %v2409 = vpack.c.bf16 %v2337, %v2335
    %v2410 = vpack.c.bf16 %v2340, %v2338
    %v2411 = vpack.c.bf16 %v2341, %v2339
    %v2412 = vpack.c.bf16 %v2344, %v2342
    %v2413 = vpack.c.bf16 %v2345, %v2343
    %v2414 = vpack.c.bf16 %v2348, %v2346
    %v2415 = vpack.c.bf16 %v2349, %v2347
    %v2416 = vpack.c.bf16 %v2352, %v2350
    %v2417 = vpack.c.bf16 %v2353, %v2351
    %v2418 = vld [vmem:[%s7] sm:$0xf]
    %v2419 = vld [vmem:[%s7 + $0x4] sm:$0xf]
    %v2420 = vld [vmem:[%s7 + $0x8] sm:$0xf]
    %v2421 = vld [vmem:[%s7 + $0xc] sm:$0xf]
    %v2422 = vld [vmem:[%s7 + $0x10] sm:$0xf]
    %v2423 = vld [vmem:[%s7 + $0x14] sm:$0xf]
    %v2424 = vld [vmem:[%s7 + $0x18] sm:$0xf]
    %v2425 = vld [vmem:[%s7 + $0x1c] sm:$0xf]
    %v2426 = vld [vmem:[%s7 + $0x20] sm:$0xf]
    %v2427 = vld [vmem:[%s7 + $0x24] sm:$0xf]
    %v2428 = vld [vmem:[%s7 + $0x28] sm:$0xf]
    %v2429 = vld [vmem:[%s7 + $0x2c] sm:$0xf]
    %v2430 = vld [vmem:[%s7 + $0x30] sm:$0xf]
    %v2431 = vld [vmem:[%s7 + $0x34] sm:$0xf]
    %v2432 = vld [vmem:[%s7 + $0x38] sm:$0xf]
    %v2433 = vld [vmem:[%s7 + $0x3c] sm:$0xf]
    %v2434 = vld [vmem:[%s7 + $0x40] sm:$0xf]
    %v2435 = vld [vmem:[%s7 + $0x44] sm:$0xf]
    %v2436 = vld [vmem:[%s7 + $0x48] sm:$0xf]
    %v2437 = vld [vmem:[%s7 + $0x4c] sm:$0xf]
    %v2438 = vld [vmem:[%s7 + $0x50] sm:$0xf]
    %v2439 = vld [vmem:[%s7 + $0x54] sm:$0xf]
    %v2440 = vld [vmem:[%s7 + $0x58] sm:$0xf]
    %v2441 = vld [vmem:[%s7 + $0x5c] sm:$0xf]
    %v2442 = vld [vmem:[%s7 + $0x60] sm:$0xf]
    %v2443 = vld [vmem:[%s7 + $0x64] sm:$0xf]
    %v2444 = vld [vmem:[%s7 + $0x68] sm:$0xf]
    %v2445 = vld [vmem:[%s7 + $0x6c] sm:$0xf]
    %v2446 = vld [vmem:[%s7 + $0x70] sm:$0xf]
    %v2447 = vld [vmem:[%s7 + $0x74] sm:$0xf]
    %v2448 = vld [vmem:[%s7 + $0x78] sm:$0xf]
    %v2449 = vld [vmem:[%s7 + $0x7c] sm:$0xf]
    %v2450 = vld [vmem:[%s9] sm:$0x1]
    %v2452 = vlaneseq
    %v2453 = vshrl.u32 %v2452, 7
    %v2454 = vsub.s32 0, %v2453
    %v2455 = vrot.slane %v2450, %v2454
    %v2489 = vunpack.c.l.b16 %v2418
    %v2490 = vunpack.c.l.b16 %v2419
    %v2491 = vunpack.c.l.b16 %v2420
    %v2492 = vunpack.c.l.b16 %v2421
    %v2493 = vunpack.c.l.b16 %v2422
    %v2494 = vunpack.c.l.b16 %v2423
    %v2495 = vunpack.c.l.b16 %v2424
    %v2496 = vunpack.c.l.b16 %v2425
    %v2497 = vunpack.c.l.b16 %v2426
    %v2498 = vunpack.c.l.b16 %v2427
    %v2499 = vunpack.c.l.b16 %v2428
    %v2500 = vunpack.c.l.b16 %v2429
    %v2501 = vunpack.c.l.b16 %v2430
    %v2502 = vunpack.c.l.b16 %v2431
    %v2503 = vunpack.c.l.b16 %v2432
    %v2504 = vunpack.c.l.b16 %v2433
    %v2505 = vunpack.c.l.b16 %v2434
    %v2506 = vunpack.c.l.b16 %v2435
    %v2507 = vunpack.c.l.b16 %v2436
    %v2508 = vunpack.c.l.b16 %v2437
    %v2509 = vunpack.c.l.b16 %v2438
    %v2510 = vunpack.c.l.b16 %v2439
    %v2511 = vunpack.c.l.b16 %v2440
    %v2512 = vunpack.c.l.b16 %v2441
    %v2513 = vunpack.c.l.b16 %v2442
    %v2514 = vunpack.c.l.b16 %v2443
    %v2515 = vunpack.c.l.b16 %v2444
    %v2516 = vunpack.c.l.b16 %v2445
    %v2517 = vunpack.c.l.b16 %v2446
    %v2518 = vunpack.c.l.b16 %v2447
    %v2519 = vunpack.c.l.b16 %v2448
    %v2520 = vunpack.c.l.b16 %v2449
    %v2521 = vpack.c.b16 %v2490, %v2489
    %v2522 = vpack.c.b16 %v2492, %v2491
    %v2523 = vpack.c.b16 %v2494, %v2493
    %v2524 = vpack.c.b16 %v2496, %v2495
    %v2525 = vpack.c.b16 %v2498, %v2497
    %v2526 = vpack.c.b16 %v2500, %v2499
    %v2527 = vpack.c.b16 %v2502, %v2501
    %v2528 = vpack.c.b16 %v2504, %v2503
    %v2529 = vpack.c.b16 %v2506, %v2505
    %v2530 = vpack.c.b16 %v2508, %v2507
    %v2531 = vpack.c.b16 %v2510, %v2509
    %v2532 = vpack.c.b16 %v2512, %v2511
    %v2533 = vpack.c.b16 %v2514, %v2513
    %v2534 = vpack.c.b16 %v2516, %v2515
    %v2535 = vpack.c.b16 %v2518, %v2517
    %v2536 = vpack.c.b16 %v2520, %v2519
    %2553 = vmatprep.subr.bf16.mxu0 0
    %2554 = vmatpush1.bf16.msra.mxu0 %v2528
    %2555 = vmatprep.subr.bf16.mxu0 0
    %2556 = vmatpush1.bf16.msra.mxu0 %v2527
    %2557 = vmatprep.subr.bf16.mxu0 0
    %2558 = vmatpush1.bf16.msra.mxu0 %v2526
    %2559 = vmatprep.subr.bf16.mxu0 0
    %2560 = vmatpush1.bf16.msra.mxu0 %v2525
    %2561 = vmatprep.subr.bf16.mxu0 0
    %2562 = vmatpush1.bf16.msra.mxu0 %v2524
    %2563 = vmatprep.subr.bf16.mxu0 0
    %2564 = vmatpush1.bf16.msra.mxu0 %v2523
    %2565 = vmatprep.subr.bf16.mxu0 0
    %2566 = vmatpush1.bf16.msra.mxu0 %v2522
    %2567 = vmatprep.subr.bf16.mxu0 0
    %2568 = vmatpush1.bf16.msra.mxu0 %v2521
    %2569 = vmatprep.subr.bf16.mxu0 0
    %2570 = vmatpush2.bf16.msra.mxu0 %v2536
    %2571 = vmatprep.subr.bf16.mxu0 0
    %2572 = vmatpush2.bf16.msra.mxu0 %v2535
    %2573 = vmatprep.subr.bf16.mxu0 0
    %2574 = vmatpush2.bf16.msra.mxu0 %v2534
    %2575 = vmatprep.subr.bf16.mxu0 0
    %2576 = vmatpush2.bf16.msra.mxu0 %v2533
    %2577 = vmatprep.subr.bf16.mxu0 0
    %2578 = vmatpush2.bf16.msra.mxu0 %v2532
    %2579 = vmatprep.subr.bf16.mxu0 0
    %2580 = vmatpush2.bf16.msra.mxu0 %v2531
    %2581 = vmatprep.subr.bf16.mxu0 0
    %2582 = vmatpush2.bf16.msra.mxu0 %v2530
    %2583 = vmatprep.subr.bf16.mxu0 0
    %2584 = vmatpush2.bf16.msra.mxu0 %v2529
    %2585 = vmatprep.mubr.bf16.mxu0 %v2355
    %2586 = vmatmul.mubr.bf16.gmra.mxu0 %v2354
    %v2587 = vpop.f32.mrf.mxu0
    %v2588 = vadd.f32 %v2455, %v2587
    %v2589 = vpop.f32.mrf.mxu0
    %v2590 = vpop.f32.mrf.mxu0
    %v2591 = vadd.f32 %v2455, %v2590
    %v2592 = vpop.f32.mrf.mxu0
    %2593 = vmatprep.mubr.bf16.mxu0 %v2357
    %2594 = vmatmul.mubr.bf16.gmra.mxu0 %v2356
    %v2595 = vpop.f32.mrf.mxu0
    %v2596 = vadd.f32 %v2455, %v2595
    %v2597 = vpop.f32.mrf.mxu0
    %v2598 = vpop.f32.mrf.mxu0
    %v2599 = vadd.f32 %v2455, %v2598
    %v2600 = vpop.f32.mrf.mxu0
    %2601 = vmatprep.mubr.bf16.mxu0 %v2359
    %2602 = vmatmul.mubr.bf16.gmra.mxu0 %v2358
    %v2603 = vpop.f32.mrf.mxu0
    %v2604 = vadd.f32 %v2455, %v2603
    %v2605 = vpop.f32.mrf.mxu0
    %v2606 = vpop.f32.mrf.mxu0
    %v2607 = vadd.f32 %v2455, %v2606
    %v2608 = vpop.f32.mrf.mxu0
    %2609 = vmatprep.mubr.bf16.mxu0 %v2361
    %2610 = vmatmul.mubr.bf16.gmra.mxu0 %v2360
    %v2611 = vpop.f32.mrf.mxu0
    %v2612 = vadd.f32 %v2455, %v2611
    %v2613 = vpop.f32.mrf.mxu0
    %v2614 = vpop.f32.mrf.mxu0
    %v2615 = vadd.f32 %v2455, %v2614
    %v2616 = vpop.f32.mrf.mxu0
    %2617 = vmatprep.mubr.bf16.mxu0 %v2363
    %2618 = vmatmul.mubr.bf16.gmra.mxu0 %v2362
    %v2619 = vpop.f32.mrf.mxu0
    %v2620 = vadd.f32 %v2455, %v2619
    %v2621 = vpop.f32.mrf.mxu0
    %v2622 = vpop.f32.mrf.mxu0
    %v2623 = vadd.f32 %v2455, %v2622
    %v2624 = vpop.f32.mrf.mxu0
    %2625 = vmatprep.mubr.bf16.mxu0 %v2365
    %2626 = vmatmul.mubr.bf16.gmra.mxu0 %v2364
    %v2627 = vpop.f32.mrf.mxu0
    %v2628 = vadd.f32 %v2455, %v2627
    %v2629 = vpop.f32.mrf.mxu0
    %v2630 = vpop.f32.mrf.mxu0
    %v2631 = vadd.f32 %v2455, %v2630
    %v2632 = vpop.f32.mrf.mxu0
    %2633 = vmatprep.mubr.bf16.mxu0 %v2367
    %2634 = vmatmul.mubr.bf16.gmra.mxu0 %v2366
    %v2635 = vpop.f32.mrf.mxu0
    %v2636 = vadd.f32 %v2455, %v2635
    %v2637 = vpop.f32.mrf.mxu0
    %v2638 = vpop.f32.mrf.mxu0
    %v2639 = vadd.f32 %v2455, %v2638
    %v2640 = vpop.f32.mrf.mxu0
    %2641 = vmatprep.mubr.bf16.mxu0 %v2369
    %2642 = vmatmul.mubr.bf16.gmra.mxu0 %v2368
    %v2643 = vpop.f32.mrf.mxu0
    %v2644 = vadd.f32 %v2455, %v2643
    %v2645 = vpop.f32.mrf.mxu0
    %v2646 = vpop.f32.mrf.mxu0
    %v2647 = vadd.f32 %v2455, %v2646
    %v2648 = vpop.f32.mrf.mxu0
    %2649 = vmatprep.mubr.bf16.mxu0 %v2371
    %2650 = vmatmul.mubr.bf16.gmra.mxu0 %v2370
    %v2651 = vpop.f32.mrf.mxu0
    %v2652 = vadd.f32 %v2455, %v2651
    %v2653 = vpop.f32.mrf.mxu0
    %v2654 = vpop.f32.mrf.mxu0
    %v2655 = vadd.f32 %v2455, %v2654
    %v2656 = vpop.f32.mrf.mxu0
    %2657 = vmatprep.mubr.bf16.mxu0 %v2373
    %2658 = vmatmul.mubr.bf16.gmra.mxu0 %v2372
    %v2659 = vpop.f32.mrf.mxu0
    %v2660 = vadd.f32 %v2455, %v2659
    %v2661 = vpop.f32.mrf.mxu0
    %v2662 = vpop.f32.mrf.mxu0
    %v2663 = vadd.f32 %v2455, %v2662
    %v2664 = vpop.f32.mrf.mxu0
    %2665 = vmatprep.mubr.bf16.mxu0 %v2375
    %2666 = vmatmul.mubr.bf16.gmra.mxu0 %v2374
    %v2667 = vpop.f32.mrf.mxu0
    %v2668 = vadd.f32 %v2455, %v2667
    %v2669 = vpop.f32.mrf.mxu0
    %v2670 = vpop.f32.mrf.mxu0
    %v2671 = vadd.f32 %v2455, %v2670
    %v2672 = vpop.f32.mrf.mxu0
    %2673 = vmatprep.mubr.bf16.mxu0 %v2377
    %2674 = vmatmul.mubr.bf16.gmra.mxu0 %v2376
    %v2675 = vpop.f32.mrf.mxu0
    %v2676 = vadd.f32 %v2455, %v2675
    %v2677 = vpop.f32.mrf.mxu0
    %v2678 = vpop.f32.mrf.mxu0
    %v2679 = vadd.f32 %v2455, %v2678
    %v2680 = vpop.f32.mrf.mxu0
    %2681 = vmatprep.mubr.bf16.mxu0 %v2379
    %2682 = vmatmul.mubr.bf16.gmra.mxu0 %v2378
    %v2683 = vpop.f32.mrf.mxu0
    %v2684 = vadd.f32 %v2455, %v2683
    %v2685 = vpop.f32.mrf.mxu0
    %v2686 = vpop.f32.mrf.mxu0
    %v2687 = vadd.f32 %v2455, %v2686
    %v2688 = vpop.f32.mrf.mxu0
    %2689 = vmatprep.mubr.bf16.mxu0 %v2381
    %2690 = vmatmul.mubr.bf16.gmra.mxu0 %v2380
    %v2691 = vpop.f32.mrf.mxu0
    %v2692 = vadd.f32 %v2455, %v2691
    %v2693 = vpop.f32.mrf.mxu0
    %v2694 = vpop.f32.mrf.mxu0
    %v2695 = vadd.f32 %v2455, %v2694
    %v2696 = vpop.f32.mrf.mxu0
    %2697 = vmatprep.mubr.bf16.mxu0 %v2383
    %2698 = vmatmul.mubr.bf16.gmra.mxu0 %v2382
    %v2699 = vpop.f32.mrf.mxu0
    %v2700 = vadd.f32 %v2455, %v2699
    %v2701 = vpop.f32.mrf.mxu0
    %v2702 = vpop.f32.mrf.mxu0
    %v2703 = vadd.f32 %v2455, %v2702
    %v2704 = vpop.f32.mrf.mxu0
    %2705 = vmatprep.mubr.bf16.mxu0 %v2385
    %2706 = vmatmul.mubr.bf16.gmra.mxu0 %v2384
    %v2707 = vpop.f32.mrf.mxu0
    %v2708 = vadd.f32 %v2455, %v2707
    %v2709 = vpop.f32.mrf.mxu0
    %v2710 = vpop.f32.mrf.mxu0
    %v2711 = vadd.f32 %v2455, %v2710
    %v2712 = vpop.f32.mrf.mxu0
    %2713 = vmatprep.mubr.bf16.mxu0 %v2387
    %2714 = vmatmul.mubr.bf16.gmra.mxu0 %v2386
    %v2715 = vpop.f32.mrf.mxu0
    %v2716 = vadd.f32 %v2455, %v2715
    %v2717 = vpop.f32.mrf.mxu0
    %v2718 = vpop.f32.mrf.mxu0
    %v2719 = vadd.f32 %v2455, %v2718
    %v2720 = vpop.f32.mrf.mxu0
    %2721 = vmatprep.mubr.bf16.mxu0 %v2389
    %2722 = vmatmul.mubr.bf16.gmra.mxu0 %v2388
    %v2723 = vpop.f32.mrf.mxu0
    %v2724 = vadd.f32 %v2455, %v2723
    %v2725 = vpop.f32.mrf.mxu0
    %v2726 = vpop.f32.mrf.mxu0
    %v2727 = vadd.f32 %v2455, %v2726
    %v2728 = vpop.f32.mrf.mxu0
    %2729 = vmatprep.mubr.bf16.mxu0 %v2391
    %2730 = vmatmul.mubr.bf16.gmra.mxu0 %v2390
    %v2731 = vpop.f32.mrf.mxu0
    %v2732 = vadd.f32 %v2455, %v2731
    %v2733 = vpop.f32.mrf.mxu0
    %v2734 = vpop.f32.mrf.mxu0
    %v2735 = vadd.f32 %v2455, %v2734
    %v2736 = vpop.f32.mrf.mxu0
    %2737 = vmatprep.mubr.bf16.mxu0 %v2393
    %2738 = vmatmul.mubr.bf16.gmra.mxu0 %v2392
    %v2739 = vpop.f32.mrf.mxu0
    %v2740 = vadd.f32 %v2455, %v2739
    %v2741 = vpop.f32.mrf.mxu0
    %v2742 = vpop.f32.mrf.mxu0
    %v2743 = vadd.f32 %v2455, %v2742
    %v2744 = vpop.f32.mrf.mxu0
    %2745 = vmatprep.mubr.bf16.mxu0 %v2395
    %2746 = vmatmul.mubr.bf16.gmra.mxu0 %v2394
    %v2747 = vpop.f32.mrf.mxu0
    %v2748 = vadd.f32 %v2455, %v2747
    %v2749 = vpop.f32.mrf.mxu0
    %v2750 = vpop.f32.mrf.mxu0
    %v2751 = vadd.f32 %v2455, %v2750
    %v2752 = vpop.f32.mrf.mxu0
    %2753 = vmatprep.mubr.bf16.mxu0 %v2397
    %2754 = vmatmul.mubr.bf16.gmra.mxu0 %v2396
    %v2755 = vpop.f32.mrf.mxu0
    %v2756 = vadd.f32 %v2455, %v2755
    %v2757 = vpop.f32.mrf.mxu0
    %v2758 = vpop.f32.mrf.mxu0
    %v2759 = vadd.f32 %v2455, %v2758
    %v2760 = vpop.f32.mrf.mxu0
    %2761 = vmatprep.mubr.bf16.mxu0 %v2399
    %2762 = vmatmul.mubr.bf16.gmra.mxu0 %v2398
    %v2763 = vpop.f32.mrf.mxu0
    %v2764 = vadd.f32 %v2455, %v2763
    %v2765 = vpop.f32.mrf.mxu0
    %v2766 = vpop.f32.mrf.mxu0
    %v2767 = vadd.f32 %v2455, %v2766
    %v2768 = vpop.f32.mrf.mxu0
    %2769 = vmatprep.mubr.bf16.mxu0 %v2401
    %2770 = vmatmul.mubr.bf16.gmra.mxu0 %v2400
    %v2771 = vpop.f32.mrf.mxu0
    %v2772 = vadd.f32 %v2455, %v2771
    %v2773 = vpop.f32.mrf.mxu0
    %v2774 = vpop.f32.mrf.mxu0
    %v2775 = vadd.f32 %v2455, %v2774
    %v2776 = vpop.f32.mrf.mxu0
    %2777 = vmatprep.mubr.bf16.mxu0 %v2403
    %2778 = vmatmul.mubr.bf16.gmra.mxu0 %v2402
    %v2779 = vpop.f32.mrf.mxu0
    %v2780 = vadd.f32 %v2455, %v2779
    %v2781 = vpop.f32.mrf.mxu0
    %v2782 = vpop.f32.mrf.mxu0
    %v2783 = vadd.f32 %v2455, %v2782
    %v2784 = vpop.f32.mrf.mxu0
    %2785 = vmatprep.mubr.bf16.mxu0 %v2405
    %2786 = vmatmul.mubr.bf16.gmra.mxu0 %v2404
    %v2787 = vpop.f32.mrf.mxu0
    %v2788 = vadd.f32 %v2455, %v2787
    %v2789 = vpop.f32.mrf.mxu0
    %v2790 = vpop.f32.mrf.mxu0
    %v2791 = vadd.f32 %v2455, %v2790
    %v2792 = vpop.f32.mrf.mxu0
    %2793 = vmatprep.mubr.bf16.mxu0 %v2407
    %2794 = vmatmul.mubr.bf16.gmra.mxu0 %v2406
    %v2795 = vpop.f32.mrf.mxu0
    %v2796 = vadd.f32 %v2455, %v2795
    %v2797 = vpop.f32.mrf.mxu0
    %v2798 = vpop.f32.mrf.mxu0
    %v2799 = vadd.f32 %v2455, %v2798
    %v2800 = vpop.f32.mrf.mxu0
    %2801 = vmatprep.mubr.bf16.mxu0 %v2409
    %2802 = vmatmul.mubr.bf16.gmra.mxu0 %v2408
    %v2803 = vpop.f32.mrf.mxu0
    %v2804 = vadd.f32 %v2455, %v2803
    %v2805 = vpop.f32.mrf.mxu0
    %v2806 = vpop.f32.mrf.mxu0
    %v2807 = vadd.f32 %v2455, %v2806
    %v2808 = vpop.f32.mrf.mxu0
    %2809 = vmatprep.mubr.bf16.mxu0 %v2411
    %2810 = vmatmul.mubr.bf16.gmra.mxu0 %v2410
    %v2811 = vpop.f32.mrf.mxu0
    %v2812 = vadd.f32 %v2455, %v2811
    %v2813 = vpop.f32.mrf.mxu0
    %v2814 = vpop.f32.mrf.mxu0
    %v2815 = vadd.f32 %v2455, %v2814
    %v2816 = vpop.f32.mrf.mxu0
    %2817 = vmatprep.mubr.bf16.mxu0 %v2413
    %2818 = vmatmul.mubr.bf16.gmra.mxu0 %v2412
    %v2819 = vpop.f32.mrf.mxu0
    %v2820 = vadd.f32 %v2455, %v2819
    %v2821 = vpop.f32.mrf.mxu0
    %v2822 = vpop.f32.mrf.mxu0
    %v2823 = vadd.f32 %v2455, %v2822
    %v2824 = vpop.f32.mrf.mxu0
    %2825 = vmatprep.mubr.bf16.mxu0 %v2415
    %2826 = vmatmul.mubr.bf16.gmra.mxu0 %v2414
    %v2827 = vpop.f32.mrf.mxu0
    %v2828 = vadd.f32 %v2455, %v2827
    %v2829 = vpop.f32.mrf.mxu0
    %v2830 = vpop.f32.mrf.mxu0
    %v2831 = vadd.f32 %v2455, %v2830
    %v2832 = vpop.f32.mrf.mxu0
    %2833 = vmatprep.mubr.bf16.mxu0 %v2417
    %2834 = vmatmul.mubr.bf16.gmra.mxu0 %v2416
    %v2835 = vpop.f32.mrf.mxu0
    %v2836 = vadd.f32 %v2455, %v2835
    %v2837 = vpop.f32.mrf.mxu0
    %v2838 = vpop.f32.mrf.mxu0
    %v2839 = vadd.f32 %v2455, %v2838
    %v2840 = vpop.f32.mrf.mxu0
    %2841 = vdwg.mxu0
    %v2842 = vmax.f32 %v2588, 0.0
    %v2843 = vmax.f32 %v2591, 0.0
    %v2844 = vmax.f32 %v2596, 0.0
    %v2845 = vmax.f32 %v2599, 0.0
    %v2846 = vmax.f32 %v2604, 0.0
    %v2847 = vmax.f32 %v2607, 0.0
    %v2848 = vmax.f32 %v2612, 0.0
    %v2849 = vmax.f32 %v2615, 0.0
    %v2850 = vmax.f32 %v2620, 0.0
    %v2851 = vmax.f32 %v2623, 0.0
    %v2852 = vmax.f32 %v2628, 0.0
    %v2853 = vmax.f32 %v2631, 0.0
    %v2854 = vmax.f32 %v2636, 0.0
    %v2855 = vmax.f32 %v2639, 0.0
    %v2856 = vmax.f32 %v2644, 0.0
    %v2857 = vmax.f32 %v2647, 0.0
    %v2858 = vmax.f32 %v2652, 0.0
    %v2859 = vmax.f32 %v2655, 0.0
    %v2860 = vmax.f32 %v2660, 0.0
    %v2861 = vmax.f32 %v2663, 0.0
    %v2862 = vmax.f32 %v2668, 0.0
    %v2863 = vmax.f32 %v2671, 0.0
    %v2864 = vmax.f32 %v2676, 0.0
    %v2865 = vmax.f32 %v2679, 0.0
    %v2866 = vmax.f32 %v2684, 0.0
    %v2867 = vmax.f32 %v2687, 0.0
    %v2868 = vmax.f32 %v2692, 0.0
    %v2869 = vmax.f32 %v2695, 0.0
    %v2870 = vmax.f32 %v2700, 0.0
    %v2871 = vmax.f32 %v2703, 0.0
    %v2872 = vmax.f32 %v2708, 0.0
    %v2873 = vmax.f32 %v2711, 0.0
    %v2874 = vmax.f32 %v2716, 0.0
    %v2875 = vmax.f32 %v2719, 0.0
    %v2876 = vmax.f32 %v2724, 0.0
    %v2877 = vmax.f32 %v2727, 0.0
    %v2878 = vmax.f32 %v2732, 0.0
    %v2879 = vmax.f32 %v2735, 0.0
    %v2880 = vmax.f32 %v2740, 0.0
    %v2881 = vmax.f32 %v2743, 0.0
    %v2882 = vmax.f32 %v2748, 0.0
    %v2883 = vmax.f32 %v2751, 0.0
    %v2884 = vmax.f32 %v2756, 0.0
    %v2885 = vmax.f32 %v2759, 0.0
    %v2886 = vmax.f32 %v2764, 0.0
    %v2887 = vmax.f32 %v2767, 0.0
    %v2888 = vmax.f32 %v2772, 0.0
    %v2889 = vmax.f32 %v2775, 0.0
    %v2890 = vmax.f32 %v2780, 0.0
    %v2891 = vmax.f32 %v2783, 0.0
    %v2892 = vmax.f32 %v2788, 0.0
    %v2893 = vmax.f32 %v2791, 0.0
    %v2894 = vmax.f32 %v2796, 0.0
    %v2895 = vmax.f32 %v2799, 0.0
    %v2896 = vmax.f32 %v2804, 0.0
    %v2897 = vmax.f32 %v2807, 0.0
    %v2898 = vmax.f32 %v2812, 0.0
    %v2899 = vmax.f32 %v2815, 0.0
    %v2900 = vmax.f32 %v2820, 0.0
    %v2901 = vmax.f32 %v2823, 0.0
    %v2902 = vmax.f32 %v2828, 0.0
    %v2903 = vmax.f32 %v2831, 0.0
    %v2904 = vmax.f32 %v2836, 0.0
    %v2905 = vmax.f32 %v2839, 0.0
    %v2906 = vpack.c.bf16 %v2843, %v2842
    %v2907 = vpack.c.bf16 %v2845, %v2844
    %v2908 = vpack.c.bf16 %v2847, %v2846
    %v2909 = vpack.c.bf16 %v2849, %v2848
    %v2910 = vpack.c.bf16 %v2851, %v2850
    %v2911 = vpack.c.bf16 %v2853, %v2852
    %v2912 = vpack.c.bf16 %v2855, %v2854
    %v2913 = vpack.c.bf16 %v2857, %v2856
    %v2914 = vpack.c.bf16 %v2859, %v2858
    %v2915 = vpack.c.bf16 %v2861, %v2860
    %v2916 = vpack.c.bf16 %v2863, %v2862
    %v2917 = vpack.c.bf16 %v2865, %v2864
    %v2918 = vpack.c.bf16 %v2867, %v2866
    %v2919 = vpack.c.bf16 %v2869, %v2868
    %v2920 = vpack.c.bf16 %v2871, %v2870
    %v2921 = vpack.c.bf16 %v2873, %v2872
    %v2922 = vpack.c.bf16 %v2875, %v2874
    %v2923 = vpack.c.bf16 %v2877, %v2876
    %v2924 = vpack.c.bf16 %v2879, %v2878
    %v2925 = vpack.c.bf16 %v2881, %v2880
    %v2926 = vpack.c.bf16 %v2883, %v2882
    %v2927 = vpack.c.bf16 %v2885, %v2884
    %v2928 = vpack.c.bf16 %v2887, %v2886
    %v2929 = vpack.c.bf16 %v2889, %v2888
    %v2930 = vpack.c.bf16 %v2891, %v2890
    %v2931 = vpack.c.bf16 %v2893, %v2892
    %v2932 = vpack.c.bf16 %v2895, %v2894
    %v2933 = vpack.c.bf16 %v2897, %v2896
    %v2934 = vpack.c.bf16 %v2899, %v2898
    %v2935 = vpack.c.bf16 %v2901, %v2900
    %v2936 = vpack.c.bf16 %v2903, %v2902
    %v2937 = vpack.c.bf16 %v2905, %v2904
    %v2938 = vld [vmem:[%s11] sm:$0xf]
    %v2939 = vld [vmem:[%s11 + $0x4] sm:$0xf]
    %v2940 = vld [vmem:[%s11 + $0x8] sm:$0xf]
    %v2941 = vld [vmem:[%s11 + $0xc] sm:$0xf]
    %v2942 = vld [vmem:[%s11 + $0x10] sm:$0xf]
    %v2943 = vld [vmem:[%s11 + $0x14] sm:$0xf]
    %v2944 = vld [vmem:[%s11 + $0x18] sm:$0xf]
    %v2945 = vld [vmem:[%s11 + $0x1c] sm:$0xf]
    %v2946 = vld [vmem:[%s11 + $0x20] sm:$0xf]
    %v2947 = vld [vmem:[%s11 + $0x24] sm:$0xf]
    %v2948 = vld [vmem:[%s11 + $0x28] sm:$0xf]
    %v2949 = vld [vmem:[%s11 + $0x2c] sm:$0xf]
    %v2950 = vld [vmem:[%s11 + $0x30] sm:$0xf]
    %v2951 = vld [vmem:[%s11 + $0x34] sm:$0xf]
    %v2952 = vld [vmem:[%s11 + $0x38] sm:$0xf]
    %v2953 = vld [vmem:[%s11 + $0x3c] sm:$0xf]
    %v2954 = vld [vmem:[#allocation5] sm:$0x1]
    %v2956 = vlaneseq
    %v2957 = vshrl.u32 %v2956, 7
    %v2958 = vsub.s32 0, %v2957
    %v2959 = vrot.slane %v2954, %v2958
    %v2977 = vunpack.c.l.b16 %v2938
    %v2978 = vunpack.c.l.b16 %v2939
    %v2979 = vunpack.c.l.b16 %v2940
    %v2980 = vunpack.c.l.b16 %v2941
    %v2981 = vunpack.c.l.b16 %v2942
    %v2982 = vunpack.c.l.b16 %v2943
    %v2983 = vunpack.c.l.b16 %v2944
    %v2984 = vunpack.c.l.b16 %v2945
    %v2985 = vunpack.c.l.b16 %v2946
    %v2986 = vunpack.c.l.b16 %v2947
    %v2987 = vunpack.c.l.b16 %v2948
    %v2988 = vunpack.c.l.b16 %v2949
    %v2989 = vunpack.c.l.b16 %v2950
    %v2990 = vunpack.c.l.b16 %v2951
    %v2991 = vunpack.c.l.b16 %v2952
    %v2992 = vunpack.c.l.b16 %v2953
    %v2993 = vpack.c.b16 %v2978, %v2977
    %v2994 = vpack.c.b16 %v2980, %v2979
    %v2995 = vpack.c.b16 %v2982, %v2981
    %v2996 = vpack.c.b16 %v2984, %v2983
    %v2997 = vpack.c.b16 %v2986, %v2985
    %v2998 = vpack.c.b16 %v2988, %v2987
    %v2999 = vpack.c.b16 %v2990, %v2989
    %v3000 = vpack.c.b16 %v2992, %v2991
    %3009 = vmatprep.subr.bf16.mxu0 0
    %3010 = vmatpush1.bf16.msra.mxu0 %v3000
    %3011 = vmatprep.subr.bf16.mxu0 0
    %3012 = vmatpush1.bf16.msra.mxu0 %v2999
    %3013 = vmatprep.subr.bf16.mxu0 0
    %3014 = vmatpush1.bf16.msra.mxu0 %v2998
    %3015 = vmatprep.subr.bf16.mxu0 0
    %3016 = vmatpush1.bf16.msra.mxu0 %v2997
    %3017 = vmatprep.subr.bf16.mxu0 0
    %3018 = vmatpush1.bf16.msra.mxu0 %v2996
    %3019 = vmatprep.subr.bf16.mxu0 0
    %3020 = vmatpush1.bf16.msra.mxu0 %v2995
    %3021 = vmatprep.subr.bf16.mxu0 0
    %3022 = vmatpush1.bf16.msra.mxu0 %v2994
    %3023 = vmatprep.subr.bf16.mxu0 0
    %3024 = vmatpush1.bf16.msra.mxu0 %v2993
    %3025 = vmatprep.subr.bf16.mxu0 0
    %3026 = vmatpush2.bf16.msra.mxu0 0
    %3027 = vmatprep.subr.bf16.mxu0 0
    %3028 = vmatpush2.bf16.msra.mxu0 0
    %3029 = vmatprep.subr.bf16.mxu0 0
    %3030 = vmatpush2.bf16.msra.mxu0 0
    %3031 = vmatprep.subr.bf16.mxu0 0
    %3032 = vmatpush2.bf16.msra.mxu0 0
    %3033 = vmatprep.subr.bf16.mxu0 0
    %3034 = vmatpush2.bf16.msra.mxu0 0
    %3035 = vmatprep.subr.bf16.mxu0 0
    %3036 = vmatpush2.bf16.msra.mxu0 0
    %3037 = vmatprep.subr.bf16.mxu0 0
    %3038 = vmatpush2.bf16.msra.mxu0 0
    %3039 = vmatprep.subr.bf16.mxu0 0
    %3040 = vmatpush2.bf16.msra.mxu0 0
    %3041 = vmatprep.mubr.bf16.mxu0 0
    %3042 = vmatmul.mubr.bf16.gmra.mxu0 %v2906
    %v3043 = vpop.f32.mrf.mxu0
    %v3044 = vadd.f32 %v2959, %v3043
    %v3045 = vpop.f32.mrf.mxu0
    %v3046 = vpop.f32.mrf.mxu0
    %v3047 = vadd.f32 %v2959, %v3046
    %v3048 = vpop.f32.mrf.mxu0
    %3049 = vmatprep.mubr.bf16.mxu0 0
    %3050 = vmatmul.mubr.bf16.gmra.mxu0 %v2907
    %v3051 = vpop.f32.mrf.mxu0
    %v3052 = vadd.f32 %v2959, %v3051
    %v3053 = vpop.f32.mrf.mxu0
    %v3054 = vpop.f32.mrf.mxu0
    %v3055 = vadd.f32 %v2959, %v3054
    %v3056 = vpop.f32.mrf.mxu0
    %3057 = vmatprep.mubr.bf16.mxu0 0
    %3058 = vmatmul.mubr.bf16.gmra.mxu0 %v2908
    %v3059 = vpop.f32.mrf.mxu0
    %v3060 = vadd.f32 %v2959, %v3059
    %v3061 = vpop.f32.mrf.mxu0
    %v3062 = vpop.f32.mrf.mxu0
    %v3063 = vadd.f32 %v2959, %v3062
    %v3064 = vpop.f32.mrf.mxu0
    %3065 = vmatprep.mubr.bf16.mxu0 0
    %3066 = vmatmul.mubr.bf16.gmra.mxu0 %v2909
    %v3067 = vpop.f32.mrf.mxu0
    %v3068 = vadd.f32 %v2959, %v3067
    %v3069 = vpop.f32.mrf.mxu0
    %v3070 = vpop.f32.mrf.mxu0
    %v3071 = vadd.f32 %v2959, %v3070
    %v3072 = vpop.f32.mrf.mxu0
    %3073 = vmatprep.mubr.bf16.mxu0 0
    %3074 = vmatmul.mubr.bf16.gmra.mxu0 %v2910
    %v3075 = vpop.f32.mrf.mxu0
    %v3076 = vadd.f32 %v2959, %v3075
    %v3077 = vpop.f32.mrf.mxu0
    %v3078 = vpop.f32.mrf.mxu0
    %v3079 = vadd.f32 %v2959, %v3078
    %v3080 = vpop.f32.mrf.mxu0
    %3081 = vmatprep.mubr.bf16.mxu0 0
    %3082 = vmatmul.mubr.bf16.gmra.mxu0 %v2911
    %v3083 = vpop.f32.mrf.mxu0
    %v3084 = vadd.f32 %v2959, %v3083
    %v3085 = vpop.f32.mrf.mxu0
    %v3086 = vpop.f32.mrf.mxu0
    %v3087 = vadd.f32 %v2959, %v3086
    %v3088 = vpop.f32.mrf.mxu0
    %3089 = vmatprep.mubr.bf16.mxu0 0
    %3090 = vmatmul.mubr.bf16.gmra.mxu0 %v2912
    %v3091 = vpop.f32.mrf.mxu0
    %v3092 = vadd.f32 %v2959, %v3091
    %v3093 = vpop.f32.mrf.mxu0
    %v3094 = vpop.f32.mrf.mxu0
    %v3095 = vadd.f32 %v2959, %v3094
    %v3096 = vpop.f32.mrf.mxu0
    %3097 = vmatprep.mubr.bf16.mxu0 0
    %3098 = vmatmul.mubr.bf16.gmra.mxu0 %v2913
    %v3099 = vpop.f32.mrf.mxu0
    %v3100 = vadd.f32 %v2959, %v3099
    %v3101 = vpop.f32.mrf.mxu0
    %v3102 = vpop.f32.mrf.mxu0
    %v3103 = vadd.f32 %v2959, %v3102
    %v3104 = vpop.f32.mrf.mxu0
    %3105 = vmatprep.mubr.bf16.mxu0 0
    %3106 = vmatmul.mubr.bf16.gmra.mxu0 %v2914
    %v3107 = vpop.f32.mrf.mxu0
    %v3108 = vadd.f32 %v2959, %v3107
    %v3109 = vpop.f32.mrf.mxu0
    %v3110 = vpop.f32.mrf.mxu0
    %v3111 = vadd.f32 %v2959, %v3110
    %v3112 = vpop.f32.mrf.mxu0
    %3113 = vmatprep.mubr.bf16.mxu0 0
    %3114 = vmatmul.mubr.bf16.gmra.mxu0 %v2915
    %v3115 = vpop.f32.mrf.mxu0
    %v3116 = vadd.f32 %v2959, %v3115
    %v3117 = vpop.f32.mrf.mxu0
    %v3118 = vpop.f32.mrf.mxu0
    %v3119 = vadd.f32 %v2959, %v3118
    %v3120 = vpop.f32.mrf.mxu0
    %3121 = vmatprep.mubr.bf16.mxu0 0
    %3122 = vmatmul.mubr.bf16.gmra.mxu0 %v2916
    %v3123 = vpop.f32.mrf.mxu0
    %v3124 = vadd.f32 %v2959, %v3123
    %v3125 = vpop.f32.mrf.mxu0
    %v3126 = vpop.f32.mrf.mxu0
    %v3127 = vadd.f32 %v2959, %v3126
    %v3128 = vpop.f32.mrf.mxu0
    %3129 = vmatprep.mubr.bf16.mxu0 0
    %3130 = vmatmul.mubr.bf16.gmra.mxu0 %v2917
    %v3131 = vpop.f32.mrf.mxu0
    %v3132 = vadd.f32 %v2959, %v3131
    %v3133 = vpop.f32.mrf.mxu0
    %v3134 = vpop.f32.mrf.mxu0
    %v3135 = vadd.f32 %v2959, %v3134
    %v3136 = vpop.f32.mrf.mxu0
    %3137 = vmatprep.mubr.bf16.mxu0 0
    %3138 = vmatmul.mubr.bf16.gmra.mxu0 %v2918
    %v3139 = vpop.f32.mrf.mxu0
    %v3140 = vadd.f32 %v2959, %v3139
    %v3141 = vpop.f32.mrf.mxu0
    %v3142 = vpop.f32.mrf.mxu0
    %v3143 = vadd.f32 %v2959, %v3142
    %v3144 = vpop.f32.mrf.mxu0
    %3145 = vmatprep.mubr.bf16.mxu0 0
    %3146 = vmatmul.mubr.bf16.gmra.mxu0 %v2919
    %v3147 = vpop.f32.mrf.mxu0
    %v3148 = vadd.f32 %v2959, %v3147
    %v3149 = vpop.f32.mrf.mxu0
    %v3150 = vpop.f32.mrf.mxu0
    %v3151 = vadd.f32 %v2959, %v3150
    %v3152 = vpop.f32.mrf.mxu0
    %3153 = vmatprep.mubr.bf16.mxu0 0
    %3154 = vmatmul.mubr.bf16.gmra.mxu0 %v2920
    %v3155 = vpop.f32.mrf.mxu0
    %v3156 = vadd.f32 %v2959, %v3155
    %v3157 = vpop.f32.mrf.mxu0
    %v3158 = vpop.f32.mrf.mxu0
    %v3159 = vadd.f32 %v2959, %v3158
    %v3160 = vpop.f32.mrf.mxu0
    %3161 = vmatprep.mubr.bf16.mxu0 0
    %3162 = vmatmul.mubr.bf16.gmra.mxu0 %v2921
    %v3163 = vpop.f32.mrf.mxu0
    %v3164 = vadd.f32 %v2959, %v3163
    %v3165 = vpop.f32.mrf.mxu0
    %v3166 = vpop.f32.mrf.mxu0
    %v3167 = vadd.f32 %v2959, %v3166
    %v3168 = vpop.f32.mrf.mxu0
    %3169 = vmatprep.mubr.bf16.mxu0 0
    %3170 = vmatmul.mubr.bf16.gmra.mxu0 %v2922
    %v3171 = vpop.f32.mrf.mxu0
    %v3172 = vadd.f32 %v2959, %v3171
    %v3173 = vpop.f32.mrf.mxu0
    %v3174 = vpop.f32.mrf.mxu0
    %v3175 = vadd.f32 %v2959, %v3174
    %v3176 = vpop.f32.mrf.mxu0
    %3177 = vmatprep.mubr.bf16.mxu0 0
    %3178 = vmatmul.mubr.bf16.gmra.mxu0 %v2923
    %v3179 = vpop.f32.mrf.mxu0
    %v3180 = vadd.f32 %v2959, %v3179
    %v3181 = vpop.f32.mrf.mxu0
    %v3182 = vpop.f32.mrf.mxu0
    %v3183 = vadd.f32 %v2959, %v3182
    %v3184 = vpop.f32.mrf.mxu0
    %3185 = vmatprep.mubr.bf16.mxu0 0
    %3186 = vmatmul.mubr.bf16.gmra.mxu0 %v2924
    %v3187 = vpop.f32.mrf.mxu0
    %v3188 = vadd.f32 %v2959, %v3187
    %v3189 = vpop.f32.mrf.mxu0
    %v3190 = vpop.f32.mrf.mxu0
    %v3191 = vadd.f32 %v2959, %v3190
    %v3192 = vpop.f32.mrf.mxu0
    %3193 = vmatprep.mubr.bf16.mxu0 0
    %3194 = vmatmul.mubr.bf16.gmra.mxu0 %v2925
    %v3195 = vpop.f32.mrf.mxu0
    %v3196 = vadd.f32 %v2959, %v3195
    %v3197 = vpop.f32.mrf.mxu0
    %v3198 = vpop.f32.mrf.mxu0
    %v3199 = vadd.f32 %v2959, %v3198
    %v3200 = vpop.f32.mrf.mxu0
    %3201 = vmatprep.mubr.bf16.mxu0 0
    %3202 = vmatmul.mubr.bf16.gmra.mxu0 %v2926
    %v3203 = vpop.f32.mrf.mxu0
    %v3204 = vadd.f32 %v2959, %v3203
    %v3205 = vpop.f32.mrf.mxu0
    %v3206 = vpop.f32.mrf.mxu0
    %v3207 = vadd.f32 %v2959, %v3206
    %v3208 = vpop.f32.mrf.mxu0
    %3209 = vmatprep.mubr.bf16.mxu0 0
    %3210 = vmatmul.mubr.bf16.gmra.mxu0 %v2927
    %v3211 = vpop.f32.mrf.mxu0
    %v3212 = vadd.f32 %v2959, %v3211
    %v3213 = vpop.f32.mrf.mxu0
    %v3214 = vpop.f32.mrf.mxu0
    %v3215 = vadd.f32 %v2959, %v3214
    %v3216 = vpop.f32.mrf.mxu0
    %3217 = vmatprep.mubr.bf16.mxu0 0
    %3218 = vmatmul.mubr.bf16.gmra.mxu0 %v2928
    %v3219 = vpop.f32.mrf.mxu0
    %v3220 = vadd.f32 %v2959, %v3219
    %v3221 = vpop.f32.mrf.mxu0
    %v3222 = vpop.f32.mrf.mxu0
    %v3223 = vadd.f32 %v2959, %v3222
    %v3224 = vpop.f32.mrf.mxu0
    %3225 = vmatprep.mubr.bf16.mxu0 0
    %3226 = vmatmul.mubr.bf16.gmra.mxu0 %v2929
    %v3227 = vpop.f32.mrf.mxu0
    %v3228 = vadd.f32 %v2959, %v3227
    %v3229 = vpop.f32.mrf.mxu0
    %v3230 = vpop.f32.mrf.mxu0
    %v3231 = vadd.f32 %v2959, %v3230
    %v3232 = vpop.f32.mrf.mxu0
    %3233 = vmatprep.mubr.bf16.mxu0 0
    %3234 = vmatmul.mubr.bf16.gmra.mxu0 %v2930
    %v3235 = vpop.f32.mrf.mxu0
    %v3236 = vadd.f32 %v2959, %v3235
    %v3237 = vpop.f32.mrf.mxu0
    %v3238 = vpop.f32.mrf.mxu0
    %v3239 = vadd.f32 %v2959, %v3238
    %v3240 = vpop.f32.mrf.mxu0
    %3241 = vmatprep.mubr.bf16.mxu0 0
    %3242 = vmatmul.mubr.bf16.gmra.mxu0 %v2931
    %v3243 = vpop.f32.mrf.mxu0
    %v3244 = vadd.f32 %v2959, %v3243
    %v3245 = vpop.f32.mrf.mxu0
    %v3246 = vpop.f32.mrf.mxu0
    %v3247 = vadd.f32 %v2959, %v3246
    %v3248 = vpop.f32.mrf.mxu0
    %3249 = vmatprep.mubr.bf16.mxu0 0
    %3250 = vmatmul.mubr.bf16.gmra.mxu0 %v2932
    %v3251 = vpop.f32.mrf.mxu0
    %v3252 = vadd.f32 %v2959, %v3251
    %v3253 = vpop.f32.mrf.mxu0
    %v3254 = vpop.f32.mrf.mxu0
    %v3255 = vadd.f32 %v2959, %v3254
    %v3256 = vpop.f32.mrf.mxu0
    %3257 = vmatprep.mubr.bf16.mxu0 0
    %3258 = vmatmul.mubr.bf16.gmra.mxu0 %v2933
    %v3259 = vpop.f32.mrf.mxu0
    %v3260 = vadd.f32 %v2959, %v3259
    %v3261 = vpop.f32.mrf.mxu0
    %v3262 = vpop.f32.mrf.mxu0
    %v3263 = vadd.f32 %v2959, %v3262
    %v3264 = vpop.f32.mrf.mxu0
    %3265 = vmatprep.mubr.bf16.mxu0 0
    %3266 = vmatmul.mubr.bf16.gmra.mxu0 %v2934
    %v3267 = vpop.f32.mrf.mxu0
    %v3268 = vadd.f32 %v2959, %v3267
    %v3269 = vpop.f32.mrf.mxu0
    %v3270 = vpop.f32.mrf.mxu0
    %v3271 = vadd.f32 %v2959, %v3270
    %v3272 = vpop.f32.mrf.mxu0
    %3273 = vmatprep.mubr.bf16.mxu0 0
    %3274 = vmatmul.mubr.bf16.gmra.mxu0 %v2935
    %v3275 = vpop.f32.mrf.mxu0
    %v3276 = vadd.f32 %v2959, %v3275
    %v3277 = vpop.f32.mrf.mxu0
    %v3278 = vpop.f32.mrf.mxu0
    %v3279 = vadd.f32 %v2959, %v3278
    %v3280 = vpop.f32.mrf.mxu0
    %3281 = vmatprep.mubr.bf16.mxu0 0
    %3282 = vmatmul.mubr.bf16.gmra.mxu0 %v2936
    %v3283 = vpop.f32.mrf.mxu0
    %v3284 = vadd.f32 %v2959, %v3283
    %v3285 = vpop.f32.mrf.mxu0
    %v3286 = vpop.f32.mrf.mxu0
    %v3287 = vadd.f32 %v2959, %v3286
    %v3288 = vpop.f32.mrf.mxu0
    %3289 = vmatprep.mubr.bf16.mxu0 0
    %3290 = vmatmul.mubr.bf16.gmra.mxu0 %v2937
    %v3291 = vpop.f32.mrf.mxu0
    %v3292 = vadd.f32 %v2959, %v3291
    %v3293 = vpop.f32.mrf.mxu0
    %v3294 = vpop.f32.mrf.mxu0
    %v3295 = vadd.f32 %v2959, %v3294
    %v3296 = vpop.f32.mrf.mxu0
    %3297 = vdwg.mxu0
    %v3298 = vpack.c.bf16 %v2100, %v2098
    %v3299 = vpack.c.bf16 %v2101, %v2099
    %v3300 = vpack.c.bf16 %v2104, %v2102
    %v3301 = vpack.c.bf16 %v2105, %v2103
    %v3302 = vpack.c.bf16 %v2108, %v2106
    %v3303 = vpack.c.bf16 %v2109, %v2107
    %v3304 = vpack.c.bf16 %v2112, %v2110
    %v3305 = vpack.c.bf16 %v2113, %v2111
    %v3306 = vpack.c.bf16 %v2116, %v2114
    %v3307 = vpack.c.bf16 %v2117, %v2115
    %v3308 = vpack.c.bf16 %v2120, %v2118
    %v3309 = vpack.c.bf16 %v2121, %v2119
    %v3310 = vpack.c.bf16 %v2124, %v2122
    %v3311 = vpack.c.bf16 %v2125, %v2123
    %v3312 = vpack.c.bf16 %v2128, %v2126
    %v3313 = vpack.c.bf16 %v2129, %v2127
    %v3314 = vpack.c.bf16 %v2132, %v2130
    %v3315 = vpack.c.bf16 %v2133, %v2131
    %v3316 = vpack.c.bf16 %v2136, %v2134
    %v3317 = vpack.c.bf16 %v2137, %v2135
    %v3318 = vpack.c.bf16 %v2140, %v2138
    %v3319 = vpack.c.bf16 %v2141, %v2139
    %v3320 = vpack.c.bf16 %v2144, %v2142
    %v3321 = vpack.c.bf16 %v2145, %v2143
    %v3322 = vpack.c.bf16 %v2148, %v2146
    %v3323 = vpack.c.bf16 %v2149, %v2147
    %v3324 = vpack.c.bf16 %v2152, %v2150
    %v3325 = vpack.c.bf16 %v2153, %v2151
    %v3326 = vpack.c.bf16 %v2156, %v2154
    %v3327 = vpack.c.bf16 %v2157, %v2155
    %v3328 = vpack.c.bf16 %v2160, %v2158
    %v3329 = vpack.c.bf16 %v2161, %v2159
    %v3330 = vpack.c.bf16 %v2164, %v2162
    %v3331 = vpack.c.bf16 %v2165, %v2163
    %v3332 = vpack.c.bf16 %v2168, %v2166
    %v3333 = vpack.c.bf16 %v2169, %v2167
    %v3334 = vpack.c.bf16 %v2172, %v2170
    %v3335 = vpack.c.bf16 %v2173, %v2171
    %v3336 = vpack.c.bf16 %v2176, %v2174
    %v3337 = vpack.c.bf16 %v2177, %v2175
    %v3338 = vpack.c.bf16 %v2180, %v2178
    %v3339 = vpack.c.bf16 %v2181, %v2179
    %v3340 = vpack.c.bf16 %v2184, %v2182
    %v3341 = vpack.c.bf16 %v2185, %v2183
    %v3342 = vpack.c.bf16 %v2188, %v2186
    %v3343 = vpack.c.bf16 %v2189, %v2187
    %v3344 = vpack.c.bf16 %v2192, %v2190
    %v3345 = vpack.c.bf16 %v2193, %v2191
    %v3346 = vpack.c.bf16 %v2196, %v2194
    %v3347 = vpack.c.bf16 %v2197, %v2195
    %v3348 = vpack.c.bf16 %v2200, %v2198
    %v3349 = vpack.c.bf16 %v2201, %v2199
    %v3350 = vpack.c.bf16 %v2204, %v2202
    %v3351 = vpack.c.bf16 %v2205, %v2203
    %v3352 = vpack.c.bf16 %v2208, %v2206
    %v3353 = vpack.c.bf16 %v2209, %v2207
    %v3354 = vpack.c.bf16 %v2212, %v2210
    %v3355 = vpack.c.bf16 %v2213, %v2211
    %v3356 = vpack.c.bf16 %v2216, %v2214
    %v3357 = vpack.c.bf16 %v2217, %v2215
    %v3358 = vpack.c.bf16 %v2220, %v2218
    %v3359 = vpack.c.bf16 %v2221, %v2219
    %v3360 = vpack.c.bf16 %v2224, %v2222
    %v3361 = vpack.c.bf16 %v2225, %v2223
    %v3362 = vld [vmem:[%s15] sm:$0xf]
    %v3363 = vld [vmem:[%s15 + $0x4] sm:$0xf]
    %v3364 = vld [vmem:[%s15 + $0x8] sm:$0xf]
    %v3365 = vld [vmem:[%s15 + $0xc] sm:$0xf]
    %v3366 = vld [vmem:[%s15 + $0x10] sm:$0xf]
    %v3367 = vld [vmem:[%s15 + $0x14] sm:$0xf]
    %v3368 = vld [vmem:[%s15 + $0x18] sm:$0xf]
    %v3369 = vld [vmem:[%s15 + $0x1c] sm:$0xf]
    %v3370 = vld [vmem:[%s15 + $0x20] sm:$0xf]
    %v3371 = vld [vmem:[%s15 + $0x24] sm:$0xf]
    %v3372 = vld [vmem:[%s15 + $0x28] sm:$0xf]
    %v3373 = vld [vmem:[%s15 + $0x2c] sm:$0xf]
    %v3374 = vld [vmem:[%s15 + $0x30] sm:$0xf]
    %v3375 = vld [vmem:[%s15 + $0x34] sm:$0xf]
    %v3376 = vld [vmem:[%s15 + $0x38] sm:$0xf]
    %v3377 = vld [vmem:[%s15 + $0x3c] sm:$0xf]
    %v3378 = vld [vmem:[%s15 + $0x40] sm:$0xf]
    %v3379 = vld [vmem:[%s15 + $0x44] sm:$0xf]
    %v3380 = vld [vmem:[%s15 + $0x48] sm:$0xf]
    %v3381 = vld [vmem:[%s15 + $0x4c] sm:$0xf]
    %v3382 = vld [vmem:[%s15 + $0x50] sm:$0xf]
    %v3383 = vld [vmem:[%s15 + $0x54] sm:$0xf]
    %v3384 = vld [vmem:[%s15 + $0x58] sm:$0xf]
    %v3385 = vld [vmem:[%s15 + $0x5c] sm:$0xf]
    %v3386 = vld [vmem:[%s15 + $0x60] sm:$0xf]
    %v3387 = vld [vmem:[%s15 + $0x64] sm:$0xf]
    %v3388 = vld [vmem:[%s15 + $0x68] sm:$0xf]
    %v3389 = vld [vmem:[%s15 + $0x6c] sm:$0xf]
    %v3390 = vld [vmem:[%s15 + $0x70] sm:$0xf]
    %v3391 = vld [vmem:[%s15 + $0x74] sm:$0xf]
    %v3392 = vld [vmem:[%s15 + $0x78] sm:$0xf]
    %v3393 = vld [vmem:[%s15 + $0x7c] sm:$0xf]
    %v3426 = vunpack.c.l.b16 %v3362
    %v3427 = vunpack.c.l.b16 %v3363
    %v3428 = vunpack.c.l.b16 %v3364
    %v3429 = vunpack.c.l.b16 %v3365
    %v3430 = vunpack.c.l.b16 %v3366
    %v3431 = vunpack.c.l.b16 %v3367
    %v3432 = vunpack.c.l.b16 %v3368
    %v3433 = vunpack.c.l.b16 %v3369
    %v3434 = vunpack.c.l.b16 %v3370
    %v3435 = vunpack.c.l.b16 %v3371
    %v3436 = vunpack.c.l.b16 %v3372
    %v3437 = vunpack.c.l.b16 %v3373
    %v3438 = vunpack.c.l.b16 %v3374
    %v3439 = vunpack.c.l.b16 %v3375
    %v3440 = vunpack.c.l.b16 %v3376
    %v3441 = vunpack.c.l.b16 %v3377
    %v3442 = vunpack.c.l.b16 %v3378
    %v3443 = vunpack.c.l.b16 %v3379
    %v3444 = vunpack.c.l.b16 %v3380
    %v3445 = vunpack.c.l.b16 %v3381
    %v3446 = vunpack.c.l.b16 %v3382
    %v3447 = vunpack.c.l.b16 %v3383
    %v3448 = vunpack.c.l.b16 %v3384
    %v3449 = vunpack.c.l.b16 %v3385
    %v3450 = vunpack.c.l.b16 %v3386
    %v3451 = vunpack.c.l.b16 %v3387
    %v3452 = vunpack.c.l.b16 %v3388
    %v3453 = vunpack.c.l.b16 %v3389
    %v3454 = vunpack.c.l.b16 %v3390
    %v3455 = vunpack.c.l.b16 %v3391
    %v3456 = vunpack.c.l.b16 %v3392
    %v3457 = vunpack.c.l.b16 %v3393
    %v3458 = vpack.c.b16 %v3427, %v3426
    %v3459 = vpack.c.b16 %v3429, %v3428
    %v3460 = vpack.c.b16 %v3431, %v3430
    %v3461 = vpack.c.b16 %v3433, %v3432
    %v3462 = vpack.c.b16 %v3435, %v3434
    %v3463 = vpack.c.b16 %v3437, %v3436
    %v3464 = vpack.c.b16 %v3439, %v3438
    %v3465 = vpack.c.b16 %v3441, %v3440
    %v3466 = vpack.c.b16 %v3443, %v3442
    %v3467 = vpack.c.b16 %v3445, %v3444
    %v3468 = vpack.c.b16 %v3447, %v3446
    %v3469 = vpack.c.b16 %v3449, %v3448
    %v3470 = vpack.c.b16 %v3451, %v3450
    %v3471 = vpack.c.b16 %v3453, %v3452
    %v3472 = vpack.c.b16 %v3455, %v3454
    %v3473 = vpack.c.b16 %v3457, %v3456
    %3490 = vmatprep.subr.bf16.mxu0 0
    %3491 = vmatpush1.bf16.msra.mxu0 %v3465
    %3492 = vmatprep.subr.bf16.mxu0 0
    %3493 = vmatpush1.bf16.msra.mxu0 %v3464
    %3494 = vmatprep.subr.bf16.mxu0 0
    %3495 = vmatpush1.bf16.msra.mxu0 %v3463
    %3496 = vmatprep.subr.bf16.mxu0 0
    %3497 = vmatpush1.bf16.msra.mxu0 %v3462
    %3498 = vmatprep.subr.bf16.mxu0 0
    %3499 = vmatpush1.bf16.msra.mxu0 %v3461
    %3500 = vmatprep.subr.bf16.mxu0 0
    %3501 = vmatpush1.bf16.msra.mxu0 %v3460
    %3502 = vmatprep.subr.bf16.mxu0 0
    %3503 = vmatpush1.bf16.msra.mxu0 %v3459
    %3504 = vmatprep.subr.bf16.mxu0 0
    %3505 = vmatpush1.bf16.msra.mxu0 %v3458
    %3506 = vmatprep.subr.bf16.mxu0 0
    %3507 = vmatpush2.bf16.msra.mxu0 %v3473
    %3508 = vmatprep.subr.bf16.mxu0 0
    %3509 = vmatpush2.bf16.msra.mxu0 %v3472
    %3510 = vmatprep.subr.bf16.mxu0 0
    %3511 = vmatpush2.bf16.msra.mxu0 %v3471
    %3512 = vmatprep.subr.bf16.mxu0 0
    %3513 = vmatpush2.bf16.msra.mxu0 %v3470
    %3514 = vmatprep.subr.bf16.mxu0 0
    %3515 = vmatpush2.bf16.msra.mxu0 %v3469
    %3516 = vmatprep.subr.bf16.mxu0 0
    %3517 = vmatpush2.bf16.msra.mxu0 %v3468
    %3518 = vmatprep.subr.bf16.mxu0 0
    %3519 = vmatpush2.bf16.msra.mxu0 %v3467
    %3520 = vmatprep.subr.bf16.mxu0 0
    %3521 = vmatpush2.bf16.msra.mxu0 %v3466
    %3522 = vmatprep.mubr.bf16.mxu0 %v3299
    %3523 = vmatmul.mubr.bf16.gmra.mxu0 %v3298
    %v3524 = vpop.f32.mrf.mxu0
    %v3525 = vadd.f32 %v3044, %v3524
    %v3526 = vpop.f32.mrf.mxu0
    %v3527 = vpop.f32.mrf.mxu0
    %v3528 = vadd.f32 %v3047, %v3527
    %v3529 = vpop.f32.mrf.mxu0
    %3530 = vmatprep.mubr.bf16.mxu0 %v3301
    %3531 = vmatmul.mubr.bf16.gmra.mxu0 %v3300
    %v3532 = vpop.f32.mrf.mxu0
    %v3533 = vadd.f32 %v3052, %v3532
    %v3534 = vpop.f32.mrf.mxu0
    %v3535 = vpop.f32.mrf.mxu0
    %v3536 = vadd.f32 %v3055, %v3535
    %v3537 = vpop.f32.mrf.mxu0
    %3538 = vmatprep.mubr.bf16.mxu0 %v3303
    %3539 = vmatmul.mubr.bf16.gmra.mxu0 %v3302
    %v3540 = vpop.f32.mrf.mxu0
    %v3541 = vadd.f32 %v3060, %v3540
    %v3542 = vpop.f32.mrf.mxu0
    %v3543 = vpop.f32.mrf.mxu0
    %v3544 = vadd.f32 %v3063, %v3543
    %v3545 = vpop.f32.mrf.mxu0
    %3546 = vmatprep.mubr.bf16.mxu0 %v3305
    %3547 = vmatmul.mubr.bf16.gmra.mxu0 %v3304
    %v3548 = vpop.f32.mrf.mxu0
    %v3549 = vadd.f32 %v3068, %v3548
    %v3550 = vpop.f32.mrf.mxu0
    %v3551 = vpop.f32.mrf.mxu0
    %v3552 = vadd.f32 %v3071, %v3551
    %v3553 = vpop.f32.mrf.mxu0
    %3554 = vmatprep.mubr.bf16.mxu0 %v3307
    %3555 = vmatmul.mubr.bf16.gmra.mxu0 %v3306
    %v3556 = vpop.f32.mrf.mxu0
    %v3557 = vadd.f32 %v3076, %v3556
    %v3558 = vpop.f32.mrf.mxu0
    %v3559 = vpop.f32.mrf.mxu0
    %v3560 = vadd.f32 %v3079, %v3559
    %v3561 = vpop.f32.mrf.mxu0
    %3562 = vmatprep.mubr.bf16.mxu0 %v3309
    %3563 = vmatmul.mubr.bf16.gmra.mxu0 %v3308
    %v3564 = vpop.f32.mrf.mxu0
    %v3565 = vadd.f32 %v3084, %v3564
    %v3566 = vpop.f32.mrf.mxu0
    %v3567 = vpop.f32.mrf.mxu0
    %v3568 = vadd.f32 %v3087, %v3567
    %v3569 = vpop.f32.mrf.mxu0
    %3570 = vmatprep.mubr.bf16.mxu0 %v3311
    %3571 = vmatmul.mubr.bf16.gmra.mxu0 %v3310
    %v3572 = vpop.f32.mrf.mxu0
    %v3573 = vadd.f32 %v3092, %v3572
    %v3574 = vpop.f32.mrf.mxu0
    %v3575 = vpop.f32.mrf.mxu0
    %v3576 = vadd.f32 %v3095, %v3575
    %v3577 = vpop.f32.mrf.mxu0
    %3578 = vmatprep.mubr.bf16.mxu0 %v3313
    %3579 = vmatmul.mubr.bf16.gmra.mxu0 %v3312
    %v3580 = vpop.f32.mrf.mxu0
    %v3581 = vadd.f32 %v3100, %v3580
    %v3582 = vpop.f32.mrf.mxu0
    %v3583 = vpop.f32.mrf.mxu0
    %v3584 = vadd.f32 %v3103, %v3583
    %v3585 = vpop.f32.mrf.mxu0
    %3586 = vmatprep.mubr.bf16.mxu0 %v3315
    %3587 = vmatmul.mubr.bf16.gmra.mxu0 %v3314
    %v3588 = vpop.f32.mrf.mxu0
    %v3589 = vadd.f32 %v3108, %v3588
    %v3590 = vpop.f32.mrf.mxu0
    %v3591 = vpop.f32.mrf.mxu0
    %v3592 = vadd.f32 %v3111, %v3591
    %v3593 = vpop.f32.mrf.mxu0
    %3594 = vmatprep.mubr.bf16.mxu0 %v3317
    %3595 = vmatmul.mubr.bf16.gmra.mxu0 %v3316
    %v3596 = vpop.f32.mrf.mxu0
    %v3597 = vadd.f32 %v3116, %v3596
    %v3598 = vpop.f32.mrf.mxu0
    %v3599 = vpop.f32.mrf.mxu0
    %v3600 = vadd.f32 %v3119, %v3599
    %v3601 = vpop.f32.mrf.mxu0
    %3602 = vmatprep.mubr.bf16.mxu0 %v3319
    %3603 = vmatmul.mubr.bf16.gmra.mxu0 %v3318
    %v3604 = vpop.f32.mrf.mxu0
    %v3605 = vadd.f32 %v3124, %v3604
    %v3606 = vpop.f32.mrf.mxu0
    %v3607 = vpop.f32.mrf.mxu0
    %v3608 = vadd.f32 %v3127, %v3607
    %v3609 = vpop.f32.mrf.mxu0
    %3610 = vmatprep.mubr.bf16.mxu0 %v3321
    %3611 = vmatmul.mubr.bf16.gmra.mxu0 %v3320
    %v3612 = vpop.f32.mrf.mxu0
    %v3613 = vadd.f32 %v3132, %v3612
    %v3614 = vpop.f32.mrf.mxu0
    %v3615 = vpop.f32.mrf.mxu0
    %v3616 = vadd.f32 %v3135, %v3615
    %v3617 = vpop.f32.mrf.mxu0
    %3618 = vmatprep.mubr.bf16.mxu0 %v3323
    %3619 = vmatmul.mubr.bf16.gmra.mxu0 %v3322
    %v3620 = vpop.f32.mrf.mxu0
    %v3621 = vadd.f32 %v3140, %v3620
    %v3622 = vpop.f32.mrf.mxu0
    %v3623 = vpop.f32.mrf.mxu0
    %v3624 = vadd.f32 %v3143, %v3623
    %v3625 = vpop.f32.mrf.mxu0
    %3626 = vmatprep.mubr.bf16.mxu0 %v3325
    %3627 = vmatmul.mubr.bf16.gmra.mxu0 %v3324
    %v3628 = vpop.f32.mrf.mxu0
    %v3629 = vadd.f32 %v3148, %v3628
    %v3630 = vpop.f32.mrf.mxu0
    %v3631 = vpop.f32.mrf.mxu0
    %v3632 = vadd.f32 %v3151, %v3631
    %v3633 = vpop.f32.mrf.mxu0
    %3634 = vmatprep.mubr.bf16.mxu0 %v3327
    %3635 = vmatmul.mubr.bf16.gmra.mxu0 %v3326
    %v3636 = vpop.f32.mrf.mxu0
    %v3637 = vadd.f32 %v3156, %v3636
    %v3638 = vpop.f32.mrf.mxu0
    %v3639 = vpop.f32.mrf.mxu0
    %v3640 = vadd.f32 %v3159, %v3639
    %v3641 = vpop.f32.mrf.mxu0
    %3642 = vmatprep.mubr.bf16.mxu0 %v3329
    %3643 = vmatmul.mubr.bf16.gmra.mxu0 %v3328
    %v3644 = vpop.f32.mrf.mxu0
    %v3645 = vadd.f32 %v3164, %v3644
    %v3646 = vpop.f32.mrf.mxu0
    %v3647 = vpop.f32.mrf.mxu0
    %v3648 = vadd.f32 %v3167, %v3647
    %v3649 = vpop.f32.mrf.mxu0
    %3650 = vmatprep.mubr.bf16.mxu0 %v3331
    %3651 = vmatmul.mubr.bf16.gmra.mxu0 %v3330
    %v3652 = vpop.f32.mrf.mxu0
    %v3653 = vadd.f32 %v3172, %v3652
    %v3654 = vpop.f32.mrf.mxu0
    %v3655 = vpop.f32.mrf.mxu0
    %v3656 = vadd.f32 %v3175, %v3655
    %v3657 = vpop.f32.mrf.mxu0
    %3658 = vmatprep.mubr.bf16.mxu0 %v3333
    %3659 = vmatmul.mubr.bf16.gmra.mxu0 %v3332
    %v3660 = vpop.f32.mrf.mxu0
    %v3661 = vadd.f32 %v3180, %v3660
    %v3662 = vpop.f32.mrf.mxu0
    %v3663 = vpop.f32.mrf.mxu0
    %v3664 = vadd.f32 %v3183, %v3663
    %v3665 = vpop.f32.mrf.mxu0
    %3666 = vmatprep.mubr.bf16.mxu0 %v3335
    %3667 = vmatmul.mubr.bf16.gmra.mxu0 %v3334
    %v3668 = vpop.f32.mrf.mxu0
    %v3669 = vadd.f32 %v3188, %v3668
    %v3670 = vpop.f32.mrf.mxu0
    %v3671 = vpop.f32.mrf.mxu0
    %v3672 = vadd.f32 %v3191, %v3671
    %v3673 = vpop.f32.mrf.mxu0
    %3674 = vmatprep.mubr.bf16.mxu0 %v3337
    %3675 = vmatmul.mubr.bf16.gmra.mxu0 %v3336
    %v3676 = vpop.f32.mrf.mxu0
    %v3677 = vadd.f32 %v3196, %v3676
    %v3678 = vpop.f32.mrf.mxu0
    %v3679 = vpop.f32.mrf.mxu0
    %v3680 = vadd.f32 %v3199, %v3679
    %v3681 = vpop.f32.mrf.mxu0
    %3682 = vmatprep.mubr.bf16.mxu0 %v3339
    %3683 = vmatmul.mubr.bf16.gmra.mxu0 %v3338
    %v3684 = vpop.f32.mrf.mxu0
    %v3685 = vadd.f32 %v3204, %v3684
    %v3686 = vpop.f32.mrf.mxu0
    %v3687 = vpop.f32.mrf.mxu0
    %v3688 = vadd.f32 %v3207, %v3687
    %v3689 = vpop.f32.mrf.mxu0
    %3690 = vmatprep.mubr.bf16.mxu0 %v3341
    %3691 = vmatmul.mubr.bf16.gmra.mxu0 %v3340
    %v3692 = vpop.f32.mrf.mxu0
    %v3693 = vadd.f32 %v3212, %v3692
    %v3694 = vpop.f32.mrf.mxu0
    %v3695 = vpop.f32.mrf.mxu0
    %v3696 = vadd.f32 %v3215, %v3695
    %v3697 = vpop.f32.mrf.mxu0
    %3698 = vmatprep.mubr.bf16.mxu0 %v3343
    %3699 = vmatmul.mubr.bf16.gmra.mxu0 %v3342
    %v3700 = vpop.f32.mrf.mxu0
    %v3701 = vadd.f32 %v3220, %v3700
    %v3702 = vpop.f32.mrf.mxu0
    %v3703 = vpop.f32.mrf.mxu0
    %v3704 = vadd.f32 %v3223, %v3703
    %v3705 = vpop.f32.mrf.mxu0
    %3706 = vmatprep.mubr.bf16.mxu0 %v3345
    %3707 = vmatmul.mubr.bf16.gmra.mxu0 %v3344
    %v3708 = vpop.f32.mrf.mxu0
    %v3709 = vadd.f32 %v3228, %v3708
    %v3710 = vpop.f32.mrf.mxu0
    %v3711 = vpop.f32.mrf.mxu0
    %v3712 = vadd.f32 %v3231, %v3711
    %v3713 = vpop.f32.mrf.mxu0
    %3714 = vmatprep.mubr.bf16.mxu0 %v3347
    %3715 = vmatmul.mubr.bf16.gmra.mxu0 %v3346
    %v3716 = vpop.f32.mrf.mxu0
    %v3717 = vadd.f32 %v3236, %v3716
    %v3718 = vpop.f32.mrf.mxu0
    %v3719 = vpop.f32.mrf.mxu0
    %v3720 = vadd.f32 %v3239, %v3719
    %v3721 = vpop.f32.mrf.mxu0
    %3722 = vmatprep.mubr.bf16.mxu0 %v3349
    %3723 = vmatmul.mubr.bf16.gmra.mxu0 %v3348
    %v3724 = vpop.f32.mrf.mxu0
    %v3725 = vadd.f32 %v3244, %v3724
    %v3726 = vpop.f32.mrf.mxu0
    %v3727 = vpop.f32.mrf.mxu0
    %v3728 = vadd.f32 %v3247, %v3727
    %v3729 = vpop.f32.mrf.mxu0
    %3730 = vmatprep.mubr.bf16.mxu0 %v3351
    %3731 = vmatmul.mubr.bf16.gmra.mxu0 %v3350
    %v3732 = vpop.f32.mrf.mxu0
    %v3733 = vadd.f32 %v3252, %v3732
    %v3734 = vpop.f32.mrf.mxu0
    %v3735 = vpop.f32.mrf.mxu0
    %v3736 = vadd.f32 %v3255, %v3735
    %v3737 = vpop.f32.mrf.mxu0
    %3738 = vmatprep.mubr.bf16.mxu0 %v3353
    %3739 = vmatmul.mubr.bf16.gmra.mxu0 %v3352
    %v3740 = vpop.f32.mrf.mxu0
    %v3741 = vadd.f32 %v3260, %v3740
    %v3742 = vpop.f32.mrf.mxu0
    %v3743 = vpop.f32.mrf.mxu0
    %v3744 = vadd.f32 %v3263, %v3743
    %v3745 = vpop.f32.mrf.mxu0
    %3746 = vmatprep.mubr.bf16.mxu0 %v3355
    %3747 = vmatmul.mubr.bf16.gmra.mxu0 %v3354
    %v3748 = vpop.f32.mrf.mxu0
    %v3749 = vadd.f32 %v3268, %v3748
    %v3750 = vpop.f32.mrf.mxu0
    %v3751 = vpop.f32.mrf.mxu0
    %v3752 = vadd.f32 %v3271, %v3751
    %v3753 = vpop.f32.mrf.mxu0
    %3754 = vmatprep.mubr.bf16.mxu0 %v3357
    %3755 = vmatmul.mubr.bf16.gmra.mxu0 %v3356
    %v3756 = vpop.f32.mrf.mxu0
    %v3757 = vadd.f32 %v3276, %v3756
    %v3758 = vpop.f32.mrf.mxu0
    %v3759 = vpop.f32.mrf.mxu0
    %v3760 = vadd.f32 %v3279, %v3759
    %v3761 = vpop.f32.mrf.mxu0
    %3762 = vmatprep.mubr.bf16.mxu0 %v3359
    %3763 = vmatmul.mubr.bf16.gmra.mxu0 %v3358
    %v3764 = vpop.f32.mrf.mxu0
    %v3765 = vadd.f32 %v3284, %v3764
    %v3766 = vpop.f32.mrf.mxu0
    %v3767 = vpop.f32.mrf.mxu0
    %v3768 = vadd.f32 %v3287, %v3767
    %v3769 = vpop.f32.mrf.mxu0
    %3770 = vmatprep.mubr.bf16.mxu0 %v3361
    %3771 = vmatmul.mubr.bf16.gmra.mxu0 %v3360
    %v3772 = vpop.f32.mrf.mxu0
    %v3773 = vadd.f32 %v3292, %v3772
    %v3774 = vpop.f32.mrf.mxu0
    %v3775 = vpop.f32.mrf.mxu0
    %v3776 = vadd.f32 %v3295, %v3775
    %v3777 = vpop.f32.mrf.mxu0
    %3778 = vdwg.mxu0
    %v3779 = vmax.f32 %v3525, %v3528
    %v3780 = vmax.f32 %v3779, %v3533
    %v3781 = vmax.f32 %v3780, %v3536
    %v3782 = vmax.f32 %v3781, %v3541
    %v3783 = vmax.f32 %v3782, %v3544
    %v3784 = vmax.f32 %v3783, %v3549
    %v3785 = vmax.f32 %v3784, %v3552
    %v3786 = vrot.slane %v3785, 4
    %v3787 = vmax.f32 %v3785, %v3786
    %v3788 = vrot.slane %v3787, 2
    %v3789 = vmax.f32 %v3787, %v3788
    %v3790 = vrot.slane %v3789, 1
    %v3791 = vmax.f32 %v3789, %v3790
    %v3792 = vmax.f32 %v3557, %v3560
    %v3793 = vmax.f32 %v3792, %v3565
    %v3794 = vmax.f32 %v3793, %v3568
    %v3795 = vmax.f32 %v3794, %v3573
    %v3796 = vmax.f32 %v3795, %v3576
    %v3797 = vmax.f32 %v3796, %v3581
    %v3798 = vmax.f32 %v3797, %v3584
    %v3799 = vrot.slane %v3798, 4
    %v3800 = vmax.f32 %v3798, %v3799
    %v3801 = vrot.slane %v3800, 2
    %v3802 = vmax.f32 %v3800, %v3801
    %v3803 = vrot.slane %v3802, 1
    %v3804 = vmax.f32 %v3802, %v3803
    %v3805 = vmax.f32 %v3589, %v3592
    %v3806 = vmax.f32 %v3805, %v3597
    %v3807 = vmax.f32 %v3806, %v3600
    %v3808 = vmax.f32 %v3807, %v3605
    %v3809 = vmax.f32 %v3808, %v3608
    %v3810 = vmax.f32 %v3809, %v3613
    %v3811 = vmax.f32 %v3810, %v3616
    %v3812 = vrot.slane %v3811, 4
    %v3813 = vmax.f32 %v3811, %v3812
    %v3814 = vrot.slane %v3813, 2
    %v3815 = vmax.f32 %v3813, %v3814
    %v3816 = vrot.slane %v3815, 1
    %v3817 = vmax.f32 %v3815, %v3816
    %v3818 = vmax.f32 %v3621, %v3624
    %v3819 = vmax.f32 %v3818, %v3629
    %v3820 = vmax.f32 %v3819, %v3632
    %v3821 = vmax.f32 %v3820, %v3637
    %v3822 = vmax.f32 %v3821, %v3640
    %v3823 = vmax.f32 %v3822, %v3645
    %v3824 = vmax.f32 %v3823, %v3648
    %v3825 = vrot.slane %v3824, 4
    %v3826 = vmax.f32 %v3824, %v3825
    %v3827 = vrot.slane %v3826, 2
    %v3828 = vmax.f32 %v3826, %v3827
    %v3829 = vrot.slane %v3828, 1
    %v3830 = vmax.f32 %v3828, %v3829
    %v3831 = vmax.f32 %v3653, %v3656
    %v3832 = vmax.f32 %v3831, %v3661
    %v3833 = vmax.f32 %v3832, %v3664
    %v3834 = vmax.f32 %v3833, %v3669
    %v3835 = vmax.f32 %v3834, %v3672
    %v3836 = vmax.f32 %v3835, %v3677
    %v3837 = vmax.f32 %v3836, %v3680
    %v3838 = vrot.slane %v3837, 4
    %v3839 = vmax.f32 %v3837, %v3838
    %v3840 = vrot.slane %v3839, 2
    %v3841 = vmax.f32 %v3839, %v3840
    %v3842 = vrot.slane %v3841, 1
    %v3843 = vmax.f32 %v3841, %v3842
    %v3844 = vmax.f32 %v3685, %v3688
    %v3845 = vmax.f32 %v3844, %v3693
    %v3846 = vmax.f32 %v3845, %v3696
    %v3847 = vmax.f32 %v3846, %v3701
    %v3848 = vmax.f32 %v3847, %v3704
    %v3849 = vmax.f32 %v3848, %v3709
    %v3850 = vmax.f32 %v3849, %v3712
    %v3851 = vrot.slane %v3850, 4
    %v3852 = vmax.f32 %v3850, %v3851
    %v3853 = vrot.slane %v3852, 2
    %v3854 = vmax.f32 %v3852, %v3853
    %v3855 = vrot.slane %v3854, 1
    %v3856 = vmax.f32 %v3854, %v3855
    %v3857 = vmax.f32 %v3717, %v3720
    %v3858 = vmax.f32 %v3857, %v3725
    %v3859 = vmax.f32 %v3858, %v3728
    %v3860 = vmax.f32 %v3859, %v3733
    %v3861 = vmax.f32 %v3860, %v3736
    %v3862 = vmax.f32 %v3861, %v3741
    %v3863 = vmax.f32 %v3862, %v3744
    %v3864 = vrot.slane %v3863, 4
    %v3865 = vmax.f32 %v3863, %v3864
    %v3866 = vrot.slane %v3865, 2
    %v3867 = vmax.f32 %v3865, %v3866
    %v3868 = vrot.slane %v3867, 1
    %v3869 = vmax.f32 %v3867, %v3868
    %v3870 = vmax.f32 %v3749, %v3752
    %v3871 = vmax.f32 %v3870, %v3757
    %v3872 = vmax.f32 %v3871, %v3760
    %v3873 = vmax.f32 %v3872, %v3765
    %v3874 = vmax.f32 %v3873, %v3768
    %v3875 = vmax.f32 %v3874, %v3773
    %v3876 = vmax.f32 %v3875, %v3776
    %v3877 = vrot.slane %v3876, 4
    %v3878 = vmax.f32 %v3876, %v3877
    %v3879 = vrot.slane %v3878, 2
    %v3880 = vmax.f32 %v3878, %v3879
    %v3881 = vrot.slane %v3880, 1
    %v3882 = vmax.f32 %v3880, %v3881
    %v3883 = vmax.f32 %v3525, 0.0
    %v3884 = vmax.f32 %v3528, 0.0
    %v3885 = vmax.f32 %v3533, 0.0
    %v3886 = vmax.f32 %v3536, 0.0
    %v3887 = vmax.f32 %v3541, 0.0
    %v3888 = vmax.f32 %v3544, 0.0
    %v3889 = vmax.f32 %v3549, 0.0
    %v3890 = vmax.f32 %v3552, 0.0
    %v3891 = vmax.f32 %v3557, 0.0
    %v3892 = vmax.f32 %v3560, 0.0
    %v3893 = vmax.f32 %v3565, 0.0
    %v3894 = vmax.f32 %v3568, 0.0
    %v3895 = vmax.f32 %v3573, 0.0
    %v3896 = vmax.f32 %v3576, 0.0
    %v3897 = vmax.f32 %v3581, 0.0
    %v3898 = vmax.f32 %v3584, 0.0
    %v3899 = vmax.f32 %v3589, 0.0
    %v3900 = vmax.f32 %v3592, 0.0
    %v3901 = vmax.f32 %v3597, 0.0
    %v3902 = vmax.f32 %v3600, 0.0
    %v3903 = vmax.f32 %v3605, 0.0
    %v3904 = vmax.f32 %v3608, 0.0
    %v3905 = vmax.f32 %v3613, 0.0
    %v3906 = vmax.f32 %v3616, 0.0
    %v3907 = vmax.f32 %v3621, 0.0
    %v3908 = vmax.f32 %v3624, 0.0
    %v3909 = vmax.f32 %v3629, 0.0
    %v3910 = vmax.f32 %v3632, 0.0
    %v3911 = vmax.f32 %v3637, 0.0
    %v3912 = vmax.f32 %v3640, 0.0
    %v3913 = vmax.f32 %v3645, 0.0
    %v3914 = vmax.f32 %v3648, 0.0
    %v3915 = vmax.f32 %v3653, 0.0
    %v3916 = vmax.f32 %v3656, 0.0
    %v3917 = vmax.f32 %v3661, 0.0
    %v3918 = vmax.f32 %v3664, 0.0
    %v3919 = vmax.f32 %v3669, 0.0
    %v3920 = vmax.f32 %v3672, 0.0
    %v3921 = vmax.f32 %v3677, 0.0
    %v3922 = vmax.f32 %v3680, 0.0
    %v3923 = vmax.f32 %v3685, 0.0
    %v3924 = vmax.f32 %v3688, 0.0
    %v3925 = vmax.f32 %v3693, 0.0
    %v3926 = vmax.f32 %v3696, 0.0
    %v3927 = vmax.f32 %v3701, 0.0
    %v3928 = vmax.f32 %v3704, 0.0
    %v3929 = vmax.f32 %v3709, 0.0
    %v3930 = vmax.f32 %v3712, 0.0
    %v3931 = vmax.f32 %v3717, 0.0
    %v3932 = vmax.f32 %v3720, 0.0
    %v3933 = vmax.f32 %v3725, 0.0
    %v3934 = vmax.f32 %v3728, 0.0
    %v3935 = vmax.f32 %v3733, 0.0
    %v3936 = vmax.f32 %v3736, 0.0
    %v3937 = vmax.f32 %v3741, 0.0
    %v3938 = vmax.f32 %v3744, 0.0
    %v3939 = vmax.f32 %v3749, 0.0
    %v3940 = vmax.f32 %v3752, 0.0
    %v3941 = vmax.f32 %v3757, 0.0
    %v3942 = vmax.f32 %v3760, 0.0
    %v3943 = vmax.f32 %v3765, 0.0
    %v3944 = vmax.f32 %v3768, 0.0
    %v3945 = vmax.f32 %v3773, 0.0
    %v3946 = vmax.f32 %v3776, 0.0
    %v3947 = vmax.f32 %v3791, 0.0
    %v3948 = vmax.f32 %v3804, 0.0
    %v3949 = vmax.f32 %v3817, 0.0
    %v3950 = vmax.f32 %v3830, 0.0
    %v3951 = vmax.f32 %v3843, 0.0
    %v3952 = vmax.f32 %v3856, 0.0
    %v3953 = vmax.f32 %v3869, 0.0
    %v3954 = vmax.f32 %v3882, 0.0
    %v3955 = vpack.c.bf16 %v3884, %v3883
    %v3956 = vpack.c.bf16 %v3886, %v3885
    %v3957 = vpack.c.bf16 %v3888, %v3887
    %v3958 = vpack.c.bf16 %v3890, %v3889
    %v3959 = vpack.c.bf16 %v3892, %v3891
    %v3960 = vpack.c.bf16 %v3894, %v3893
    %v3961 = vpack.c.bf16 %v3896, %v3895
    %v3962 = vpack.c.bf16 %v3898, %v3897
    %v3963 = vpack.c.bf16 %v3900, %v3899
    %v3964 = vpack.c.bf16 %v3902, %v3901
    %v3965 = vpack.c.bf16 %v3904, %v3903
    %v3966 = vpack.c.bf16 %v3906, %v3905
    %v3967 = vpack.c.bf16 %v3908, %v3907
    %v3968 = vpack.c.bf16 %v3910, %v3909
    %v3969 = vpack.c.bf16 %v3912, %v3911
    %v3970 = vpack.c.bf16 %v3914, %v3913
    %v3971 = vpack.c.bf16 %v3916, %v3915
    %v3972 = vpack.c.bf16 %v3918, %v3917
    %v3973 = vpack.c.bf16 %v3920, %v3919
    %v3974 = vpack.c.bf16 %v3922, %v3921
    %v3975 = vpack.c.bf16 %v3924, %v3923
    %v3976 = vpack.c.bf16 %v3926, %v3925
    %v3977 = vpack.c.bf16 %v3928, %v3927
    %v3978 = vpack.c.bf16 %v3930, %v3929
    %v3979 = vpack.c.bf16 %v3932, %v3931
    %v3980 = vpack.c.bf16 %v3934, %v3933
    %v3981 = vpack.c.bf16 %v3936, %v3935
    %v3982 = vpack.c.bf16 %v3938, %v3937
    %v3983 = vpack.c.bf16 %v3940, %v3939
    %v3984 = vpack.c.bf16 %v3942, %v3941
    %v3985 = vpack.c.bf16 %v3944, %v3943
    %v3986 = vpack.c.bf16 %v3946, %v3945
    %v3987 = vld [vmem:[%s17] sm:$0xf]
    %v3988 = vld [vmem:[%s17 + $0x4] sm:$0xf]
    %v3989 = vld [vmem:[%s17 + $0x8] sm:$0xf]
    %v3990 = vld [vmem:[%s17 + $0xc] sm:$0xf]
    %v3991 = vld [vmem:[%s17 + $0x10] sm:$0xf]
    %v3992 = vld [vmem:[%s17 + $0x14] sm:$0xf]
    %v3993 = vld [vmem:[%s17 + $0x18] sm:$0xf]
    %v3994 = vld [vmem:[%s17 + $0x1c] sm:$0xf]
    %v3995 = vld [vmem:[%s17 + $0x20] sm:$0xf]
    %v3996 = vld [vmem:[%s17 + $0x24] sm:$0xf]
    %v3997 = vld [vmem:[%s17 + $0x28] sm:$0xf]
    %v3998 = vld [vmem:[%s17 + $0x2c] sm:$0xf]
    %v3999 = vld [vmem:[%s17 + $0x30] sm:$0xf]
    %v4000 = vld [vmem:[%s17 + $0x34] sm:$0xf]
    %v4001 = vld [vmem:[%s17 + $0x38] sm:$0xf]
    %v4002 = vld [vmem:[%s17 + $0x3c] sm:$0xf]
    %v4003 = vld [vmem:[#allocation7] sm:$0x1]
    %v4005 = vlaneseq
    %v4006 = vshrl.u32 %v4005, 7
    %v4007 = vsub.s32 0, %v4006
    %v4008 = vrot.slane %v4003, %v4007
    %v4026 = vunpack.c.l.b16 %v3987
    %v4027 = vunpack.c.l.b16 %v3988
    %v4028 = vunpack.c.l.b16 %v3989
    %v4029 = vunpack.c.l.b16 %v3990
    %v4030 = vunpack.c.l.b16 %v3991
    %v4031 = vunpack.c.l.b16 %v3992
    %v4032 = vunpack.c.l.b16 %v3993
    %v4033 = vunpack.c.l.b16 %v3994
    %v4034 = vunpack.c.l.b16 %v3995
    %v4035 = vunpack.c.l.b16 %v3996
    %v4036 = vunpack.c.l.b16 %v3997
    %v4037 = vunpack.c.l.b16 %v3998
    %v4038 = vunpack.c.l.b16 %v3999
    %v4039 = vunpack.c.l.b16 %v4000
    %v4040 = vunpack.c.l.b16 %v4001
    %v4041 = vunpack.c.l.b16 %v4002
    %v4042 = vpack.c.b16 %v4027, %v4026
    %v4043 = vpack.c.b16 %v4029, %v4028
    %v4044 = vpack.c.b16 %v4031, %v4030
    %v4045 = vpack.c.b16 %v4033, %v4032
    %v4046 = vpack.c.b16 %v4035, %v4034
    %v4047 = vpack.c.b16 %v4037, %v4036
    %v4048 = vpack.c.b16 %v4039, %v4038
    %v4049 = vpack.c.b16 %v4041, %v4040
    %4058 = vmatprep.subr.bf16.mxu0 0
    %4059 = vmatpush1.bf16.msra.mxu0 %v4049
    %4060 = vmatprep.subr.bf16.mxu0 0
    %4061 = vmatpush1.bf16.msra.mxu0 %v4048
    %4062 = vmatprep.subr.bf16.mxu0 0
    %4063 = vmatpush1.bf16.msra.mxu0 %v4047
    %4064 = vmatprep.subr.bf16.mxu0 0
    %4065 = vmatpush1.bf16.msra.mxu0 %v4046
    %4066 = vmatprep.subr.bf16.mxu0 0
    %4067 = vmatpush1.bf16.msra.mxu0 %v4045
    %4068 = vmatprep.subr.bf16.mxu0 0
    %4069 = vmatpush1.bf16.msra.mxu0 %v4044
    %4070 = vmatprep.subr.bf16.mxu0 0
    %4071 = vmatpush1.bf16.msra.mxu0 %v4043
    %4072 = vmatprep.subr.bf16.mxu0 0
    %4073 = vmatpush1.bf16.msra.mxu0 %v4042
    %4074 = vmatprep.subr.bf16.mxu0 0
    %4075 = vmatpush2.bf16.msra.mxu0 0
    %4076 = vmatprep.subr.bf16.mxu0 0
    %4077 = vmatpush2.bf16.msra.mxu0 0
    %4078 = vmatprep.subr.bf16.mxu0 0
    %4079 = vmatpush2.bf16.msra.mxu0 0
    %4080 = vmatprep.subr.bf16.mxu0 0
    %4081 = vmatpush2.bf16.msra.mxu0 0
    %4082 = vmatprep.subr.bf16.mxu0 0
    %4083 = vmatpush2.bf16.msra.mxu0 0
    %4084 = vmatprep.subr.bf16.mxu0 0
    %4085 = vmatpush2.bf16.msra.mxu0 0
    %4086 = vmatprep.subr.bf16.mxu0 0
    %4087 = vmatpush2.bf16.msra.mxu0 0
    %4088 = vmatprep.subr.bf16.mxu0 0
    %4089 = vmatpush2.bf16.msra.mxu0 0
    %4090 = vmatprep.mubr.bf16.mxu0 0
    %4091 = vmatmul.mubr.bf16.gmra.mxu0 %v3955
    %v4092 = vpop.f32.mrf.mxu0
    %v4093 = vadd.f32 %v4008, %v4092
    %v4094 = vpop.f32.mrf.mxu0
    %v4095 = vpop.f32.mrf.mxu0
    %v4096 = vadd.f32 %v4008, %v4095
    %v4097 = vpop.f32.mrf.mxu0
    %4098 = vmatprep.mubr.bf16.mxu0 0
    %4099 = vmatmul.mubr.bf16.gmra.mxu0 %v3956
    %v4100 = vpop.f32.mrf.mxu0
    %v4101 = vadd.f32 %v4008, %v4100
    %v4102 = vpop.f32.mrf.mxu0
    %v4103 = vpop.f32.mrf.mxu0
    %v4104 = vadd.f32 %v4008, %v4103
    %v4105 = vpop.f32.mrf.mxu0
    %4106 = vmatprep.mubr.bf16.mxu0 0
    %4107 = vmatmul.mubr.bf16.gmra.mxu0 %v3957
    %v4108 = vpop.f32.mrf.mxu0
    %v4109 = vadd.f32 %v4008, %v4108
    %v4110 = vpop.f32.mrf.mxu0
    %v4111 = vpop.f32.mrf.mxu0
    %v4112 = vadd.f32 %v4008, %v4111
    %v4113 = vpop.f32.mrf.mxu0
    %4114 = vmatprep.mubr.bf16.mxu0 0
    %4115 = vmatmul.mubr.bf16.gmra.mxu0 %v3958
    %v4116 = vpop.f32.mrf.mxu0
    %v4117 = vadd.f32 %v4008, %v4116
    %v4118 = vpop.f32.mrf.mxu0
    %v4119 = vpop.f32.mrf.mxu0
    %v4120 = vadd.f32 %v4008, %v4119
    %v4121 = vpop.f32.mrf.mxu0
    %4122 = vmatprep.mubr.bf16.mxu0 0
    %4123 = vmatmul.mubr.bf16.gmra.mxu0 %v3959
    %v4124 = vpop.f32.mrf.mxu0
    %v4125 = vadd.f32 %v4008, %v4124
    %v4126 = vpop.f32.mrf.mxu0
    %v4127 = vpop.f32.mrf.mxu0
    %v4128 = vadd.f32 %v4008, %v4127
    %v4129 = vpop.f32.mrf.mxu0
    %4130 = vmatprep.mubr.bf16.mxu0 0
    %4131 = vmatmul.mubr.bf16.gmra.mxu0 %v3960
    %v4132 = vpop.f32.mrf.mxu0
    %v4133 = vadd.f32 %v4008, %v4132
    %v4134 = vpop.f32.mrf.mxu0
    %v4135 = vpop.f32.mrf.mxu0
    %v4136 = vadd.f32 %v4008, %v4135
    %v4137 = vpop.f32.mrf.mxu0
    %4138 = vmatprep.mubr.bf16.mxu0 0
    %4139 = vmatmul.mubr.bf16.gmra.mxu0 %v3961
    %v4140 = vpop.f32.mrf.mxu0
    %v4141 = vadd.f32 %v4008, %v4140
    %v4142 = vpop.f32.mrf.mxu0
    %v4143 = vpop.f32.mrf.mxu0
    %v4144 = vadd.f32 %v4008, %v4143
    %v4145 = vpop.f32.mrf.mxu0
    %4146 = vmatprep.mubr.bf16.mxu0 0
    %4147 = vmatmul.mubr.bf16.gmra.mxu0 %v3962
    %v4148 = vpop.f32.mrf.mxu0
    %v4149 = vadd.f32 %v4008, %v4148
    %v4150 = vpop.f32.mrf.mxu0
    %v4151 = vpop.f32.mrf.mxu0
    %v4152 = vadd.f32 %v4008, %v4151
    %v4153 = vpop.f32.mrf.mxu0
    %4154 = vmatprep.mubr.bf16.mxu0 0
    %4155 = vmatmul.mubr.bf16.gmra.mxu0 %v3963
    %v4156 = vpop.f32.mrf.mxu0
    %v4157 = vadd.f32 %v4008, %v4156
    %v4158 = vpop.f32.mrf.mxu0
    %v4159 = vpop.f32.mrf.mxu0
    %v4160 = vadd.f32 %v4008, %v4159
    %v4161 = vpop.f32.mrf.mxu0
    %4162 = vmatprep.mubr.bf16.mxu0 0
    %4163 = vmatmul.mubr.bf16.gmra.mxu0 %v3964
    %v4164 = vpop.f32.mrf.mxu0
    %v4165 = vadd.f32 %v4008, %v4164
    %v4166 = vpop.f32.mrf.mxu0
    %v4167 = vpop.f32.mrf.mxu0
    %v4168 = vadd.f32 %v4008, %v4167
    %v4169 = vpop.f32.mrf.mxu0
    %4170 = vmatprep.mubr.bf16.mxu0 0
    %4171 = vmatmul.mubr.bf16.gmra.mxu0 %v3965
    %v4172 = vpop.f32.mrf.mxu0
    %v4173 = vadd.f32 %v4008, %v4172
    %v4174 = vpop.f32.mrf.mxu0
    %v4175 = vpop.f32.mrf.mxu0
    %v4176 = vadd.f32 %v4008, %v4175
    %v4177 = vpop.f32.mrf.mxu0
    %4178 = vmatprep.mubr.bf16.mxu0 0
    %4179 = vmatmul.mubr.bf16.gmra.mxu0 %v3966
    %v4180 = vpop.f32.mrf.mxu0
    %v4181 = vadd.f32 %v4008, %v4180
    %v4182 = vpop.f32.mrf.mxu0
    %v4183 = vpop.f32.mrf.mxu0
    %v4184 = vadd.f32 %v4008, %v4183
    %v4185 = vpop.f32.mrf.mxu0
    %4186 = vmatprep.mubr.bf16.mxu0 0
    %4187 = vmatmul.mubr.bf16.gmra.mxu0 %v3967
    %v4188 = vpop.f32.mrf.mxu0
    %v4189 = vadd.f32 %v4008, %v4188
    %v4190 = vpop.f32.mrf.mxu0
    %v4191 = vpop.f32.mrf.mxu0
    %v4192 = vadd.f32 %v4008, %v4191
    %v4193 = vpop.f32.mrf.mxu0
    %4194 = vmatprep.mubr.bf16.mxu0 0
    %4195 = vmatmul.mubr.bf16.gmra.mxu0 %v3968
    %v4196 = vpop.f32.mrf.mxu0
    %v4197 = vadd.f32 %v4008, %v4196
    %v4198 = vpop.f32.mrf.mxu0
    %v4199 = vpop.f32.mrf.mxu0
    %v4200 = vadd.f32 %v4008, %v4199
    %v4201 = vpop.f32.mrf.mxu0
    %4202 = vmatprep.mubr.bf16.mxu0 0
    %4203 = vmatmul.mubr.bf16.gmra.mxu0 %v3969
    %v4204 = vpop.f32.mrf.mxu0
    %v4205 = vadd.f32 %v4008, %v4204
    %v4206 = vpop.f32.mrf.mxu0
    %v4207 = vpop.f32.mrf.mxu0
    %v4208 = vadd.f32 %v4008, %v4207
    %v4209 = vpop.f32.mrf.mxu0
    %4210 = vmatprep.mubr.bf16.mxu0 0
    %4211 = vmatmul.mubr.bf16.gmra.mxu0 %v3970
    %v4212 = vpop.f32.mrf.mxu0
    %v4213 = vadd.f32 %v4008, %v4212
    %v4214 = vpop.f32.mrf.mxu0
    %v4215 = vpop.f32.mrf.mxu0
    %v4216 = vadd.f32 %v4008, %v4215
    %v4217 = vpop.f32.mrf.mxu0
    %4218 = vmatprep.mubr.bf16.mxu0 0
    %4219 = vmatmul.mubr.bf16.gmra.mxu0 %v3971
    %v4220 = vpop.f32.mrf.mxu0
    %v4221 = vadd.f32 %v4008, %v4220
    %v4222 = vpop.f32.mrf.mxu0
    %v4223 = vpop.f32.mrf.mxu0
    %v4224 = vadd.f32 %v4008, %v4223
    %v4225 = vpop.f32.mrf.mxu0
    %4226 = vmatprep.mubr.bf16.mxu0 0
    %4227 = vmatmul.mubr.bf16.gmra.mxu0 %v3972
    %v4228 = vpop.f32.mrf.mxu0
    %v4229 = vadd.f32 %v4008, %v4228
    %v4230 = vpop.f32.mrf.mxu0
    %v4231 = vpop.f32.mrf.mxu0
    %v4232 = vadd.f32 %v4008, %v4231
    %v4233 = vpop.f32.mrf.mxu0
    %4234 = vmatprep.mubr.bf16.mxu0 0
    %4235 = vmatmul.mubr.bf16.gmra.mxu0 %v3973
    %v4236 = vpop.f32.mrf.mxu0
    %v4237 = vadd.f32 %v4008, %v4236
    %v4238 = vpop.f32.mrf.mxu0
    %v4239 = vpop.f32.mrf.mxu0
    %v4240 = vadd.f32 %v4008, %v4239
    %v4241 = vpop.f32.mrf.mxu0
    %4242 = vmatprep.mubr.bf16.mxu0 0
    %4243 = vmatmul.mubr.bf16.gmra.mxu0 %v3974
    %v4244 = vpop.f32.mrf.mxu0
    %v4245 = vadd.f32 %v4008, %v4244
    %v4246 = vpop.f32.mrf.mxu0
    %v4247 = vpop.f32.mrf.mxu0
    %v4248 = vadd.f32 %v4008, %v4247
    %v4249 = vpop.f32.mrf.mxu0
    %4250 = vmatprep.mubr.bf16.mxu0 0
    %4251 = vmatmul.mubr.bf16.gmra.mxu0 %v3975
    %v4252 = vpop.f32.mrf.mxu0
    %v4253 = vadd.f32 %v4008, %v4252
    %v4254 = vpop.f32.mrf.mxu0
    %v4255 = vpop.f32.mrf.mxu0
    %v4256 = vadd.f32 %v4008, %v4255
    %v4257 = vpop.f32.mrf.mxu0
    %4258 = vmatprep.mubr.bf16.mxu0 0
    %4259 = vmatmul.mubr.bf16.gmra.mxu0 %v3976
    %v4260 = vpop.f32.mrf.mxu0
    %v4261 = vadd.f32 %v4008, %v4260
    %v4262 = vpop.f32.mrf.mxu0
    %v4263 = vpop.f32.mrf.mxu0
    %v4264 = vadd.f32 %v4008, %v4263
    %v4265 = vpop.f32.mrf.mxu0
    %4266 = vmatprep.mubr.bf16.mxu0 0
    %4267 = vmatmul.mubr.bf16.gmra.mxu0 %v3977
    %v4268 = vpop.f32.mrf.mxu0
    %v4269 = vadd.f32 %v4008, %v4268
    %v4270 = vpop.f32.mrf.mxu0
    %v4271 = vpop.f32.mrf.mxu0
    %v4272 = vadd.f32 %v4008, %v4271
    %v4273 = vpop.f32.mrf.mxu0
    %4274 = vmatprep.mubr.bf16.mxu0 0
    %4275 = vmatmul.mubr.bf16.gmra.mxu0 %v3978
    %v4276 = vpop.f32.mrf.mxu0
    %v4277 = vadd.f32 %v4008, %v4276
    %v4278 = vpop.f32.mrf.mxu0
    %v4279 = vpop.f32.mrf.mxu0
    %v4280 = vadd.f32 %v4008, %v4279
    %v4281 = vpop.f32.mrf.mxu0
    %4282 = vmatprep.mubr.bf16.mxu0 0
    %4283 = vmatmul.mubr.bf16.gmra.mxu0 %v3979
    %v4284 = vpop.f32.mrf.mxu0
    %v4285 = vadd.f32 %v4008, %v4284
    %v4286 = vpop.f32.mrf.mxu0
    %v4287 = vpop.f32.mrf.mxu0
    %v4288 = vadd.f32 %v4008, %v4287
    %v4289 = vpop.f32.mrf.mxu0
    %4290 = vmatprep.mubr.bf16.mxu0 0
    %4291 = vmatmul.mubr.bf16.gmra.mxu0 %v3980
    %v4292 = vpop.f32.mrf.mxu0
    %v4293 = vadd.f32 %v4008, %v4292
    %v4294 = vpop.f32.mrf.mxu0
    %v4295 = vpop.f32.mrf.mxu0
    %v4296 = vadd.f32 %v4008, %v4295
    %v4297 = vpop.f32.mrf.mxu0
    %4298 = vmatprep.mubr.bf16.mxu0 0
    %4299 = vmatmul.mubr.bf16.gmra.mxu0 %v3981
    %v4300 = vpop.f32.mrf.mxu0
    %v4301 = vadd.f32 %v4008, %v4300
    %v4302 = vpop.f32.mrf.mxu0
    %v4303 = vpop.f32.mrf.mxu0
    %v4304 = vadd.f32 %v4008, %v4303
    %v4305 = vpop.f32.mrf.mxu0
    %4306 = vmatprep.mubr.bf16.mxu0 0
    %4307 = vmatmul.mubr.bf16.gmra.mxu0 %v3982
    %v4308 = vpop.f32.mrf.mxu0
    %v4309 = vadd.f32 %v4008, %v4308
    %v4310 = vpop.f32.mrf.mxu0
    %v4311 = vpop.f32.mrf.mxu0
    %v4312 = vadd.f32 %v4008, %v4311
    %v4313 = vpop.f32.mrf.mxu0
    %4314 = vmatprep.mubr.bf16.mxu0 0
    %4315 = vmatmul.mubr.bf16.gmra.mxu0 %v3983
    %v4316 = vpop.f32.mrf.mxu0
    %v4317 = vadd.f32 %v4008, %v4316
    %v4318 = vpop.f32.mrf.mxu0
    %v4319 = vpop.f32.mrf.mxu0
    %v4320 = vadd.f32 %v4008, %v4319
    %v4321 = vpop.f32.mrf.mxu0
    %4322 = vmatprep.mubr.bf16.mxu0 0
    %4323 = vmatmul.mubr.bf16.gmra.mxu0 %v3984
    %v4324 = vpop.f32.mrf.mxu0
    %v4325 = vadd.f32 %v4008, %v4324
    %v4326 = vpop.f32.mrf.mxu0
    %v4327 = vpop.f32.mrf.mxu0
    %v4328 = vadd.f32 %v4008, %v4327
    %v4329 = vpop.f32.mrf.mxu0
    %4330 = vmatprep.mubr.bf16.mxu0 0
    %4331 = vmatmul.mubr.bf16.gmra.mxu0 %v3985
    %v4332 = vpop.f32.mrf.mxu0
    %v4333 = vadd.f32 %v4008, %v4332
    %v4334 = vpop.f32.mrf.mxu0
    %v4335 = vpop.f32.mrf.mxu0
    %v4336 = vadd.f32 %v4008, %v4335
    %v4337 = vpop.f32.mrf.mxu0
    %4338 = vmatprep.mubr.bf16.mxu0 0
    %4339 = vmatmul.mubr.bf16.gmra.mxu0 %v3986
    %v4340 = vpop.f32.mrf.mxu0
    %v4341 = vadd.f32 %v4008, %v4340
    %v4342 = vpop.f32.mrf.mxu0
    %v4343 = vpop.f32.mrf.mxu0
    %v4344 = vadd.f32 %v4008, %v4343
    %v4345 = vpop.f32.mrf.mxu0
    %4346 = vdwg.mxu0
    %v4347 = vpack.c.bf16 %v3947, %v3947
    %v4348 = vpack.c.bf16 %v3948, %v3948
    %v4349 = vpack.c.bf16 %v3949, %v3949
    %v4350 = vpack.c.bf16 %v3950, %v3950
    %v4351 = vpack.c.bf16 %v3951, %v3951
    %v4352 = vpack.c.bf16 %v3952, %v3952
    %v4353 = vpack.c.bf16 %v3953, %v3953
    %v4354 = vpack.c.bf16 %v3954, %v3954
    %v4355 = vld [vmem:[%s19] sm:$0xf]
    %v4356 = vld [vmem:[%s19 + $0x4] sm:$0xf]
    %v4357 = vld [vmem:[%s19 + $0x8] sm:$0xf]
    %v4358 = vld [vmem:[%s19 + $0xc] sm:$0xf]
    %v4359 = vld [vmem:[%s19 + $0x10] sm:$0xf]
    %v4360 = vld [vmem:[%s19 + $0x14] sm:$0xf]
    %v4361 = vld [vmem:[%s19 + $0x18] sm:$0xf]
    %v4362 = vld [vmem:[%s19 + $0x1c] sm:$0xf]
    %v4363 = vld [vmem:[%s19 + $0x20] sm:$0xf]
    %v4364 = vld [vmem:[%s19 + $0x24] sm:$0xf]
    %v4365 = vld [vmem:[%s19 + $0x28] sm:$0xf]
    %v4366 = vld [vmem:[%s19 + $0x2c] sm:$0xf]
    %v4367 = vld [vmem:[%s19 + $0x30] sm:$0xf]
    %v4368 = vld [vmem:[%s19 + $0x34] sm:$0xf]
    %v4369 = vld [vmem:[%s19 + $0x38] sm:$0xf]
    %v4370 = vld [vmem:[%s19 + $0x3c] sm:$0xf]
    %v4379 = vunpack.c.l.b16 %v4347
    %v4380 = vunpack.c.l.b16 %v4348
    %v4381 = vunpack.c.l.b16 %v4349
    %v4382 = vunpack.c.l.b16 %v4350
    %v4383 = vunpack.c.l.b16 %v4351
    %v4384 = vunpack.c.l.b16 %v4352
    %v4385 = vunpack.c.l.b16 %v4353
    %v4386 = vunpack.c.l.b16 %v4354
    %vm4387 = vcmask 1041409
    %v4388 = vsel %vm4387, %v4380, %v4379
    %vm4389 = vcmask 1042434
    %v4390 = vsel %vm4389, %v4381, %v4388
    %vm4391 = vcmask 1043459
    %v4392 = vsel %vm4391, %v4382, %v4390
    %vm4393 = vcmask 1044484
    %v4394 = vsel %vm4393, %v4383, %v4392
    %vm4395 = vcmask 1045509
    %v4396 = vsel %vm4395, %v4384, %v4394
    %vm4397 = vcmask 1046534
    %v4398 = vsel %vm4397, %v4385, %v4396
    %vm4399 = vcmask 1047559
    %v4400 = vsel %vm4399, %v4386, %v4398
    %v4401 = vpack.c.b16 %v4400, %v4400
    %v4419 = vunpack.c.l.b16 %v4355
    %v4420 = vunpack.c.l.b16 %v4356
    %v4421 = vunpack.c.l.b16 %v4357
    %v4422 = vunpack.c.l.b16 %v4358
    %v4423 = vunpack.c.l.b16 %v4359
    %v4424 = vunpack.c.l.b16 %v4360
    %v4425 = vunpack.c.l.b16 %v4361
    %v4426 = vunpack.c.l.b16 %v4362
    %v4427 = vunpack.c.l.b16 %v4363
    %v4428 = vunpack.c.l.b16 %v4364
    %v4429 = vunpack.c.l.b16 %v4365
    %v4430 = vunpack.c.l.b16 %v4366
    %v4431 = vunpack.c.l.b16 %v4367
    %v4432 = vunpack.c.l.b16 %v4368
    %v4433 = vunpack.c.l.b16 %v4369
    %v4434 = vunpack.c.l.b16 %v4370
    %v4435 = vpack.c.b16 %v4420, %v4419
    %v4436 = vpack.c.b16 %v4422, %v4421
    %v4437 = vpack.c.b16 %v4424, %v4423
    %v4438 = vpack.c.b16 %v4426, %v4425
    %v4439 = vpack.c.b16 %v4428, %v4427
    %v4440 = vpack.c.b16 %v4430, %v4429
    %v4441 = vpack.c.b16 %v4432, %v4431
    %v4442 = vpack.c.b16 %v4434, %v4433
    %4451 = vmatprep.subr.bf16.mxu0 0
    %4452 = vmatpush1.bf16.msra.mxu0 %v4442
    %4453 = vmatprep.subr.bf16.mxu0 0
    %4454 = vmatpush1.bf16.msra.mxu0 %v4441
    %4455 = vmatprep.subr.bf16.mxu0 0
    %4456 = vmatpush1.bf16.msra.mxu0 %v4440
    %4457 = vmatprep.subr.bf16.mxu0 0
    %4458 = vmatpush1.bf16.msra.mxu0 %v4439
    %4459 = vmatprep.subr.bf16.mxu0 0
    %4460 = vmatpush1.bf16.msra.mxu0 %v4438
    %4461 = vmatprep.subr.bf16.mxu0 0
    %4462 = vmatpush1.bf16.msra.mxu0 %v4437
    %4463 = vmatprep.subr.bf16.mxu0 0
    %4464 = vmatpush1.bf16.msra.mxu0 %v4436
    %4465 = vmatprep.subr.bf16.mxu0 0
    %4466 = vmatpush1.bf16.msra.mxu0 %v4435
    %4467 = vmatprep.subr.bf16.mxu0 0
    %4468 = vmatpush2.bf16.msra.mxu0 0
    %4469 = vmatprep.subr.bf16.mxu0 0
    %4470 = vmatpush2.bf16.msra.mxu0 0
    %4471 = vmatprep.subr.bf16.mxu0 0
    %4472 = vmatpush2.bf16.msra.mxu0 0
    %4473 = vmatprep.subr.bf16.mxu0 0
    %4474 = vmatpush2.bf16.msra.mxu0 0
    %4475 = vmatprep.subr.bf16.mxu0 0
    %4476 = vmatpush2.bf16.msra.mxu0 0
    %4477 = vmatprep.subr.bf16.mxu0 0
    %4478 = vmatpush2.bf16.msra.mxu0 0
    %4479 = vmatprep.subr.bf16.mxu0 0
    %4480 = vmatpush2.bf16.msra.mxu0 0
    %4481 = vmatprep.subr.bf16.mxu0 0
    %4482 = vmatpush2.bf16.msra.mxu0 0
    %4483 = vmatprep.mubr.bf16.mxu0 0
    %4484 = vmatmul.mubr.bf16.gmra.mxu0 %v4401
    %v4485 = vpop.f32.mrf.mxu0
    %v4486 = vadd.f32 0.0, %v4485
    %v4487 = vpop.f32.mrf.mxu0
    %v4488 = vpop.f32.mrf.mxu0
    %v4489 = vpop.f32.mrf.mxu0
    %4490 = vdwg.mxu0
    %v4492 = vcombine.high %v4486, %v4486
    %v4494 = vunpack.c.l.s4 1966171168
    %v4495 = vunpack.c.0.s8 %v4494
    %v4496 = vlaneseq
    %v4497 = vshrl.u32 %v4496, 7
    %v4498 = vsub.s32 %v4495, %v4497
    %v4499 = vrot.slane %v4486, %v4498
    %v4501 = vunpack.c.l.s4 1966171168
    %v4502 = vunpack.c.0.s8 %v4501
    %v4503 = vlaneseq
    %v4504 = vshrl.u32 %v4503, 7
    %v4505 = vsub.s32 %v4502, %v4504
    %v4506 = vrot.slane %v4492, %v4505
    %v4507 = vcombine.high %v4499, %v4499
    %v4508 = vcombine.high %v4506, %v4506
    %v4510 = vunpack.c.l.s4 1966171168
    %v4511 = vunpack.c.0.s8 %v4510
    %v4512 = vlaneseq
    %v4513 = vshrl.u32 %v4512, 7
    %v4514 = vsub.s32 %v4511, %v4513
    %v4515 = vrot.slane %v4499, %v4514
    %v4517 = vunpack.c.l.s4 1966171168
    %v4518 = vunpack.c.0.s8 %v4517
    %v4519 = vlaneseq
    %v4520 = vshrl.u32 %v4519, 7
    %v4521 = vsub.s32 %v4518, %v4520
    %v4522 = vrot.slane %v4506, %v4521
    %v4524 = vunpack.c.l.s4 1966171168
    %v4525 = vunpack.c.0.s8 %v4524
    %v4526 = vlaneseq
    %v4527 = vshrl.u32 %v4526, 7
    %v4528 = vsub.s32 %v4525, %v4527
    %v4529 = vrot.slane %v4507, %v4528
    %v4531 = vunpack.c.l.s4 1966171168
    %v4532 = vunpack.c.0.s8 %v4531
    %v4533 = vlaneseq
    %v4534 = vshrl.u32 %v4533, 7
    %v4535 = vsub.s32 %v4532, %v4534
    %v4536 = vrot.slane %v4508, %v4535
    %v4537 = vcombine.high %v4515, %v4515
    %v4538 = vcombine.high %v4522, %v4522
    %v4539 = vcombine.high %v4529, %v4529
    %v4540 = vcombine.high %v4536, %v4536
    %v4541 = vlaneseq
    %v4542 = vshrl.u32 %v4541, 7
    %v4543 = vsub.s32 0, %v4542
    %v4544 = vrot.slane %v4515, %v4543
    %v4545 = vlaneseq
    %v4546 = vshrl.u32 %v4545, 7
    %v4547 = vsub.s32 0, %v4546
    %v4548 = vrot.slane %v4529, %v4547
    %v4549 = vlaneseq
    %v4550 = vshrl.u32 %v4549, 7
    %v4551 = vsub.s32 0, %v4550
    %v4552 = vrot.slane %v4537, %v4551
    %v4553 = vlaneseq
    %v4554 = vshrl.u32 %v4553, 7
    %v4555 = vsub.s32 0, %v4554
    %v4556 = vrot.slane %v4539, %v4555
    %v4557 = vlaneseq
    %v4558 = vshrl.u32 %v4557, 7
    %v4559 = vsub.s32 0, %v4558
    %v4560 = vrot.slane %v4522, %v4559
    %v4561 = vlaneseq
    %v4562 = vshrl.u32 %v4561, 7
    %v4563 = vsub.s32 0, %v4562
    %v4564 = vrot.slane %v4536, %v4563
    %v4565 = vlaneseq
    %v4566 = vshrl.u32 %v4565, 7
    %v4567 = vsub.s32 0, %v4566
    %v4568 = vrot.slane %v4538, %v4567
    %v4569 = vlaneseq
    %v4570 = vshrl.u32 %v4569, 7
    %v4571 = vsub.s32 0, %v4570
    %v4572 = vrot.slane %v4540, %v4571
    %v4581 = vadd.f32 %v4093, %v4544
    %v4582 = vadd.f32 %v4096, %v4544
    %v4583 = vadd.f32 %v4101, %v4544
    %v4584 = vadd.f32 %v4104, %v4544
    %v4585 = vadd.f32 %v4109, %v4544
    %v4586 = vadd.f32 %v4112, %v4544
    %v4587 = vadd.f32 %v4117, %v4544
    %v4588 = vadd.f32 %v4120, %v4544
    %v4589 = vadd.f32 %v4125, %v4548
    %v4590 = vadd.f32 %v4128, %v4548
    %v4591 = vadd.f32 %v4133, %v4548
    %v4592 = vadd.f32 %v4136, %v4548
    %v4593 = vadd.f32 %v4141, %v4548
    %v4594 = vadd.f32 %v4144, %v4548
    %v4595 = vadd.f32 %v4149, %v4548
    %v4596 = vadd.f32 %v4152, %v4548
    %v4597 = vadd.f32 %v4157, %v4552
    %v4598 = vadd.f32 %v4160, %v4552
    %v4599 = vadd.f32 %v4165, %v4552
    %v4600 = vadd.f32 %v4168, %v4552
    %v4601 = vadd.f32 %v4173, %v4552
    %v4602 = vadd.f32 %v4176, %v4552
    %v4603 = vadd.f32 %v4181, %v4552
    %v4604 = vadd.f32 %v4184, %v4552
    %v4605 = vadd.f32 %v4189, %v4556
    %v4606 = vadd.f32 %v4192, %v4556
    %v4607 = vadd.f32 %v4197, %v4556
    %v4608 = vadd.f32 %v4200, %v4556
    %v4609 = vadd.f32 %v4205, %v4556
    %v4610 = vadd.f32 %v4208, %v4556
    %v4611 = vadd.f32 %v4213, %v4556
    %v4612 = vadd.f32 %v4216, %v4556
    %v4613 = vadd.f32 %v4221, %v4560
    %v4614 = vadd.f32 %v4224, %v4560
    %v4615 = vadd.f32 %v4229, %v4560
    %v4616 = vadd.f32 %v4232, %v4560
    %v4617 = vadd.f32 %v4237, %v4560
    %v4618 = vadd.f32 %v4240, %v4560
    %v4619 = vadd.f32 %v4245, %v4560
    %v4620 = vadd.f32 %v4248, %v4560
    %v4621 = vadd.f32 %v4253, %v4564
    %v4622 = vadd.f32 %v4256, %v4564
    %v4623 = vadd.f32 %v4261, %v4564
    %v4624 = vadd.f32 %v4264, %v4564
    %v4625 = vadd.f32 %v4269, %v4564
    %v4626 = vadd.f32 %v4272, %v4564
    %v4627 = vadd.f32 %v4277, %v4564
    %v4628 = vadd.f32 %v4280, %v4564
    %v4629 = vadd.f32 %v4285, %v4568
    %v4630 = vadd.f32 %v4288, %v4568
    %v4631 = vadd.f32 %v4293, %v4568
    %v4632 = vadd.f32 %v4296, %v4568
    %v4633 = vadd.f32 %v4301, %v4568
    %v4634 = vadd.f32 %v4304, %v4568
    %v4635 = vadd.f32 %v4309, %v4568
    %v4636 = vadd.f32 %v4312, %v4568
    %v4637 = vadd.f32 %v4317, %v4572
    %v4638 = vadd.f32 %v4320, %v4572
    %v4639 = vadd.f32 %v4325, %v4572
    %v4640 = vadd.f32 %v4328, %v4572
    %v4641 = vadd.f32 %v4333, %v4572
    %v4642 = vadd.f32 %v4336, %v4572
    %v4643 = vadd.f32 %v4341, %v4572
    %v4644 = vadd.f32 %v4344, %v4572
    %v4645 = vmax.f32 %v4581, 0.0
    %v4646 = vmax.f32 %v4582, 0.0
    %v4647 = vmax.f32 %v4583, 0.0
    %v4648 = vmax.f32 %v4584, 0.0
    %v4649 = vmax.f32 %v4585, 0.0
    %v4650 = vmax.f32 %v4586, 0.0
    %v4651 = vmax.f32 %v4587, 0.0
    %v4652 = vmax.f32 %v4588, 0.0
    %v4653 = vmax.f32 %v4589, 0.0
    %v4654 = vmax.f32 %v4590, 0.0
    %v4655 = vmax.f32 %v4591, 0.0
    %v4656 = vmax.f32 %v4592, 0.0
    %v4657 = vmax.f32 %v4593, 0.0
    %v4658 = vmax.f32 %v4594, 0.0
    %v4659 = vmax.f32 %v4595, 0.0
    %v4660 = vmax.f32 %v4596, 0.0
    %v4661 = vmax.f32 %v4597, 0.0
    %v4662 = vmax.f32 %v4598, 0.0
    %v4663 = vmax.f32 %v4599, 0.0
    %v4664 = vmax.f32 %v4600, 0.0
    %v4665 = vmax.f32 %v4601, 0.0
    %v4666 = vmax.f32 %v4602, 0.0
    %v4667 = vmax.f32 %v4603, 0.0
    %v4668 = vmax.f32 %v4604, 0.0
    %v4669 = vmax.f32 %v4605, 0.0
    %v4670 = vmax.f32 %v4606, 0.0
    %v4671 = vmax.f32 %v4607, 0.0
    %v4672 = vmax.f32 %v4608, 0.0
    %v4673 = vmax.f32 %v4609, 0.0
    %v4674 = vmax.f32 %v4610, 0.0
    %v4675 = vmax.f32 %v4611, 0.0
    %v4676 = vmax.f32 %v4612, 0.0
    %v4677 = vmax.f32 %v4613, 0.0
    %v4678 = vmax.f32 %v4614, 0.0
    %v4679 = vmax.f32 %v4615, 0.0
    %v4680 = vmax.f32 %v4616, 0.0
    %v4681 = vmax.f32 %v4617, 0.0
    %v4682 = vmax.f32 %v4618, 0.0
    %v4683 = vmax.f32 %v4619, 0.0
    %v4684 = vmax.f32 %v4620, 0.0
    %v4685 = vmax.f32 %v4621, 0.0
    %v4686 = vmax.f32 %v4622, 0.0
    %v4687 = vmax.f32 %v4623, 0.0
    %v4688 = vmax.f32 %v4624, 0.0
    %v4689 = vmax.f32 %v4625, 0.0
    %v4690 = vmax.f32 %v4626, 0.0
    %v4691 = vmax.f32 %v4627, 0.0
    %v4692 = vmax.f32 %v4628, 0.0
    %v4693 = vmax.f32 %v4629, 0.0
    %v4694 = vmax.f32 %v4630, 0.0
    %v4695 = vmax.f32 %v4631, 0.0
    %v4696 = vmax.f32 %v4632, 0.0
    %v4697 = vmax.f32 %v4633, 0.0
    %v4698 = vmax.f32 %v4634, 0.0
    %v4699 = vmax.f32 %v4635, 0.0
    %v4700 = vmax.f32 %v4636, 0.0
    %v4701 = vmax.f32 %v4637, 0.0
    %v4702 = vmax.f32 %v4638, 0.0
    %v4703 = vmax.f32 %v4639, 0.0
    %v4704 = vmax.f32 %v4640, 0.0
    %v4705 = vmax.f32 %v4641, 0.0
    %v4706 = vmax.f32 %v4642, 0.0
    %v4707 = vmax.f32 %v4643, 0.0
    %v4708 = vmax.f32 %v4644, 0.0
    %v4709 = vpack.c.bf16 %v4646, %v4645
    %v4710 = vpack.c.bf16 %v4648, %v4647
    %v4711 = vpack.c.bf16 %v4650, %v4649
    %v4712 = vpack.c.bf16 %v4652, %v4651
    %v4713 = vpack.c.bf16 %v4654, %v4653
    %v4714 = vpack.c.bf16 %v4656, %v4655
    %v4715 = vpack.c.bf16 %v4658, %v4657
    %v4716 = vpack.c.bf16 %v4660, %v4659
    %v4717 = vpack.c.bf16 %v4662, %v4661
    %v4718 = vpack.c.bf16 %v4664, %v4663
    %v4719 = vpack.c.bf16 %v4666, %v4665
    %v4720 = vpack.c.bf16 %v4668, %v4667
    %v4721 = vpack.c.bf16 %v4670, %v4669
    %v4722 = vpack.c.bf16 %v4672, %v4671
    %v4723 = vpack.c.bf16 %v4674, %v4673
    %v4724 = vpack.c.bf16 %v4676, %v4675
    %v4725 = vpack.c.bf16 %v4678, %v4677
    %v4726 = vpack.c.bf16 %v4680, %v4679
    %v4727 = vpack.c.bf16 %v4682, %v4681
    %v4728 = vpack.c.bf16 %v4684, %v4683
    %v4729 = vpack.c.bf16 %v4686, %v4685
    %v4730 = vpack.c.bf16 %v4688, %v4687
    %v4731 = vpack.c.bf16 %v4690, %v4689
    %v4732 = vpack.c.bf16 %v4692, %v4691
    %v4733 = vpack.c.bf16 %v4694, %v4693
    %v4734 = vpack.c.bf16 %v4696, %v4695
    %v4735 = vpack.c.bf16 %v4698, %v4697
    %v4736 = vpack.c.bf16 %v4700, %v4699
    %v4737 = vpack.c.bf16 %v4702, %v4701
    %v4738 = vpack.c.bf16 %v4704, %v4703
    %v4739 = vpack.c.bf16 %v4706, %v4705
    %v4740 = vpack.c.bf16 %v4708, %v4707
    %v4741 = vld [vmem:[%s23] sm:$0xf]
    %v4742 = vld [vmem:[%s23 + $0x4] sm:$0xf]
    %v4743 = vld [vmem:[%s23 + $0x8] sm:$0xf]
    %v4744 = vld [vmem:[%s23 + $0xc] sm:$0xf]
    %v4745 = vld [vmem:[%s23 + $0x10] sm:$0xf]
    %v4746 = vld [vmem:[%s23 + $0x14] sm:$0xf]
    %v4747 = vld [vmem:[%s23 + $0x18] sm:$0xf]
    %v4748 = vld [vmem:[%s23 + $0x1c] sm:$0xf]
    %v4749 = vld [vmem:[%s23 + $0x20] sm:$0xf]
    %v4750 = vld [vmem:[%s23 + $0x24] sm:$0xf]
    %v4751 = vld [vmem:[%s23 + $0x28] sm:$0xf]
    %v4752 = vld [vmem:[%s23 + $0x2c] sm:$0xf]
    %v4753 = vld [vmem:[%s23 + $0x30] sm:$0xf]
    %v4754 = vld [vmem:[%s23 + $0x34] sm:$0xf]
    %v4755 = vld [vmem:[%s23 + $0x38] sm:$0xf]
    %v4756 = vld [vmem:[%s23 + $0x3c] sm:$0xf]
    %v4757 = vld [vmem:[#allocation8] sm:$0x1]
    %v4759 = vlaneseq
    %v4760 = vshrl.u32 %v4759, 7
    %v4761 = vsub.s32 0, %v4760
    %v4762 = vrot.slane %v4757, %v4761
    %v4780 = vunpack.c.l.b16 %v4741
    %v4781 = vunpack.c.l.b16 %v4742
    %v4782 = vunpack.c.l.b16 %v4743
    %v4783 = vunpack.c.l.b16 %v4744
    %v4784 = vunpack.c.l.b16 %v4745
    %v4785 = vunpack.c.l.b16 %v4746
    %v4786 = vunpack.c.l.b16 %v4747
    %v4787 = vunpack.c.l.b16 %v4748
    %v4788 = vunpack.c.l.b16 %v4749
    %v4789 = vunpack.c.l.b16 %v4750
    %v4790 = vunpack.c.l.b16 %v4751
    %v4791 = vunpack.c.l.b16 %v4752
    %v4792 = vunpack.c.l.b16 %v4753
    %v4793 = vunpack.c.l.b16 %v4754
    %v4794 = vunpack.c.l.b16 %v4755
    %v4795 = vunpack.c.l.b16 %v4756
    %v4796 = vpack.c.b16 %v4781, %v4780
    %v4797 = vpack.c.b16 %v4783, %v4782
    %v4798 = vpack.c.b16 %v4785, %v4784
    %v4799 = vpack.c.b16 %v4787, %v4786
    %v4800 = vpack.c.b16 %v4789, %v4788
    %v4801 = vpack.c.b16 %v4791, %v4790
    %v4802 = vpack.c.b16 %v4793, %v4792
    %v4803 = vpack.c.b16 %v4795, %v4794
    %4812 = vmatprep.subr.bf16.mxu0 0
    %4813 = vmatpush1.bf16.msra.mxu0 %v4803
    %4814 = vmatprep.subr.bf16.mxu0 0
    %4815 = vmatpush1.bf16.msra.mxu0 %v4802
    %4816 = vmatprep.subr.bf16.mxu0 0
    %4817 = vmatpush1.bf16.msra.mxu0 %v4801
    %4818 = vmatprep.subr.bf16.mxu0 0
    %4819 = vmatpush1.bf16.msra.mxu0 %v4800
    %4820 = vmatprep.subr.bf16.mxu0 0
    %4821 = vmatpush1.bf16.msra.mxu0 %v4799
    %4822 = vmatprep.subr.bf16.mxu0 0
    %4823 = vmatpush1.bf16.msra.mxu0 %v4798
    %4824 = vmatprep.subr.bf16.mxu0 0
    %4825 = vmatpush1.bf16.msra.mxu0 %v4797
    %4826 = vmatprep.subr.bf16.mxu0 0
    %4827 = vmatpush1.bf16.msra.mxu0 %v4796
    %4828 = vmatprep.subr.bf16.mxu0 0
    %4829 = vmatpush2.bf16.msra.mxu0 0
    %4830 = vmatprep.subr.bf16.mxu0 0
    %4831 = vmatpush2.bf16.msra.mxu0 0
    %4832 = vmatprep.subr.bf16.mxu0 0
    %4833 = vmatpush2.bf16.msra.mxu0 0
    %4834 = vmatprep.subr.bf16.mxu0 0
    %4835 = vmatpush2.bf16.msra.mxu0 0
    %4836 = vmatprep.subr.bf16.mxu0 0
    %4837 = vmatpush2.bf16.msra.mxu0 0
    %4838 = vmatprep.subr.bf16.mxu0 0
    %4839 = vmatpush2.bf16.msra.mxu0 0
    %4840 = vmatprep.subr.bf16.mxu0 0
    %4841 = vmatpush2.bf16.msra.mxu0 0
    %4842 = vmatprep.subr.bf16.mxu0 0
    %4843 = vmatpush2.bf16.msra.mxu0 0
    %4844 = vmatprep.mubr.bf16.mxu0 0
    %4845 = vmatmul.mubr.bf16.gmra.mxu0 %v4709
    %v4846 = vpop.f32.mrf.mxu0
    %v4847 = vadd.f32 %v4762, %v4846
    %v4848 = vpop.f32.mrf.mxu0
    %v4849 = vpop.f32.mrf.mxu0
    %v4850 = vadd.f32 %v4762, %v4849
    %v4851 = vpop.f32.mrf.mxu0
    %4852 = vmatprep.mubr.bf16.mxu0 0
    %4853 = vmatmul.mubr.bf16.gmra.mxu0 %v4710
    %v4854 = vpop.f32.mrf.mxu0
    %v4855 = vadd.f32 %v4762, %v4854
    %v4856 = vpop.f32.mrf.mxu0
    %v4857 = vpop.f32.mrf.mxu0
    %v4858 = vadd.f32 %v4762, %v4857
    %v4859 = vpop.f32.mrf.mxu0
    %4860 = vmatprep.mubr.bf16.mxu0 0
    %4861 = vmatmul.mubr.bf16.gmra.mxu0 %v4711
    %v4862 = vpop.f32.mrf.mxu0
    %v4863 = vadd.f32 %v4762, %v4862
    %v4864 = vpop.f32.mrf.mxu0
    %v4865 = vpop.f32.mrf.mxu0
    %v4866 = vadd.f32 %v4762, %v4865
    %v4867 = vpop.f32.mrf.mxu0
    %4868 = vmatprep.mubr.bf16.mxu0 0
    %4869 = vmatmul.mubr.bf16.gmra.mxu0 %v4712
    %v4870 = vpop.f32.mrf.mxu0
    %v4871 = vadd.f32 %v4762, %v4870
    %v4872 = vpop.f32.mrf.mxu0
    %v4873 = vpop.f32.mrf.mxu0
    %v4874 = vadd.f32 %v4762, %v4873
    %v4875 = vpop.f32.mrf.mxu0
    %4876 = vmatprep.mubr.bf16.mxu0 0
    %4877 = vmatmul.mubr.bf16.gmra.mxu0 %v4713
    %v4878 = vpop.f32.mrf.mxu0
    %v4879 = vadd.f32 %v4762, %v4878
    %v4880 = vpop.f32.mrf.mxu0
    %v4881 = vpop.f32.mrf.mxu0
    %v4882 = vadd.f32 %v4762, %v4881
    %v4883 = vpop.f32.mrf.mxu0
    %4884 = vmatprep.mubr.bf16.mxu0 0
    %4885 = vmatmul.mubr.bf16.gmra.mxu0 %v4714
    %v4886 = vpop.f32.mrf.mxu0
    %v4887 = vadd.f32 %v4762, %v4886
    %v4888 = vpop.f32.mrf.mxu0
    %v4889 = vpop.f32.mrf.mxu0
    %v4890 = vadd.f32 %v4762, %v4889
    %v4891 = vpop.f32.mrf.mxu0
    %4892 = vmatprep.mubr.bf16.mxu0 0
    %4893 = vmatmul.mubr.bf16.gmra.mxu0 %v4715
    %v4894 = vpop.f32.mrf.mxu0
    %v4895 = vadd.f32 %v4762, %v4894
    %v4896 = vpop.f32.mrf.mxu0
    %v4897 = vpop.f32.mrf.mxu0
    %v4898 = vadd.f32 %v4762, %v4897
    %v4899 = vpop.f32.mrf.mxu0
    %4900 = vmatprep.mubr.bf16.mxu0 0
    %4901 = vmatmul.mubr.bf16.gmra.mxu0 %v4716
    %v4902 = vpop.f32.mrf.mxu0
    %v4903 = vadd.f32 %v4762, %v4902
    %v4904 = vpop.f32.mrf.mxu0
    %v4905 = vpop.f32.mrf.mxu0
    %v4906 = vadd.f32 %v4762, %v4905
    %v4907 = vpop.f32.mrf.mxu0
    %4908 = vmatprep.mubr.bf16.mxu0 0
    %4909 = vmatmul.mubr.bf16.gmra.mxu0 %v4717
    %v4910 = vpop.f32.mrf.mxu0
    %v4911 = vadd.f32 %v4762, %v4910
    %v4912 = vpop.f32.mrf.mxu0
    %v4913 = vpop.f32.mrf.mxu0
    %v4914 = vadd.f32 %v4762, %v4913
    %v4915 = vpop.f32.mrf.mxu0
    %4916 = vmatprep.mubr.bf16.mxu0 0
    %4917 = vmatmul.mubr.bf16.gmra.mxu0 %v4718
    %v4918 = vpop.f32.mrf.mxu0
    %v4919 = vadd.f32 %v4762, %v4918
    %v4920 = vpop.f32.mrf.mxu0
    %v4921 = vpop.f32.mrf.mxu0
    %v4922 = vadd.f32 %v4762, %v4921
    %v4923 = vpop.f32.mrf.mxu0
    %4924 = vmatprep.mubr.bf16.mxu0 0
    %4925 = vmatmul.mubr.bf16.gmra.mxu0 %v4719
    %v4926 = vpop.f32.mrf.mxu0
    %v4927 = vadd.f32 %v4762, %v4926
    %v4928 = vpop.f32.mrf.mxu0
    %v4929 = vpop.f32.mrf.mxu0
    %v4930 = vadd.f32 %v4762, %v4929
    %v4931 = vpop.f32.mrf.mxu0
    %4932 = vmatprep.mubr.bf16.mxu0 0
    %4933 = vmatmul.mubr.bf16.gmra.mxu0 %v4720
    %v4934 = vpop.f32.mrf.mxu0
    %v4935 = vadd.f32 %v4762, %v4934
    %v4936 = vpop.f32.mrf.mxu0
    %v4937 = vpop.f32.mrf.mxu0
    %v4938 = vadd.f32 %v4762, %v4937
    %v4939 = vpop.f32.mrf.mxu0
    %4940 = vmatprep.mubr.bf16.mxu0 0
    %4941 = vmatmul.mubr.bf16.gmra.mxu0 %v4721
    %v4942 = vpop.f32.mrf.mxu0
    %v4943 = vadd.f32 %v4762, %v4942
    %v4944 = vpop.f32.mrf.mxu0
    %v4945 = vpop.f32.mrf.mxu0
    %v4946 = vadd.f32 %v4762, %v4945
    %v4947 = vpop.f32.mrf.mxu0
    %4948 = vmatprep.mubr.bf16.mxu0 0
    %4949 = vmatmul.mubr.bf16.gmra.mxu0 %v4722
    %v4950 = vpop.f32.mrf.mxu0
    %v4951 = vadd.f32 %v4762, %v4950
    %v4952 = vpop.f32.mrf.mxu0
    %v4953 = vpop.f32.mrf.mxu0
    %v4954 = vadd.f32 %v4762, %v4953
    %v4955 = vpop.f32.mrf.mxu0
    %4956 = vmatprep.mubr.bf16.mxu0 0
    %4957 = vmatmul.mubr.bf16.gmra.mxu0 %v4723
    %v4958 = vpop.f32.mrf.mxu0
    %v4959 = vadd.f32 %v4762, %v4958
    %v4960 = vpop.f32.mrf.mxu0
    %v4961 = vpop.f32.mrf.mxu0
    %v4962 = vadd.f32 %v4762, %v4961
    %v4963 = vpop.f32.mrf.mxu0
    %4964 = vmatprep.mubr.bf16.mxu0 0
    %4965 = vmatmul.mubr.bf16.gmra.mxu0 %v4724
    %v4966 = vpop.f32.mrf.mxu0
    %v4967 = vadd.f32 %v4762, %v4966
    %v4968 = vpop.f32.mrf.mxu0
    %v4969 = vpop.f32.mrf.mxu0
    %v4970 = vadd.f32 %v4762, %v4969
    %v4971 = vpop.f32.mrf.mxu0
    %4972 = vmatprep.mubr.bf16.mxu0 0
    %4973 = vmatmul.mubr.bf16.gmra.mxu0 %v4725
    %v4974 = vpop.f32.mrf.mxu0
    %v4975 = vadd.f32 %v4762, %v4974
    %v4976 = vpop.f32.mrf.mxu0
    %v4977 = vpop.f32.mrf.mxu0
    %v4978 = vadd.f32 %v4762, %v4977
    %v4979 = vpop.f32.mrf.mxu0
    %4980 = vmatprep.mubr.bf16.mxu0 0
    %4981 = vmatmul.mubr.bf16.gmra.mxu0 %v4726
    %v4982 = vpop.f32.mrf.mxu0
    %v4983 = vadd.f32 %v4762, %v4982
    %v4984 = vpop.f32.mrf.mxu0
    %v4985 = vpop.f32.mrf.mxu0
    %v4986 = vadd.f32 %v4762, %v4985
    %v4987 = vpop.f32.mrf.mxu0
    %4988 = vmatprep.mubr.bf16.mxu0 0
    %4989 = vmatmul.mubr.bf16.gmra.mxu0 %v4727
    %v4990 = vpop.f32.mrf.mxu0
    %v4991 = vadd.f32 %v4762, %v4990
    %v4992 = vpop.f32.mrf.mxu0
    %v4993 = vpop.f32.mrf.mxu0
    %v4994 = vadd.f32 %v4762, %v4993
    %v4995 = vpop.f32.mrf.mxu0
    %4996 = vmatprep.mubr.bf16.mxu0 0
    %4997 = vmatmul.mubr.bf16.gmra.mxu0 %v4728
    %v4998 = vpop.f32.mrf.mxu0
    %v4999 = vadd.f32 %v4762, %v4998
    %v5000 = vpop.f32.mrf.mxu0
    %v5001 = vpop.f32.mrf.mxu0
    %v5002 = vadd.f32 %v4762, %v5001
    %v5003 = vpop.f32.mrf.mxu0
    %5004 = vmatprep.mubr.bf16.mxu0 0
    %5005 = vmatmul.mubr.bf16.gmra.mxu0 %v4729
    %v5006 = vpop.f32.mrf.mxu0
    %v5007 = vadd.f32 %v4762, %v5006
    %v5008 = vpop.f32.mrf.mxu0
    %v5009 = vpop.f32.mrf.mxu0
    %v5010 = vadd.f32 %v4762, %v5009
    %v5011 = vpop.f32.mrf.mxu0
    %5012 = vmatprep.mubr.bf16.mxu0 0
    %5013 = vmatmul.mubr.bf16.gmra.mxu0 %v4730
    %v5014 = vpop.f32.mrf.mxu0
    %v5015 = vadd.f32 %v4762, %v5014
    %v5016 = vpop.f32.mrf.mxu0
    %v5017 = vpop.f32.mrf.mxu0
    %v5018 = vadd.f32 %v4762, %v5017
    %v5019 = vpop.f32.mrf.mxu0
    %5020 = vmatprep.mubr.bf16.mxu0 0
    %5021 = vmatmul.mubr.bf16.gmra.mxu0 %v4731
    %v5022 = vpop.f32.mrf.mxu0
    %v5023 = vadd.f32 %v4762, %v5022
    %v5024 = vpop.f32.mrf.mxu0
    %v5025 = vpop.f32.mrf.mxu0
    %v5026 = vadd.f32 %v4762, %v5025
    %v5027 = vpop.f32.mrf.mxu0
    %5028 = vmatprep.mubr.bf16.mxu0 0
    %5029 = vmatmul.mubr.bf16.gmra.mxu0 %v4732
    %v5030 = vpop.f32.mrf.mxu0
    %v5031 = vadd.f32 %v4762, %v5030
    %v5032 = vpop.f32.mrf.mxu0
    %v5033 = vpop.f32.mrf.mxu0
    %v5034 = vadd.f32 %v4762, %v5033
    %v5035 = vpop.f32.mrf.mxu0
    %5036 = vmatprep.mubr.bf16.mxu0 0
    %5037 = vmatmul.mubr.bf16.gmra.mxu0 %v4733
    %v5038 = vpop.f32.mrf.mxu0
    %v5039 = vadd.f32 %v4762, %v5038
    %v5040 = vpop.f32.mrf.mxu0
    %v5041 = vpop.f32.mrf.mxu0
    %v5042 = vadd.f32 %v4762, %v5041
    %v5043 = vpop.f32.mrf.mxu0
    %5044 = vmatprep.mubr.bf16.mxu0 0
    %5045 = vmatmul.mubr.bf16.gmra.mxu0 %v4734
    %v5046 = vpop.f32.mrf.mxu0
    %v5047 = vadd.f32 %v4762, %v5046
    %v5048 = vpop.f32.mrf.mxu0
    %v5049 = vpop.f32.mrf.mxu0
    %v5050 = vadd.f32 %v4762, %v5049
    %v5051 = vpop.f32.mrf.mxu0
    %5052 = vmatprep.mubr.bf16.mxu0 0
    %5053 = vmatmul.mubr.bf16.gmra.mxu0 %v4735
    %v5054 = vpop.f32.mrf.mxu0
    %v5055 = vadd.f32 %v4762, %v5054
    %v5056 = vpop.f32.mrf.mxu0
    %v5057 = vpop.f32.mrf.mxu0
    %v5058 = vadd.f32 %v4762, %v5057
    %v5059 = vpop.f32.mrf.mxu0
    %5060 = vmatprep.mubr.bf16.mxu0 0
    %5061 = vmatmul.mubr.bf16.gmra.mxu0 %v4736
    %v5062 = vpop.f32.mrf.mxu0
    %v5063 = vadd.f32 %v4762, %v5062
    %v5064 = vpop.f32.mrf.mxu0
    %v5065 = vpop.f32.mrf.mxu0
    %v5066 = vadd.f32 %v4762, %v5065
    %v5067 = vpop.f32.mrf.mxu0
    %5068 = vmatprep.mubr.bf16.mxu0 0
    %5069 = vmatmul.mubr.bf16.gmra.mxu0 %v4737
    %v5070 = vpop.f32.mrf.mxu0
    %v5071 = vadd.f32 %v4762, %v5070
    %v5072 = vpop.f32.mrf.mxu0
    %v5073 = vpop.f32.mrf.mxu0
    %v5074 = vadd.f32 %v4762, %v5073
    %v5075 = vpop.f32.mrf.mxu0
    %5076 = vmatprep.mubr.bf16.mxu0 0
    %5077 = vmatmul.mubr.bf16.gmra.mxu0 %v4738
    %v5078 = vpop.f32.mrf.mxu0
    %v5079 = vadd.f32 %v4762, %v5078
    %v5080 = vpop.f32.mrf.mxu0
    %v5081 = vpop.f32.mrf.mxu0
    %v5082 = vadd.f32 %v4762, %v5081
    %v5083 = vpop.f32.mrf.mxu0
    %5084 = vmatprep.mubr.bf16.mxu0 0
    %5085 = vmatmul.mubr.bf16.gmra.mxu0 %v4739
    %v5086 = vpop.f32.mrf.mxu0
    %v5087 = vadd.f32 %v4762, %v5086
    %v5088 = vpop.f32.mrf.mxu0
    %v5089 = vpop.f32.mrf.mxu0
    %v5090 = vadd.f32 %v4762, %v5089
    %v5091 = vpop.f32.mrf.mxu0
    %5092 = vmatprep.mubr.bf16.mxu0 0
    %5093 = vmatmul.mubr.bf16.gmra.mxu0 %v4740
    %v5094 = vpop.f32.mrf.mxu0
    %v5095 = vadd.f32 %v4762, %v5094
    %v5096 = vpop.f32.mrf.mxu0
    %v5097 = vpop.f32.mrf.mxu0
    %v5098 = vadd.f32 %v4762, %v5097
    %v5099 = vpop.f32.mrf.mxu0
    %5100 = vdwg.mxu0
    %v5101 = vpack.c.bf16 %v3528, %v3525
    %v5102 = vpack.c.bf16 %v3536, %v3533
    %v5103 = vpack.c.bf16 %v3544, %v3541
    %v5104 = vpack.c.bf16 %v3552, %v3549
    %v5105 = vpack.c.bf16 %v3560, %v3557
    %v5106 = vpack.c.bf16 %v3568, %v3565
    %v5107 = vpack.c.bf16 %v3576, %v3573
    %v5108 = vpack.c.bf16 %v3584, %v3581
    %v5109 = vpack.c.bf16 %v3592, %v3589
    %v5110 = vpack.c.bf16 %v3600, %v3597
    %v5111 = vpack.c.bf16 %v3608, %v3605
    %v5112 = vpack.c.bf16 %v3616, %v3613
    %v5113 = vpack.c.bf16 %v3624, %v3621
    %v5114 = vpack.c.bf16 %v3632, %v3629
    %v5115 = vpack.c.bf16 %v3640, %v3637
    %v5116 = vpack.c.bf16 %v3648, %v3645
    %v5117 = vpack.c.bf16 %v3656, %v3653
    %v5118 = vpack.c.bf16 %v3664, %v3661
    %v5119 = vpack.c.bf16 %v3672, %v3669
    %v5120 = vpack.c.bf16 %v3680, %v3677
    %v5121 = vpack.c.bf16 %v3688, %v3685
    %v5122 = vpack.c.bf16 %v3696, %v3693
    %v5123 = vpack.c.bf16 %v3704, %v3701
    %v5124 = vpack.c.bf16 %v3712, %v3709
    %v5125 = vpack.c.bf16 %v3720, %v3717
    %v5126 = vpack.c.bf16 %v3728, %v3725
    %v5127 = vpack.c.bf16 %v3736, %v3733
    %v5128 = vpack.c.bf16 %v3744, %v3741
    %v5129 = vpack.c.bf16 %v3752, %v3749
    %v5130 = vpack.c.bf16 %v3760, %v3757
    %v5131 = vpack.c.bf16 %v3768, %v3765
    %v5132 = vpack.c.bf16 %v3776, %v3773
    %v5133 = vld [vmem:[#allocation10] sm:$0xf]
    %v5134 = vld [vmem:[#allocation10 + $0x4] sm:$0xf]
    %v5135 = vld [vmem:[#allocation10 + $0x8] sm:$0xf]
    %v5136 = vld [vmem:[#allocation10 + $0xc] sm:$0xf]
    %v5137 = vld [vmem:[#allocation10 + $0x10] sm:$0xf]
    %v5138 = vld [vmem:[#allocation10 + $0x14] sm:$0xf]
    %v5139 = vld [vmem:[#allocation10 + $0x18] sm:$0xf]
    %v5140 = vld [vmem:[#allocation10 + $0x1c] sm:$0xf]
    %v5141 = vld [vmem:[#allocation10 + $0x20] sm:$0xf]
    %v5142 = vld [vmem:[#allocation10 + $0x24] sm:$0xf]
    %v5143 = vld [vmem:[#allocation10 + $0x28] sm:$0xf]
    %v5144 = vld [vmem:[#allocation10 + $0x2c] sm:$0xf]
    %v5145 = vld [vmem:[#allocation10 + $0x30] sm:$0xf]
    %v5146 = vld [vmem:[#allocation10 + $0x34] sm:$0xf]
    %v5147 = vld [vmem:[#allocation10 + $0x38] sm:$0xf]
    %v5148 = vld [vmem:[#allocation10 + $0x3c] sm:$0xf]
    %v5165 = vunpack.c.l.b16 %v5133
    %v5166 = vunpack.c.l.b16 %v5134
    %v5167 = vunpack.c.l.b16 %v5135
    %v5168 = vunpack.c.l.b16 %v5136
    %v5169 = vunpack.c.l.b16 %v5137
    %v5170 = vunpack.c.l.b16 %v5138
    %v5171 = vunpack.c.l.b16 %v5139
    %v5172 = vunpack.c.l.b16 %v5140
    %v5173 = vunpack.c.l.b16 %v5141
    %v5174 = vunpack.c.l.b16 %v5142
    %v5175 = vunpack.c.l.b16 %v5143
    %v5176 = vunpack.c.l.b16 %v5144
    %v5177 = vunpack.c.l.b16 %v5145
    %v5178 = vunpack.c.l.b16 %v5146
    %v5179 = vunpack.c.l.b16 %v5147
    %v5180 = vunpack.c.l.b16 %v5148
    %v5181 = vpack.c.b16 %v5166, %v5165
    %v5182 = vpack.c.b16 %v5168, %v5167
    %v5183 = vpack.c.b16 %v5170, %v5169
    %v5184 = vpack.c.b16 %v5172, %v5171
    %v5185 = vpack.c.b16 %v5174, %v5173
    %v5186 = vpack.c.b16 %v5176, %v5175
    %v5187 = vpack.c.b16 %v5178, %v5177
    %v5188 = vpack.c.b16 %v5180, %v5179
    %5197 = vmatprep.subr.bf16.mxu0 0
    %5198 = vmatpush1.bf16.msra.mxu0 %v5188
    %5199 = vmatprep.subr.bf16.mxu0 0
    %5200 = vmatpush1.bf16.msra.mxu0 %v5187
    %5201 = vmatprep.subr.bf16.mxu0 0
    %5202 = vmatpush1.bf16.msra.mxu0 %v5186
    %5203 = vmatprep.subr.bf16.mxu0 0
    %5204 = vmatpush1.bf16.msra.mxu0 %v5185
    %5205 = vmatprep.subr.bf16.mxu0 0
    %5206 = vmatpush1.bf16.msra.mxu0 %v5184
    %5207 = vmatprep.subr.bf16.mxu0 0
    %5208 = vmatpush1.bf16.msra.mxu0 %v5183
    %5209 = vmatprep.subr.bf16.mxu0 0
    %5210 = vmatpush1.bf16.msra.mxu0 %v5182
    %5211 = vmatprep.subr.bf16.mxu0 0
    %5212 = vmatpush1.bf16.msra.mxu0 %v5181
    %5213 = vmatprep.subr.bf16.mxu0 0
    %5214 = vmatpush2.bf16.msra.mxu0 0
    %5215 = vmatprep.subr.bf16.mxu0 0
    %5216 = vmatpush2.bf16.msra.mxu0 0
    %5217 = vmatprep.subr.bf16.mxu0 0
    %5218 = vmatpush2.bf16.msra.mxu0 0
    %5219 = vmatprep.subr.bf16.mxu0 0
    %5220 = vmatpush2.bf16.msra.mxu0 0
    %5221 = vmatprep.subr.bf16.mxu0 0
    %5222 = vmatpush2.bf16.msra.mxu0 0
    %5223 = vmatprep.subr.bf16.mxu0 0
    %5224 = vmatpush2.bf16.msra.mxu0 0
    %5225 = vmatprep.subr.bf16.mxu0 0
    %5226 = vmatpush2.bf16.msra.mxu0 0
    %5227 = vmatprep.subr.bf16.mxu0 0
    %5228 = vmatpush2.bf16.msra.mxu0 0
    %5229 = vmatprep.mubr.bf16.mxu0 0
    %5230 = vmatmul.mubr.bf16.gmra.mxu0 %v5101
    %v5231 = vpop.f32.mrf.mxu0
    %v5232 = vadd.f32 0.0, %v5231
    %v5233 = vpop.f32.mrf.mxu0
    %v5234 = vpop.f32.mrf.mxu0
    %v5235 = vadd.f32 0.0, %v5234
    %v5236 = vpop.f32.mrf.mxu0
    %5237 = vmatprep.mubr.bf16.mxu0 0
    %5238 = vmatmul.mubr.bf16.gmra.mxu0 %v5102
    %v5239 = vpop.f32.mrf.mxu0
    %v5240 = vadd.f32 0.0, %v5239
    %v5241 = vpop.f32.mrf.mxu0
    %v5242 = vpop.f32.mrf.mxu0
    %v5243 = vadd.f32 0.0, %v5242
    %v5244 = vpop.f32.mrf.mxu0
    %5245 = vmatprep.mubr.bf16.mxu0 0
    %5246 = vmatmul.mubr.bf16.gmra.mxu0 %v5103
    %v5247 = vpop.f32.mrf.mxu0
    %v5248 = vadd.f32 0.0, %v5247
    %v5249 = vpop.f32.mrf.mxu0
    %v5250 = vpop.f32.mrf.mxu0
    %v5251 = vadd.f32 0.0, %v5250
    %v5252 = vpop.f32.mrf.mxu0
    %5253 = vmatprep.mubr.bf16.mxu0 0
    %5254 = vmatmul.mubr.bf16.gmra.mxu0 %v5104
    %v5255 = vpop.f32.mrf.mxu0
    %v5256 = vadd.f32 0.0, %v5255
    %v5257 = vpop.f32.mrf.mxu0
    %v5258 = vpop.f32.mrf.mxu0
    %v5259 = vadd.f32 0.0, %v5258
    %v5260 = vpop.f32.mrf.mxu0
    %5261 = vmatprep.mubr.bf16.mxu0 0
    %5262 = vmatmul.mubr.bf16.gmra.mxu0 %v5105
    %v5263 = vpop.f32.mrf.mxu0
    %v5264 = vadd.f32 0.0, %v5263
    %v5265 = vpop.f32.mrf.mxu0
    %v5266 = vpop.f32.mrf.mxu0
    %v5267 = vadd.f32 0.0, %v5266
    %v5268 = vpop.f32.mrf.mxu0
    %5269 = vmatprep.mubr.bf16.mxu0 0
    %5270 = vmatmul.mubr.bf16.gmra.mxu0 %v5106
    %v5271 = vpop.f32.mrf.mxu0
    %v5272 = vadd.f32 0.0, %v5271
    %v5273 = vpop.f32.mrf.mxu0
    %v5274 = vpop.f32.mrf.mxu0
    %v5275 = vadd.f32 0.0, %v5274
    %v5276 = vpop.f32.mrf.mxu0
    %5277 = vmatprep.mubr.bf16.mxu0 0
    %5278 = vmatmul.mubr.bf16.gmra.mxu0 %v5107
    %v5279 = vpop.f32.mrf.mxu0
    %v5280 = vadd.f32 0.0, %v5279
    %v5281 = vpop.f32.mrf.mxu0
    %v5282 = vpop.f32.mrf.mxu0
    %v5283 = vadd.f32 0.0, %v5282
    %v5284 = vpop.f32.mrf.mxu0
    %5285 = vmatprep.mubr.bf16.mxu0 0
    %5286 = vmatmul.mubr.bf16.gmra.mxu0 %v5108
    %v5287 = vpop.f32.mrf.mxu0
    %v5288 = vadd.f32 0.0, %v5287
    %v5289 = vpop.f32.mrf.mxu0
    %v5290 = vpop.f32.mrf.mxu0
    %v5291 = vadd.f32 0.0, %v5290
    %v5292 = vpop.f32.mrf.mxu0
    %5293 = vmatprep.mubr.bf16.mxu0 0
    %5294 = vmatmul.mubr.bf16.gmra.mxu0 %v5109
    %v5295 = vpop.f32.mrf.mxu0
    %v5296 = vadd.f32 0.0, %v5295
    %v5297 = vpop.f32.mrf.mxu0
    %v5298 = vpop.f32.mrf.mxu0
    %v5299 = vadd.f32 0.0, %v5298
    %v5300 = vpop.f32.mrf.mxu0
    %5301 = vmatprep.mubr.bf16.mxu0 0
    %5302 = vmatmul.mubr.bf16.gmra.mxu0 %v5110
    %v5303 = vpop.f32.mrf.mxu0
    %v5304 = vadd.f32 0.0, %v5303
    %v5305 = vpop.f32.mrf.mxu0
    %v5306 = vpop.f32.mrf.mxu0
    %v5307 = vadd.f32 0.0, %v5306
    %v5308 = vpop.f32.mrf.mxu0
    %5309 = vmatprep.mubr.bf16.mxu0 0
    %5310 = vmatmul.mubr.bf16.gmra.mxu0 %v5111
    %v5311 = vpop.f32.mrf.mxu0
    %v5312 = vadd.f32 0.0, %v5311
    %v5313 = vpop.f32.mrf.mxu0
    %v5314 = vpop.f32.mrf.mxu0
    %v5315 = vadd.f32 0.0, %v5314
    %v5316 = vpop.f32.mrf.mxu0
    %5317 = vmatprep.mubr.bf16.mxu0 0
    %5318 = vmatmul.mubr.bf16.gmra.mxu0 %v5112
    %v5319 = vpop.f32.mrf.mxu0
    %v5320 = vadd.f32 0.0, %v5319
    %v5321 = vpop.f32.mrf.mxu0
    %v5322 = vpop.f32.mrf.mxu0
    %v5323 = vadd.f32 0.0, %v5322
    %v5324 = vpop.f32.mrf.mxu0
    %5325 = vmatprep.mubr.bf16.mxu0 0
    %5326 = vmatmul.mubr.bf16.gmra.mxu0 %v5113
    %v5327 = vpop.f32.mrf.mxu0
    %v5328 = vadd.f32 0.0, %v5327
    %v5329 = vpop.f32.mrf.mxu0
    %v5330 = vpop.f32.mrf.mxu0
    %v5331 = vadd.f32 0.0, %v5330
    %v5332 = vpop.f32.mrf.mxu0
    %5333 = vmatprep.mubr.bf16.mxu0 0
    %5334 = vmatmul.mubr.bf16.gmra.mxu0 %v5114
    %v5335 = vpop.f32.mrf.mxu0
    %v5336 = vadd.f32 0.0, %v5335
    %v5337 = vpop.f32.mrf.mxu0
    %v5338 = vpop.f32.mrf.mxu0
    %v5339 = vadd.f32 0.0, %v5338
    %v5340 = vpop.f32.mrf.mxu0
    %5341 = vmatprep.mubr.bf16.mxu0 0
    %5342 = vmatmul.mubr.bf16.gmra.mxu0 %v5115
    %v5343 = vpop.f32.mrf.mxu0
    %v5344 = vadd.f32 0.0, %v5343
    %v5345 = vpop.f32.mrf.mxu0
    %v5346 = vpop.f32.mrf.mxu0
    %v5347 = vadd.f32 0.0, %v5346
    %v5348 = vpop.f32.mrf.mxu0
    %5349 = vmatprep.mubr.bf16.mxu0 0
    %5350 = vmatmul.mubr.bf16.gmra.mxu0 %v5116
    %v5351 = vpop.f32.mrf.mxu0
    %v5352 = vadd.f32 0.0, %v5351
    %v5353 = vpop.f32.mrf.mxu0
    %v5354 = vpop.f32.mrf.mxu0
    %v5355 = vadd.f32 0.0, %v5354
    %v5356 = vpop.f32.mrf.mxu0
    %5357 = vmatprep.mubr.bf16.mxu0 0
    %5358 = vmatmul.mubr.bf16.gmra.mxu0 %v5117
    %v5359 = vpop.f32.mrf.mxu0
    %v5360 = vadd.f32 0.0, %v5359
    %v5361 = vpop.f32.mrf.mxu0
    %v5362 = vpop.f32.mrf.mxu0
    %v5363 = vadd.f32 0.0, %v5362
    %v5364 = vpop.f32.mrf.mxu0
    %5365 = vmatprep.mubr.bf16.mxu0 0
    %5366 = vmatmul.mubr.bf16.gmra.mxu0 %v5118
    %v5367 = vpop.f32.mrf.mxu0
    %v5368 = vadd.f32 0.0, %v5367
    %v5369 = vpop.f32.mrf.mxu0
    %v5370 = vpop.f32.mrf.mxu0
    %v5371 = vadd.f32 0.0, %v5370
    %v5372 = vpop.f32.mrf.mxu0
    %5373 = vmatprep.mubr.bf16.mxu0 0
    %5374 = vmatmul.mubr.bf16.gmra.mxu0 %v5119
    %v5375 = vpop.f32.mrf.mxu0
    %v5376 = vadd.f32 0.0, %v5375
    %v5377 = vpop.f32.mrf.mxu0
    %v5378 = vpop.f32.mrf.mxu0
    %v5379 = vadd.f32 0.0, %v5378
    %v5380 = vpop.f32.mrf.mxu0
    %5381 = vmatprep.mubr.bf16.mxu0 0
    %5382 = vmatmul.mubr.bf16.gmra.mxu0 %v5120
    %v5383 = vpop.f32.mrf.mxu0
    %v5384 = vadd.f32 0.0, %v5383
    %v5385 = vpop.f32.mrf.mxu0
    %v5386 = vpop.f32.mrf.mxu0
    %v5387 = vadd.f32 0.0, %v5386
    %v5388 = vpop.f32.mrf.mxu0
    %5389 = vmatprep.mubr.bf16.mxu0 0
    %5390 = vmatmul.mubr.bf16.gmra.mxu0 %v5121
    %v5391 = vpop.f32.mrf.mxu0
    %v5392 = vadd.f32 0.0, %v5391
    %v5393 = vpop.f32.mrf.mxu0
    %v5394 = vpop.f32.mrf.mxu0
    %v5395 = vadd.f32 0.0, %v5394
    %v5396 = vpop.f32.mrf.mxu0
    %5397 = vmatprep.mubr.bf16.mxu0 0
    %5398 = vmatmul.mubr.bf16.gmra.mxu0 %v5122
    %v5399 = vpop.f32.mrf.mxu0
    %v5400 = vadd.f32 0.0, %v5399
    %v5401 = vpop.f32.mrf.mxu0
    %v5402 = vpop.f32.mrf.mxu0
    %v5403 = vadd.f32 0.0, %v5402
    %v5404 = vpop.f32.mrf.mxu0
    %5405 = vmatprep.mubr.bf16.mxu0 0
    %5406 = vmatmul.mubr.bf16.gmra.mxu0 %v5123
    %v5407 = vpop.f32.mrf.mxu0
    %v5408 = vadd.f32 0.0, %v5407
    %v5409 = vpop.f32.mrf.mxu0
    %v5410 = vpop.f32.mrf.mxu0
    %v5411 = vadd.f32 0.0, %v5410
    %v5412 = vpop.f32.mrf.mxu0
    %5413 = vmatprep.mubr.bf16.mxu0 0
    %5414 = vmatmul.mubr.bf16.gmra.mxu0 %v5124
    %v5415 = vpop.f32.mrf.mxu0
    %v5416 = vadd.f32 0.0, %v5415
    %v5417 = vpop.f32.mrf.mxu0
    %v5418 = vpop.f32.mrf.mxu0
    %v5419 = vadd.f32 0.0, %v5418
    %v5420 = vpop.f32.mrf.mxu0
    %5421 = vmatprep.mubr.bf16.mxu0 0
    %5422 = vmatmul.mubr.bf16.gmra.mxu0 %v5125
    %v5423 = vpop.f32.mrf.mxu0
    %v5424 = vadd.f32 0.0, %v5423
    %v5425 = vpop.f32.mrf.mxu0
    %v5426 = vpop.f32.mrf.mxu0
    %v5427 = vadd.f32 0.0, %v5426
    %v5428 = vpop.f32.mrf.mxu0
    %5429 = vmatprep.mubr.bf16.mxu0 0
    %5430 = vmatmul.mubr.bf16.gmra.mxu0 %v5126
    %v5431 = vpop.f32.mrf.mxu0
    %v5432 = vadd.f32 0.0, %v5431
    %v5433 = vpop.f32.mrf.mxu0
    %v5434 = vpop.f32.mrf.mxu0
    %v5435 = vadd.f32 0.0, %v5434
    %v5436 = vpop.f32.mrf.mxu0
    %5437 = vmatprep.mubr.bf16.mxu0 0
    %5438 = vmatmul.mubr.bf16.gmra.mxu0 %v5127
    %v5439 = vpop.f32.mrf.mxu0
    %v5440 = vadd.f32 0.0, %v5439
    %v5441 = vpop.f32.mrf.mxu0
    %v5442 = vpop.f32.mrf.mxu0
    %v5443 = vadd.f32 0.0, %v5442
    %v5444 = vpop.f32.mrf.mxu0
    %5445 = vmatprep.mubr.bf16.mxu0 0
    %5446 = vmatmul.mubr.bf16.gmra.mxu0 %v5128
    %v5447 = vpop.f32.mrf.mxu0
    %v5448 = vadd.f32 0.0, %v5447
    %v5449 = vpop.f32.mrf.mxu0
    %v5450 = vpop.f32.mrf.mxu0
    %v5451 = vadd.f32 0.0, %v5450
    %v5452 = vpop.f32.mrf.mxu0
    %5453 = vmatprep.mubr.bf16.mxu0 0
    %5454 = vmatmul.mubr.bf16.gmra.mxu0 %v5129
    %v5455 = vpop.f32.mrf.mxu0
    %v5456 = vadd.f32 0.0, %v5455
    %v5457 = vpop.f32.mrf.mxu0
    %v5458 = vpop.f32.mrf.mxu0
    %v5459 = vadd.f32 0.0, %v5458
    %v5460 = vpop.f32.mrf.mxu0
    %5461 = vmatprep.mubr.bf16.mxu0 0
    %5462 = vmatmul.mubr.bf16.gmra.mxu0 %v5130
    %v5463 = vpop.f32.mrf.mxu0
    %v5464 = vadd.f32 0.0, %v5463
    %v5465 = vpop.f32.mrf.mxu0
    %v5466 = vpop.f32.mrf.mxu0
    %v5467 = vadd.f32 0.0, %v5466
    %v5468 = vpop.f32.mrf.mxu0
    %5469 = vmatprep.mubr.bf16.mxu0 0
    %5470 = vmatmul.mubr.bf16.gmra.mxu0 %v5131
    %v5471 = vpop.f32.mrf.mxu0
    %v5472 = vadd.f32 0.0, %v5471
    %v5473 = vpop.f32.mrf.mxu0
    %v5474 = vpop.f32.mrf.mxu0
    %v5475 = vadd.f32 0.0, %v5474
    %v5476 = vpop.f32.mrf.mxu0
    %5477 = vmatprep.mubr.bf16.mxu0 0
    %5478 = vmatmul.mubr.bf16.gmra.mxu0 %v5132
    %v5479 = vpop.f32.mrf.mxu0
    %v5480 = vadd.f32 0.0, %v5479
    %v5481 = vpop.f32.mrf.mxu0
    %v5482 = vpop.f32.mrf.mxu0
    %v5483 = vadd.f32 0.0, %v5482
    %v5484 = vpop.f32.mrf.mxu0
    %5485 = vdwg.mxu0
    %v5486 = vpack.c.bf16 %v3791, %v3791
    %v5487 = vpack.c.bf16 %v3804, %v3804
    %v5488 = vpack.c.bf16 %v3817, %v3817
    %v5489 = vpack.c.bf16 %v3830, %v3830
    %v5490 = vpack.c.bf16 %v3843, %v3843
    %v5491 = vpack.c.bf16 %v3856, %v3856
    %v5492 = vpack.c.bf16 %v3869, %v3869
    %v5493 = vpack.c.bf16 %v3882, %v3882
    %v5494 = vld [vmem:[#allocation11] sm:$0xf]
    %v5495 = vld [vmem:[#allocation11 + $0x4] sm:$0xf]
    %v5496 = vld [vmem:[#allocation11 + $0x8] sm:$0xf]
    %v5497 = vld [vmem:[#allocation11 + $0xc] sm:$0xf]
    %v5498 = vld [vmem:[#allocation11 + $0x10] sm:$0xf]
    %v5499 = vld [vmem:[#allocation11 + $0x14] sm:$0xf]
    %v5500 = vld [vmem:[#allocation11 + $0x18] sm:$0xf]
    %v5501 = vld [vmem:[#allocation11 + $0x1c] sm:$0xf]
    %v5502 = vld [vmem:[#allocation11 + $0x20] sm:$0xf]
    %v5503 = vld [vmem:[#allocation11 + $0x24] sm:$0xf]
    %v5504 = vld [vmem:[#allocation11 + $0x28] sm:$0xf]
    %v5505 = vld [vmem:[#allocation11 + $0x2c] sm:$0xf]
    %v5506 = vld [vmem:[#allocation11 + $0x30] sm:$0xf]
    %v5507 = vld [vmem:[#allocation11 + $0x34] sm:$0xf]
    %v5508 = vld [vmem:[#allocation11 + $0x38] sm:$0xf]
    %v5509 = vld [vmem:[#allocation11 + $0x3c] sm:$0xf]
    %v5518 = vunpack.c.l.b16 %v5486
    %v5519 = vunpack.c.l.b16 %v5487
    %v5520 = vunpack.c.l.b16 %v5488
    %v5521 = vunpack.c.l.b16 %v5489
    %v5522 = vunpack.c.l.b16 %v5490
    %v5523 = vunpack.c.l.b16 %v5491
    %v5524 = vunpack.c.l.b16 %v5492
    %v5525 = vunpack.c.l.b16 %v5493
    %v5526 = vsel %vm4387, %v5519, %v5518
    %v5527 = vsel %vm4389, %v5520, %v5526
    %v5528 = vsel %vm4391, %v5521, %v5527
    %v5529 = vsel %vm4393, %v5522, %v5528
    %v5530 = vsel %vm4395, %v5523, %v5529
    %v5531 = vsel %vm4397, %v5524, %v5530
    %v5532 = vsel %vm4399, %v5525, %v5531
    %v5533 = vpack.c.b16 %v5532, %v5532
    %v5551 = vunpack.c.l.b16 %v5494
    %v5552 = vunpack.c.l.b16 %v5495
    %v5553 = vunpack.c.l.b16 %v5496
    %v5554 = vunpack.c.l.b16 %v5497
    %v5555 = vunpack.c.l.b16 %v5498
    %v5556 = vunpack.c.l.b16 %v5499
    %v5557 = vunpack.c.l.b16 %v5500
    %v5558 = vunpack.c.l.b16 %v5501
    %v5559 = vunpack.c.l.b16 %v5502
    %v5560 = vunpack.c.l.b16 %v5503
    %v5561 = vunpack.c.l.b16 %v5504
    %v5562 = vunpack.c.l.b16 %v5505
    %v5563 = vunpack.c.l.b16 %v5506
    %v5564 = vunpack.c.l.b16 %v5507
    %v5565 = vunpack.c.l.b16 %v5508
    %v5566 = vunpack.c.l.b16 %v5509
    %v5567 = vpack.c.b16 %v5552, %v5551
    %v5568 = vpack.c.b16 %v5554, %v5553
    %v5569 = vpack.c.b16 %v5556, %v5555
    %v5570 = vpack.c.b16 %v5558, %v5557
    %v5571 = vpack.c.b16 %v5560, %v5559
    %v5572 = vpack.c.b16 %v5562, %v5561
    %v5573 = vpack.c.b16 %v5564, %v5563
    %v5574 = vpack.c.b16 %v5566, %v5565
    %5583 = vmatprep.subr.bf16.mxu0 0
    %5584 = vmatpush1.bf16.msra.mxu0 %v5574
    %5585 = vmatprep.subr.bf16.mxu0 0
    %5586 = vmatpush1.bf16.msra.mxu0 %v5573
    %5587 = vmatprep.subr.bf16.mxu0 0
    %5588 = vmatpush1.bf16.msra.mxu0 %v5572
    %5589 = vmatprep.subr.bf16.mxu0 0
    %5590 = vmatpush1.bf16.msra.mxu0 %v5571
    %5591 = vmatprep.subr.bf16.mxu0 0
    %5592 = vmatpush1.bf16.msra.mxu0 %v5570
    %5593 = vmatprep.subr.bf16.mxu0 0
    %5594 = vmatpush1.bf16.msra.mxu0 %v5569
    %5595 = vmatprep.subr.bf16.mxu0 0
    %5596 = vmatpush1.bf16.msra.mxu0 %v5568
    %5597 = vmatprep.subr.bf16.mxu0 0
    %5598 = vmatpush1.bf16.msra.mxu0 %v5567
    %5599 = vmatprep.subr.bf16.mxu0 0
    %5600 = vmatpush2.bf16.msra.mxu0 0
    %5601 = vmatprep.subr.bf16.mxu0 0
    %5602 = vmatpush2.bf16.msra.mxu0 0
    %5603 = vmatprep.subr.bf16.mxu0 0
    %5604 = vmatpush2.bf16.msra.mxu0 0
    %5605 = vmatprep.subr.bf16.mxu0 0
    %5606 = vmatpush2.bf16.msra.mxu0 0
    %5607 = vmatprep.subr.bf16.mxu0 0
    %5608 = vmatpush2.bf16.msra.mxu0 0
    %5609 = vmatprep.subr.bf16.mxu0 0
    %5610 = vmatpush2.bf16.msra.mxu0 0
    %5611 = vmatprep.subr.bf16.mxu0 0
    %5612 = vmatpush2.bf16.msra.mxu0 0
    %5613 = vmatprep.subr.bf16.mxu0 0
    %5614 = vmatpush2.bf16.msra.mxu0 0
    %5615 = vmatprep.mubr.bf16.mxu0 0
    %5616 = vmatmul.mubr.bf16.gmra.mxu0 %v5533
    %v5617 = vpop.f32.mrf.mxu0
    %v5618 = vadd.f32 0.0, %v5617
    %v5619 = vpop.f32.mrf.mxu0
    %v5620 = vpop.f32.mrf.mxu0
    %v5621 = vpop.f32.mrf.mxu0
    %5622 = vdwg.mxu0
    %v5624 = vcombine.high %v5618, %v5618
    %v5626 = vunpack.c.l.s4 1966171168
    %v5627 = vunpack.c.0.s8 %v5626
    %v5628 = vlaneseq
    %v5629 = vshrl.u32 %v5628, 7
    %v5630 = vsub.s32 %v5627, %v5629
    %v5631 = vrot.slane %v5618, %v5630
    %v5633 = vunpack.c.l.s4 1966171168
    %v5634 = vunpack.c.0.s8 %v5633
    %v5635 = vlaneseq
    %v5636 = vshrl.u32 %v5635, 7
    %v5637 = vsub.s32 %v5634, %v5636
    %v5638 = vrot.slane %v5624, %v5637
    %v5639 = vcombine.high %v5631, %v5631
    %v5640 = vcombine.high %v5638, %v5638
    %v5642 = vunpack.c.l.s4 1966171168
    %v5643 = vunpack.c.0.s8 %v5642
    %v5644 = vlaneseq
    %v5645 = vshrl.u32 %v5644, 7
    %v5646 = vsub.s32 %v5643, %v5645
    %v5647 = vrot.slane %v5631, %v5646
    %v5649 = vunpack.c.l.s4 1966171168
    %v5650 = vunpack.c.0.s8 %v5649
    %v5651 = vlaneseq
    %v5652 = vshrl.u32 %v5651, 7
    %v5653 = vsub.s32 %v5650, %v5652
    %v5654 = vrot.slane %v5638, %v5653
    %v5656 = vunpack.c.l.s4 1966171168
    %v5657 = vunpack.c.0.s8 %v5656
    %v5658 = vlaneseq
    %v5659 = vshrl.u32 %v5658, 7
    %v5660 = vsub.s32 %v5657, %v5659
    %v5661 = vrot.slane %v5639, %v5660
    %v5663 = vunpack.c.l.s4 1966171168
    %v5664 = vunpack.c.0.s8 %v5663
    %v5665 = vlaneseq
    %v5666 = vshrl.u32 %v5665, 7
    %v5667 = vsub.s32 %v5664, %v5666
    %v5668 = vrot.slane %v5640, %v5667
    %v5669 = vcombine.high %v5647, %v5647
    %v5670 = vcombine.high %v5654, %v5654
    %v5671 = vcombine.high %v5661, %v5661
    %v5672 = vcombine.high %v5668, %v5668
    %v5673 = vlaneseq
    %v5674 = vshrl.u32 %v5673, 7
    %v5675 = vsub.s32 0, %v5674
    %v5676 = vrot.slane %v5647, %v5675
    %v5677 = vlaneseq
    %v5678 = vshrl.u32 %v5677, 7
    %v5679 = vsub.s32 0, %v5678
    %v5680 = vrot.slane %v5661, %v5679
    %v5681 = vlaneseq
    %v5682 = vshrl.u32 %v5681, 7
    %v5683 = vsub.s32 0, %v5682
    %v5684 = vrot.slane %v5669, %v5683
    %v5685 = vlaneseq
    %v5686 = vshrl.u32 %v5685, 7
    %v5687 = vsub.s32 0, %v5686
    %v5688 = vrot.slane %v5671, %v5687
    %v5689 = vlaneseq
    %v5690 = vshrl.u32 %v5689, 7
    %v5691 = vsub.s32 0, %v5690
    %v5692 = vrot.slane %v5654, %v5691
    %v5693 = vlaneseq
    %v5694 = vshrl.u32 %v5693, 7
    %v5695 = vsub.s32 0, %v5694
    %v5696 = vrot.slane %v5668, %v5695
    %v5697 = vlaneseq
    %v5698 = vshrl.u32 %v5697, 7
    %v5699 = vsub.s32 0, %v5698
    %v5700 = vrot.slane %v5670, %v5699
    %v5701 = vlaneseq
    %v5702 = vshrl.u32 %v5701, 7
    %v5703 = vsub.s32 0, %v5702
    %v5704 = vrot.slane %v5672, %v5703
    %v5713 = vadd.f32 %v5232, %v5676
    %v5714 = vadd.f32 %v5235, %v5676
    %v5715 = vadd.f32 %v5240, %v5676
    %v5716 = vadd.f32 %v5243, %v5676
    %v5717 = vadd.f32 %v5248, %v5676
    %v5718 = vadd.f32 %v5251, %v5676
    %v5719 = vadd.f32 %v5256, %v5676
    %v5720 = vadd.f32 %v5259, %v5676
    %v5721 = vadd.f32 %v5264, %v5680
    %v5722 = vadd.f32 %v5267, %v5680
    %v5723 = vadd.f32 %v5272, %v5680
    %v5724 = vadd.f32 %v5275, %v5680
    %v5725 = vadd.f32 %v5280, %v5680
    %v5726 = vadd.f32 %v5283, %v5680
    %v5727 = vadd.f32 %v5288, %v5680
    %v5728 = vadd.f32 %v5291, %v5680
    %v5729 = vadd.f32 %v5296, %v5684
    %v5730 = vadd.f32 %v5299, %v5684
    %v5731 = vadd.f32 %v5304, %v5684
    %v5732 = vadd.f32 %v5307, %v5684
    %v5733 = vadd.f32 %v5312, %v5684
    %v5734 = vadd.f32 %v5315, %v5684
    %v5735 = vadd.f32 %v5320, %v5684
    %v5736 = vadd.f32 %v5323, %v5684
    %v5737 = vadd.f32 %v5328, %v5688
    %v5738 = vadd.f32 %v5331, %v5688
    %v5739 = vadd.f32 %v5336, %v5688
    %v5740 = vadd.f32 %v5339, %v5688
    %v5741 = vadd.f32 %v5344, %v5688
    %v5742 = vadd.f32 %v5347, %v5688
    %v5743 = vadd.f32 %v5352, %v5688
    %v5744 = vadd.f32 %v5355, %v5688
    %v5745 = vadd.f32 %v5360, %v5692
    %v5746 = vadd.f32 %v5363, %v5692
    %v5747 = vadd.f32 %v5368, %v5692
    %v5748 = vadd.f32 %v5371, %v5692
    %v5749 = vadd.f32 %v5376, %v5692
    %v5750 = vadd.f32 %v5379, %v5692
    %v5751 = vadd.f32 %v5384, %v5692
    %v5752 = vadd.f32 %v5387, %v5692
    %v5753 = vadd.f32 %v5392, %v5696
    %v5754 = vadd.f32 %v5395, %v5696
    %v5755 = vadd.f32 %v5400, %v5696
    %v5756 = vadd.f32 %v5403, %v5696
    %v5757 = vadd.f32 %v5408, %v5696
    %v5758 = vadd.f32 %v5411, %v5696
    %v5759 = vadd.f32 %v5416, %v5696
    %v5760 = vadd.f32 %v5419, %v5696
    %v5761 = vadd.f32 %v5424, %v5700
    %v5762 = vadd.f32 %v5427, %v5700
    %v5763 = vadd.f32 %v5432, %v5700
    %v5764 = vadd.f32 %v5435, %v5700
    %v5765 = vadd.f32 %v5440, %v5700
    %v5766 = vadd.f32 %v5443, %v5700
    %v5767 = vadd.f32 %v5448, %v5700
    %v5768 = vadd.f32 %v5451, %v5700
    %v5769 = vadd.f32 %v5456, %v5704
    %v5770 = vadd.f32 %v5459, %v5704
    %v5771 = vadd.f32 %v5464, %v5704
    %v5772 = vadd.f32 %v5467, %v5704
    %v5773 = vadd.f32 %v5472, %v5704
    %v5774 = vadd.f32 %v5475, %v5704
    %v5775 = vadd.f32 %v5480, %v5704
    %v5776 = vadd.f32 %v5483, %v5704
    %v5777 = vadd.f32 %v5713, %v4847
    %v5778 = vadd.f32 %v5714, %v4850
    %v5779 = vadd.f32 %v5715, %v4855
    %v5780 = vadd.f32 %v5716, %v4858
    %v5781 = vadd.f32 %v5717, %v4863
    %v5782 = vadd.f32 %v5718, %v4866
    %v5783 = vadd.f32 %v5719, %v4871
    %v5784 = vadd.f32 %v5720, %v4874
    %v5785 = vadd.f32 %v5721, %v4879
    %v5786 = vadd.f32 %v5722, %v4882
    %v5787 = vadd.f32 %v5723, %v4887
    %v5788 = vadd.f32 %v5724, %v4890
    %v5789 = vadd.f32 %v5725, %v4895
    %v5790 = vadd.f32 %v5726, %v4898
    %v5791 = vadd.f32 %v5727, %v4903
    %v5792 = vadd.f32 %v5728, %v4906
    %v5793 = vadd.f32 %v5729, %v4911
    %v5794 = vadd.f32 %v5730, %v4914
    %v5795 = vadd.f32 %v5731, %v4919
    %v5796 = vadd.f32 %v5732, %v4922
    %v5797 = vadd.f32 %v5733, %v4927
    %v5798 = vadd.f32 %v5734, %v4930
    %v5799 = vadd.f32 %v5735, %v4935
    %v5800 = vadd.f32 %v5736, %v4938
    %v5801 = vadd.f32 %v5737, %v4943
    %v5802 = vadd.f32 %v5738, %v4946
    %v5803 = vadd.f32 %v5739, %v4951
    %v5804 = vadd.f32 %v5740, %v4954
    %v5805 = vadd.f32 %v5741, %v4959
    %v5806 = vadd.f32 %v5742, %v4962
    %v5807 = vadd.f32 %v5743, %v4967
    %v5808 = vadd.f32 %v5744, %v4970
    %v5809 = vadd.f32 %v5745, %v4975
    %v5810 = vadd.f32 %v5746, %v4978
    %v5811 = vadd.f32 %v5747, %v4983
    %v5812 = vadd.f32 %v5748, %v4986
    %v5813 = vadd.f32 %v5749, %v4991
    %v5814 = vadd.f32 %v5750, %v4994
    %v5815 = vadd.f32 %v5751, %v4999
    %v5816 = vadd.f32 %v5752, %v5002
    %v5817 = vadd.f32 %v5753, %v5007
    %v5818 = vadd.f32 %v5754, %v5010
    %v5819 = vadd.f32 %v5755, %v5015
    %v5820 = vadd.f32 %v5756, %v5018
    %v5821 = vadd.f32 %v5757, %v5023
    %v5822 = vadd.f32 %v5758, %v5026
    %v5823 = vadd.f32 %v5759, %v5031
    %v5824 = vadd.f32 %v5760, %v5034
    %v5825 = vadd.f32 %v5761, %v5039
    %v5826 = vadd.f32 %v5762, %v5042
    %v5827 = vadd.f32 %v5763, %v5047
    %v5828 = vadd.f32 %v5764, %v5050
    %v5829 = vadd.f32 %v5765, %v5055
    %v5830 = vadd.f32 %v5766, %v5058
    %v5831 = vadd.f32 %v5767, %v5063
    %v5832 = vadd.f32 %v5768, %v5066
    %v5833 = vadd.f32 %v5769, %v5071
    %v5834 = vadd.f32 %v5770, %v5074
    %v5835 = vadd.f32 %v5771, %v5079
    %v5836 = vadd.f32 %v5772, %v5082
    %v5837 = vadd.f32 %v5773, %v5087
    %v5838 = vadd.f32 %v5774, %v5090
    %v5839 = vadd.f32 %v5775, %v5095
    %v5840 = vadd.f32 %v5776, %v5098
    %v5841 = vmax.f32 %v5777, %v5778
    %v5842 = vmax.f32 %v5841, %v5779
    %v5843 = vmax.f32 %v5842, %v5780
    %v5844 = vmax.f32 %v5843, %v5781
    %v5845 = vmax.f32 %v5844, %v5782
    %v5846 = vmax.f32 %v5845, %v5783
    %v5847 = vmax.f32 %v5846, %v5784
    %v5848 = vrot.slane %v5847, 4
    %v5849 = vmax.f32 %v5847, %v5848
    %v5850 = vrot.slane %v5849, 2
    %v5851 = vmax.f32 %v5849, %v5850
    %v5852 = vrot.slane %v5851, 1
    %v5853 = vmax.f32 %v5851, %v5852
    %v5854 = vmax.f32 %v5785, %v5786
    %v5855 = vmax.f32 %v5854, %v5787
    %v5856 = vmax.f32 %v5855, %v5788
    %v5857 = vmax.f32 %v5856, %v5789
    %v5858 = vmax.f32 %v5857, %v5790
    %v5859 = vmax.f32 %v5858, %v5791
    %v5860 = vmax.f32 %v5859, %v5792
    %v5861 = vrot.slane %v5860, 4
    %v5862 = vmax.f32 %v5860, %v5861
    %v5863 = vrot.slane %v5862, 2
    %v5864 = vmax.f32 %v5862, %v5863
    %v5865 = vrot.slane %v5864, 1
    %v5866 = vmax.f32 %v5864, %v5865
    %v5867 = vmax.f32 %v5793, %v5794
    %v5868 = vmax.f32 %v5867, %v5795
    %v5869 = vmax.f32 %v5868, %v5796
    %v5870 = vmax.f32 %v5869, %v5797
    %v5871 = vmax.f32 %v5870, %v5798
    %v5872 = vmax.f32 %v5871, %v5799
    %v5873 = vmax.f32 %v5872, %v5800
    %v5874 = vrot.slane %v5873, 4
    %v5875 = vmax.f32 %v5873, %v5874
    %v5876 = vrot.slane %v5875, 2
    %v5877 = vmax.f32 %v5875, %v5876
    %v5878 = vrot.slane %v5877, 1
    %v5879 = vmax.f32 %v5877, %v5878
    %v5880 = vmax.f32 %v5801, %v5802
    %v5881 = vmax.f32 %v5880, %v5803
    %v5882 = vmax.f32 %v5881, %v5804
    %v5883 = vmax.f32 %v5882, %v5805
    %v5884 = vmax.f32 %v5883, %v5806
    %v5885 = vmax.f32 %v5884, %v5807
    %v5886 = vmax.f32 %v5885, %v5808
    %v5887 = vrot.slane %v5886, 4
    %v5888 = vmax.f32 %v5886, %v5887
    %v5889 = vrot.slane %v5888, 2
    %v5890 = vmax.f32 %v5888, %v5889
    %v5891 = vrot.slane %v5890, 1
    %v5892 = vmax.f32 %v5890, %v5891
    %v5893 = vmax.f32 %v5809, %v5810
    %v5894 = vmax.f32 %v5893, %v5811
    %v5895 = vmax.f32 %v5894, %v5812
    %v5896 = vmax.f32 %v5895, %v5813
    %v5897 = vmax.f32 %v5896, %v5814
    %v5898 = vmax.f32 %v5897, %v5815
    %v5899 = vmax.f32 %v5898, %v5816
    %v5900 = vrot.slane %v5899, 4
    %v5901 = vmax.f32 %v5899, %v5900
    %v5902 = vrot.slane %v5901, 2
    %v5903 = vmax.f32 %v5901, %v5902
    %v5904 = vrot.slane %v5903, 1
    %v5905 = vmax.f32 %v5903, %v5904
    %v5906 = vmax.f32 %v5817, %v5818
    %v5907 = vmax.f32 %v5906, %v5819
    %v5908 = vmax.f32 %v5907, %v5820
    %v5909 = vmax.f32 %v5908, %v5821
    %v5910 = vmax.f32 %v5909, %v5822
    %v5911 = vmax.f32 %v5910, %v5823
    %v5912 = vmax.f32 %v5911, %v5824
    %v5913 = vrot.slane %v5912, 4
    %v5914 = vmax.f32 %v5912, %v5913
    %v5915 = vrot.slane %v5914, 2
    %v5916 = vmax.f32 %v5914, %v5915
    %v5917 = vrot.slane %v5916, 1
    %v5918 = vmax.f32 %v5916, %v5917
    %v5919 = vmax.f32 %v5825, %v5826
    %v5920 = vmax.f32 %v5919, %v5827
    %v5921 = vmax.f32 %v5920, %v5828
    %v5922 = vmax.f32 %v5921, %v5829
    %v5923 = vmax.f32 %v5922, %v5830
    %v5924 = vmax.f32 %v5923, %v5831
    %v5925 = vmax.f32 %v5924, %v5832
    %v5926 = vrot.slane %v5925, 4
    %v5927 = vmax.f32 %v5925, %v5926
    %v5928 = vrot.slane %v5927, 2
    %v5929 = vmax.f32 %v5927, %v5928
    %v5930 = vrot.slane %v5929, 1
    %v5931 = vmax.f32 %v5929, %v5930
    %v5932 = vmax.f32 %v5833, %v5834
    %v5933 = vmax.f32 %v5932, %v5835
    %v5934 = vmax.f32 %v5933, %v5836
    %v5935 = vmax.f32 %v5934, %v5837
    %v5936 = vmax.f32 %v5935, %v5838
    %v5937 = vmax.f32 %v5936, %v5839
    %v5938 = vmax.f32 %v5937, %v5840
    %v5939 = vrot.slane %v5938, 4
    %v5940 = vmax.f32 %v5938, %v5939
    %v5941 = vrot.slane %v5940, 2
    %v5942 = vmax.f32 %v5940, %v5941
    %v5943 = vrot.slane %v5942, 1
    %v5944 = vmax.f32 %v5942, %v5943
    %v5945 = vmax.f32 %v5777, 0.0
    %v5946 = vmax.f32 %v5778, 0.0
    %v5947 = vmax.f32 %v5779, 0.0
    %v5948 = vmax.f32 %v5780, 0.0
    %v5949 = vmax.f32 %v5781, 0.0
    %v5950 = vmax.f32 %v5782, 0.0
    %v5951 = vmax.f32 %v5783, 0.0
    %v5952 = vmax.f32 %v5784, 0.0
    %v5953 = vmax.f32 %v5785, 0.0
    %v5954 = vmax.f32 %v5786, 0.0
    %v5955 = vmax.f32 %v5787, 0.0
    %v5956 = vmax.f32 %v5788, 0.0
    %v5957 = vmax.f32 %v5789, 0.0
    %v5958 = vmax.f32 %v5790, 0.0
    %v5959 = vmax.f32 %v5791, 0.0
    %v5960 = vmax.f32 %v5792, 0.0
    %v5961 = vmax.f32 %v5793, 0.0
    %v5962 = vmax.f32 %v5794, 0.0
    %v5963 = vmax.f32 %v5795, 0.0
    %v5964 = vmax.f32 %v5796, 0.0
    %v5965 = vmax.f32 %v5797, 0.0
    %v5966 = vmax.f32 %v5798, 0.0
    %v5967 = vmax.f32 %v5799, 0.0
    %v5968 = vmax.f32 %v5800, 0.0
    %v5969 = vmax.f32 %v5801, 0.0
    %v5970 = vmax.f32 %v5802, 0.0
    %v5971 = vmax.f32 %v5803, 0.0
    %v5972 = vmax.f32 %v5804, 0.0
    %v5973 = vmax.f32 %v5805, 0.0
    %v5974 = vmax.f32 %v5806, 0.0
    %v5975 = vmax.f32 %v5807, 0.0
    %v5976 = vmax.f32 %v5808, 0.0
    %v5977 = vmax.f32 %v5809, 0.0
    %v5978 = vmax.f32 %v5810, 0.0
    %v5979 = vmax.f32 %v5811, 0.0
    %v5980 = vmax.f32 %v5812, 0.0
    %v5981 = vmax.f32 %v5813, 0.0
    %v5982 = vmax.f32 %v5814, 0.0
    %v5983 = vmax.f32 %v5815, 0.0
    %v5984 = vmax.f32 %v5816, 0.0
    %v5985 = vmax.f32 %v5817, 0.0
    %v5986 = vmax.f32 %v5818, 0.0
    %v5987 = vmax.f32 %v5819, 0.0
    %v5988 = vmax.f32 %v5820, 0.0
    %v5989 = vmax.f32 %v5821, 0.0
    %v5990 = vmax.f32 %v5822, 0.0
    %v5991 = vmax.f32 %v5823, 0.0
    %v5992 = vmax.f32 %v5824, 0.0
    %v5993 = vmax.f32 %v5825, 0.0
    %v5994 = vmax.f32 %v5826, 0.0
    %v5995 = vmax.f32 %v5827, 0.0
    %v5996 = vmax.f32 %v5828, 0.0
    %v5997 = vmax.f32 %v5829, 0.0
    %v5998 = vmax.f32 %v5830, 0.0
    %v5999 = vmax.f32 %v5831, 0.0
    %v6000 = vmax.f32 %v5832, 0.0
    %v6001 = vmax.f32 %v5833, 0.0
    %v6002 = vmax.f32 %v5834, 0.0
    %v6003 = vmax.f32 %v5835, 0.0
    %v6004 = vmax.f32 %v5836, 0.0
    %v6005 = vmax.f32 %v5837, 0.0
    %v6006 = vmax.f32 %v5838, 0.0
    %v6007 = vmax.f32 %v5839, 0.0
    %v6008 = vmax.f32 %v5840, 0.0
    %v6009 = vmax.f32 %v5853, 0.0
    %v6010 = vmax.f32 %v5866, 0.0
    %v6011 = vmax.f32 %v5879, 0.0
    %v6012 = vmax.f32 %v5892, 0.0
    %v6013 = vmax.f32 %v5905, 0.0
    %v6014 = vmax.f32 %v5918, 0.0
    %v6015 = vmax.f32 %v5931, 0.0
    %v6016 = vmax.f32 %v5944, 0.0
    %v6017 = vpack.c.bf16 %v5946, %v5945
    %v6018 = vpack.c.bf16 %v5948, %v5947
    %v6019 = vpack.c.bf16 %v5950, %v5949
    %v6020 = vpack.c.bf16 %v5952, %v5951
    %v6021 = vpack.c.bf16 %v5954, %v5953
    %v6022 = vpack.c.bf16 %v5956, %v5955
    %v6023 = vpack.c.bf16 %v5958, %v5957
    %v6024 = vpack.c.bf16 %v5960, %v5959
    %v6025 = vpack.c.bf16 %v5962, %v5961
    %v6026 = vpack.c.bf16 %v5964, %v5963
    %v6027 = vpack.c.bf16 %v5966, %v5965
    %v6028 = vpack.c.bf16 %v5968, %v5967
    %v6029 = vpack.c.bf16 %v5970, %v5969
    %v6030 = vpack.c.bf16 %v5972, %v5971
    %v6031 = vpack.c.bf16 %v5974, %v5973
    %v6032 = vpack.c.bf16 %v5976, %v5975
    %v6033 = vpack.c.bf16 %v5978, %v5977
    %v6034 = vpack.c.bf16 %v5980, %v5979
    %v6035 = vpack.c.bf16 %v5982, %v5981
    %v6036 = vpack.c.bf16 %v5984, %v5983
    %v6037 = vpack.c.bf16 %v5986, %v5985
    %v6038 = vpack.c.bf16 %v5988, %v5987
    %v6039 = vpack.c.bf16 %v5990, %v5989
    %v6040 = vpack.c.bf16 %v5992, %v5991
    %v6041 = vpack.c.bf16 %v5994, %v5993
    %v6042 = vpack.c.bf16 %v5996, %v5995
    %v6043 = vpack.c.bf16 %v5998, %v5997
    %v6044 = vpack.c.bf16 %v6000, %v5999
    %v6045 = vpack.c.bf16 %v6002, %v6001
    %v6046 = vpack.c.bf16 %v6004, %v6003
    %v6047 = vpack.c.bf16 %v6006, %v6005
    %v6048 = vpack.c.bf16 %v6008, %v6007
    %v6049 = vld [vmem:[#allocation13] sm:$0xf]
    %v6050 = vld [vmem:[#allocation13 + $0x4] sm:$0xf]
    %v6051 = vld [vmem:[#allocation13 + $0x8] sm:$0xf]
    %v6052 = vld [vmem:[#allocation13 + $0xc] sm:$0xf]
    %v6053 = vld [vmem:[#allocation13 + $0x10] sm:$0xf]
    %v6054 = vld [vmem:[#allocation13 + $0x14] sm:$0xf]
    %v6055 = vld [vmem:[#allocation13 + $0x18] sm:$0xf]
    %v6056 = vld [vmem:[#allocation13 + $0x1c] sm:$0xf]
    %v6057 = vld [vmem:[#allocation13 + $0x20] sm:$0xf]
    %v6058 = vld [vmem:[#allocation13 + $0x24] sm:$0xf]
    %v6059 = vld [vmem:[#allocation13 + $0x28] sm:$0xf]
    %v6060 = vld [vmem:[#allocation13 + $0x2c] sm:$0xf]
    %v6061 = vld [vmem:[#allocation13 + $0x30] sm:$0xf]
    %v6062 = vld [vmem:[#allocation13 + $0x34] sm:$0xf]
    %v6063 = vld [vmem:[#allocation13 + $0x38] sm:$0xf]
    %v6064 = vld [vmem:[#allocation13 + $0x3c] sm:$0xf]
    %v6065 = vld [vmem:[#allocation16] sm:$0x1]
    %v6067 = vlaneseq
    %v6068 = vshrl.u32 %v6067, 7
    %v6069 = vsub.s32 0, %v6068
    %v6070 = vrot.slane %v6065, %v6069
    %v6088 = vunpack.c.l.b16 %v6049
    %v6089 = vunpack.c.l.b16 %v6050
    %v6090 = vunpack.c.l.b16 %v6051
    %v6091 = vunpack.c.l.b16 %v6052
    %v6092 = vunpack.c.l.b16 %v6053
    %v6093 = vunpack.c.l.b16 %v6054
    %v6094 = vunpack.c.l.b16 %v6055
    %v6095 = vunpack.c.l.b16 %v6056
    %v6096 = vunpack.c.l.b16 %v6057
    %v6097 = vunpack.c.l.b16 %v6058
    %v6098 = vunpack.c.l.b16 %v6059
    %v6099 = vunpack.c.l.b16 %v6060
    %v6100 = vunpack.c.l.b16 %v6061
    %v6101 = vunpack.c.l.b16 %v6062
    %v6102 = vunpack.c.l.b16 %v6063
    %v6103 = vunpack.c.l.b16 %v6064
    %v6104 = vpack.c.b16 %v6089, %v6088
    %v6105 = vpack.c.b16 %v6091, %v6090
    %v6106 = vpack.c.b16 %v6093, %v6092
    %v6107 = vpack.c.b16 %v6095, %v6094
    %v6108 = vpack.c.b16 %v6097, %v6096
    %v6109 = vpack.c.b16 %v6099, %v6098
    %v6110 = vpack.c.b16 %v6101, %v6100
    %v6111 = vpack.c.b16 %v6103, %v6102
    %6120 = vmatprep.subr.bf16.mxu0 0
    %6121 = vmatpush1.bf16.msra.mxu0 %v6111
    %6122 = vmatprep.subr.bf16.mxu0 0
    %6123 = vmatpush1.bf16.msra.mxu0 %v6110
    %6124 = vmatprep.subr.bf16.mxu0 0
    %6125 = vmatpush1.bf16.msra.mxu0 %v6109
    %6126 = vmatprep.subr.bf16.mxu0 0
    %6127 = vmatpush1.bf16.msra.mxu0 %v6108
    %6128 = vmatprep.subr.bf16.mxu0 0
    %6129 = vmatpush1.bf16.msra.mxu0 %v6107
    %6130 = vmatprep.subr.bf16.mxu0 0
    %6131 = vmatpush1.bf16.msra.mxu0 %v6106
    %6132 = vmatprep.subr.bf16.mxu0 0
    %6133 = vmatpush1.bf16.msra.mxu0 %v6105
    %6134 = vmatprep.subr.bf16.mxu0 0
    %6135 = vmatpush1.bf16.msra.mxu0 %v6104
    %6136 = vmatprep.subr.bf16.mxu0 0
    %6137 = vmatpush2.bf16.msra.mxu0 0
    %6138 = vmatprep.subr.bf16.mxu0 0
    %6139 = vmatpush2.bf16.msra.mxu0 0
    %6140 = vmatprep.subr.bf16.mxu0 0
    %6141 = vmatpush2.bf16.msra.mxu0 0
    %6142 = vmatprep.subr.bf16.mxu0 0
    %6143 = vmatpush2.bf16.msra.mxu0 0
    %6144 = vmatprep.subr.bf16.mxu0 0
    %6145 = vmatpush2.bf16.msra.mxu0 0
    %6146 = vmatprep.subr.bf16.mxu0 0
    %6147 = vmatpush2.bf16.msra.mxu0 0
    %6148 = vmatprep.subr.bf16.mxu0 0
    %6149 = vmatpush2.bf16.msra.mxu0 0
    %6150 = vmatprep.subr.bf16.mxu0 0
    %6151 = vmatpush2.bf16.msra.mxu0 0
    %6152 = vmatprep.mubr.bf16.mxu0 0
    %6153 = vmatmul.mubr.bf16.gmra.mxu0 %v6017
    %v6154 = vpop.f32.mrf.mxu0
    %v6155 = vadd.f32 %v6070, %v6154
    %v6156 = vpop.f32.mrf.mxu0
    %v6157 = vpop.f32.mrf.mxu0
    %v6158 = vadd.f32 %v6070, %v6157
    %v6159 = vpop.f32.mrf.mxu0
    %6160 = vmatprep.mubr.bf16.mxu0 0
    %6161 = vmatmul.mubr.bf16.gmra.mxu0 %v6018
    %v6162 = vpop.f32.mrf.mxu0
    %v6163 = vadd.f32 %v6070, %v6162
    %v6164 = vpop.f32.mrf.mxu0
    %v6165 = vpop.f32.mrf.mxu0
    %v6166 = vadd.f32 %v6070, %v6165
    %v6167 = vpop.f32.mrf.mxu0
    %6168 = vmatprep.mubr.bf16.mxu0 0
    %6169 = vmatmul.mubr.bf16.gmra.mxu0 %v6019
    %v6170 = vpop.f32.mrf.mxu0
    %v6171 = vadd.f32 %v6070, %v6170
    %v6172 = vpop.f32.mrf.mxu0
    %v6173 = vpop.f32.mrf.mxu0
    %v6174 = vadd.f32 %v6070, %v6173
    %v6175 = vpop.f32.mrf.mxu0
    %6176 = vmatprep.mubr.bf16.mxu0 0
    %6177 = vmatmul.mubr.bf16.gmra.mxu0 %v6020
    %v6178 = vpop.f32.mrf.mxu0
    %v6179 = vadd.f32 %v6070, %v6178
    %v6180 = vpop.f32.mrf.mxu0
    %v6181 = vpop.f32.mrf.mxu0
    %v6182 = vadd.f32 %v6070, %v6181
    %v6183 = vpop.f32.mrf.mxu0
    %6184 = vmatprep.mubr.bf16.mxu0 0
    %6185 = vmatmul.mubr.bf16.gmra.mxu0 %v6021
    %v6186 = vpop.f32.mrf.mxu0
    %v6187 = vadd.f32 %v6070, %v6186
    %v6188 = vpop.f32.mrf.mxu0
    %v6189 = vpop.f32.mrf.mxu0
    %v6190 = vadd.f32 %v6070, %v6189
    %v6191 = vpop.f32.mrf.mxu0
    %6192 = vmatprep.mubr.bf16.mxu0 0
    %6193 = vmatmul.mubr.bf16.gmra.mxu0 %v6022
    %v6194 = vpop.f32.mrf.mxu0
    %v6195 = vadd.f32 %v6070, %v6194
    %v6196 = vpop.f32.mrf.mxu0
    %v6197 = vpop.f32.mrf.mxu0
    %v6198 = vadd.f32 %v6070, %v6197
    %v6199 = vpop.f32.mrf.mxu0
    %6200 = vmatprep.mubr.bf16.mxu0 0
    %6201 = vmatmul.mubr.bf16.gmra.mxu0 %v6023
    %v6202 = vpop.f32.mrf.mxu0
    %v6203 = vadd.f32 %v6070, %v6202
    %v6204 = vpop.f32.mrf.mxu0
    %v6205 = vpop.f32.mrf.mxu0
    %v6206 = vadd.f32 %v6070, %v6205
    %v6207 = vpop.f32.mrf.mxu0
    %6208 = vmatprep.mubr.bf16.mxu0 0
    %6209 = vmatmul.mubr.bf16.gmra.mxu0 %v6024
    %v6210 = vpop.f32.mrf.mxu0
    %v6211 = vadd.f32 %v6070, %v6210
    %v6212 = vpop.f32.mrf.mxu0
    %v6213 = vpop.f32.mrf.mxu0
    %v6214 = vadd.f32 %v6070, %v6213
    %v6215 = vpop.f32.mrf.mxu0
    %6216 = vmatprep.mubr.bf16.mxu0 0
    %6217 = vmatmul.mubr.bf16.gmra.mxu0 %v6025
    %v6218 = vpop.f32.mrf.mxu0
    %v6219 = vadd.f32 %v6070, %v6218
    %v6220 = vpop.f32.mrf.mxu0
    %v6221 = vpop.f32.mrf.mxu0
    %v6222 = vadd.f32 %v6070, %v6221
    %v6223 = vpop.f32.mrf.mxu0
    %6224 = vmatprep.mubr.bf16.mxu0 0
    %6225 = vmatmul.mubr.bf16.gmra.mxu0 %v6026
    %v6226 = vpop.f32.mrf.mxu0
    %v6227 = vadd.f32 %v6070, %v6226
    %v6228 = vpop.f32.mrf.mxu0
    %v6229 = vpop.f32.mrf.mxu0
    %v6230 = vadd.f32 %v6070, %v6229
    %v6231 = vpop.f32.mrf.mxu0
    %6232 = vmatprep.mubr.bf16.mxu0 0
    %6233 = vmatmul.mubr.bf16.gmra.mxu0 %v6027
    %v6234 = vpop.f32.mrf.mxu0
    %v6235 = vadd.f32 %v6070, %v6234
    %v6236 = vpop.f32.mrf.mxu0
    %v6237 = vpop.f32.mrf.mxu0
    %v6238 = vadd.f32 %v6070, %v6237
    %v6239 = vpop.f32.mrf.mxu0
    %6240 = vmatprep.mubr.bf16.mxu0 0
    %6241 = vmatmul.mubr.bf16.gmra.mxu0 %v6028
    %v6242 = vpop.f32.mrf.mxu0
    %v6243 = vadd.f32 %v6070, %v6242
    %v6244 = vpop.f32.mrf.mxu0
    %v6245 = vpop.f32.mrf.mxu0
    %v6246 = vadd.f32 %v6070, %v6245
    %v6247 = vpop.f32.mrf.mxu0
    %6248 = vmatprep.mubr.bf16.mxu0 0
    %6249 = vmatmul.mubr.bf16.gmra.mxu0 %v6029
    %v6250 = vpop.f32.mrf.mxu0
    %v6251 = vadd.f32 %v6070, %v6250
    %v6252 = vpop.f32.mrf.mxu0
    %v6253 = vpop.f32.mrf.mxu0
    %v6254 = vadd.f32 %v6070, %v6253
    %v6255 = vpop.f32.mrf.mxu0
    %6256 = vmatprep.mubr.bf16.mxu0 0
    %6257 = vmatmul.mubr.bf16.gmra.mxu0 %v6030
    %v6258 = vpop.f32.mrf.mxu0
    %v6259 = vadd.f32 %v6070, %v6258
    %v6260 = vpop.f32.mrf.mxu0
    %v6261 = vpop.f32.mrf.mxu0
    %v6262 = vadd.f32 %v6070, %v6261
    %v6263 = vpop.f32.mrf.mxu0
    %6264 = vmatprep.mubr.bf16.mxu0 0
    %6265 = vmatmul.mubr.bf16.gmra.mxu0 %v6031
    %v6266 = vpop.f32.mrf.mxu0
    %v6267 = vadd.f32 %v6070, %v6266
    %v6268 = vpop.f32.mrf.mxu0
    %v6269 = vpop.f32.mrf.mxu0
    %v6270 = vadd.f32 %v6070, %v6269
    %v6271 = vpop.f32.mrf.mxu0
    %6272 = vmatprep.mubr.bf16.mxu0 0
    %6273 = vmatmul.mubr.bf16.gmra.mxu0 %v6032
    %v6274 = vpop.f32.mrf.mxu0
    %v6275 = vadd.f32 %v6070, %v6274
    %v6276 = vpop.f32.mrf.mxu0
    %v6277 = vpop.f32.mrf.mxu0
    %v6278 = vadd.f32 %v6070, %v6277
    %v6279 = vpop.f32.mrf.mxu0
    %6280 = vmatprep.mubr.bf16.mxu0 0
    %6281 = vmatmul.mubr.bf16.gmra.mxu0 %v6033
    %v6282 = vpop.f32.mrf.mxu0
    %v6283 = vadd.f32 %v6070, %v6282
    %v6284 = vpop.f32.mrf.mxu0
    %v6285 = vpop.f32.mrf.mxu0
    %v6286 = vadd.f32 %v6070, %v6285
    %v6287 = vpop.f32.mrf.mxu0
    %6288 = vmatprep.mubr.bf16.mxu0 0
    %6289 = vmatmul.mubr.bf16.gmra.mxu0 %v6034
    %v6290 = vpop.f32.mrf.mxu0
    %v6291 = vadd.f32 %v6070, %v6290
    %v6292 = vpop.f32.mrf.mxu0
    %v6293 = vpop.f32.mrf.mxu0
    %v6294 = vadd.f32 %v6070, %v6293
    %v6295 = vpop.f32.mrf.mxu0
    %6296 = vmatprep.mubr.bf16.mxu0 0
    %6297 = vmatmul.mubr.bf16.gmra.mxu0 %v6035
    %v6298 = vpop.f32.mrf.mxu0
    %v6299 = vadd.f32 %v6070, %v6298
    %v6300 = vpop.f32.mrf.mxu0
    %v6301 = vpop.f32.mrf.mxu0
    %v6302 = vadd.f32 %v6070, %v6301
    %v6303 = vpop.f32.mrf.mxu0
    %6304 = vmatprep.mubr.bf16.mxu0 0
    %6305 = vmatmul.mubr.bf16.gmra.mxu0 %v6036
    %v6306 = vpop.f32.mrf.mxu0
    %v6307 = vadd.f32 %v6070, %v6306
    %v6308 = vpop.f32.mrf.mxu0
    %v6309 = vpop.f32.mrf.mxu0
    %v6310 = vadd.f32 %v6070, %v6309
    %v6311 = vpop.f32.mrf.mxu0
    %6312 = vmatprep.mubr.bf16.mxu0 0
    %6313 = vmatmul.mubr.bf16.gmra.mxu0 %v6037
    %v6314 = vpop.f32.mrf.mxu0
    %v6315 = vadd.f32 %v6070, %v6314
    %v6316 = vpop.f32.mrf.mxu0
    %v6317 = vpop.f32.mrf.mxu0
    %v6318 = vadd.f32 %v6070, %v6317
    %v6319 = vpop.f32.mrf.mxu0
    %6320 = vmatprep.mubr.bf16.mxu0 0
    %6321 = vmatmul.mubr.bf16.gmra.mxu0 %v6038
    %v6322 = vpop.f32.mrf.mxu0
    %v6323 = vadd.f32 %v6070, %v6322
    %v6324 = vpop.f32.mrf.mxu0
    %v6325 = vpop.f32.mrf.mxu0
    %v6326 = vadd.f32 %v6070, %v6325
    %v6327 = vpop.f32.mrf.mxu0
    %6328 = vmatprep.mubr.bf16.mxu0 0
    %6329 = vmatmul.mubr.bf16.gmra.mxu0 %v6039
    %v6330 = vpop.f32.mrf.mxu0
    %v6331 = vadd.f32 %v6070, %v6330
    %v6332 = vpop.f32.mrf.mxu0
    %v6333 = vpop.f32.mrf.mxu0
    %v6334 = vadd.f32 %v6070, %v6333
    %v6335 = vpop.f32.mrf.mxu0
    %6336 = vmatprep.mubr.bf16.mxu0 0
    %6337 = vmatmul.mubr.bf16.gmra.mxu0 %v6040
    %v6338 = vpop.f32.mrf.mxu0
    %v6339 = vadd.f32 %v6070, %v6338
    %v6340 = vpop.f32.mrf.mxu0
    %v6341 = vpop.f32.mrf.mxu0
    %v6342 = vadd.f32 %v6070, %v6341
    %v6343 = vpop.f32.mrf.mxu0
    %6344 = vmatprep.mubr.bf16.mxu0 0
    %6345 = vmatmul.mubr.bf16.gmra.mxu0 %v6041
    %v6346 = vpop.f32.mrf.mxu0
    %v6347 = vadd.f32 %v6070, %v6346
    %v6348 = vpop.f32.mrf.mxu0
    %v6349 = vpop.f32.mrf.mxu0
    %v6350 = vadd.f32 %v6070, %v6349
    %v6351 = vpop.f32.mrf.mxu0
    %6352 = vmatprep.mubr.bf16.mxu0 0
    %6353 = vmatmul.mubr.bf16.gmra.mxu0 %v6042
    %v6354 = vpop.f32.mrf.mxu0
    %v6355 = vadd.f32 %v6070, %v6354
    %v6356 = vpop.f32.mrf.mxu0
    %v6357 = vpop.f32.mrf.mxu0
    %v6358 = vadd.f32 %v6070, %v6357
    %v6359 = vpop.f32.mrf.mxu0
    %6360 = vmatprep.mubr.bf16.mxu0 0
    %6361 = vmatmul.mubr.bf16.gmra.mxu0 %v6043
    %v6362 = vpop.f32.mrf.mxu0
    %v6363 = vadd.f32 %v6070, %v6362
    %v6364 = vpop.f32.mrf.mxu0
    %v6365 = vpop.f32.mrf.mxu0
    %v6366 = vadd.f32 %v6070, %v6365
    %v6367 = vpop.f32.mrf.mxu0
    %6368 = vmatprep.mubr.bf16.mxu0 0
    %6369 = vmatmul.mubr.bf16.gmra.mxu0 %v6044
    %v6370 = vpop.f32.mrf.mxu0
    %v6371 = vadd.f32 %v6070, %v6370
    %v6372 = vpop.f32.mrf.mxu0
    %v6373 = vpop.f32.mrf.mxu0
    %v6374 = vadd.f32 %v6070, %v6373
    %v6375 = vpop.f32.mrf.mxu0
    %6376 = vmatprep.mubr.bf16.mxu0 0
    %6377 = vmatmul.mubr.bf16.gmra.mxu0 %v6045
    %v6378 = vpop.f32.mrf.mxu0
    %v6379 = vadd.f32 %v6070, %v6378
    %v6380 = vpop.f32.mrf.mxu0
    %v6381 = vpop.f32.mrf.mxu0
    %v6382 = vadd.f32 %v6070, %v6381
    %v6383 = vpop.f32.mrf.mxu0
    %6384 = vmatprep.mubr.bf16.mxu0 0
    %6385 = vmatmul.mubr.bf16.gmra.mxu0 %v6046
    %v6386 = vpop.f32.mrf.mxu0
    %v6387 = vadd.f32 %v6070, %v6386
    %v6388 = vpop.f32.mrf.mxu0
    %v6389 = vpop.f32.mrf.mxu0
    %v6390 = vadd.f32 %v6070, %v6389
    %v6391 = vpop.f32.mrf.mxu0
    %6392 = vmatprep.mubr.bf16.mxu0 0
    %6393 = vmatmul.mubr.bf16.gmra.mxu0 %v6047
    %v6394 = vpop.f32.mrf.mxu0
    %v6395 = vadd.f32 %v6070, %v6394
    %v6396 = vpop.f32.mrf.mxu0
    %v6397 = vpop.f32.mrf.mxu0
    %v6398 = vadd.f32 %v6070, %v6397
    %v6399 = vpop.f32.mrf.mxu0
    %6400 = vmatprep.mubr.bf16.mxu0 0
    %6401 = vmatmul.mubr.bf16.gmra.mxu0 %v6048
    %v6402 = vpop.f32.mrf.mxu0
    %v6403 = vadd.f32 %v6070, %v6402
    %v6404 = vpop.f32.mrf.mxu0
    %v6405 = vpop.f32.mrf.mxu0
    %v6406 = vadd.f32 %v6070, %v6405
    %v6407 = vpop.f32.mrf.mxu0
    %6408 = vdwg.mxu0
    %v6409 = vpack.c.bf16 %v6009, %v6009
    %v6410 = vpack.c.bf16 %v6010, %v6010
    %v6411 = vpack.c.bf16 %v6011, %v6011
    %v6412 = vpack.c.bf16 %v6012, %v6012
    %v6413 = vpack.c.bf16 %v6013, %v6013
    %v6414 = vpack.c.bf16 %v6014, %v6014
    %v6415 = vpack.c.bf16 %v6015, %v6015
    %v6416 = vpack.c.bf16 %v6016, %v6016
    %v6417 = vld [vmem:[#allocation14] sm:$0xf]
    %v6418 = vld [vmem:[#allocation14 + $0x4] sm:$0xf]
    %v6419 = vld [vmem:[#allocation14 + $0x8] sm:$0xf]
    %v6420 = vld [vmem:[#allocation14 + $0xc] sm:$0xf]
    %v6421 = vld [vmem:[#allocation14 + $0x10] sm:$0xf]
    %v6422 = vld [vmem:[#allocation14 + $0x14] sm:$0xf]
    %v6423 = vld [vmem:[#allocation14 + $0x18] sm:$0xf]
    %v6424 = vld [vmem:[#allocation14 + $0x1c] sm:$0xf]
    %v6425 = vld [vmem:[#allocation14 + $0x20] sm:$0xf]
    %v6426 = vld [vmem:[#allocation14 + $0x24] sm:$0xf]
    %v6427 = vld [vmem:[#allocation14 + $0x28] sm:$0xf]
    %v6428 = vld [vmem:[#allocation14 + $0x2c] sm:$0xf]
    %v6429 = vld [vmem:[#allocation14 + $0x30] sm:$0xf]
    %v6430 = vld [vmem:[#allocation14 + $0x34] sm:$0xf]
    %v6431 = vld [vmem:[#allocation14 + $0x38] sm:$0xf]
    %v6432 = vld [vmem:[#allocation14 + $0x3c] sm:$0xf]
    %v6441 = vunpack.c.l.b16 %v6409
    %v6442 = vunpack.c.l.b16 %v6410
    %v6443 = vunpack.c.l.b16 %v6411
    %v6444 = vunpack.c.l.b16 %v6412
    %v6445 = vunpack.c.l.b16 %v6413
    %v6446 = vunpack.c.l.b16 %v6414
    %v6447 = vunpack.c.l.b16 %v6415
    %v6448 = vunpack.c.l.b16 %v6416
    %v6449 = vsel %vm4387, %v6442, %v6441
    %v6450 = vsel %vm4389, %v6443, %v6449
    %v6451 = vsel %vm4391, %v6444, %v6450
    %v6452 = vsel %vm4393, %v6445, %v6451
    %v6453 = vsel %vm4395, %v6446, %v6452
    %v6454 = vsel %vm4397, %v6447, %v6453
    %v6455 = vsel %vm4399, %v6448, %v6454
    %v6456 = vpack.c.b16 %v6455, %v6455
    %v6474 = vunpack.c.l.b16 %v6417
    %v6475 = vunpack.c.l.b16 %v6418
    %v6476 = vunpack.c.l.b16 %v6419
    %v6477 = vunpack.c.l.b16 %v6420
    %v6478 = vunpack.c.l.b16 %v6421
    %v6479 = vunpack.c.l.b16 %v6422
    %v6480 = vunpack.c.l.b16 %v6423
    %v6481 = vunpack.c.l.b16 %v6424
    %v6482 = vunpack.c.l.b16 %v6425
    %v6483 = vunpack.c.l.b16 %v6426
    %v6484 = vunpack.c.l.b16 %v6427
    %v6485 = vunpack.c.l.b16 %v6428
    %v6486 = vunpack.c.l.b16 %v6429
    %v6487 = vunpack.c.l.b16 %v6430
    %v6488 = vunpack.c.l.b16 %v6431
    %v6489 = vunpack.c.l.b16 %v6432
    %v6490 = vpack.c.b16 %v6475, %v6474
    %v6491 = vpack.c.b16 %v6477, %v6476
    %v6492 = vpack.c.b16 %v6479, %v6478
    %v6493 = vpack.c.b16 %v6481, %v6480
    %v6494 = vpack.c.b16 %v6483, %v6482
    %v6495 = vpack.c.b16 %v6485, %v6484
    %v6496 = vpack.c.b16 %v6487, %v6486
    %v6497 = vpack.c.b16 %v6489, %v6488
    %6506 = vmatprep.subr.bf16.mxu0 0
    %6507 = vmatpush1.bf16.msra.mxu0 %v6497
    %6508 = vmatprep.subr.bf16.mxu0 0
    %6509 = vmatpush1.bf16.msra.mxu0 %v6496
    %6510 = vmatprep.subr.bf16.mxu0 0
    %6511 = vmatpush1.bf16.msra.mxu0 %v6495
    %6512 = vmatprep.subr.bf16.mxu0 0
    %6513 = vmatpush1.bf16.msra.mxu0 %v6494
    %6514 = vmatprep.subr.bf16.mxu0 0
    %6515 = vmatpush1.bf16.msra.mxu0 %v6493
    %6516 = vmatprep.subr.bf16.mxu0 0
    %6517 = vmatpush1.bf16.msra.mxu0 %v6492
    %6518 = vmatprep.subr.bf16.mxu0 0
    %6519 = vmatpush1.bf16.msra.mxu0 %v6491
    %6520 = vmatprep.subr.bf16.mxu0 0
    %6521 = vmatpush1.bf16.msra.mxu0 %v6490
    %6522 = vmatprep.subr.bf16.mxu0 0
    %6523 = vmatpush2.bf16.msra.mxu0 0
    %6524 = vmatprep.subr.bf16.mxu0 0
    %6525 = vmatpush2.bf16.msra.mxu0 0
    %6526 = vmatprep.subr.bf16.mxu0 0
    %6527 = vmatpush2.bf16.msra.mxu0 0
    %6528 = vmatprep.subr.bf16.mxu0 0
    %6529 = vmatpush2.bf16.msra.mxu0 0
    %6530 = vmatprep.subr.bf16.mxu0 0
    %6531 = vmatpush2.bf16.msra.mxu0 0
    %6532 = vmatprep.subr.bf16.mxu0 0
    %6533 = vmatpush2.bf16.msra.mxu0 0
    %6534 = vmatprep.subr.bf16.mxu0 0
    %6535 = vmatpush2.bf16.msra.mxu0 0
    %6536 = vmatprep.subr.bf16.mxu0 0
    %6537 = vmatpush2.bf16.msra.mxu0 0
    %6538 = vmatprep.mubr.bf16.mxu0 0
    %6539 = vmatmul.mubr.bf16.gmra.mxu0 %v6456
    %v6540 = vpop.f32.mrf.mxu0
    %v6541 = vadd.f32 0.0, %v6540
    %v6542 = vpop.f32.mrf.mxu0
    %v6543 = vpop.f32.mrf.mxu0
    %v6544 = vpop.f32.mrf.mxu0
    %6545 = vdwg.mxu0
    %v6547 = vcombine.high %v6541, %v6541
    %v6549 = vunpack.c.l.s4 1966171168
    %v6550 = vunpack.c.0.s8 %v6549
    %v6551 = vlaneseq
    %v6552 = vshrl.u32 %v6551, 7
    %v6553 = vsub.s32 %v6550, %v6552
    %v6554 = vrot.slane %v6541, %v6553
    %v6556 = vunpack.c.l.s4 1966171168
    %v6557 = vunpack.c.0.s8 %v6556
    %v6558 = vlaneseq
    %v6559 = vshrl.u32 %v6558, 7
    %v6560 = vsub.s32 %v6557, %v6559
    %v6561 = vrot.slane %v6547, %v6560
    %v6562 = vcombine.high %v6554, %v6554
    %v6563 = vcombine.high %v6561, %v6561
    %v6565 = vunpack.c.l.s4 1966171168
    %v6566 = vunpack.c.0.s8 %v6565
    %v6567 = vlaneseq
    %v6568 = vshrl.u32 %v6567, 7
    %v6569 = vsub.s32 %v6566, %v6568
    %v6570 = vrot.slane %v6554, %v6569
    %v6572 = vunpack.c.l.s4 1966171168
    %v6573 = vunpack.c.0.s8 %v6572
    %v6574 = vlaneseq
    %v6575 = vshrl.u32 %v6574, 7
    %v6576 = vsub.s32 %v6573, %v6575
    %v6577 = vrot.slane %v6561, %v6576
    %v6579 = vunpack.c.l.s4 1966171168
    %v6580 = vunpack.c.0.s8 %v6579
    %v6581 = vlaneseq
    %v6582 = vshrl.u32 %v6581, 7
    %v6583 = vsub.s32 %v6580, %v6582
    %v6584 = vrot.slane %v6562, %v6583
    %v6586 = vunpack.c.l.s4 1966171168
    %v6587 = vunpack.c.0.s8 %v6586
    %v6588 = vlaneseq
    %v6589 = vshrl.u32 %v6588, 7
    %v6590 = vsub.s32 %v6587, %v6589
    %v6591 = vrot.slane %v6563, %v6590
    %v6592 = vcombine.high %v6570, %v6570
    %v6593 = vcombine.high %v6577, %v6577
    %v6594 = vcombine.high %v6584, %v6584
    %v6595 = vcombine.high %v6591, %v6591
    %v6596 = vlaneseq
    %v6597 = vshrl.u32 %v6596, 7
    %v6598 = vsub.s32 0, %v6597
    %v6599 = vrot.slane %v6570, %v6598
    %v6600 = vlaneseq
    %v6601 = vshrl.u32 %v6600, 7
    %v6602 = vsub.s32 0, %v6601
    %v6603 = vrot.slane %v6584, %v6602
    %v6604 = vlaneseq
    %v6605 = vshrl.u32 %v6604, 7
    %v6606 = vsub.s32 0, %v6605
    %v6607 = vrot.slane %v6592, %v6606
    %v6608 = vlaneseq
    %v6609 = vshrl.u32 %v6608, 7
    %v6610 = vsub.s32 0, %v6609
    %v6611 = vrot.slane %v6594, %v6610
    %v6612 = vlaneseq
    %v6613 = vshrl.u32 %v6612, 7
    %v6614 = vsub.s32 0, %v6613
    %v6615 = vrot.slane %v6577, %v6614
    %v6616 = vlaneseq
    %v6617 = vshrl.u32 %v6616, 7
    %v6618 = vsub.s32 0, %v6617
    %v6619 = vrot.slane %v6591, %v6618
    %v6620 = vlaneseq
    %v6621 = vshrl.u32 %v6620, 7
    %v6622 = vsub.s32 0, %v6621
    %v6623 = vrot.slane %v6593, %v6622
    %v6624 = vlaneseq
    %v6625 = vshrl.u32 %v6624, 7
    %v6626 = vsub.s32 0, %v6625
    %v6627 = vrot.slane %v6595, %v6626
    %v6636 = vadd.f32 %v6155, %v6599
    %v6637 = vadd.f32 %v6158, %v6599
    %v6638 = vadd.f32 %v6163, %v6599
    %v6639 = vadd.f32 %v6166, %v6599
    %v6640 = vadd.f32 %v6171, %v6599
    %v6641 = vadd.f32 %v6174, %v6599
    %v6642 = vadd.f32 %v6179, %v6599
    %v6643 = vadd.f32 %v6182, %v6599
    %v6644 = vadd.f32 %v6187, %v6603
    %v6645 = vadd.f32 %v6190, %v6603
    %v6646 = vadd.f32 %v6195, %v6603
    %v6647 = vadd.f32 %v6198, %v6603
    %v6648 = vadd.f32 %v6203, %v6603
    %v6649 = vadd.f32 %v6206, %v6603
    %v6650 = vadd.f32 %v6211, %v6603
    %v6651 = vadd.f32 %v6214, %v6603
    %v6652 = vadd.f32 %v6219, %v6607
    %v6653 = vadd.f32 %v6222, %v6607
    %v6654 = vadd.f32 %v6227, %v6607
    %v6655 = vadd.f32 %v6230, %v6607
    %v6656 = vadd.f32 %v6235, %v6607
    %v6657 = vadd.f32 %v6238, %v6607
    %v6658 = vadd.f32 %v6243, %v6607
    %v6659 = vadd.f32 %v6246, %v6607
    %v6660 = vadd.f32 %v6251, %v6611
    %v6661 = vadd.f32 %v6254, %v6611
    %v6662 = vadd.f32 %v6259, %v6611
    %v6663 = vadd.f32 %v6262, %v6611
    %v6664 = vadd.f32 %v6267, %v6611
    %v6665 = vadd.f32 %v6270, %v6611
    %v6666 = vadd.f32 %v6275, %v6611
    %v6667 = vadd.f32 %v6278, %v6611
    %v6668 = vadd.f32 %v6283, %v6615
    %v6669 = vadd.f32 %v6286, %v6615
    %v6670 = vadd.f32 %v6291, %v6615
    %v6671 = vadd.f32 %v6294, %v6615
    %v6672 = vadd.f32 %v6299, %v6615
    %v6673 = vadd.f32 %v6302, %v6615
    %v6674 = vadd.f32 %v6307, %v6615
    %v6675 = vadd.f32 %v6310, %v6615
    %v6676 = vadd.f32 %v6315, %v6619
    %v6677 = vadd.f32 %v6318, %v6619
    %v6678 = vadd.f32 %v6323, %v6619
    %v6679 = vadd.f32 %v6326, %v6619
    %v6680 = vadd.f32 %v6331, %v6619
    %v6681 = vadd.f32 %v6334, %v6619
    %v6682 = vadd.f32 %v6339, %v6619
    %v6683 = vadd.f32 %v6342, %v6619
    %v6684 = vadd.f32 %v6347, %v6623
    %v6685 = vadd.f32 %v6350, %v6623
    %v6686 = vadd.f32 %v6355, %v6623
    %v6687 = vadd.f32 %v6358, %v6623
    %v6688 = vadd.f32 %v6363, %v6623
    %v6689 = vadd.f32 %v6366, %v6623
    %v6690 = vadd.f32 %v6371, %v6623
    %v6691 = vadd.f32 %v6374, %v6623
    %v6692 = vadd.f32 %v6379, %v6627
    %v6693 = vadd.f32 %v6382, %v6627
    %v6694 = vadd.f32 %v6387, %v6627
    %v6695 = vadd.f32 %v6390, %v6627
    %v6696 = vadd.f32 %v6395, %v6627
    %v6697 = vadd.f32 %v6398, %v6627
    %v6698 = vadd.f32 %v6403, %v6627
    %v6699 = vadd.f32 %v6406, %v6627
    %v6700 = vmax.f32 %v6636, 0.0
    %v6701 = vmax.f32 %v6637, 0.0
    %v6702 = vmax.f32 %v6638, 0.0
    %v6703 = vmax.f32 %v6639, 0.0
    %v6704 = vmax.f32 %v6640, 0.0
    %v6705 = vmax.f32 %v6641, 0.0
    %v6706 = vmax.f32 %v6642, 0.0
    %v6707 = vmax.f32 %v6643, 0.0
    %v6708 = vmax.f32 %v6644, 0.0
    %v6709 = vmax.f32 %v6645, 0.0
    %v6710 = vmax.f32 %v6646, 0.0
    %v6711 = vmax.f32 %v6647, 0.0
    %v6712 = vmax.f32 %v6648, 0.0
    %v6713 = vmax.f32 %v6649, 0.0
    %v6714 = vmax.f32 %v6650, 0.0
    %v6715 = vmax.f32 %v6651, 0.0
    %v6716 = vmax.f32 %v6652, 0.0
    %v6717 = vmax.f32 %v6653, 0.0
    %v6718 = vmax.f32 %v6654, 0.0
    %v6719 = vmax.f32 %v6655, 0.0
    %v6720 = vmax.f32 %v6656, 0.0
    %v6721 = vmax.f32 %v6657, 0.0
    %v6722 = vmax.f32 %v6658, 0.0
    %v6723 = vmax.f32 %v6659, 0.0
    %v6724 = vmax.f32 %v6660, 0.0
    %v6725 = vmax.f32 %v6661, 0.0
    %v6726 = vmax.f32 %v6662, 0.0
    %v6727 = vmax.f32 %v6663, 0.0
    %v6728 = vmax.f32 %v6664, 0.0
    %v6729 = vmax.f32 %v6665, 0.0
    %v6730 = vmax.f32 %v6666, 0.0
    %v6731 = vmax.f32 %v6667, 0.0
    %v6732 = vmax.f32 %v6668, 0.0
    %v6733 = vmax.f32 %v6669, 0.0
    %v6734 = vmax.f32 %v6670, 0.0
    %v6735 = vmax.f32 %v6671, 0.0
    %v6736 = vmax.f32 %v6672, 0.0
    %v6737 = vmax.f32 %v6673, 0.0
    %v6738 = vmax.f32 %v6674, 0.0
    %v6739 = vmax.f32 %v6675, 0.0
    %v6740 = vmax.f32 %v6676, 0.0
    %v6741 = vmax.f32 %v6677, 0.0
    %v6742 = vmax.f32 %v6678, 0.0
    %v6743 = vmax.f32 %v6679, 0.0
    %v6744 = vmax.f32 %v6680, 0.0
    %v6745 = vmax.f32 %v6681, 0.0
    %v6746 = vmax.f32 %v6682, 0.0
    %v6747 = vmax.f32 %v6683, 0.0
    %v6748 = vmax.f32 %v6684, 0.0
    %v6749 = vmax.f32 %v6685, 0.0
    %v6750 = vmax.f32 %v6686, 0.0
    %v6751 = vmax.f32 %v6687, 0.0
    %v6752 = vmax.f32 %v6688, 0.0
    %v6753 = vmax.f32 %v6689, 0.0
    %v6754 = vmax.f32 %v6690, 0.0
    %v6755 = vmax.f32 %v6691, 0.0
    %v6756 = vmax.f32 %v6692, 0.0
    %v6757 = vmax.f32 %v6693, 0.0
    %v6758 = vmax.f32 %v6694, 0.0
    %v6759 = vmax.f32 %v6695, 0.0
    %v6760 = vmax.f32 %v6696, 0.0
    %v6761 = vmax.f32 %v6697, 0.0
    %v6762 = vmax.f32 %v6698, 0.0
    %v6763 = vmax.f32 %v6699, 0.0
    %v6764 = vpack.c.bf16 %v6701, %v6700
    %v6765 = vpack.c.bf16 %v6703, %v6702
    %v6766 = vpack.c.bf16 %v6705, %v6704
    %v6767 = vpack.c.bf16 %v6707, %v6706
    %v6768 = vpack.c.bf16 %v6709, %v6708
    %v6769 = vpack.c.bf16 %v6711, %v6710
    %v6770 = vpack.c.bf16 %v6713, %v6712
    %v6771 = vpack.c.bf16 %v6715, %v6714
    %v6772 = vpack.c.bf16 %v6717, %v6716
    %v6773 = vpack.c.bf16 %v6719, %v6718
    %v6774 = vpack.c.bf16 %v6721, %v6720
    %v6775 = vpack.c.bf16 %v6723, %v6722
    %v6776 = vpack.c.bf16 %v6725, %v6724
    %v6777 = vpack.c.bf16 %v6727, %v6726
    %v6778 = vpack.c.bf16 %v6729, %v6728
    %v6779 = vpack.c.bf16 %v6731, %v6730
    %v6780 = vpack.c.bf16 %v6733, %v6732
    %v6781 = vpack.c.bf16 %v6735, %v6734
    %v6782 = vpack.c.bf16 %v6737, %v6736
    %v6783 = vpack.c.bf16 %v6739, %v6738
    %v6784 = vpack.c.bf16 %v6741, %v6740
    %v6785 = vpack.c.bf16 %v6743, %v6742
    %v6786 = vpack.c.bf16 %v6745, %v6744
    %v6787 = vpack.c.bf16 %v6747, %v6746
    %v6788 = vpack.c.bf16 %v6749, %v6748
    %v6789 = vpack.c.bf16 %v6751, %v6750
    %v6790 = vpack.c.bf16 %v6753, %v6752
    %v6791 = vpack.c.bf16 %v6755, %v6754
    %v6792 = vpack.c.bf16 %v6757, %v6756
    %v6793 = vpack.c.bf16 %v6759, %v6758
    %v6794 = vpack.c.bf16 %v6761, %v6760
    %v6795 = vpack.c.bf16 %v6763, %v6762
    %v6796 = vld [vmem:[#allocation17] sm:$0xf]
    %v6797 = vld [vmem:[#allocation17 + $0x4] sm:$0xf]
    %v6798 = vld [vmem:[#allocation17 + $0x8] sm:$0xf]
    %v6799 = vld [vmem:[#allocation17 + $0xc] sm:$0xf]
    %v6800 = vld [vmem:[#allocation17 + $0x10] sm:$0xf]
    %v6801 = vld [vmem:[#allocation17 + $0x14] sm:$0xf]
    %v6802 = vld [vmem:[#allocation17 + $0x18] sm:$0xf]
    %v6803 = vld [vmem:[#allocation17 + $0x1c] sm:$0xf]
    %v6804 = vld [vmem:[#allocation17 + $0x20] sm:$0xf]
    %v6805 = vld [vmem:[#allocation17 + $0x24] sm:$0xf]
    %v6806 = vld [vmem:[#allocation17 + $0x28] sm:$0xf]
    %v6807 = vld [vmem:[#allocation17 + $0x2c] sm:$0xf]
    %v6808 = vld [vmem:[#allocation17 + $0x30] sm:$0xf]
    %v6809 = vld [vmem:[#allocation17 + $0x34] sm:$0xf]
    %v6810 = vld [vmem:[#allocation17 + $0x38] sm:$0xf]
    %v6811 = vld [vmem:[#allocation17 + $0x3c] sm:$0xf]
    %v6812 = vld [vmem:[#allocation19] sm:$0x1]
    %v6814 = vlaneseq
    %v6815 = vshrl.u32 %v6814, 7
    %v6816 = vsub.s32 0, %v6815
    %v6817 = vrot.slane %v6812, %v6816
    %v6835 = vunpack.c.l.b16 %v6796
    %v6836 = vunpack.c.l.b16 %v6797
    %v6837 = vunpack.c.l.b16 %v6798
    %v6838 = vunpack.c.l.b16 %v6799
    %v6839 = vunpack.c.l.b16 %v6800
    %v6840 = vunpack.c.l.b16 %v6801
    %v6841 = vunpack.c.l.b16 %v6802
    %v6842 = vunpack.c.l.b16 %v6803
    %v6843 = vunpack.c.l.b16 %v6804
    %v6844 = vunpack.c.l.b16 %v6805
    %v6845 = vunpack.c.l.b16 %v6806
    %v6846 = vunpack.c.l.b16 %v6807
    %v6847 = vunpack.c.l.b16 %v6808
    %v6848 = vunpack.c.l.b16 %v6809
    %v6849 = vunpack.c.l.b16 %v6810
    %v6850 = vunpack.c.l.b16 %v6811
    %v6851 = vpack.c.b16 %v6836, %v6835
    %v6852 = vpack.c.b16 %v6838, %v6837
    %v6853 = vpack.c.b16 %v6840, %v6839
    %v6854 = vpack.c.b16 %v6842, %v6841
    %v6855 = vpack.c.b16 %v6844, %v6843
    %v6856 = vpack.c.b16 %v6846, %v6845
    %v6857 = vpack.c.b16 %v6848, %v6847
    %v6858 = vpack.c.b16 %v6850, %v6849
    %6867 = vmatprep.subr.bf16.mxu0 0
    %6868 = vmatpush1.bf16.msra.mxu0 %v6858
    %6869 = vmatprep.subr.bf16.mxu0 0
    %6870 = vmatpush1.bf16.msra.mxu0 %v6857
    %6871 = vmatprep.subr.bf16.mxu0 0
    %6872 = vmatpush1.bf16.msra.mxu0 %v6856
    %6873 = vmatprep.subr.bf16.mxu0 0
    %6874 = vmatpush1.bf16.msra.mxu0 %v6855
    %6875 = vmatprep.subr.bf16.mxu0 0
    %6876 = vmatpush1.bf16.msra.mxu0 %v6854
    %6877 = vmatprep.subr.bf16.mxu0 0
    %6878 = vmatpush1.bf16.msra.mxu0 %v6853
    %6879 = vmatprep.subr.bf16.mxu0 0
    %6880 = vmatpush1.bf16.msra.mxu0 %v6852
    %6881 = vmatprep.subr.bf16.mxu0 0
    %6882 = vmatpush1.bf16.msra.mxu0 %v6851
    %6883 = vmatprep.subr.bf16.mxu0 0
    %6884 = vmatpush2.bf16.msra.mxu0 0
    %6885 = vmatprep.subr.bf16.mxu0 0
    %6886 = vmatpush2.bf16.msra.mxu0 0
    %6887 = vmatprep.subr.bf16.mxu0 0
    %6888 = vmatpush2.bf16.msra.mxu0 0
    %6889 = vmatprep.subr.bf16.mxu0 0
    %6890 = vmatpush2.bf16.msra.mxu0 0
    %6891 = vmatprep.subr.bf16.mxu0 0
    %6892 = vmatpush2.bf16.msra.mxu0 0
    %6893 = vmatprep.subr.bf16.mxu0 0
    %6894 = vmatpush2.bf16.msra.mxu0 0
    %6895 = vmatprep.subr.bf16.mxu0 0
    %6896 = vmatpush2.bf16.msra.mxu0 0
    %6897 = vmatprep.subr.bf16.mxu0 0
    %6898 = vmatpush2.bf16.msra.mxu0 0
    %6899 = vmatprep.mubr.bf16.mxu0 0
    %6900 = vmatmul.mubr.bf16.gmra.mxu0 %v6764
    %v6901 = vpop.f32.mrf.mxu0
    %v6902 = vadd.f32 %v6817, %v6901
    %v6903 = vpop.f32.mrf.mxu0
    %v6904 = vpop.f32.mrf.mxu0
    %v6905 = vadd.f32 %v6817, %v6904
    %v6906 = vpop.f32.mrf.mxu0
    %6907 = vmatprep.mubr.bf16.mxu0 0
    %6908 = vmatmul.mubr.bf16.gmra.mxu0 %v6765
    %v6909 = vpop.f32.mrf.mxu0
    %v6910 = vadd.f32 %v6817, %v6909
    %v6911 = vpop.f32.mrf.mxu0
    %v6912 = vpop.f32.mrf.mxu0
    %v6913 = vadd.f32 %v6817, %v6912
    %v6914 = vpop.f32.mrf.mxu0
    %6915 = vmatprep.mubr.bf16.mxu0 0
    %6916 = vmatmul.mubr.bf16.gmra.mxu0 %v6766
    %v6917 = vpop.f32.mrf.mxu0
    %v6918 = vadd.f32 %v6817, %v6917
    %v6919 = vpop.f32.mrf.mxu0
    %v6920 = vpop.f32.mrf.mxu0
    %v6921 = vadd.f32 %v6817, %v6920
    %v6922 = vpop.f32.mrf.mxu0
    %6923 = vmatprep.mubr.bf16.mxu0 0
    %6924 = vmatmul.mubr.bf16.gmra.mxu0 %v6767
    %v6925 = vpop.f32.mrf.mxu0
    %v6926 = vadd.f32 %v6817, %v6925
    %v6927 = vpop.f32.mrf.mxu0
    %v6928 = vpop.f32.mrf.mxu0
    %v6929 = vadd.f32 %v6817, %v6928
    %v6930 = vpop.f32.mrf.mxu0
    %6931 = vmatprep.mubr.bf16.mxu0 0
    %6932 = vmatmul.mubr.bf16.gmra.mxu0 %v6768
    %v6933 = vpop.f32.mrf.mxu0
    %v6934 = vadd.f32 %v6817, %v6933
    %v6935 = vpop.f32.mrf.mxu0
    %v6936 = vpop.f32.mrf.mxu0
    %v6937 = vadd.f32 %v6817, %v6936
    %v6938 = vpop.f32.mrf.mxu0
    %6939 = vmatprep.mubr.bf16.mxu0 0
    %6940 = vmatmul.mubr.bf16.gmra.mxu0 %v6769
    %v6941 = vpop.f32.mrf.mxu0
    %v6942 = vadd.f32 %v6817, %v6941
    %v6943 = vpop.f32.mrf.mxu0
    %v6944 = vpop.f32.mrf.mxu0
    %v6945 = vadd.f32 %v6817, %v6944
    %v6946 = vpop.f32.mrf.mxu0
    %6947 = vmatprep.mubr.bf16.mxu0 0
    %6948 = vmatmul.mubr.bf16.gmra.mxu0 %v6770
    %v6949 = vpop.f32.mrf.mxu0
    %v6950 = vadd.f32 %v6817, %v6949
    %v6951 = vpop.f32.mrf.mxu0
    %v6952 = vpop.f32.mrf.mxu0
    %v6953 = vadd.f32 %v6817, %v6952
    %v6954 = vpop.f32.mrf.mxu0
    %6955 = vmatprep.mubr.bf16.mxu0 0
    %6956 = vmatmul.mubr.bf16.gmra.mxu0 %v6771
    %v6957 = vpop.f32.mrf.mxu0
    %v6958 = vadd.f32 %v6817, %v6957
    %v6959 = vpop.f32.mrf.mxu0
    %v6960 = vpop.f32.mrf.mxu0
    %v6961 = vadd.f32 %v6817, %v6960
    %v6962 = vpop.f32.mrf.mxu0
    %6963 = vmatprep.mubr.bf16.mxu0 0
    %6964 = vmatmul.mubr.bf16.gmra.mxu0 %v6772
    %v6965 = vpop.f32.mrf.mxu0
    %v6966 = vadd.f32 %v6817, %v6965
    %v6967 = vpop.f32.mrf.mxu0
    %v6968 = vpop.f32.mrf.mxu0
    %v6969 = vadd.f32 %v6817, %v6968
    %v6970 = vpop.f32.mrf.mxu0
    %6971 = vmatprep.mubr.bf16.mxu0 0
    %6972 = vmatmul.mubr.bf16.gmra.mxu0 %v6773
    %v6973 = vpop.f32.mrf.mxu0
    %v6974 = vadd.f32 %v6817, %v6973
    %v6975 = vpop.f32.mrf.mxu0
    %v6976 = vpop.f32.mrf.mxu0
    %v6977 = vadd.f32 %v6817, %v6976
    %v6978 = vpop.f32.mrf.mxu0
    %6979 = vmatprep.mubr.bf16.mxu0 0
    %6980 = vmatmul.mubr.bf16.gmra.mxu0 %v6774
    %v6981 = vpop.f32.mrf.mxu0
    %v6982 = vadd.f32 %v6817, %v6981
    %v6983 = vpop.f32.mrf.mxu0
    %v6984 = vpop.f32.mrf.mxu0
    %v6985 = vadd.f32 %v6817, %v6984
    %v6986 = vpop.f32.mrf.mxu0
    %6987 = vmatprep.mubr.bf16.mxu0 0
    %6988 = vmatmul.mubr.bf16.gmra.mxu0 %v6775
    %v6989 = vpop.f32.mrf.mxu0
    %v6990 = vadd.f32 %v6817, %v6989
    %v6991 = vpop.f32.mrf.mxu0
    %v6992 = vpop.f32.mrf.mxu0
    %v6993 = vadd.f32 %v6817, %v6992
    %v6994 = vpop.f32.mrf.mxu0
    %6995 = vmatprep.mubr.bf16.mxu0 0
    %6996 = vmatmul.mubr.bf16.gmra.mxu0 %v6776
    %v6997 = vpop.f32.mrf.mxu0
    %v6998 = vadd.f32 %v6817, %v6997
    %v6999 = vpop.f32.mrf.mxu0
    %v7000 = vpop.f32.mrf.mxu0
    %v7001 = vadd.f32 %v6817, %v7000
    %v7002 = vpop.f32.mrf.mxu0
    %7003 = vmatprep.mubr.bf16.mxu0 0
    %7004 = vmatmul.mubr.bf16.gmra.mxu0 %v6777
    %v7005 = vpop.f32.mrf.mxu0
    %v7006 = vadd.f32 %v6817, %v7005
    %v7007 = vpop.f32.mrf.mxu0
    %v7008 = vpop.f32.mrf.mxu0
    %v7009 = vadd.f32 %v6817, %v7008
    %v7010 = vpop.f32.mrf.mxu0
    %7011 = vmatprep.mubr.bf16.mxu0 0
    %7012 = vmatmul.mubr.bf16.gmra.mxu0 %v6778
    %v7013 = vpop.f32.mrf.mxu0
    %v7014 = vadd.f32 %v6817, %v7013
    %v7015 = vpop.f32.mrf.mxu0
    %v7016 = vpop.f32.mrf.mxu0
    %v7017 = vadd.f32 %v6817, %v7016
    %v7018 = vpop.f32.mrf.mxu0
    %7019 = vmatprep.mubr.bf16.mxu0 0
    %7020 = vmatmul.mubr.bf16.gmra.mxu0 %v6779
    %v7021 = vpop.f32.mrf.mxu0
    %v7022 = vadd.f32 %v6817, %v7021
    %v7023 = vpop.f32.mrf.mxu0
    %v7024 = vpop.f32.mrf.mxu0
    %v7025 = vadd.f32 %v6817, %v7024
    %v7026 = vpop.f32.mrf.mxu0
    %7027 = vmatprep.mubr.bf16.mxu0 0
    %7028 = vmatmul.mubr.bf16.gmra.mxu0 %v6780
    %v7029 = vpop.f32.mrf.mxu0
    %v7030 = vadd.f32 %v6817, %v7029
    %v7031 = vpop.f32.mrf.mxu0
    %v7032 = vpop.f32.mrf.mxu0
    %v7033 = vadd.f32 %v6817, %v7032
    %v7034 = vpop.f32.mrf.mxu0
    %7035 = vmatprep.mubr.bf16.mxu0 0
    %7036 = vmatmul.mubr.bf16.gmra.mxu0 %v6781
    %v7037 = vpop.f32.mrf.mxu0
    %v7038 = vadd.f32 %v6817, %v7037
    %v7039 = vpop.f32.mrf.mxu0
    %v7040 = vpop.f32.mrf.mxu0
    %v7041 = vadd.f32 %v6817, %v7040
    %v7042 = vpop.f32.mrf.mxu0
    %7043 = vmatprep.mubr.bf16.mxu0 0
    %7044 = vmatmul.mubr.bf16.gmra.mxu0 %v6782
    %v7045 = vpop.f32.mrf.mxu0
    %v7046 = vadd.f32 %v6817, %v7045
    %v7047 = vpop.f32.mrf.mxu0
    %v7048 = vpop.f32.mrf.mxu0
    %v7049 = vadd.f32 %v6817, %v7048
    %v7050 = vpop.f32.mrf.mxu0
    %7051 = vmatprep.mubr.bf16.mxu0 0
    %7052 = vmatmul.mubr.bf16.gmra.mxu0 %v6783
    %v7053 = vpop.f32.mrf.mxu0
    %v7054 = vadd.f32 %v6817, %v7053
    %v7055 = vpop.f32.mrf.mxu0
    %v7056 = vpop.f32.mrf.mxu0
    %v7057 = vadd.f32 %v6817, %v7056
    %v7058 = vpop.f32.mrf.mxu0
    %7059 = vmatprep.mubr.bf16.mxu0 0
    %7060 = vmatmul.mubr.bf16.gmra.mxu0 %v6784
    %v7061 = vpop.f32.mrf.mxu0
    %v7062 = vadd.f32 %v6817, %v7061
    %v7063 = vpop.f32.mrf.mxu0
    %v7064 = vpop.f32.mrf.mxu0
    %v7065 = vadd.f32 %v6817, %v7064
    %v7066 = vpop.f32.mrf.mxu0
    %7067 = vmatprep.mubr.bf16.mxu0 0
    %7068 = vmatmul.mubr.bf16.gmra.mxu0 %v6785
    %v7069 = vpop.f32.mrf.mxu0
    %v7070 = vadd.f32 %v6817, %v7069
    %v7071 = vpop.f32.mrf.mxu0
    %v7072 = vpop.f32.mrf.mxu0
    %v7073 = vadd.f32 %v6817, %v7072
    %v7074 = vpop.f32.mrf.mxu0
    %7075 = vmatprep.mubr.bf16.mxu0 0
    %7076 = vmatmul.mubr.bf16.gmra.mxu0 %v6786
    %v7077 = vpop.f32.mrf.mxu0
    %v7078 = vadd.f32 %v6817, %v7077
    %v7079 = vpop.f32.mrf.mxu0
    %v7080 = vpop.f32.mrf.mxu0
    %v7081 = vadd.f32 %v6817, %v7080
    %v7082 = vpop.f32.mrf.mxu0
    %7083 = vmatprep.mubr.bf16.mxu0 0
    %7084 = vmatmul.mubr.bf16.gmra.mxu0 %v6787
    %v7085 = vpop.f32.mrf.mxu0
    %v7086 = vadd.f32 %v6817, %v7085
    %v7087 = vpop.f32.mrf.mxu0
    %v7088 = vpop.f32.mrf.mxu0
    %v7089 = vadd.f32 %v6817, %v7088
    %v7090 = vpop.f32.mrf.mxu0
    %7091 = vmatprep.mubr.bf16.mxu0 0
    %7092 = vmatmul.mubr.bf16.gmra.mxu0 %v6788
    %v7093 = vpop.f32.mrf.mxu0
    %v7094 = vadd.f32 %v6817, %v7093
    %v7095 = vpop.f32.mrf.mxu0
    %v7096 = vpop.f32.mrf.mxu0
    %v7097 = vadd.f32 %v6817, %v7096
    %v7098 = vpop.f32.mrf.mxu0
    %7099 = vmatprep.mubr.bf16.mxu0 0
    %7100 = vmatmul.mubr.bf16.gmra.mxu0 %v6789
    %v7101 = vpop.f32.mrf.mxu0
    %v7102 = vadd.f32 %v6817, %v7101
    %v7103 = vpop.f32.mrf.mxu0
    %v7104 = vpop.f32.mrf.mxu0
    %v7105 = vadd.f32 %v6817, %v7104
    %v7106 = vpop.f32.mrf.mxu0
    %7107 = vmatprep.mubr.bf16.mxu0 0
    %7108 = vmatmul.mubr.bf16.gmra.mxu0 %v6790
    %v7109 = vpop.f32.mrf.mxu0
    %v7110 = vadd.f32 %v6817, %v7109
    %v7111 = vpop.f32.mrf.mxu0
    %v7112 = vpop.f32.mrf.mxu0
    %v7113 = vadd.f32 %v6817, %v7112
    %v7114 = vpop.f32.mrf.mxu0
    %7115 = vmatprep.mubr.bf16.mxu0 0
    %7116 = vmatmul.mubr.bf16.gmra.mxu0 %v6791
    %v7117 = vpop.f32.mrf.mxu0
    %v7118 = vadd.f32 %v6817, %v7117
    %v7119 = vpop.f32.mrf.mxu0
    %v7120 = vpop.f32.mrf.mxu0
    %v7121 = vadd.f32 %v6817, %v7120
    %v7122 = vpop.f32.mrf.mxu0
    %7123 = vmatprep.mubr.bf16.mxu0 0
    %7124 = vmatmul.mubr.bf16.gmra.mxu0 %v6792
    %v7125 = vpop.f32.mrf.mxu0
    %v7126 = vadd.f32 %v6817, %v7125
    %v7127 = vpop.f32.mrf.mxu0
    %v7128 = vpop.f32.mrf.mxu0
    %v7129 = vadd.f32 %v6817, %v7128
    %v7130 = vpop.f32.mrf.mxu0
    %7131 = vmatprep.mubr.bf16.mxu0 0
    %7132 = vmatmul.mubr.bf16.gmra.mxu0 %v6793
    %v7133 = vpop.f32.mrf.mxu0
    %v7134 = vadd.f32 %v6817, %v7133
    %v7135 = vpop.f32.mrf.mxu0
    %v7136 = vpop.f32.mrf.mxu0
    %v7137 = vadd.f32 %v6817, %v7136
    %v7138 = vpop.f32.mrf.mxu0
    %7139 = vmatprep.mubr.bf16.mxu0 0
    %7140 = vmatmul.mubr.bf16.gmra.mxu0 %v6794
    %v7141 = vpop.f32.mrf.mxu0
    %v7142 = vadd.f32 %v6817, %v7141
    %v7143 = vpop.f32.mrf.mxu0
    %v7144 = vpop.f32.mrf.mxu0
    %v7145 = vadd.f32 %v6817, %v7144
    %v7146 = vpop.f32.mrf.mxu0
    %7147 = vmatprep.mubr.bf16.mxu0 0
    %7148 = vmatmul.mubr.bf16.gmra.mxu0 %v6795
    %v7149 = vpop.f32.mrf.mxu0
    %v7150 = vadd.f32 %v6817, %v7149
    %v7151 = vpop.f32.mrf.mxu0
    %v7152 = vpop.f32.mrf.mxu0
    %v7153 = vadd.f32 %v6817, %v7152
    %v7154 = vpop.f32.mrf.mxu0
    %7155 = vdwg.mxu0
    %v7156 = vpack.c.bf16 %v5778, %v5777
    %v7157 = vpack.c.bf16 %v5780, %v5779
    %v7158 = vpack.c.bf16 %v5782, %v5781
    %v7159 = vpack.c.bf16 %v5784, %v5783
    %v7160 = vpack.c.bf16 %v5786, %v5785
    %v7161 = vpack.c.bf16 %v5788, %v5787
    %v7162 = vpack.c.bf16 %v5790, %v5789
    %v7163 = vpack.c.bf16 %v5792, %v5791
    %v7164 = vpack.c.bf16 %v5794, %v5793
    %v7165 = vpack.c.bf16 %v5796, %v5795
    %v7166 = vpack.c.bf16 %v5798, %v5797
    %v7167 = vpack.c.bf16 %v5800, %v5799
    %v7168 = vpack.c.bf16 %v5802, %v5801
    %v7169 = vpack.c.bf16 %v5804, %v5803
    %v7170 = vpack.c.bf16 %v5806, %v5805
    %v7171 = vpack.c.bf16 %v5808, %v5807
    %v7172 = vpack.c.bf16 %v5810, %v5809
    %v7173 = vpack.c.bf16 %v5812, %v5811
    %v7174 = vpack.c.bf16 %v5814, %v5813
    %v7175 = vpack.c.bf16 %v5816, %v5815
    %v7176 = vpack.c.bf16 %v5818, %v5817
    %v7177 = vpack.c.bf16 %v5820, %v5819
    %v7178 = vpack.c.bf16 %v5822, %v5821
    %v7179 = vpack.c.bf16 %v5824, %v5823
    %v7180 = vpack.c.bf16 %v5826, %v5825
    %v7181 = vpack.c.bf16 %v5828, %v5827
    %v7182 = vpack.c.bf16 %v5830, %v5829
    %v7183 = vpack.c.bf16 %v5832, %v5831
    %v7184 = vpack.c.bf16 %v5834, %v5833
    %v7185 = vpack.c.bf16 %v5836, %v5835
    %v7186 = vpack.c.bf16 %v5838, %v5837
    %v7187 = vpack.c.bf16 %v5840, %v5839
    %v7188 = vld [vmem:[#allocation20] sm:$0xf]
    %v7189 = vld [vmem:[#allocation20 + $0x4] sm:$0xf]
    %v7190 = vld [vmem:[#allocation20 + $0x8] sm:$0xf]
    %v7191 = vld [vmem:[#allocation20 + $0xc] sm:$0xf]
    %v7192 = vld [vmem:[#allocation20 + $0x10] sm:$0xf]
    %v7193 = vld [vmem:[#allocation20 + $0x14] sm:$0xf]
    %v7194 = vld [vmem:[#allocation20 + $0x18] sm:$0xf]
    %v7195 = vld [vmem:[#allocation20 + $0x1c] sm:$0xf]
    %v7196 = vld [vmem:[#allocation20 + $0x20] sm:$0xf]
    %v7197 = vld [vmem:[#allocation20 + $0x24] sm:$0xf]
    %v7198 = vld [vmem:[#allocation20 + $0x28] sm:$0xf]
    %v7199 = vld [vmem:[#allocation20 + $0x2c] sm:$0xf]
    %v7200 = vld [vmem:[#allocation20 + $0x30] sm:$0xf]
    %v7201 = vld [vmem:[#allocation20 + $0x34] sm:$0xf]
    %v7202 = vld [vmem:[#allocation20 + $0x38] sm:$0xf]
    %v7203 = vld [vmem:[#allocation20 + $0x3c] sm:$0xf]
    %v7220 = vunpack.c.l.b16 %v7188
    %v7221 = vunpack.c.l.b16 %v7189
    %v7222 = vunpack.c.l.b16 %v7190
    %v7223 = vunpack.c.l.b16 %v7191
    %v7224 = vunpack.c.l.b16 %v7192
    %v7225 = vunpack.c.l.b16 %v7193
    %v7226 = vunpack.c.l.b16 %v7194
    %v7227 = vunpack.c.l.b16 %v7195
    %v7228 = vunpack.c.l.b16 %v7196
    %v7229 = vunpack.c.l.b16 %v7197
    %v7230 = vunpack.c.l.b16 %v7198
    %v7231 = vunpack.c.l.b16 %v7199
    %v7232 = vunpack.c.l.b16 %v7200
    %v7233 = vunpack.c.l.b16 %v7201
    %v7234 = vunpack.c.l.b16 %v7202
    %v7235 = vunpack.c.l.b16 %v7203
    %v7236 = vpack.c.b16 %v7221, %v7220
    %v7237 = vpack.c.b16 %v7223, %v7222
    %v7238 = vpack.c.b16 %v7225, %v7224
    %v7239 = vpack.c.b16 %v7227, %v7226
    %v7240 = vpack.c.b16 %v7229, %v7228
    %v7241 = vpack.c.b16 %v7231, %v7230
    %v7242 = vpack.c.b16 %v7233, %v7232
    %v7243 = vpack.c.b16 %v7235, %v7234
    %7252 = vmatprep.subr.bf16.mxu0 0
    %7253 = vmatpush1.bf16.msra.mxu0 %v7243
    %7254 = vmatprep.subr.bf16.mxu0 0
    %7255 = vmatpush1.bf16.msra.mxu0 %v7242
    %7256 = vmatprep.subr.bf16.mxu0 0
    %7257 = vmatpush1.bf16.msra.mxu0 %v7241
    %7258 = vmatprep.subr.bf16.mxu0 0
    %7259 = vmatpush1.bf16.msra.mxu0 %v7240
    %7260 = vmatprep.subr.bf16.mxu0 0
    %7261 = vmatpush1.bf16.msra.mxu0 %v7239
    %7262 = vmatprep.subr.bf16.mxu0 0
    %7263 = vmatpush1.bf16.msra.mxu0 %v7238
    %7264 = vmatprep.subr.bf16.mxu0 0
    %7265 = vmatpush1.bf16.msra.mxu0 %v7237
    %7266 = vmatprep.subr.bf16.mxu0 0
    %7267 = vmatpush1.bf16.msra.mxu0 %v7236
    %7268 = vmatprep.subr.bf16.mxu0 0
    %7269 = vmatpush2.bf16.msra.mxu0 0
    %7270 = vmatprep.subr.bf16.mxu0 0
    %7271 = vmatpush2.bf16.msra.mxu0 0
    %7272 = vmatprep.subr.bf16.mxu0 0
    %7273 = vmatpush2.bf16.msra.mxu0 0
    %7274 = vmatprep.subr.bf16.mxu0 0
    %7275 = vmatpush2.bf16.msra.mxu0 0
    %7276 = vmatprep.subr.bf16.mxu0 0
    %7277 = vmatpush2.bf16.msra.mxu0 0
    %7278 = vmatprep.subr.bf16.mxu0 0
    %7279 = vmatpush2.bf16.msra.mxu0 0
    %7280 = vmatprep.subr.bf16.mxu0 0
    %7281 = vmatpush2.bf16.msra.mxu0 0
    %7282 = vmatprep.subr.bf16.mxu0 0
    %7283 = vmatpush2.bf16.msra.mxu0 0
    %7284 = vmatprep.mubr.bf16.mxu0 0
    %7285 = vmatmul.mubr.bf16.gmra.mxu0 %v7156
    %v7286 = vpop.f32.mrf.mxu0
    %v7287 = vadd.f32 0.0, %v7286
    %v7288 = vpop.f32.mrf.mxu0
    %v7289 = vpop.f32.mrf.mxu0
    %v7290 = vadd.f32 0.0, %v7289
    %v7291 = vpop.f32.mrf.mxu0
    %7292 = vmatprep.mubr.bf16.mxu0 0
    %7293 = vmatmul.mubr.bf16.gmra.mxu0 %v7157
    %v7294 = vpop.f32.mrf.mxu0
    %v7295 = vadd.f32 0.0, %v7294
    %v7296 = vpop.f32.mrf.mxu0
    %v7297 = vpop.f32.mrf.mxu0
    %v7298 = vadd.f32 0.0, %v7297
    %v7299 = vpop.f32.mrf.mxu0
    %7300 = vmatprep.mubr.bf16.mxu0 0
    %7301 = vmatmul.mubr.bf16.gmra.mxu0 %v7158
    %v7302 = vpop.f32.mrf.mxu0
    %v7303 = vadd.f32 0.0, %v7302
    %v7304 = vpop.f32.mrf.mxu0
    %v7305 = vpop.f32.mrf.mxu0
    %v7306 = vadd.f32 0.0, %v7305
    %v7307 = vpop.f32.mrf.mxu0
    %7308 = vmatprep.mubr.bf16.mxu0 0
    %7309 = vmatmul.mubr.bf16.gmra.mxu0 %v7159
    %v7310 = vpop.f32.mrf.mxu0
    %v7311 = vadd.f32 0.0, %v7310
    %v7312 = vpop.f32.mrf.mxu0
    %v7313 = vpop.f32.mrf.mxu0
    %v7314 = vadd.f32 0.0, %v7313
    %v7315 = vpop.f32.mrf.mxu0
    %7316 = vmatprep.mubr.bf16.mxu0 0
    %7317 = vmatmul.mubr.bf16.gmra.mxu0 %v7160
    %v7318 = vpop.f32.mrf.mxu0
    %v7319 = vadd.f32 0.0, %v7318
    %v7320 = vpop.f32.mrf.mxu0
    %v7321 = vpop.f32.mrf.mxu0
    %v7322 = vadd.f32 0.0, %v7321
    %v7323 = vpop.f32.mrf.mxu0
    %7324 = vmatprep.mubr.bf16.mxu0 0
    %7325 = vmatmul.mubr.bf16.gmra.mxu0 %v7161
    %v7326 = vpop.f32.mrf.mxu0
    %v7327 = vadd.f32 0.0, %v7326
    %v7328 = vpop.f32.mrf.mxu0
    %v7329 = vpop.f32.mrf.mxu0
    %v7330 = vadd.f32 0.0, %v7329
    %v7331 = vpop.f32.mrf.mxu0
    %7332 = vmatprep.mubr.bf16.mxu0 0
    %7333 = vmatmul.mubr.bf16.gmra.mxu0 %v7162
    %v7334 = vpop.f32.mrf.mxu0
    %v7335 = vadd.f32 0.0, %v7334
    %v7336 = vpop.f32.mrf.mxu0
    %v7337 = vpop.f32.mrf.mxu0
    %v7338 = vadd.f32 0.0, %v7337
    %v7339 = vpop.f32.mrf.mxu0
    %7340 = vmatprep.mubr.bf16.mxu0 0
    %7341 = vmatmul.mubr.bf16.gmra.mxu0 %v7163
    %v7342 = vpop.f32.mrf.mxu0
    %v7343 = vadd.f32 0.0, %v7342
    %v7344 = vpop.f32.mrf.mxu0
    %v7345 = vpop.f32.mrf.mxu0
    %v7346 = vadd.f32 0.0, %v7345
    %v7347 = vpop.f32.mrf.mxu0
    %7348 = vmatprep.mubr.bf16.mxu0 0
    %7349 = vmatmul.mubr.bf16.gmra.mxu0 %v7164
    %v7350 = vpop.f32.mrf.mxu0
    %v7351 = vadd.f32 0.0, %v7350
    %v7352 = vpop.f32.mrf.mxu0
    %v7353 = vpop.f32.mrf.mxu0
    %v7354 = vadd.f32 0.0, %v7353
    %v7355 = vpop.f32.mrf.mxu0
    %7356 = vmatprep.mubr.bf16.mxu0 0
    %7357 = vmatmul.mubr.bf16.gmra.mxu0 %v7165
    %v7358 = vpop.f32.mrf.mxu0
    %v7359 = vadd.f32 0.0, %v7358
    %v7360 = vpop.f32.mrf.mxu0
    %v7361 = vpop.f32.mrf.mxu0
    %v7362 = vadd.f32 0.0, %v7361
    %v7363 = vpop.f32.mrf.mxu0
    %7364 = vmatprep.mubr.bf16.mxu0 0
    %7365 = vmatmul.mubr.bf16.gmra.mxu0 %v7166
    %v7366 = vpop.f32.mrf.mxu0
    %v7367 = vadd.f32 0.0, %v7366
    %v7368 = vpop.f32.mrf.mxu0
    %v7369 = vpop.f32.mrf.mxu0
    %v7370 = vadd.f32 0.0, %v7369
    %v7371 = vpop.f32.mrf.mxu0
    %7372 = vmatprep.mubr.bf16.mxu0 0
    %7373 = vmatmul.mubr.bf16.gmra.mxu0 %v7167
    %v7374 = vpop.f32.mrf.mxu0
    %v7375 = vadd.f32 0.0, %v7374
    %v7376 = vpop.f32.mrf.mxu0
    %v7377 = vpop.f32.mrf.mxu0
    %v7378 = vadd.f32 0.0, %v7377
    %v7379 = vpop.f32.mrf.mxu0
    %7380 = vmatprep.mubr.bf16.mxu0 0
    %7381 = vmatmul.mubr.bf16.gmra.mxu0 %v7168
    %v7382 = vpop.f32.mrf.mxu0
    %v7383 = vadd.f32 0.0, %v7382
    %v7384 = vpop.f32.mrf.mxu0
    %v7385 = vpop.f32.mrf.mxu0
    %v7386 = vadd.f32 0.0, %v7385
    %v7387 = vpop.f32.mrf.mxu0
    %7388 = vmatprep.mubr.bf16.mxu0 0
    %7389 = vmatmul.mubr.bf16.gmra.mxu0 %v7169
    %v7390 = vpop.f32.mrf.mxu0
    %v7391 = vadd.f32 0.0, %v7390
    %v7392 = vpop.f32.mrf.mxu0
    %v7393 = vpop.f32.mrf.mxu0
    %v7394 = vadd.f32 0.0, %v7393
    %v7395 = vpop.f32.mrf.mxu0
    %7396 = vmatprep.mubr.bf16.mxu0 0
    %7397 = vmatmul.mubr.bf16.gmra.mxu0 %v7170
    %v7398 = vpop.f32.mrf.mxu0
    %v7399 = vadd.f32 0.0, %v7398
    %v7400 = vpop.f32.mrf.mxu0
    %v7401 = vpop.f32.mrf.mxu0
    %v7402 = vadd.f32 0.0, %v7401
    %v7403 = vpop.f32.mrf.mxu0
    %7404 = vmatprep.mubr.bf16.mxu0 0
    %7405 = vmatmul.mubr.bf16.gmra.mxu0 %v7171
    %v7406 = vpop.f32.mrf.mxu0
    %v7407 = vadd.f32 0.0, %v7406
    %v7408 = vpop.f32.mrf.mxu0
    %v7409 = vpop.f32.mrf.mxu0
    %v7410 = vadd.f32 0.0, %v7409
    %v7411 = vpop.f32.mrf.mxu0
    %7412 = vmatprep.mubr.bf16.mxu0 0
    %7413 = vmatmul.mubr.bf16.gmra.mxu0 %v7172
    %v7414 = vpop.f32.mrf.mxu0
    %v7415 = vadd.f32 0.0, %v7414
    %v7416 = vpop.f32.mrf.mxu0
    %v7417 = vpop.f32.mrf.mxu0
    %v7418 = vadd.f32 0.0, %v7417
    %v7419 = vpop.f32.mrf.mxu0
    %7420 = vmatprep.mubr.bf16.mxu0 0
    %7421 = vmatmul.mubr.bf16.gmra.mxu0 %v7173
    %v7422 = vpop.f32.mrf.mxu0
    %v7423 = vadd.f32 0.0, %v7422
    %v7424 = vpop.f32.mrf.mxu0
    %v7425 = vpop.f32.mrf.mxu0
    %v7426 = vadd.f32 0.0, %v7425
    %v7427 = vpop.f32.mrf.mxu0
    %7428 = vmatprep.mubr.bf16.mxu0 0
    %7429 = vmatmul.mubr.bf16.gmra.mxu0 %v7174
    %v7430 = vpop.f32.mrf.mxu0
    %v7431 = vadd.f32 0.0, %v7430
    %v7432 = vpop.f32.mrf.mxu0
    %v7433 = vpop.f32.mrf.mxu0
    %v7434 = vadd.f32 0.0, %v7433
    %v7435 = vpop.f32.mrf.mxu0
    %7436 = vmatprep.mubr.bf16.mxu0 0
    %7437 = vmatmul.mubr.bf16.gmra.mxu0 %v7175
    %v7438 = vpop.f32.mrf.mxu0
    %v7439 = vadd.f32 0.0, %v7438
    %v7440 = vpop.f32.mrf.mxu0
    %v7441 = vpop.f32.mrf.mxu0
    %v7442 = vadd.f32 0.0, %v7441
    %v7443 = vpop.f32.mrf.mxu0
    %7444 = vmatprep.mubr.bf16.mxu0 0
    %7445 = vmatmul.mubr.bf16.gmra.mxu0 %v7176
    %v7446 = vpop.f32.mrf.mxu0
    %v7447 = vadd.f32 0.0, %v7446
    %v7448 = vpop.f32.mrf.mxu0
    %v7449 = vpop.f32.mrf.mxu0
    %v7450 = vadd.f32 0.0, %v7449
    %v7451 = vpop.f32.mrf.mxu0
    %7452 = vmatprep.mubr.bf16.mxu0 0
    %7453 = vmatmul.mubr.bf16.gmra.mxu0 %v7177
    %v7454 = vpop.f32.mrf.mxu0
    %v7455 = vadd.f32 0.0, %v7454
    %v7456 = vpop.f32.mrf.mxu0
    %v7457 = vpop.f32.mrf.mxu0
    %v7458 = vadd.f32 0.0, %v7457
    %v7459 = vpop.f32.mrf.mxu0
    %7460 = vmatprep.mubr.bf16.mxu0 0
    %7461 = vmatmul.mubr.bf16.gmra.mxu0 %v7178
    %v7462 = vpop.f32.mrf.mxu0
    %v7463 = vadd.f32 0.0, %v7462
    %v7464 = vpop.f32.mrf.mxu0
    %v7465 = vpop.f32.mrf.mxu0
    %v7466 = vadd.f32 0.0, %v7465
    %v7467 = vpop.f32.mrf.mxu0
    %7468 = vmatprep.mubr.bf16.mxu0 0
    %7469 = vmatmul.mubr.bf16.gmra.mxu0 %v7179
    %v7470 = vpop.f32.mrf.mxu0
    %v7471 = vadd.f32 0.0, %v7470
    %v7472 = vpop.f32.mrf.mxu0
    %v7473 = vpop.f32.mrf.mxu0
    %v7474 = vadd.f32 0.0, %v7473
    %v7475 = vpop.f32.mrf.mxu0
    %7476 = vmatprep.mubr.bf16.mxu0 0
    %7477 = vmatmul.mubr.bf16.gmra.mxu0 %v7180
    %v7478 = vpop.f32.mrf.mxu0
    %v7479 = vadd.f32 0.0, %v7478
    %v7480 = vpop.f32.mrf.mxu0
    %v7481 = vpop.f32.mrf.mxu0
    %v7482 = vadd.f32 0.0, %v7481
    %v7483 = vpop.f32.mrf.mxu0
    %7484 = vmatprep.mubr.bf16.mxu0 0
    %7485 = vmatmul.mubr.bf16.gmra.mxu0 %v7181
    %v7486 = vpop.f32.mrf.mxu0
    %v7487 = vadd.f32 0.0, %v7486
    %v7488 = vpop.f32.mrf.mxu0
    %v7489 = vpop.f32.mrf.mxu0
    %v7490 = vadd.f32 0.0, %v7489
    %v7491 = vpop.f32.mrf.mxu0
    %7492 = vmatprep.mubr.bf16.mxu0 0
    %7493 = vmatmul.mubr.bf16.gmra.mxu0 %v7182
    %v7494 = vpop.f32.mrf.mxu0
    %v7495 = vadd.f32 0.0, %v7494
    %v7496 = vpop.f32.mrf.mxu0
    %v7497 = vpop.f32.mrf.mxu0
    %v7498 = vadd.f32 0.0, %v7497
    %v7499 = vpop.f32.mrf.mxu0
    %7500 = vmatprep.mubr.bf16.mxu0 0
    %7501 = vmatmul.mubr.bf16.gmra.mxu0 %v7183
    %v7502 = vpop.f32.mrf.mxu0
    %v7503 = vadd.f32 0.0, %v7502
    %v7504 = vpop.f32.mrf.mxu0
    %v7505 = vpop.f32.mrf.mxu0
    %v7506 = vadd.f32 0.0, %v7505
    %v7507 = vpop.f32.mrf.mxu0
    %7508 = vmatprep.mubr.bf16.mxu0 0
    %7509 = vmatmul.mubr.bf16.gmra.mxu0 %v7184
    %v7510 = vpop.f32.mrf.mxu0
    %v7511 = vadd.f32 0.0, %v7510
    %v7512 = vpop.f32.mrf.mxu0
    %v7513 = vpop.f32.mrf.mxu0
    %v7514 = vadd.f32 0.0, %v7513
    %v7515 = vpop.f32.mrf.mxu0
    %7516 = vmatprep.mubr.bf16.mxu0 0
    %7517 = vmatmul.mubr.bf16.gmra.mxu0 %v7185
    %v7518 = vpop.f32.mrf.mxu0
    %v7519 = vadd.f32 0.0, %v7518
    %v7520 = vpop.f32.mrf.mxu0
    %v7521 = vpop.f32.mrf.mxu0
    %v7522 = vadd.f32 0.0, %v7521
    %v7523 = vpop.f32.mrf.mxu0
    %7524 = vmatprep.mubr.bf16.mxu0 0
    %7525 = vmatmul.mubr.bf16.gmra.mxu0 %v7186
    %v7526 = vpop.f32.mrf.mxu0
    %v7527 = vadd.f32 0.0, %v7526
    %v7528 = vpop.f32.mrf.mxu0
    %v7529 = vpop.f32.mrf.mxu0
    %v7530 = vadd.f32 0.0, %v7529
    %v7531 = vpop.f32.mrf.mxu0
    %7532 = vmatprep.mubr.bf16.mxu0 0
    %7533 = vmatmul.mubr.bf16.gmra.mxu0 %v7187
    %v7534 = vpop.f32.mrf.mxu0
    %v7535 = vadd.f32 0.0, %v7534
    %v7536 = vpop.f32.mrf.mxu0
    %v7537 = vpop.f32.mrf.mxu0
    %v7538 = vadd.f32 0.0, %v7537
    %v7539 = vpop.f32.mrf.mxu0
    %7540 = vdwg.mxu0
    %v7541 = vpack.c.bf16 %v5853, %v5853
    %v7542 = vpack.c.bf16 %v5866, %v5866
    %v7543 = vpack.c.bf16 %v5879, %v5879
    %v7544 = vpack.c.bf16 %v5892, %v5892
    %v7545 = vpack.c.bf16 %v5905, %v5905
    %v7546 = vpack.c.bf16 %v5918, %v5918
    %v7547 = vpack.c.bf16 %v5931, %v5931
    %v7548 = vpack.c.bf16 %v5944, %v5944
    %v7549 = vld [vmem:[#allocation22] sm:$0xf]
    %v7550 = vld [vmem:[#allocation22 + $0x4] sm:$0xf]
    %v7551 = vld [vmem:[#allocation22 + $0x8] sm:$0xf]
    %v7552 = vld [vmem:[#allocation22 + $0xc] sm:$0xf]
    %v7553 = vld [vmem:[#allocation22 + $0x10] sm:$0xf]
    %v7554 = vld [vmem:[#allocation22 + $0x14] sm:$0xf]
    %v7555 = vld [vmem:[#allocation22 + $0x18] sm:$0xf]
    %v7556 = vld [vmem:[#allocation22 + $0x1c] sm:$0xf]
    %v7557 = vld [vmem:[#allocation22 + $0x20] sm:$0xf]
    %v7558 = vld [vmem:[#allocation22 + $0x24] sm:$0xf]
    %v7559 = vld [vmem:[#allocation22 + $0x28] sm:$0xf]
    %v7560 = vld [vmem:[#allocation22 + $0x2c] sm:$0xf]
    %v7561 = vld [vmem:[#allocation22 + $0x30] sm:$0xf]
    %v7562 = vld [vmem:[#allocation22 + $0x34] sm:$0xf]
    %v7563 = vld [vmem:[#allocation22 + $0x38] sm:$0xf]
    %v7564 = vld [vmem:[#allocation22 + $0x3c] sm:$0xf]
    %v7573 = vunpack.c.l.b16 %v7541
    %v7574 = vunpack.c.l.b16 %v7542
    %v7575 = vunpack.c.l.b16 %v7543
    %v7576 = vunpack.c.l.b16 %v7544
    %v7577 = vunpack.c.l.b16 %v7545
    %v7578 = vunpack.c.l.b16 %v7546
    %v7579 = vunpack.c.l.b16 %v7547
    %v7580 = vunpack.c.l.b16 %v7548
    %v7581 = vsel %vm4387, %v7574, %v7573
    %v7582 = vsel %vm4389, %v7575, %v7581
    %v7583 = vsel %vm4391, %v7576, %v7582
    %v7584 = vsel %vm4393, %v7577, %v7583
    %v7585 = vsel %vm4395, %v7578, %v7584
    %v7586 = vsel %vm4397, %v7579, %v7585
    %v7587 = vsel %vm4399, %v7580, %v7586
    %v7588 = vpack.c.b16 %v7587, %v7587
    %v7606 = vunpack.c.l.b16 %v7549
    %v7607 = vunpack.c.l.b16 %v7550
    %v7608 = vunpack.c.l.b16 %v7551
    %v7609 = vunpack.c.l.b16 %v7552
    %v7610 = vunpack.c.l.b16 %v7553
    %v7611 = vunpack.c.l.b16 %v7554
    %v7612 = vunpack.c.l.b16 %v7555
    %v7613 = vunpack.c.l.b16 %v7556
    %v7614 = vunpack.c.l.b16 %v7557
    %v7615 = vunpack.c.l.b16 %v7558
    %v7616 = vunpack.c.l.b16 %v7559
    %v7617 = vunpack.c.l.b16 %v7560
    %v7618 = vunpack.c.l.b16 %v7561
    %v7619 = vunpack.c.l.b16 %v7562
    %v7620 = vunpack.c.l.b16 %v7563
    %v7621 = vunpack.c.l.b16 %v7564
    %v7622 = vpack.c.b16 %v7607, %v7606
    %v7623 = vpack.c.b16 %v7609, %v7608
    %v7624 = vpack.c.b16 %v7611, %v7610
    %v7625 = vpack.c.b16 %v7613, %v7612
    %v7626 = vpack.c.b16 %v7615, %v7614
    %v7627 = vpack.c.b16 %v7617, %v7616
    %v7628 = vpack.c.b16 %v7619, %v7618
    %v7629 = vpack.c.b16 %v7621, %v7620
    %7638 = vmatprep.subr.bf16.mxu0 0
    %7639 = vmatpush1.bf16.msra.mxu0 %v7629
    %7640 = vmatprep.subr.bf16.mxu0 0
    %7641 = vmatpush1.bf16.msra.mxu0 %v7628
    %7642 = vmatprep.subr.bf16.mxu0 0
    %7643 = vmatpush1.bf16.msra.mxu0 %v7627
    %7644 = vmatprep.subr.bf16.mxu0 0
    %7645 = vmatpush1.bf16.msra.mxu0 %v7626
    %7646 = vmatprep.subr.bf16.mxu0 0
    %7647 = vmatpush1.bf16.msra.mxu0 %v7625
    %7648 = vmatprep.subr.bf16.mxu0 0
    %7649 = vmatpush1.bf16.msra.mxu0 %v7624
    %7650 = vmatprep.subr.bf16.mxu0 0
    %7651 = vmatpush1.bf16.msra.mxu0 %v7623
    %7652 = vmatprep.subr.bf16.mxu0 0
    %7653 = vmatpush1.bf16.msra.mxu0 %v7622
    %7654 = vmatprep.subr.bf16.mxu0 0
    %7655 = vmatpush2.bf16.msra.mxu0 0
    %7656 = vmatprep.subr.bf16.mxu0 0
    %7657 = vmatpush2.bf16.msra.mxu0 0
    %7658 = vmatprep.subr.bf16.mxu0 0
    %7659 = vmatpush2.bf16.msra.mxu0 0
    %7660 = vmatprep.subr.bf16.mxu0 0
    %7661 = vmatpush2.bf16.msra.mxu0 0
    %7662 = vmatprep.subr.bf16.mxu0 0
    %7663 = vmatpush2.bf16.msra.mxu0 0
    %7664 = vmatprep.subr.bf16.mxu0 0
    %7665 = vmatpush2.bf16.msra.mxu0 0
    %7666 = vmatprep.subr.bf16.mxu0 0
    %7667 = vmatpush2.bf16.msra.mxu0 0
    %7668 = vmatprep.subr.bf16.mxu0 0
    %7669 = vmatpush2.bf16.msra.mxu0 0
    %7670 = vmatprep.mubr.bf16.mxu0 0
    %7671 = vmatmul.mubr.bf16.gmra.mxu0 %v7588
    %v7672 = vpop.f32.mrf.mxu0
    %v7673 = vadd.f32 0.0, %v7672
    %v7674 = vpop.f32.mrf.mxu0
    %v7675 = vpop.f32.mrf.mxu0
    %v7676 = vpop.f32.mrf.mxu0
    %7677 = vdwg.mxu0
    %v7679 = vcombine.high %v7673, %v7673
    %v7681 = vunpack.c.l.s4 1966171168
    %v7682 = vunpack.c.0.s8 %v7681
    %v7683 = vlaneseq
    %v7684 = vshrl.u32 %v7683, 7
    %v7685 = vsub.s32 %v7682, %v7684
    %v7686 = vrot.slane %v7673, %v7685
    %v7688 = vunpack.c.l.s4 1966171168
    %v7689 = vunpack.c.0.s8 %v7688
    %v7690 = vlaneseq
    %v7691 = vshrl.u32 %v7690, 7
    %v7692 = vsub.s32 %v7689, %v7691
    %v7693 = vrot.slane %v7679, %v7692
    %v7694 = vcombine.high %v7686, %v7686
    %v7695 = vcombine.high %v7693, %v7693
    %v7697 = vunpack.c.l.s4 1966171168
    %v7698 = vunpack.c.0.s8 %v7697
    %v7699 = vlaneseq
    %v7700 = vshrl.u32 %v7699, 7
    %v7701 = vsub.s32 %v7698, %v7700
    %v7702 = vrot.slane %v7686, %v7701
    %v7704 = vunpack.c.l.s4 1966171168
    %v7705 = vunpack.c.0.s8 %v7704
    %v7706 = vlaneseq
    %v7707 = vshrl.u32 %v7706, 7
    %v7708 = vsub.s32 %v7705, %v7707
    %v7709 = vrot.slane %v7693, %v7708
    %v7711 = vunpack.c.l.s4 1966171168
    %v7712 = vunpack.c.0.s8 %v7711
    %v7713 = vlaneseq
    %v7714 = vshrl.u32 %v7713, 7
    %v7715 = vsub.s32 %v7712, %v7714
    %v7716 = vrot.slane %v7694, %v7715
    %v7718 = vunpack.c.l.s4 1966171168
    %v7719 = vunpack.c.0.s8 %v7718
    %v7720 = vlaneseq
    %v7721 = vshrl.u32 %v7720, 7
    %v7722 = vsub.s32 %v7719, %v7721
    %v7723 = vrot.slane %v7695, %v7722
    %v7724 = vcombine.high %v7702, %v7702
    %v7725 = vcombine.high %v7709, %v7709
    %v7726 = vcombine.high %v7716, %v7716
    %v7727 = vcombine.high %v7723, %v7723
    %v7728 = vlaneseq
    %v7729 = vshrl.u32 %v7728, 7
    %v7730 = vsub.s32 0, %v7729
    %v7731 = vrot.slane %v7702, %v7730
    %v7732 = vlaneseq
    %v7733 = vshrl.u32 %v7732, 7
    %v7734 = vsub.s32 0, %v7733
    %v7735 = vrot.slane %v7716, %v7734
    %v7736 = vlaneseq
    %v7737 = vshrl.u32 %v7736, 7
    %v7738 = vsub.s32 0, %v7737
    %v7739 = vrot.slane %v7724, %v7738
    %v7740 = vlaneseq
    %v7741 = vshrl.u32 %v7740, 7
    %v7742 = vsub.s32 0, %v7741
    %v7743 = vrot.slane %v7726, %v7742
    %v7744 = vlaneseq
    %v7745 = vshrl.u32 %v7744, 7
    %v7746 = vsub.s32 0, %v7745
    %v7747 = vrot.slane %v7709, %v7746
    %v7748 = vlaneseq
    %v7749 = vshrl.u32 %v7748, 7
    %v7750 = vsub.s32 0, %v7749
    %v7751 = vrot.slane %v7723, %v7750
    %v7752 = vlaneseq
    %v7753 = vshrl.u32 %v7752, 7
    %v7754 = vsub.s32 0, %v7753
    %v7755 = vrot.slane %v7725, %v7754
    %v7756 = vlaneseq
    %v7757 = vshrl.u32 %v7756, 7
    %v7758 = vsub.s32 0, %v7757
    %v7759 = vrot.slane %v7727, %v7758
    %v7768 = vadd.f32 %v7287, %v7731
    %v7769 = vadd.f32 %v7290, %v7731
    %v7770 = vadd.f32 %v7295, %v7731
    %v7771 = vadd.f32 %v7298, %v7731
    %v7772 = vadd.f32 %v7303, %v7731
    %v7773 = vadd.f32 %v7306, %v7731
    %v7774 = vadd.f32 %v7311, %v7731
    %v7775 = vadd.f32 %v7314, %v7731
    %v7776 = vadd.f32 %v7319, %v7735
    %v7777 = vadd.f32 %v7322, %v7735
    %v7778 = vadd.f32 %v7327, %v7735
    %v7779 = vadd.f32 %v7330, %v7735
    %v7780 = vadd.f32 %v7335, %v7735
    %v7781 = vadd.f32 %v7338, %v7735
    %v7782 = vadd.f32 %v7343, %v7735
    %v7783 = vadd.f32 %v7346, %v7735
    %v7784 = vadd.f32 %v7351, %v7739
    %v7785 = vadd.f32 %v7354, %v7739
    %v7786 = vadd.f32 %v7359, %v7739
    %v7787 = vadd.f32 %v7362, %v7739
    %v7788 = vadd.f32 %v7367, %v7739
    %v7789 = vadd.f32 %v7370, %v7739
    %v7790 = vadd.f32 %v7375, %v7739
    %v7791 = vadd.f32 %v7378, %v7739
    %v7792 = vadd.f32 %v7383, %v7743
    %v7793 = vadd.f32 %v7386, %v7743
    %v7794 = vadd.f32 %v7391, %v7743
    %v7795 = vadd.f32 %v7394, %v7743
    %v7796 = vadd.f32 %v7399, %v7743
    %v7797 = vadd.f32 %v7402, %v7743
    %v7798 = vadd.f32 %v7407, %v7743
    %v7799 = vadd.f32 %v7410, %v7743
    %v7800 = vadd.f32 %v7415, %v7747
    %v7801 = vadd.f32 %v7418, %v7747
    %v7802 = vadd.f32 %v7423, %v7747
    %v7803 = vadd.f32 %v7426, %v7747
    %v7804 = vadd.f32 %v7431, %v7747
    %v7805 = vadd.f32 %v7434, %v7747
    %v7806 = vadd.f32 %v7439, %v7747
    %v7807 = vadd.f32 %v7442, %v7747
    %v7808 = vadd.f32 %v7447, %v7751
    %v7809 = vadd.f32 %v7450, %v7751
    %v7810 = vadd.f32 %v7455, %v7751
    %v7811 = vadd.f32 %v7458, %v7751
    %v7812 = vadd.f32 %v7463, %v7751
    %v7813 = vadd.f32 %v7466, %v7751
    %v7814 = vadd.f32 %v7471, %v7751
    %v7815 = vadd.f32 %v7474, %v7751
    %v7816 = vadd.f32 %v7479, %v7755
    %v7817 = vadd.f32 %v7482, %v7755
    %v7818 = vadd.f32 %v7487, %v7755
    %v7819 = vadd.f32 %v7490, %v7755
    %v7820 = vadd.f32 %v7495, %v7755
    %v7821 = vadd.f32 %v7498, %v7755
    %v7822 = vadd.f32 %v7503, %v7755
    %v7823 = vadd.f32 %v7506, %v7755
    %v7824 = vadd.f32 %v7511, %v7759
    %v7825 = vadd.f32 %v7514, %v7759
    %v7826 = vadd.f32 %v7519, %v7759
    %v7827 = vadd.f32 %v7522, %v7759
    %v7828 = vadd.f32 %v7527, %v7759
    %v7829 = vadd.f32 %v7530, %v7759
    %v7830 = vadd.f32 %v7535, %v7759
    %v7831 = vadd.f32 %v7538, %v7759
    %v7832 = vadd.f32 %v7768, %v6902
    %v7833 = vadd.f32 %v7769, %v6905
    %v7834 = vadd.f32 %v7770, %v6910
    %v7835 = vadd.f32 %v7771, %v6913
    %v7836 = vadd.f32 %v7772, %v6918
    %v7837 = vadd.f32 %v7773, %v6921
    %v7838 = vadd.f32 %v7774, %v6926
    %v7839 = vadd.f32 %v7775, %v6929
    %v7840 = vadd.f32 %v7776, %v6934
    %v7841 = vadd.f32 %v7777, %v6937
    %v7842 = vadd.f32 %v7778, %v6942
    %v7843 = vadd.f32 %v7779, %v6945
    %v7844 = vadd.f32 %v7780, %v6950
    %v7845 = vadd.f32 %v7781, %v6953
    %v7846 = vadd.f32 %v7782, %v6958
    %v7847 = vadd.f32 %v7783, %v6961
    %v7848 = vadd.f32 %v7784, %v6966
    %v7849 = vadd.f32 %v7785, %v6969
    %v7850 = vadd.f32 %v7786, %v6974
    %v7851 = vadd.f32 %v7787, %v6977
    %v7852 = vadd.f32 %v7788, %v6982
    %v7853 = vadd.f32 %v7789, %v6985
    %v7854 = vadd.f32 %v7790, %v6990
    %v7855 = vadd.f32 %v7791, %v6993
    %v7856 = vadd.f32 %v7792, %v6998
    %v7857 = vadd.f32 %v7793, %v7001
    %v7858 = vadd.f32 %v7794, %v7006
    %v7859 = vadd.f32 %v7795, %v7009
    %v7860 = vadd.f32 %v7796, %v7014
    %v7861 = vadd.f32 %v7797, %v7017
    %v7862 = vadd.f32 %v7798, %v7022
    %v7863 = vadd.f32 %v7799, %v7025
    %v7864 = vadd.f32 %v7800, %v7030
    %v7865 = vadd.f32 %v7801, %v7033
    %v7866 = vadd.f32 %v7802, %v7038
    %v7867 = vadd.f32 %v7803, %v7041
    %v7868 = vadd.f32 %v7804, %v7046
    %v7869 = vadd.f32 %v7805, %v7049
    %v7870 = vadd.f32 %v7806, %v7054
    %v7871 = vadd.f32 %v7807, %v7057
    %v7872 = vadd.f32 %v7808, %v7062
    %v7873 = vadd.f32 %v7809, %v7065
    %v7874 = vadd.f32 %v7810, %v7070
    %v7875 = vadd.f32 %v7811, %v7073
    %v7876 = vadd.f32 %v7812, %v7078
    %v7877 = vadd.f32 %v7813, %v7081
    %v7878 = vadd.f32 %v7814, %v7086
    %v7879 = vadd.f32 %v7815, %v7089
    %v7880 = vadd.f32 %v7816, %v7094
    %v7881 = vadd.f32 %v7817, %v7097
    %v7882 = vadd.f32 %v7818, %v7102
    %v7883 = vadd.f32 %v7819, %v7105
    %v7884 = vadd.f32 %v7820, %v7110
    %v7885 = vadd.f32 %v7821, %v7113
    %v7886 = vadd.f32 %v7822, %v7118
    %v7887 = vadd.f32 %v7823, %v7121
    %v7888 = vadd.f32 %v7824, %v7126
    %v7889 = vadd.f32 %v7825, %v7129
    %v7890 = vadd.f32 %v7826, %v7134
    %v7891 = vadd.f32 %v7827, %v7137
    %v7892 = vadd.f32 %v7828, %v7142
    %v7893 = vadd.f32 %v7829, %v7145
    %v7894 = vadd.f32 %v7830, %v7150
    %v7895 = vadd.f32 %v7831, %v7153
    %v7896 = vmax.f32 %v7832, %v7833
    %v7897 = vmax.f32 %v7896, %v7834
    %v7898 = vmax.f32 %v7897, %v7835
    %v7899 = vmax.f32 %v7898, %v7836
    %v7900 = vmax.f32 %v7899, %v7837
    %v7901 = vmax.f32 %v7900, %v7838
    %v7902 = vmax.f32 %v7901, %v7839
    %v7903 = vrot.slane %v7902, 4
    %v7904 = vmax.f32 %v7902, %v7903
    %v7905 = vrot.slane %v7904, 2
    %v7906 = vmax.f32 %v7904, %v7905
    %v7907 = vrot.slane %v7906, 1
    %v7908 = vmax.f32 %v7906, %v7907
    %v7909 = vmax.f32 %v7840, %v7841
    %v7910 = vmax.f32 %v7909, %v7842
    %v7911 = vmax.f32 %v7910, %v7843
    %v7912 = vmax.f32 %v7911, %v7844
    %v7913 = vmax.f32 %v7912, %v7845
    %v7914 = vmax.f32 %v7913, %v7846
    %v7915 = vmax.f32 %v7914, %v7847
    %v7916 = vrot.slane %v7915, 4
    %v7917 = vmax.f32 %v7915, %v7916
    %v7918 = vrot.slane %v7917, 2
    %v7919 = vmax.f32 %v7917, %v7918
    %v7920 = vrot.slane %v7919, 1
    %v7921 = vmax.f32 %v7919, %v7920
    %v7922 = vmax.f32 %v7848, %v7849
    %v7923 = vmax.f32 %v7922, %v7850
    %v7924 = vmax.f32 %v7923, %v7851
    %v7925 = vmax.f32 %v7924, %v7852
    %v7926 = vmax.f32 %v7925, %v7853
    %v7927 = vmax.f32 %v7926, %v7854
    %v7928 = vmax.f32 %v7927, %v7855
    %v7929 = vrot.slane %v7928, 4
    %v7930 = vmax.f32 %v7928, %v7929
    %v7931 = vrot.slane %v7930, 2
    %v7932 = vmax.f32 %v7930, %v7931
    %v7933 = vrot.slane %v7932, 1
    %v7934 = vmax.f32 %v7932, %v7933
    %v7935 = vmax.f32 %v7856, %v7857
    %v7936 = vmax.f32 %v7935, %v7858
    %v7937 = vmax.f32 %v7936, %v7859
    %v7938 = vmax.f32 %v7937, %v7860
    %v7939 = vmax.f32 %v7938, %v7861
    %v7940 = vmax.f32 %v7939, %v7862
    %v7941 = vmax.f32 %v7940, %v7863
    %v7942 = vrot.slane %v7941, 4
    %v7943 = vmax.f32 %v7941, %v7942
    %v7944 = vrot.slane %v7943, 2
    %v7945 = vmax.f32 %v7943, %v7944
    %v7946 = vrot.slane %v7945, 1
    %v7947 = vmax.f32 %v7945, %v7946
    %v7948 = vmax.f32 %v7864, %v7865
    %v7949 = vmax.f32 %v7948, %v7866
    %v7950 = vmax.f32 %v7949, %v7867
    %v7951 = vmax.f32 %v7950, %v7868
    %v7952 = vmax.f32 %v7951, %v7869
    %v7953 = vmax.f32 %v7952, %v7870
    %v7954 = vmax.f32 %v7953, %v7871
    %v7955 = vrot.slane %v7954, 4
    %v7956 = vmax.f32 %v7954, %v7955
    %v7957 = vrot.slane %v7956, 2
    %v7958 = vmax.f32 %v7956, %v7957
    %v7959 = vrot.slane %v7958, 1
    %v7960 = vmax.f32 %v7958, %v7959
    %v7961 = vmax.f32 %v7872, %v7873
    %v7962 = vmax.f32 %v7961, %v7874
    %v7963 = vmax.f32 %v7962, %v7875
    %v7964 = vmax.f32 %v7963, %v7876
    %v7965 = vmax.f32 %v7964, %v7877
    %v7966 = vmax.f32 %v7965, %v7878
    %v7967 = vmax.f32 %v7966, %v7879
    %v7968 = vrot.slane %v7967, 4
    %v7969 = vmax.f32 %v7967, %v7968
    %v7970 = vrot.slane %v7969, 2
    %v7971 = vmax.f32 %v7969, %v7970
    %v7972 = vrot.slane %v7971, 1
    %v7973 = vmax.f32 %v7971, %v7972
    %v7974 = vmax.f32 %v7880, %v7881
    %v7975 = vmax.f32 %v7974, %v7882
    %v7976 = vmax.f32 %v7975, %v7883
    %v7977 = vmax.f32 %v7976, %v7884
    %v7978 = vmax.f32 %v7977, %v7885
    %v7979 = vmax.f32 %v7978, %v7886
    %v7980 = vmax.f32 %v7979, %v7887
    %v7981 = vrot.slane %v7980, 4
    %v7982 = vmax.f32 %v7980, %v7981
    %v7983 = vrot.slane %v7982, 2
    %v7984 = vmax.f32 %v7982, %v7983
    %v7985 = vrot.slane %v7984, 1
    %v7986 = vmax.f32 %v7984, %v7985
    %v7987 = vmax.f32 %v7888, %v7889
    %v7988 = vmax.f32 %v7987, %v7890
    %v7989 = vmax.f32 %v7988, %v7891
    %v7990 = vmax.f32 %v7989, %v7892
    %v7991 = vmax.f32 %v7990, %v7893
    %v7992 = vmax.f32 %v7991, %v7894
    %v7993 = vmax.f32 %v7992, %v7895
    %v7994 = vrot.slane %v7993, 4
    %v7995 = vmax.f32 %v7993, %v7994
    %v7996 = vrot.slane %v7995, 2
    %v7997 = vmax.f32 %v7995, %v7996
    %v7998 = vrot.slane %v7997, 1
    %v7999 = vmax.f32 %v7997, %v7998
    %v8000 = vmax.f32 %v7832, 0.0
    %v8001 = vmax.f32 %v7833, 0.0
    %v8002 = vmax.f32 %v7834, 0.0
    %v8003 = vmax.f32 %v7835, 0.0
    %v8004 = vmax.f32 %v7836, 0.0
    %v8005 = vmax.f32 %v7837, 0.0
    %v8006 = vmax.f32 %v7838, 0.0
    %v8007 = vmax.f32 %v7839, 0.0
    %v8008 = vmax.f32 %v7840, 0.0
    %v8009 = vmax.f32 %v7841, 0.0
    %v8010 = vmax.f32 %v7842, 0.0
    %v8011 = vmax.f32 %v7843, 0.0
    %v8012 = vmax.f32 %v7844, 0.0
    %v8013 = vmax.f32 %v7845, 0.0
    %v8014 = vmax.f32 %v7846, 0.0
    %v8015 = vmax.f32 %v7847, 0.0
    %v8016 = vmax.f32 %v7848, 0.0
    %v8017 = vmax.f32 %v7849, 0.0
    %v8018 = vmax.f32 %v7850, 0.0
    %v8019 = vmax.f32 %v7851, 0.0
    %v8020 = vmax.f32 %v7852, 0.0
    %v8021 = vmax.f32 %v7853, 0.0
    %v8022 = vmax.f32 %v7854, 0.0
    %v8023 = vmax.f32 %v7855, 0.0
    %v8024 = vmax.f32 %v7856, 0.0
    %v8025 = vmax.f32 %v7857, 0.0
    %v8026 = vmax.f32 %v7858, 0.0
    %v8027 = vmax.f32 %v7859, 0.0
    %v8028 = vmax.f32 %v7860, 0.0
    %v8029 = vmax.f32 %v7861, 0.0
    %v8030 = vmax.f32 %v7862, 0.0
    %v8031 = vmax.f32 %v7863, 0.0
    %v8032 = vmax.f32 %v7864, 0.0
    %v8033 = vmax.f32 %v7865, 0.0
    %v8034 = vmax.f32 %v7866, 0.0
    %v8035 = vmax.f32 %v7867, 0.0
    %v8036 = vmax.f32 %v7868, 0.0
    %v8037 = vmax.f32 %v7869, 0.0
    %v8038 = vmax.f32 %v7870, 0.0
    %v8039 = vmax.f32 %v7871, 0.0
    %v8040 = vmax.f32 %v7872, 0.0
    %v8041 = vmax.f32 %v7873, 0.0
    %v8042 = vmax.f32 %v7874, 0.0
    %v8043 = vmax.f32 %v7875, 0.0
    %v8044 = vmax.f32 %v7876, 0.0
    %v8045 = vmax.f32 %v7877, 0.0
    %v8046 = vmax.f32 %v7878, 0.0
    %v8047 = vmax.f32 %v7879, 0.0
    %v8048 = vmax.f32 %v7880, 0.0
    %v8049 = vmax.f32 %v7881, 0.0
    %v8050 = vmax.f32 %v7882, 0.0
    %v8051 = vmax.f32 %v7883, 0.0
    %v8052 = vmax.f32 %v7884, 0.0
    %v8053 = vmax.f32 %v7885, 0.0
    %v8054 = vmax.f32 %v7886, 0.0
    %v8055 = vmax.f32 %v7887, 0.0
    %v8056 = vmax.f32 %v7888, 0.0
    %v8057 = vmax.f32 %v7889, 0.0
    %v8058 = vmax.f32 %v7890, 0.0
    %v8059 = vmax.f32 %v7891, 0.0
    %v8060 = vmax.f32 %v7892, 0.0
    %v8061 = vmax.f32 %v7893, 0.0
    %v8062 = vmax.f32 %v7894, 0.0
    %v8063 = vmax.f32 %v7895, 0.0
    %v8064 = vmax.f32 %v7908, 0.0
    %v8065 = vmax.f32 %v7921, 0.0
    %v8066 = vmax.f32 %v7934, 0.0
    %v8067 = vmax.f32 %v7947, 0.0
    %v8068 = vmax.f32 %v7960, 0.0
    %v8069 = vmax.f32 %v7973, 0.0
    %v8070 = vmax.f32 %v7986, 0.0
    %v8071 = vmax.f32 %v7999, 0.0
    %v8072 = vpack.c.bf16 %v8001, %v8000
    %v8073 = vpack.c.bf16 %v8003, %v8002
    %v8074 = vpack.c.bf16 %v8005, %v8004
    %v8075 = vpack.c.bf16 %v8007, %v8006
    %v8076 = vpack.c.bf16 %v8009, %v8008
    %v8077 = vpack.c.bf16 %v8011, %v8010
    %v8078 = vpack.c.bf16 %v8013, %v8012
    %v8079 = vpack.c.bf16 %v8015, %v8014
    %v8080 = vpack.c.bf16 %v8017, %v8016
    %v8081 = vpack.c.bf16 %v8019, %v8018
    %v8082 = vpack.c.bf16 %v8021, %v8020
    %v8083 = vpack.c.bf16 %v8023, %v8022
    %v8084 = vpack.c.bf16 %v8025, %v8024
    %v8085 = vpack.c.bf16 %v8027, %v8026
    %v8086 = vpack.c.bf16 %v8029, %v8028
    %v8087 = vpack.c.bf16 %v8031, %v8030
    %v8088 = vpack.c.bf16 %v8033, %v8032
    %v8089 = vpack.c.bf16 %v8035, %v8034
    %v8090 = vpack.c.bf16 %v8037, %v8036
    %v8091 = vpack.c.bf16 %v8039, %v8038
    %v8092 = vpack.c.bf16 %v8041, %v8040
    %v8093 = vpack.c.bf16 %v8043, %v8042
    %v8094 = vpack.c.bf16 %v8045, %v8044
    %v8095 = vpack.c.bf16 %v8047, %v8046
    %v8096 = vpack.c.bf16 %v8049, %v8048
    %v8097 = vpack.c.bf16 %v8051, %v8050
    %v8098 = vpack.c.bf16 %v8053, %v8052
    %v8099 = vpack.c.bf16 %v8055, %v8054
    %v8100 = vpack.c.bf16 %v8057, %v8056
    %v8101 = vpack.c.bf16 %v8059, %v8058
    %v8102 = vpack.c.bf16 %v8061, %v8060
    %v8103 = vpack.c.bf16 %v8063, %v8062
    %v8104 = vld [vmem:[#allocation23] sm:$0xf]
    %v8105 = vld [vmem:[#allocation23 + $0x4] sm:$0xf]
    %v8106 = vld [vmem:[#allocation23 + $0x8] sm:$0xf]
    %v8107 = vld [vmem:[#allocation23 + $0xc] sm:$0xf]
    %v8108 = vld [vmem:[#allocation23 + $0x10] sm:$0xf]
    %v8109 = vld [vmem:[#allocation23 + $0x14] sm:$0xf]
    %v8110 = vld [vmem:[#allocation23 + $0x18] sm:$0xf]
    %v8111 = vld [vmem:[#allocation23 + $0x1c] sm:$0xf]
    %v8112 = vld [vmem:[#allocation23 + $0x20] sm:$0xf]
    %v8113 = vld [vmem:[#allocation23 + $0x24] sm:$0xf]
    %v8114 = vld [vmem:[#allocation23 + $0x28] sm:$0xf]
    %v8115 = vld [vmem:[#allocation23 + $0x2c] sm:$0xf]
    %v8116 = vld [vmem:[#allocation23 + $0x30] sm:$0xf]
    %v8117 = vld [vmem:[#allocation23 + $0x34] sm:$0xf]
    %v8118 = vld [vmem:[#allocation23 + $0x38] sm:$0xf]
    %v8119 = vld [vmem:[#allocation23 + $0x3c] sm:$0xf]
    %v8120 = vld [vmem:[#allocation26] sm:$0x1]
    %v8122 = vlaneseq
    %v8123 = vshrl.u32 %v8122, 7
    %v8124 = vsub.s32 0, %v8123
    %v8125 = vrot.slane %v8120, %v8124
    %v8143 = vunpack.c.l.b16 %v8104
    %v8144 = vunpack.c.l.b16 %v8105
    %v8145 = vunpack.c.l.b16 %v8106
    %v8146 = vunpack.c.l.b16 %v8107
    %v8147 = vunpack.c.l.b16 %v8108
    %v8148 = vunpack.c.l.b16 %v8109
    %v8149 = vunpack.c.l.b16 %v8110
    %v8150 = vunpack.c.l.b16 %v8111
    %v8151 = vunpack.c.l.b16 %v8112
    %v8152 = vunpack.c.l.b16 %v8113
    %v8153 = vunpack.c.l.b16 %v8114
    %v8154 = vunpack.c.l.b16 %v8115
    %v8155 = vunpack.c.l.b16 %v8116
    %v8156 = vunpack.c.l.b16 %v8117
    %v8157 = vunpack.c.l.b16 %v8118
    %v8158 = vunpack.c.l.b16 %v8119
    %v8159 = vpack.c.b16 %v8144, %v8143
    %v8160 = vpack.c.b16 %v8146, %v8145
    %v8161 = vpack.c.b16 %v8148, %v8147
    %v8162 = vpack.c.b16 %v8150, %v8149
    %v8163 = vpack.c.b16 %v8152, %v8151
    %v8164 = vpack.c.b16 %v8154, %v8153
    %v8165 = vpack.c.b16 %v8156, %v8155
    %v8166 = vpack.c.b16 %v8158, %v8157
    %8175 = vmatprep.subr.bf16.mxu0 0
    %8176 = vmatpush1.bf16.msra.mxu0 %v8166
    %8177 = vmatprep.subr.bf16.mxu0 0
    %8178 = vmatpush1.bf16.msra.mxu0 %v8165
    %8179 = vmatprep.subr.bf16.mxu0 0
    %8180 = vmatpush1.bf16.msra.mxu0 %v8164
    %8181 = vmatprep.subr.bf16.mxu0 0
    %8182 = vmatpush1.bf16.msra.mxu0 %v8163
    %8183 = vmatprep.subr.bf16.mxu0 0
    %8184 = vmatpush1.bf16.msra.mxu0 %v8162
    %8185 = vmatprep.subr.bf16.mxu0 0
    %8186 = vmatpush1.bf16.msra.mxu0 %v8161
    %8187 = vmatprep.subr.bf16.mxu0 0
    %8188 = vmatpush1.bf16.msra.mxu0 %v8160
    %8189 = vmatprep.subr.bf16.mxu0 0
    %8190 = vmatpush1.bf16.msra.mxu0 %v8159
    %8191 = vmatprep.subr.bf16.mxu0 0
    %8192 = vmatpush2.bf16.msra.mxu0 0
    %8193 = vmatprep.subr.bf16.mxu0 0
    %8194 = vmatpush2.bf16.msra.mxu0 0
    %8195 = vmatprep.subr.bf16.mxu0 0
    %8196 = vmatpush2.bf16.msra.mxu0 0
    %8197 = vmatprep.subr.bf16.mxu0 0
    %8198 = vmatpush2.bf16.msra.mxu0 0
    %8199 = vmatprep.subr.bf16.mxu0 0
    %8200 = vmatpush2.bf16.msra.mxu0 0
    %8201 = vmatprep.subr.bf16.mxu0 0
    %8202 = vmatpush2.bf16.msra.mxu0 0
    %8203 = vmatprep.subr.bf16.mxu0 0
    %8204 = vmatpush2.bf16.msra.mxu0 0
    %8205 = vmatprep.subr.bf16.mxu0 0
    %8206 = vmatpush2.bf16.msra.mxu0 0
    %8207 = vmatprep.mubr.bf16.mxu0 0
    %8208 = vmatmul.mubr.bf16.gmra.mxu0 %v8072
    %v8209 = vpop.f32.mrf.mxu0
    %v8210 = vadd.f32 %v8125, %v8209
    %v8211 = vpop.f32.mrf.mxu0
    %v8212 = vpop.f32.mrf.mxu0
    %v8213 = vadd.f32 %v8125, %v8212
    %v8214 = vpop.f32.mrf.mxu0
    %8215 = vmatprep.mubr.bf16.mxu0 0
    %8216 = vmatmul.mubr.bf16.gmra.mxu0 %v8073
    %v8217 = vpop.f32.mrf.mxu0
    %v8218 = vadd.f32 %v8125, %v8217
    %v8219 = vpop.f32.mrf.mxu0
    %v8220 = vpop.f32.mrf.mxu0
    %v8221 = vadd.f32 %v8125, %v8220
    %v8222 = vpop.f32.mrf.mxu0
    %8223 = vmatprep.mubr.bf16.mxu0 0
    %8224 = vmatmul.mubr.bf16.gmra.mxu0 %v8074
    %v8225 = vpop.f32.mrf.mxu0
    %v8226 = vadd.f32 %v8125, %v8225
    %v8227 = vpop.f32.mrf.mxu0
    %v8228 = vpop.f32.mrf.mxu0
    %v8229 = vadd.f32 %v8125, %v8228
    %v8230 = vpop.f32.mrf.mxu0
    %8231 = vmatprep.mubr.bf16.mxu0 0
    %8232 = vmatmul.mubr.bf16.gmra.mxu0 %v8075
    %v8233 = vpop.f32.mrf.mxu0
    %v8234 = vadd.f32 %v8125, %v8233
    %v8235 = vpop.f32.mrf.mxu0
    %v8236 = vpop.f32.mrf.mxu0
    %v8237 = vadd.f32 %v8125, %v8236
    %v8238 = vpop.f32.mrf.mxu0
    %8239 = vmatprep.mubr.bf16.mxu0 0
    %8240 = vmatmul.mubr.bf16.gmra.mxu0 %v8076
    %v8241 = vpop.f32.mrf.mxu0
    %v8242 = vadd.f32 %v8125, %v8241
    %v8243 = vpop.f32.mrf.mxu0
    %v8244 = vpop.f32.mrf.mxu0
    %v8245 = vadd.f32 %v8125, %v8244
    %v8246 = vpop.f32.mrf.mxu0
    %8247 = vmatprep.mubr.bf16.mxu0 0
    %8248 = vmatmul.mubr.bf16.gmra.mxu0 %v8077
    %v8249 = vpop.f32.mrf.mxu0
    %v8250 = vadd.f32 %v8125, %v8249
    %v8251 = vpop.f32.mrf.mxu0
    %v8252 = vpop.f32.mrf.mxu0
    %v8253 = vadd.f32 %v8125, %v8252
    %v8254 = vpop.f32.mrf.mxu0
    %8255 = vmatprep.mubr.bf16.mxu0 0
    %8256 = vmatmul.mubr.bf16.gmra.mxu0 %v8078
    %v8257 = vpop.f32.mrf.mxu0
    %v8258 = vadd.f32 %v8125, %v8257
    %v8259 = vpop.f32.mrf.mxu0
    %v8260 = vpop.f32.mrf.mxu0
    %v8261 = vadd.f32 %v8125, %v8260
    %v8262 = vpop.f32.mrf.mxu0
    %8263 = vmatprep.mubr.bf16.mxu0 0
    %8264 = vmatmul.mubr.bf16.gmra.mxu0 %v8079
    %v8265 = vpop.f32.mrf.mxu0
    %v8266 = vadd.f32 %v8125, %v8265
    %v8267 = vpop.f32.mrf.mxu0
    %v8268 = vpop.f32.mrf.mxu0
    %v8269 = vadd.f32 %v8125, %v8268
    %v8270 = vpop.f32.mrf.mxu0
    %8271 = vmatprep.mubr.bf16.mxu0 0
    %8272 = vmatmul.mubr.bf16.gmra.mxu0 %v8080
    %v8273 = vpop.f32.mrf.mxu0
    %v8274 = vadd.f32 %v8125, %v8273
    %v8275 = vpop.f32.mrf.mxu0
    %v8276 = vpop.f32.mrf.mxu0
    %v8277 = vadd.f32 %v8125, %v8276
    %v8278 = vpop.f32.mrf.mxu0
    %8279 = vmatprep.mubr.bf16.mxu0 0
    %8280 = vmatmul.mubr.bf16.gmra.mxu0 %v8081
    %v8281 = vpop.f32.mrf.mxu0
    %v8282 = vadd.f32 %v8125, %v8281
    %v8283 = vpop.f32.mrf.mxu0
    %v8284 = vpop.f32.mrf.mxu0
    %v8285 = vadd.f32 %v8125, %v8284
    %v8286 = vpop.f32.mrf.mxu0
    %8287 = vmatprep.mubr.bf16.mxu0 0
    %8288 = vmatmul.mubr.bf16.gmra.mxu0 %v8082
    %v8289 = vpop.f32.mrf.mxu0
    %v8290 = vadd.f32 %v8125, %v8289
    %v8291 = vpop.f32.mrf.mxu0
    %v8292 = vpop.f32.mrf.mxu0
    %v8293 = vadd.f32 %v8125, %v8292
    %v8294 = vpop.f32.mrf.mxu0
    %8295 = vmatprep.mubr.bf16.mxu0 0
    %8296 = vmatmul.mubr.bf16.gmra.mxu0 %v8083
    %v8297 = vpop.f32.mrf.mxu0
    %v8298 = vadd.f32 %v8125, %v8297
    %v8299 = vpop.f32.mrf.mxu0
    %v8300 = vpop.f32.mrf.mxu0
    %v8301 = vadd.f32 %v8125, %v8300
    %v8302 = vpop.f32.mrf.mxu0
    %8303 = vmatprep.mubr.bf16.mxu0 0
    %8304 = vmatmul.mubr.bf16.gmra.mxu0 %v8084
    %v8305 = vpop.f32.mrf.mxu0
    %v8306 = vadd.f32 %v8125, %v8305
    %v8307 = vpop.f32.mrf.mxu0
    %v8308 = vpop.f32.mrf.mxu0
    %v8309 = vadd.f32 %v8125, %v8308
    %v8310 = vpop.f32.mrf.mxu0
    %8311 = vmatprep.mubr.bf16.mxu0 0
    %8312 = vmatmul.mubr.bf16.gmra.mxu0 %v8085
    %v8313 = vpop.f32.mrf.mxu0
    %v8314 = vadd.f32 %v8125, %v8313
    %v8315 = vpop.f32.mrf.mxu0
    %v8316 = vpop.f32.mrf.mxu0
    %v8317 = vadd.f32 %v8125, %v8316
    %v8318 = vpop.f32.mrf.mxu0
    %8319 = vmatprep.mubr.bf16.mxu0 0
    %8320 = vmatmul.mubr.bf16.gmra.mxu0 %v8086
    %v8321 = vpop.f32.mrf.mxu0
    %v8322 = vadd.f32 %v8125, %v8321
    %v8323 = vpop.f32.mrf.mxu0
    %v8324 = vpop.f32.mrf.mxu0
    %v8325 = vadd.f32 %v8125, %v8324
    %v8326 = vpop.f32.mrf.mxu0
    %8327 = vmatprep.mubr.bf16.mxu0 0
    %8328 = vmatmul.mubr.bf16.gmra.mxu0 %v8087
    %v8329 = vpop.f32.mrf.mxu0
    %v8330 = vadd.f32 %v8125, %v8329
    %v8331 = vpop.f32.mrf.mxu0
    %v8332 = vpop.f32.mrf.mxu0
    %v8333 = vadd.f32 %v8125, %v8332
    %v8334 = vpop.f32.mrf.mxu0
    %8335 = vmatprep.mubr.bf16.mxu0 0
    %8336 = vmatmul.mubr.bf16.gmra.mxu0 %v8088
    %v8337 = vpop.f32.mrf.mxu0
    %v8338 = vadd.f32 %v8125, %v8337
    %v8339 = vpop.f32.mrf.mxu0
    %v8340 = vpop.f32.mrf.mxu0
    %v8341 = vadd.f32 %v8125, %v8340
    %v8342 = vpop.f32.mrf.mxu0
    %8343 = vmatprep.mubr.bf16.mxu0 0
    %8344 = vmatmul.mubr.bf16.gmra.mxu0 %v8089
    %v8345 = vpop.f32.mrf.mxu0
    %v8346 = vadd.f32 %v8125, %v8345
    %v8347 = vpop.f32.mrf.mxu0
    %v8348 = vpop.f32.mrf.mxu0
    %v8349 = vadd.f32 %v8125, %v8348
    %v8350 = vpop.f32.mrf.mxu0
    %8351 = vmatprep.mubr.bf16.mxu0 0
    %8352 = vmatmul.mubr.bf16.gmra.mxu0 %v8090
    %v8353 = vpop.f32.mrf.mxu0
    %v8354 = vadd.f32 %v8125, %v8353
    %v8355 = vpop.f32.mrf.mxu0
    %v8356 = vpop.f32.mrf.mxu0
    %v8357 = vadd.f32 %v8125, %v8356
    %v8358 = vpop.f32.mrf.mxu0
    %8359 = vmatprep.mubr.bf16.mxu0 0
    %8360 = vmatmul.mubr.bf16.gmra.mxu0 %v8091
    %v8361 = vpop.f32.mrf.mxu0
    %v8362 = vadd.f32 %v8125, %v8361
    %v8363 = vpop.f32.mrf.mxu0
    %v8364 = vpop.f32.mrf.mxu0
    %v8365 = vadd.f32 %v8125, %v8364
    %v8366 = vpop.f32.mrf.mxu0
    %8367 = vmatprep.mubr.bf16.mxu0 0
    %8368 = vmatmul.mubr.bf16.gmra.mxu0 %v8092
    %v8369 = vpop.f32.mrf.mxu0
    %v8370 = vadd.f32 %v8125, %v8369
    %v8371 = vpop.f32.mrf.mxu0
    %v8372 = vpop.f32.mrf.mxu0
    %v8373 = vadd.f32 %v8125, %v8372
    %v8374 = vpop.f32.mrf.mxu0
    %8375 = vmatprep.mubr.bf16.mxu0 0
    %8376 = vmatmul.mubr.bf16.gmra.mxu0 %v8093
    %v8377 = vpop.f32.mrf.mxu0
    %v8378 = vadd.f32 %v8125, %v8377
    %v8379 = vpop.f32.mrf.mxu0
    %v8380 = vpop.f32.mrf.mxu0
    %v8381 = vadd.f32 %v8125, %v8380
    %v8382 = vpop.f32.mrf.mxu0
    %8383 = vmatprep.mubr.bf16.mxu0 0
    %8384 = vmatmul.mubr.bf16.gmra.mxu0 %v8094
    %v8385 = vpop.f32.mrf.mxu0
    %v8386 = vadd.f32 %v8125, %v8385
    %v8387 = vpop.f32.mrf.mxu0
    %v8388 = vpop.f32.mrf.mxu0
    %v8389 = vadd.f32 %v8125, %v8388
    %v8390 = vpop.f32.mrf.mxu0
    %8391 = vmatprep.mubr.bf16.mxu0 0
    %8392 = vmatmul.mubr.bf16.gmra.mxu0 %v8095
    %v8393 = vpop.f32.mrf.mxu0
    %v8394 = vadd.f32 %v8125, %v8393
    %v8395 = vpop.f32.mrf.mxu0
    %v8396 = vpop.f32.mrf.mxu0
    %v8397 = vadd.f32 %v8125, %v8396
    %v8398 = vpop.f32.mrf.mxu0
    %8399 = vmatprep.mubr.bf16.mxu0 0
    %8400 = vmatmul.mubr.bf16.gmra.mxu0 %v8096
    %v8401 = vpop.f32.mrf.mxu0
    %v8402 = vadd.f32 %v8125, %v8401
    %v8403 = vpop.f32.mrf.mxu0
    %v8404 = vpop.f32.mrf.mxu0
    %v8405 = vadd.f32 %v8125, %v8404
    %v8406 = vpop.f32.mrf.mxu0
    %8407 = vmatprep.mubr.bf16.mxu0 0
    %8408 = vmatmul.mubr.bf16.gmra.mxu0 %v8097
    %v8409 = vpop.f32.mrf.mxu0
    %v8410 = vadd.f32 %v8125, %v8409
    %v8411 = vpop.f32.mrf.mxu0
    %v8412 = vpop.f32.mrf.mxu0
    %v8413 = vadd.f32 %v8125, %v8412
    %v8414 = vpop.f32.mrf.mxu0
    %8415 = vmatprep.mubr.bf16.mxu0 0
    %8416 = vmatmul.mubr.bf16.gmra.mxu0 %v8098
    %v8417 = vpop.f32.mrf.mxu0
    %v8418 = vadd.f32 %v8125, %v8417
    %v8419 = vpop.f32.mrf.mxu0
    %v8420 = vpop.f32.mrf.mxu0
    %v8421 = vadd.f32 %v8125, %v8420
    %v8422 = vpop.f32.mrf.mxu0
    %8423 = vmatprep.mubr.bf16.mxu0 0
    %8424 = vmatmul.mubr.bf16.gmra.mxu0 %v8099
    %v8425 = vpop.f32.mrf.mxu0
    %v8426 = vadd.f32 %v8125, %v8425
    %v8427 = vpop.f32.mrf.mxu0
    %v8428 = vpop.f32.mrf.mxu0
    %v8429 = vadd.f32 %v8125, %v8428
    %v8430 = vpop.f32.mrf.mxu0
    %8431 = vmatprep.mubr.bf16.mxu0 0
    %8432 = vmatmul.mubr.bf16.gmra.mxu0 %v8100
    %v8433 = vpop.f32.mrf.mxu0
    %v8434 = vadd.f32 %v8125, %v8433
    %v8435 = vpop.f32.mrf.mxu0
    %v8436 = vpop.f32.mrf.mxu0
    %v8437 = vadd.f32 %v8125, %v8436
    %v8438 = vpop.f32.mrf.mxu0
    %8439 = vmatprep.mubr.bf16.mxu0 0
    %8440 = vmatmul.mubr.bf16.gmra.mxu0 %v8101
    %v8441 = vpop.f32.mrf.mxu0
    %v8442 = vadd.f32 %v8125, %v8441
    %v8443 = vpop.f32.mrf.mxu0
    %v8444 = vpop.f32.mrf.mxu0
    %v8445 = vadd.f32 %v8125, %v8444
    %v8446 = vpop.f32.mrf.mxu0
    %8447 = vmatprep.mubr.bf16.mxu0 0
    %8448 = vmatmul.mubr.bf16.gmra.mxu0 %v8102
    %v8449 = vpop.f32.mrf.mxu0
    %v8450 = vadd.f32 %v8125, %v8449
    %v8451 = vpop.f32.mrf.mxu0
    %v8452 = vpop.f32.mrf.mxu0
    %v8453 = vadd.f32 %v8125, %v8452
    %v8454 = vpop.f32.mrf.mxu0
    %8455 = vmatprep.mubr.bf16.mxu0 0
    %8456 = vmatmul.mubr.bf16.gmra.mxu0 %v8103
    %v8457 = vpop.f32.mrf.mxu0
    %v8458 = vadd.f32 %v8125, %v8457
    %v8459 = vpop.f32.mrf.mxu0
    %v8460 = vpop.f32.mrf.mxu0
    %v8461 = vadd.f32 %v8125, %v8460
    %v8462 = vpop.f32.mrf.mxu0
    %8463 = vdwg.mxu0
    %v8464 = vpack.c.bf16 %v8064, %v8064
    %v8465 = vpack.c.bf16 %v8065, %v8065
    %v8466 = vpack.c.bf16 %v8066, %v8066
    %v8467 = vpack.c.bf16 %v8067, %v8067
    %v8468 = vpack.c.bf16 %v8068, %v8068
    %v8469 = vpack.c.bf16 %v8069, %v8069
    %v8470 = vpack.c.bf16 %v8070, %v8070
    %v8471 = vpack.c.bf16 %v8071, %v8071
    %v8472 = vld [vmem:[#allocation25] sm:$0xf]
    %v8473 = vld [vmem:[#allocation25 + $0x4] sm:$0xf]
    %v8474 = vld [vmem:[#allocation25 + $0x8] sm:$0xf]
    %v8475 = vld [vmem:[#allocation25 + $0xc] sm:$0xf]
    %v8476 = vld [vmem:[#allocation25 + $0x10] sm:$0xf]
    %v8477 = vld [vmem:[#allocation25 + $0x14] sm:$0xf]
    %v8478 = vld [vmem:[#allocation25 + $0x18] sm:$0xf]
    %v8479 = vld [vmem:[#allocation25 + $0x1c] sm:$0xf]
    %v8480 = vld [vmem:[#allocation25 + $0x20] sm:$0xf]
    %v8481 = vld [vmem:[#allocation25 + $0x24] sm:$0xf]
    %v8482 = vld [vmem:[#allocation25 + $0x28] sm:$0xf]
    %v8483 = vld [vmem:[#allocation25 + $0x2c] sm:$0xf]
    %v8484 = vld [vmem:[#allocation25 + $0x30] sm:$0xf]
    %v8485 = vld [vmem:[#allocation25 + $0x34] sm:$0xf]
    %v8486 = vld [vmem:[#allocation25 + $0x38] sm:$0xf]
    %v8487 = vld [vmem:[#allocation25 + $0x3c] sm:$0xf]
    %v8496 = vunpack.c.l.b16 %v8464
    %v8497 = vunpack.c.l.b16 %v8465
    %v8498 = vunpack.c.l.b16 %v8466
    %v8499 = vunpack.c.l.b16 %v8467
    %v8500 = vunpack.c.l.b16 %v8468
    %v8501 = vunpack.c.l.b16 %v8469
    %v8502 = vunpack.c.l.b16 %v8470
    %v8503 = vunpack.c.l.b16 %v8471
    %v8504 = vsel %vm4387, %v8497, %v8496
    %v8505 = vsel %vm4389, %v8498, %v8504
    %v8506 = vsel %vm4391, %v8499, %v8505
    %v8507 = vsel %vm4393, %v8500, %v8506
    %v8508 = vsel %vm4395, %v8501, %v8507
    %v8509 = vsel %vm4397, %v8502, %v8508
    %v8510 = vsel %vm4399, %v8503, %v8509
    %v8511 = vpack.c.b16 %v8510, %v8510
    %v8529 = vunpack.c.l.b16 %v8472
    %v8530 = vunpack.c.l.b16 %v8473
    %v8531 = vunpack.c.l.b16 %v8474
    %v8532 = vunpack.c.l.b16 %v8475
    %v8533 = vunpack.c.l.b16 %v8476
    %v8534 = vunpack.c.l.b16 %v8477
    %v8535 = vunpack.c.l.b16 %v8478
    %v8536 = vunpack.c.l.b16 %v8479
    %v8537 = vunpack.c.l.b16 %v8480
    %v8538 = vunpack.c.l.b16 %v8481
    %v8539 = vunpack.c.l.b16 %v8482
    %v8540 = vunpack.c.l.b16 %v8483
    %v8541 = vunpack.c.l.b16 %v8484
    %v8542 = vunpack.c.l.b16 %v8485
    %v8543 = vunpack.c.l.b16 %v8486
    %v8544 = vunpack.c.l.b16 %v8487
    %v8545 = vpack.c.b16 %v8530, %v8529
    %v8546 = vpack.c.b16 %v8532, %v8531
    %v8547 = vpack.c.b16 %v8534, %v8533
    %v8548 = vpack.c.b16 %v8536, %v8535
    %v8549 = vpack.c.b16 %v8538, %v8537
    %v8550 = vpack.c.b16 %v8540, %v8539
    %v8551 = vpack.c.b16 %v8542, %v8541
    %v8552 = vpack.c.b16 %v8544, %v8543
    %8561 = vmatprep.subr.bf16.mxu0 0
    %8562 = vmatpush1.bf16.msra.mxu0 %v8552
    %8563 = vmatprep.subr.bf16.mxu0 0
    %8564 = vmatpush1.bf16.msra.mxu0 %v8551
    %8565 = vmatprep.subr.bf16.mxu0 0
    %8566 = vmatpush1.bf16.msra.mxu0 %v8550
    %8567 = vmatprep.subr.bf16.mxu0 0
    %8568 = vmatpush1.bf16.msra.mxu0 %v8549
    %8569 = vmatprep.subr.bf16.mxu0 0
    %8570 = vmatpush1.bf16.msra.mxu0 %v8548
    %8571 = vmatprep.subr.bf16.mxu0 0
    %8572 = vmatpush1.bf16.msra.mxu0 %v8547
    %8573 = vmatprep.subr.bf16.mxu0 0
    %8574 = vmatpush1.bf16.msra.mxu0 %v8546
    %8575 = vmatprep.subr.bf16.mxu0 0
    %8576 = vmatpush1.bf16.msra.mxu0 %v8545
    %8577 = vmatprep.subr.bf16.mxu0 0
    %8578 = vmatpush2.bf16.msra.mxu0 0
    %8579 = vmatprep.subr.bf16.mxu0 0
    %8580 = vmatpush2.bf16.msra.mxu0 0
    %8581 = vmatprep.subr.bf16.mxu0 0
    %8582 = vmatpush2.bf16.msra.mxu0 0
    %8583 = vmatprep.subr.bf16.mxu0 0
    %8584 = vmatpush2.bf16.msra.mxu0 0
    %8585 = vmatprep.subr.bf16.mxu0 0
    %8586 = vmatpush2.bf16.msra.mxu0 0
    %8587 = vmatprep.subr.bf16.mxu0 0
    %8588 = vmatpush2.bf16.msra.mxu0 0
    %8589 = vmatprep.subr.bf16.mxu0 0
    %8590 = vmatpush2.bf16.msra.mxu0 0
    %8591 = vmatprep.subr.bf16.mxu0 0
    %8592 = vmatpush2.bf16.msra.mxu0 0
    %8593 = vmatprep.mubr.bf16.mxu0 0
    %8594 = vmatmul.mubr.bf16.gmra.mxu0 %v8511
    %v8595 = vpop.f32.mrf.mxu0
    %v8596 = vadd.f32 0.0, %v8595
    %v8597 = vpop.f32.mrf.mxu0
    %v8598 = vpop.f32.mrf.mxu0
    %v8599 = vpop.f32.mrf.mxu0
    %8600 = vdwg.mxu0
    %v8602 = vcombine.high %v8596, %v8596
    %v8604 = vunpack.c.l.s4 1966171168
    %v8605 = vunpack.c.0.s8 %v8604
    %v8606 = vlaneseq
    %v8607 = vshrl.u32 %v8606, 7
    %v8608 = vsub.s32 %v8605, %v8607
    %v8609 = vrot.slane %v8596, %v8608
    %v8611 = vunpack.c.l.s4 1966171168
    %v8612 = vunpack.c.0.s8 %v8611
    %v8613 = vlaneseq
    %v8614 = vshrl.u32 %v8613, 7
    %v8615 = vsub.s32 %v8612, %v8614
    %v8616 = vrot.slane %v8602, %v8615
    %v8617 = vcombine.high %v8609, %v8609
    %v8618 = vcombine.high %v8616, %v8616
    %v8620 = vunpack.c.l.s4 1966171168
    %v8621 = vunpack.c.0.s8 %v8620
    %v8622 = vlaneseq
    %v8623 = vshrl.u32 %v8622, 7
    %v8624 = vsub.s32 %v8621, %v8623
    %v8625 = vrot.slane %v8609, %v8624
    %v8627 = vunpack.c.l.s4 1966171168
    %v8628 = vunpack.c.0.s8 %v8627
    %v8629 = vlaneseq
    %v8630 = vshrl.u32 %v8629, 7
    %v8631 = vsub.s32 %v8628, %v8630
    %v8632 = vrot.slane %v8616, %v8631
    %v8634 = vunpack.c.l.s4 1966171168
    %v8635 = vunpack.c.0.s8 %v8634
    %v8636 = vlaneseq
    %v8637 = vshrl.u32 %v8636, 7
    %v8638 = vsub.s32 %v8635, %v8637
    %v8639 = vrot.slane %v8617, %v8638
    %v8641 = vunpack.c.l.s4 1966171168
    %v8642 = vunpack.c.0.s8 %v8641
    %v8643 = vlaneseq
    %v8644 = vshrl.u32 %v8643, 7
    %v8645 = vsub.s32 %v8642, %v8644
    %v8646 = vrot.slane %v8618, %v8645
    %v8647 = vcombine.high %v8625, %v8625
    %v8648 = vcombine.high %v8632, %v8632
    %v8649 = vcombine.high %v8639, %v8639
    %v8650 = vcombine.high %v8646, %v8646
    %v8651 = vlaneseq
    %v8652 = vshrl.u32 %v8651, 7
    %v8653 = vsub.s32 0, %v8652
    %v8654 = vrot.slane %v8625, %v8653
    %v8655 = vlaneseq
    %v8656 = vshrl.u32 %v8655, 7
    %v8657 = vsub.s32 0, %v8656
    %v8658 = vrot.slane %v8639, %v8657
    %v8659 = vlaneseq
    %v8660 = vshrl.u32 %v8659, 7
    %v8661 = vsub.s32 0, %v8660
    %v8662 = vrot.slane %v8647, %v8661
    %v8663 = vlaneseq
    %v8664 = vshrl.u32 %v8663, 7
    %v8665 = vsub.s32 0, %v8664
    %v8666 = vrot.slane %v8649, %v8665
    %v8667 = vlaneseq
    %v8668 = vshrl.u32 %v8667, 7
    %v8669 = vsub.s32 0, %v8668
    %v8670 = vrot.slane %v8632, %v8669
    %v8671 = vlaneseq
    %v8672 = vshrl.u32 %v8671, 7
    %v8673 = vsub.s32 0, %v8672
    %v8674 = vrot.slane %v8646, %v8673
    %v8675 = vlaneseq
    %v8676 = vshrl.u32 %v8675, 7
    %v8677 = vsub.s32 0, %v8676
    %v8678 = vrot.slane %v8648, %v8677
    %v8679 = vlaneseq
    %v8680 = vshrl.u32 %v8679, 7
    %v8681 = vsub.s32 0, %v8680
    %v8682 = vrot.slane %v8650, %v8681
    %v8691 = vadd.f32 %v8210, %v8654
    %v8692 = vadd.f32 %v8213, %v8654
    %v8693 = vadd.f32 %v8218, %v8654
    %v8694 = vadd.f32 %v8221, %v8654
    %v8695 = vadd.f32 %v8226, %v8654
    %v8696 = vadd.f32 %v8229, %v8654
    %v8697 = vadd.f32 %v8234, %v8654
    %v8698 = vadd.f32 %v8237, %v8654
    %v8699 = vadd.f32 %v8242, %v8658
    %v8700 = vadd.f32 %v8245, %v8658
    %v8701 = vadd.f32 %v8250, %v8658
    %v8702 = vadd.f32 %v8253, %v8658
    %v8703 = vadd.f32 %v8258, %v8658
    %v8704 = vadd.f32 %v8261, %v8658
    %v8705 = vadd.f32 %v8266, %v8658
    %v8706 = vadd.f32 %v8269, %v8658
    %v8707 = vadd.f32 %v8274, %v8662
    %v8708 = vadd.f32 %v8277, %v8662
    %v8709 = vadd.f32 %v8282, %v8662
    %v8710 = vadd.f32 %v8285, %v8662
    %v8711 = vadd.f32 %v8290, %v8662
    %v8712 = vadd.f32 %v8293, %v8662
    %v8713 = vadd.f32 %v8298, %v8662
    %v8714 = vadd.f32 %v8301, %v8662
    %v8715 = vadd.f32 %v8306, %v8666
    %v8716 = vadd.f32 %v8309, %v8666
    %v8717 = vadd.f32 %v8314, %v8666
    %v8718 = vadd.f32 %v8317, %v8666
    %v8719 = vadd.f32 %v8322, %v8666
    %v8720 = vadd.f32 %v8325, %v8666
    %v8721 = vadd.f32 %v8330, %v8666
    %v8722 = vadd.f32 %v8333, %v8666
    %v8723 = vadd.f32 %v8338, %v8670
    %v8724 = vadd.f32 %v8341, %v8670
    %v8725 = vadd.f32 %v8346, %v8670
    %v8726 = vadd.f32 %v8349, %v8670
    %v8727 = vadd.f32 %v8354, %v8670
    %v8728 = vadd.f32 %v8357, %v8670
    %v8729 = vadd.f32 %v8362, %v8670
    %v8730 = vadd.f32 %v8365, %v8670
    %v8731 = vadd.f32 %v8370, %v8674
    %v8732 = vadd.f32 %v8373, %v8674
    %v8733 = vadd.f32 %v8378, %v8674
    %v8734 = vadd.f32 %v8381, %v8674
    %v8735 = vadd.f32 %v8386, %v8674
    %v8736 = vadd.f32 %v8389, %v8674
    %v8737 = vadd.f32 %v8394, %v8674
    %v8738 = vadd.f32 %v8397, %v8674
    %v8739 = vadd.f32 %v8402, %v8678
    %v8740 = vadd.f32 %v8405, %v8678
    %v8741 = vadd.f32 %v8410, %v8678
    %v8742 = vadd.f32 %v8413, %v8678
    %v8743 = vadd.f32 %v8418, %v8678
    %v8744 = vadd.f32 %v8421, %v8678
    %v8745 = vadd.f32 %v8426, %v8678
    %v8746 = vadd.f32 %v8429, %v8678
    %v8747 = vadd.f32 %v8434, %v8682
    %v8748 = vadd.f32 %v8437, %v8682
    %v8749 = vadd.f32 %v8442, %v8682
    %v8750 = vadd.f32 %v8445, %v8682
    %v8751 = vadd.f32 %v8450, %v8682
    %v8752 = vadd.f32 %v8453, %v8682
    %v8753 = vadd.f32 %v8458, %v8682
    %v8754 = vadd.f32 %v8461, %v8682
    %v8755 = vmax.f32 %v8691, 0.0
    %v8756 = vmax.f32 %v8692, 0.0
    %v8757 = vmax.f32 %v8693, 0.0
    %v8758 = vmax.f32 %v8694, 0.0
    %v8759 = vmax.f32 %v8695, 0.0
    %v8760 = vmax.f32 %v8696, 0.0
    %v8761 = vmax.f32 %v8697, 0.0
    %v8762 = vmax.f32 %v8698, 0.0
    %v8763 = vmax.f32 %v8699, 0.0
    %v8764 = vmax.f32 %v8700, 0.0
    %v8765 = vmax.f32 %v8701, 0.0
    %v8766 = vmax.f32 %v8702, 0.0
    %v8767 = vmax.f32 %v8703, 0.0
    %v8768 = vmax.f32 %v8704, 0.0
    %v8769 = vmax.f32 %v8705, 0.0
    %v8770 = vmax.f32 %v8706, 0.0
    %v8771 = vmax.f32 %v8707, 0.0
    %v8772 = vmax.f32 %v8708, 0.0
    %v8773 = vmax.f32 %v8709, 0.0
    %v8774 = vmax.f32 %v8710, 0.0
    %v8775 = vmax.f32 %v8711, 0.0
    %v8776 = vmax.f32 %v8712, 0.0
    %v8777 = vmax.f32 %v8713, 0.0
    %v8778 = vmax.f32 %v8714, 0.0
    %v8779 = vmax.f32 %v8715, 0.0
    %v8780 = vmax.f32 %v8716, 0.0
    %v8781 = vmax.f32 %v8717, 0.0
    %v8782 = vmax.f32 %v8718, 0.0
    %v8783 = vmax.f32 %v8719, 0.0
    %v8784 = vmax.f32 %v8720, 0.0
    %v8785 = vmax.f32 %v8721, 0.0
    %v8786 = vmax.f32 %v8722, 0.0
    %v8787 = vmax.f32 %v8723, 0.0
    %v8788 = vmax.f32 %v8724, 0.0
    %v8789 = vmax.f32 %v8725, 0.0
    %v8790 = vmax.f32 %v8726, 0.0
    %v8791 = vmax.f32 %v8727, 0.0
    %v8792 = vmax.f32 %v8728, 0.0
    %v8793 = vmax.f32 %v8729, 0.0
    %v8794 = vmax.f32 %v8730, 0.0
    %v8795 = vmax.f32 %v8731, 0.0
    %v8796 = vmax.f32 %v8732, 0.0
    %v8797 = vmax.f32 %v8733, 0.0
    %v8798 = vmax.f32 %v8734, 0.0
    %v8799 = vmax.f32 %v8735, 0.0
    %v8800 = vmax.f32 %v8736, 0.0
    %v8801 = vmax.f32 %v8737, 0.0
    %v8802 = vmax.f32 %v8738, 0.0
    %v8803 = vmax.f32 %v8739, 0.0
    %v8804 = vmax.f32 %v8740, 0.0
    %v8805 = vmax.f32 %v8741, 0.0
    %v8806 = vmax.f32 %v8742, 0.0
    %v8807 = vmax.f32 %v8743, 0.0
    %v8808 = vmax.f32 %v8744, 0.0
    %v8809 = vmax.f32 %v8745, 0.0
    %v8810 = vmax.f32 %v8746, 0.0
    %v8811 = vmax.f32 %v8747, 0.0
    %v8812 = vmax.f32 %v8748, 0.0
    %v8813 = vmax.f32 %v8749, 0.0
    %v8814 = vmax.f32 %v8750, 0.0
    %v8815 = vmax.f32 %v8751, 0.0
    %v8816 = vmax.f32 %v8752, 0.0
    %v8817 = vmax.f32 %v8753, 0.0
    %v8818 = vmax.f32 %v8754, 0.0
    %v8819 = vpack.c.bf16 %v8756, %v8755
    %v8820 = vpack.c.bf16 %v8758, %v8757
    %v8821 = vpack.c.bf16 %v8760, %v8759
    %v8822 = vpack.c.bf16 %v8762, %v8761
    %v8823 = vpack.c.bf16 %v8764, %v8763
    %v8824 = vpack.c.bf16 %v8766, %v8765
    %v8825 = vpack.c.bf16 %v8768, %v8767
    %v8826 = vpack.c.bf16 %v8770, %v8769
    %v8827 = vpack.c.bf16 %v8772, %v8771
    %v8828 = vpack.c.bf16 %v8774, %v8773
    %v8829 = vpack.c.bf16 %v8776, %v8775
    %v8830 = vpack.c.bf16 %v8778, %v8777
    %v8831 = vpack.c.bf16 %v8780, %v8779
    %v8832 = vpack.c.bf16 %v8782, %v8781
    %v8833 = vpack.c.bf16 %v8784, %v8783
    %v8834 = vpack.c.bf16 %v8786, %v8785
    %v8835 = vpack.c.bf16 %v8788, %v8787
    %v8836 = vpack.c.bf16 %v8790, %v8789
    %v8837 = vpack.c.bf16 %v8792, %v8791
    %v8838 = vpack.c.bf16 %v8794, %v8793
    %v8839 = vpack.c.bf16 %v8796, %v8795
    %v8840 = vpack.c.bf16 %v8798, %v8797
    %v8841 = vpack.c.bf16 %v8800, %v8799
    %v8842 = vpack.c.bf16 %v8802, %v8801
    %v8843 = vpack.c.bf16 %v8804, %v8803
    %v8844 = vpack.c.bf16 %v8806, %v8805
    %v8845 = vpack.c.bf16 %v8808, %v8807
    %v8846 = vpack.c.bf16 %v8810, %v8809
    %v8847 = vpack.c.bf16 %v8812, %v8811
    %v8848 = vpack.c.bf16 %v8814, %v8813
    %v8849 = vpack.c.bf16 %v8816, %v8815
    %v8850 = vpack.c.bf16 %v8818, %v8817
    %v8851 = vld [vmem:[#allocation28] sm:$0xf]
    %v8852 = vld [vmem:[#allocation28 + $0x4] sm:$0xf]
    %v8853 = vld [vmem:[#allocation28 + $0x8] sm:$0xf]
    %v8854 = vld [vmem:[#allocation28 + $0xc] sm:$0xf]
    %v8855 = vld [vmem:[#allocation28 + $0x10] sm:$0xf]
    %v8856 = vld [vmem:[#allocation28 + $0x14] sm:$0xf]
    %v8857 = vld [vmem:[#allocation28 + $0x18] sm:$0xf]
    %v8858 = vld [vmem:[#allocation28 + $0x1c] sm:$0xf]
    %v8859 = vld [vmem:[#allocation28 + $0x20] sm:$0xf]
    %v8860 = vld [vmem:[#allocation28 + $0x24] sm:$0xf]
    %v8861 = vld [vmem:[#allocation28 + $0x28] sm:$0xf]
    %v8862 = vld [vmem:[#allocation28 + $0x2c] sm:$0xf]
    %v8863 = vld [vmem:[#allocation28 + $0x30] sm:$0xf]
    %v8864 = vld [vmem:[#allocation28 + $0x34] sm:$0xf]
    %v8865 = vld [vmem:[#allocation28 + $0x38] sm:$0xf]
    %v8866 = vld [vmem:[#allocation28 + $0x3c] sm:$0xf]
    %v8867 = vld [vmem:[#allocation29] sm:$0x1]
    %v8869 = vlaneseq
    %v8870 = vshrl.u32 %v8869, 7
    %v8871 = vsub.s32 0, %v8870
    %v8872 = vrot.slane %v8867, %v8871
    %v8890 = vunpack.c.l.b16 %v8851
    %v8891 = vunpack.c.l.b16 %v8852
    %v8892 = vunpack.c.l.b16 %v8853
    %v8893 = vunpack.c.l.b16 %v8854
    %v8894 = vunpack.c.l.b16 %v8855
    %v8895 = vunpack.c.l.b16 %v8856
    %v8896 = vunpack.c.l.b16 %v8857
    %v8897 = vunpack.c.l.b16 %v8858
    %v8898 = vunpack.c.l.b16 %v8859
    %v8899 = vunpack.c.l.b16 %v8860
    %v8900 = vunpack.c.l.b16 %v8861
    %v8901 = vunpack.c.l.b16 %v8862
    %v8902 = vunpack.c.l.b16 %v8863
    %v8903 = vunpack.c.l.b16 %v8864
    %v8904 = vunpack.c.l.b16 %v8865
    %v8905 = vunpack.c.l.b16 %v8866
    %v8906 = vpack.c.b16 %v8891, %v8890
    %v8907 = vpack.c.b16 %v8893, %v8892
    %v8908 = vpack.c.b16 %v8895, %v8894
    %v8909 = vpack.c.b16 %v8897, %v8896
    %v8910 = vpack.c.b16 %v8899, %v8898
    %v8911 = vpack.c.b16 %v8901, %v8900
    %v8912 = vpack.c.b16 %v8903, %v8902
    %v8913 = vpack.c.b16 %v8905, %v8904
    %8922 = vmatprep.subr.bf16.mxu0 0
    %8923 = vmatpush1.bf16.msra.mxu0 %v8913
    %8924 = vmatprep.subr.bf16.mxu0 0
    %8925 = vmatpush1.bf16.msra.mxu0 %v8912
    %8926 = vmatprep.subr.bf16.mxu0 0
    %8927 = vmatpush1.bf16.msra.mxu0 %v8911
    %8928 = vmatprep.subr.bf16.mxu0 0
    %8929 = vmatpush1.bf16.msra.mxu0 %v8910
    %8930 = vmatprep.subr.bf16.mxu0 0
    %8931 = vmatpush1.bf16.msra.mxu0 %v8909
    %8932 = vmatprep.subr.bf16.mxu0 0
    %8933 = vmatpush1.bf16.msra.mxu0 %v8908
    %8934 = vmatprep.subr.bf16.mxu0 0
    %8935 = vmatpush1.bf16.msra.mxu0 %v8907
    %8936 = vmatprep.subr.bf16.mxu0 0
    %8937 = vmatpush1.bf16.msra.mxu0 %v8906
    %8938 = vmatprep.subr.bf16.mxu0 0
    %8939 = vmatpush2.bf16.msra.mxu0 0
    %8940 = vmatprep.subr.bf16.mxu0 0
    %8941 = vmatpush2.bf16.msra.mxu0 0
    %8942 = vmatprep.subr.bf16.mxu0 0
    %8943 = vmatpush2.bf16.msra.mxu0 0
    %8944 = vmatprep.subr.bf16.mxu0 0
    %8945 = vmatpush2.bf16.msra.mxu0 0
    %8946 = vmatprep.subr.bf16.mxu0 0
    %8947 = vmatpush2.bf16.msra.mxu0 0
    %8948 = vmatprep.subr.bf16.mxu0 0
    %8949 = vmatpush2.bf16.msra.mxu0 0
    %8950 = vmatprep.subr.bf16.mxu0 0
    %8951 = vmatpush2.bf16.msra.mxu0 0
    %8952 = vmatprep.subr.bf16.mxu0 0
    %8953 = vmatpush2.bf16.msra.mxu0 0
    %8954 = vmatprep.mubr.bf16.mxu0 0
    %8955 = vmatmul.mubr.bf16.gmra.mxu0 %v8819
    %v8956 = vpop.f32.mrf.mxu0
    %v8957 = vadd.f32 %v8872, %v8956
    %v8958 = vpop.f32.mrf.mxu0
    %v8959 = vpop.f32.mrf.mxu0
    %v8960 = vadd.f32 %v8872, %v8959
    %v8961 = vpop.f32.mrf.mxu0
    %8962 = vmatprep.mubr.bf16.mxu0 0
    %8963 = vmatmul.mubr.bf16.gmra.mxu0 %v8820
    %v8964 = vpop.f32.mrf.mxu0
    %v8965 = vadd.f32 %v8872, %v8964
    %v8966 = vpop.f32.mrf.mxu0
    %v8967 = vpop.f32.mrf.mxu0
    %v8968 = vadd.f32 %v8872, %v8967
    %v8969 = vpop.f32.mrf.mxu0
    %8970 = vmatprep.mubr.bf16.mxu0 0
    %8971 = vmatmul.mubr.bf16.gmra.mxu0 %v8821
    %v8972 = vpop.f32.mrf.mxu0
    %v8973 = vadd.f32 %v8872, %v8972
    %v8974 = vpop.f32.mrf.mxu0
    %v8975 = vpop.f32.mrf.mxu0
    %v8976 = vadd.f32 %v8872, %v8975
    %v8977 = vpop.f32.mrf.mxu0
    %8978 = vmatprep.mubr.bf16.mxu0 0
    %8979 = vmatmul.mubr.bf16.gmra.mxu0 %v8822
    %v8980 = vpop.f32.mrf.mxu0
    %v8981 = vadd.f32 %v8872, %v8980
    %v8982 = vpop.f32.mrf.mxu0
    %v8983 = vpop.f32.mrf.mxu0
    %v8984 = vadd.f32 %v8872, %v8983
    %v8985 = vpop.f32.mrf.mxu0
    %8986 = vmatprep.mubr.bf16.mxu0 0
    %8987 = vmatmul.mubr.bf16.gmra.mxu0 %v8823
    %v8988 = vpop.f32.mrf.mxu0
    %v8989 = vadd.f32 %v8872, %v8988
    %v8990 = vpop.f32.mrf.mxu0
    %v8991 = vpop.f32.mrf.mxu0
    %v8992 = vadd.f32 %v8872, %v8991
    %v8993 = vpop.f32.mrf.mxu0
    %8994 = vmatprep.mubr.bf16.mxu0 0
    %8995 = vmatmul.mubr.bf16.gmra.mxu0 %v8824
    %v8996 = vpop.f32.mrf.mxu0
    %v8997 = vadd.f32 %v8872, %v8996
    %v8998 = vpop.f32.mrf.mxu0
    %v8999 = vpop.f32.mrf.mxu0
    %v9000 = vadd.f32 %v8872, %v8999
    %v9001 = vpop.f32.mrf.mxu0
    %9002 = vmatprep.mubr.bf16.mxu0 0
    %9003 = vmatmul.mubr.bf16.gmra.mxu0 %v8825
    %v9004 = vpop.f32.mrf.mxu0
    %v9005 = vadd.f32 %v8872, %v9004
    %v9006 = vpop.f32.mrf.mxu0
    %v9007 = vpop.f32.mrf.mxu0
    %v9008 = vadd.f32 %v8872, %v9007
    %v9009 = vpop.f32.mrf.mxu0
    %9010 = vmatprep.mubr.bf16.mxu0 0
    %9011 = vmatmul.mubr.bf16.gmra.mxu0 %v8826
    %v9012 = vpop.f32.mrf.mxu0
    %v9013 = vadd.f32 %v8872, %v9012
    %v9014 = vpop.f32.mrf.mxu0
    %v9015 = vpop.f32.mrf.mxu0
    %v9016 = vadd.f32 %v8872, %v9015
    %v9017 = vpop.f32.mrf.mxu0
    %9018 = vmatprep.mubr.bf16.mxu0 0
    %9019 = vmatmul.mubr.bf16.gmra.mxu0 %v8827
    %v9020 = vpop.f32.mrf.mxu0
    %v9021 = vadd.f32 %v8872, %v9020
    %v9022 = vpop.f32.mrf.mxu0
    %v9023 = vpop.f32.mrf.mxu0
    %v9024 = vadd.f32 %v8872, %v9023
    %v9025 = vpop.f32.mrf.mxu0
    %9026 = vmatprep.mubr.bf16.mxu0 0
    %9027 = vmatmul.mubr.bf16.gmra.mxu0 %v8828
    %v9028 = vpop.f32.mrf.mxu0
    %v9029 = vadd.f32 %v8872, %v9028
    %v9030 = vpop.f32.mrf.mxu0
    %v9031 = vpop.f32.mrf.mxu0
    %v9032 = vadd.f32 %v8872, %v9031
    %v9033 = vpop.f32.mrf.mxu0
    %9034 = vmatprep.mubr.bf16.mxu0 0
    %9035 = vmatmul.mubr.bf16.gmra.mxu0 %v8829
    %v9036 = vpop.f32.mrf.mxu0
    %v9037 = vadd.f32 %v8872, %v9036
    %v9038 = vpop.f32.mrf.mxu0
    %v9039 = vpop.f32.mrf.mxu0
    %v9040 = vadd.f32 %v8872, %v9039
    %v9041 = vpop.f32.mrf.mxu0
    %9042 = vmatprep.mubr.bf16.mxu0 0
    %9043 = vmatmul.mubr.bf16.gmra.mxu0 %v8830
    %v9044 = vpop.f32.mrf.mxu0
    %v9045 = vadd.f32 %v8872, %v9044
    %v9046 = vpop.f32.mrf.mxu0
    %v9047 = vpop.f32.mrf.mxu0
    %v9048 = vadd.f32 %v8872, %v9047
    %v9049 = vpop.f32.mrf.mxu0
    %9050 = vmatprep.mubr.bf16.mxu0 0
    %9051 = vmatmul.mubr.bf16.gmra.mxu0 %v8831
    %v9052 = vpop.f32.mrf.mxu0
    %v9053 = vadd.f32 %v8872, %v9052
    %v9054 = vpop.f32.mrf.mxu0
    %v9055 = vpop.f32.mrf.mxu0
    %v9056 = vadd.f32 %v8872, %v9055
    %v9057 = vpop.f32.mrf.mxu0
    %9058 = vmatprep.mubr.bf16.mxu0 0
    %9059 = vmatmul.mubr.bf16.gmra.mxu0 %v8832
    %v9060 = vpop.f32.mrf.mxu0
    %v9061 = vadd.f32 %v8872, %v9060
    %v9062 = vpop.f32.mrf.mxu0
    %v9063 = vpop.f32.mrf.mxu0
    %v9064 = vadd.f32 %v8872, %v9063
    %v9065 = vpop.f32.mrf.mxu0
    %9066 = vmatprep.mubr.bf16.mxu0 0
    %9067 = vmatmul.mubr.bf16.gmra.mxu0 %v8833
    %v9068 = vpop.f32.mrf.mxu0
    %v9069 = vadd.f32 %v8872, %v9068
    %v9070 = vpop.f32.mrf.mxu0
    %v9071 = vpop.f32.mrf.mxu0
    %v9072 = vadd.f32 %v8872, %v9071
    %v9073 = vpop.f32.mrf.mxu0
    %9074 = vmatprep.mubr.bf16.mxu0 0
    %9075 = vmatmul.mubr.bf16.gmra.mxu0 %v8834
    %v9076 = vpop.f32.mrf.mxu0
    %v9077 = vadd.f32 %v8872, %v9076
    %v9078 = vpop.f32.mrf.mxu0
    %v9079 = vpop.f32.mrf.mxu0
    %v9080 = vadd.f32 %v8872, %v9079
    %v9081 = vpop.f32.mrf.mxu0
    %9082 = vmatprep.mubr.bf16.mxu0 0
    %9083 = vmatmul.mubr.bf16.gmra.mxu0 %v8835
    %v9084 = vpop.f32.mrf.mxu0
    %v9085 = vadd.f32 %v8872, %v9084
    %v9086 = vpop.f32.mrf.mxu0
    %v9087 = vpop.f32.mrf.mxu0
    %v9088 = vadd.f32 %v8872, %v9087
    %v9089 = vpop.f32.mrf.mxu0
    %9090 = vmatprep.mubr.bf16.mxu0 0
    %9091 = vmatmul.mubr.bf16.gmra.mxu0 %v8836
    %v9092 = vpop.f32.mrf.mxu0
    %v9093 = vadd.f32 %v8872, %v9092
    %v9094 = vpop.f32.mrf.mxu0
    %v9095 = vpop.f32.mrf.mxu0
    %v9096 = vadd.f32 %v8872, %v9095
    %v9097 = vpop.f32.mrf.mxu0
    %9098 = vmatprep.mubr.bf16.mxu0 0
    %9099 = vmatmul.mubr.bf16.gmra.mxu0 %v8837
    %v9100 = vpop.f32.mrf.mxu0
    %v9101 = vadd.f32 %v8872, %v9100
    %v9102 = vpop.f32.mrf.mxu0
    %v9103 = vpop.f32.mrf.mxu0
    %v9104 = vadd.f32 %v8872, %v9103
    %v9105 = vpop.f32.mrf.mxu0
    %9106 = vmatprep.mubr.bf16.mxu0 0
    %9107 = vmatmul.mubr.bf16.gmra.mxu0 %v8838
    %v9108 = vpop.f32.mrf.mxu0
    %v9109 = vadd.f32 %v8872, %v9108
    %v9110 = vpop.f32.mrf.mxu0
    %v9111 = vpop.f32.mrf.mxu0
    %v9112 = vadd.f32 %v8872, %v9111
    %v9113 = vpop.f32.mrf.mxu0
    %9114 = vmatprep.mubr.bf16.mxu0 0
    %9115 = vmatmul.mubr.bf16.gmra.mxu0 %v8839
    %v9116 = vpop.f32.mrf.mxu0
    %v9117 = vadd.f32 %v8872, %v9116
    %v9118 = vpop.f32.mrf.mxu0
    %v9119 = vpop.f32.mrf.mxu0
    %v9120 = vadd.f32 %v8872, %v9119
    %v9121 = vpop.f32.mrf.mxu0
    %9122 = vmatprep.mubr.bf16.mxu0 0
    %9123 = vmatmul.mubr.bf16.gmra.mxu0 %v8840
    %v9124 = vpop.f32.mrf.mxu0
    %v9125 = vadd.f32 %v8872, %v9124
    %v9126 = vpop.f32.mrf.mxu0
    %v9127 = vpop.f32.mrf.mxu0
    %v9128 = vadd.f32 %v8872, %v9127
    %v9129 = vpop.f32.mrf.mxu0
    %9130 = vmatprep.mubr.bf16.mxu0 0
    %9131 = vmatmul.mubr.bf16.gmra.mxu0 %v8841
    %v9132 = vpop.f32.mrf.mxu0
    %v9133 = vadd.f32 %v8872, %v9132
    %v9134 = vpop.f32.mrf.mxu0
    %v9135 = vpop.f32.mrf.mxu0
    %v9136 = vadd.f32 %v8872, %v9135
    %v9137 = vpop.f32.mrf.mxu0
    %9138 = vmatprep.mubr.bf16.mxu0 0
    %9139 = vmatmul.mubr.bf16.gmra.mxu0 %v8842
    %v9140 = vpop.f32.mrf.mxu0
    %v9141 = vadd.f32 %v8872, %v9140
    %v9142 = vpop.f32.mrf.mxu0
    %v9143 = vpop.f32.mrf.mxu0
    %v9144 = vadd.f32 %v8872, %v9143
    %v9145 = vpop.f32.mrf.mxu0
    %9146 = vmatprep.mubr.bf16.mxu0 0
    %9147 = vmatmul.mubr.bf16.gmra.mxu0 %v8843
    %v9148 = vpop.f32.mrf.mxu0
    %v9149 = vadd.f32 %v8872, %v9148
    %v9150 = vpop.f32.mrf.mxu0
    %v9151 = vpop.f32.mrf.mxu0
    %v9152 = vadd.f32 %v8872, %v9151
    %v9153 = vpop.f32.mrf.mxu0
    %9154 = vmatprep.mubr.bf16.mxu0 0
    %9155 = vmatmul.mubr.bf16.gmra.mxu0 %v8844
    %v9156 = vpop.f32.mrf.mxu0
    %v9157 = vadd.f32 %v8872, %v9156
    %v9158 = vpop.f32.mrf.mxu0
    %v9159 = vpop.f32.mrf.mxu0
    %v9160 = vadd.f32 %v8872, %v9159
    %v9161 = vpop.f32.mrf.mxu0
    %9162 = vmatprep.mubr.bf16.mxu0 0
    %9163 = vmatmul.mubr.bf16.gmra.mxu0 %v8845
    %v9164 = vpop.f32.mrf.mxu0
    %v9165 = vadd.f32 %v8872, %v9164
    %v9166 = vpop.f32.mrf.mxu0
    %v9167 = vpop.f32.mrf.mxu0
    %v9168 = vadd.f32 %v8872, %v9167
    %v9169 = vpop.f32.mrf.mxu0
    %9170 = vmatprep.mubr.bf16.mxu0 0
    %9171 = vmatmul.mubr.bf16.gmra.mxu0 %v8846
    %v9172 = vpop.f32.mrf.mxu0
    %v9173 = vadd.f32 %v8872, %v9172
    %v9174 = vpop.f32.mrf.mxu0
    %v9175 = vpop.f32.mrf.mxu0
    %v9176 = vadd.f32 %v8872, %v9175
    %v9177 = vpop.f32.mrf.mxu0
    %9178 = vmatprep.mubr.bf16.mxu0 0
    %9179 = vmatmul.mubr.bf16.gmra.mxu0 %v8847
    %v9180 = vpop.f32.mrf.mxu0
    %v9181 = vadd.f32 %v8872, %v9180
    %v9182 = vpop.f32.mrf.mxu0
    %v9183 = vpop.f32.mrf.mxu0
    %v9184 = vadd.f32 %v8872, %v9183
    %v9185 = vpop.f32.mrf.mxu0
    %9186 = vmatprep.mubr.bf16.mxu0 0
    %9187 = vmatmul.mubr.bf16.gmra.mxu0 %v8848
    %v9188 = vpop.f32.mrf.mxu0
    %v9189 = vadd.f32 %v8872, %v9188
    %v9190 = vpop.f32.mrf.mxu0
    %v9191 = vpop.f32.mrf.mxu0
    %v9192 = vadd.f32 %v8872, %v9191
    %v9193 = vpop.f32.mrf.mxu0
    %9194 = vmatprep.mubr.bf16.mxu0 0
    %9195 = vmatmul.mubr.bf16.gmra.mxu0 %v8849
    %v9196 = vpop.f32.mrf.mxu0
    %v9197 = vadd.f32 %v8872, %v9196
    %v9198 = vpop.f32.mrf.mxu0
    %v9199 = vpop.f32.mrf.mxu0
    %v9200 = vadd.f32 %v8872, %v9199
    %v9201 = vpop.f32.mrf.mxu0
    %9202 = vmatprep.mubr.bf16.mxu0 0
    %9203 = vmatmul.mubr.bf16.gmra.mxu0 %v8850
    %v9204 = vpop.f32.mrf.mxu0
    %v9205 = vadd.f32 %v8872, %v9204
    %v9206 = vpop.f32.mrf.mxu0
    %v9207 = vpop.f32.mrf.mxu0
    %v9208 = vadd.f32 %v8872, %v9207
    %v9209 = vpop.f32.mrf.mxu0
    %9210 = vdwg.mxu0
    %v9211 = vpack.c.bf16 %v7833, %v7832
    %v9212 = vpack.c.bf16 %v7835, %v7834
    %v9213 = vpack.c.bf16 %v7837, %v7836
    %v9214 = vpack.c.bf16 %v7839, %v7838
    %v9215 = vpack.c.bf16 %v7841, %v7840
    %v9216 = vpack.c.bf16 %v7843, %v7842
    %v9217 = vpack.c.bf16 %v7845, %v7844
    %v9218 = vpack.c.bf16 %v7847, %v7846
    %v9219 = vpack.c.bf16 %v7849, %v7848
    %v9220 = vpack.c.bf16 %v7851, %v7850
    %v9221 = vpack.c.bf16 %v7853, %v7852
    %v9222 = vpack.c.bf16 %v7855, %v7854
    %v9223 = vpack.c.bf16 %v7857, %v7856
    %v9224 = vpack.c.bf16 %v7859, %v7858
    %v9225 = vpack.c.bf16 %v7861, %v7860
    %v9226 = vpack.c.bf16 %v7863, %v7862
    %v9227 = vpack.c.bf16 %v7865, %v7864
    %v9228 = vpack.c.bf16 %v7867, %v7866
    %v9229 = vpack.c.bf16 %v7869, %v7868
    %v9230 = vpack.c.bf16 %v7871, %v7870
    %v9231 = vpack.c.bf16 %v7873, %v7872
    %v9232 = vpack.c.bf16 %v7875, %v7874
    %v9233 = vpack.c.bf16 %v7877, %v7876
    %v9234 = vpack.c.bf16 %v7879, %v7878
    %v9235 = vpack.c.bf16 %v7881, %v7880
    %v9236 = vpack.c.bf16 %v7883, %v7882
    %v9237 = vpack.c.bf16 %v7885, %v7884
    %v9238 = vpack.c.bf16 %v7887, %v7886
    %v9239 = vpack.c.bf16 %v7889, %v7888
    %v9240 = vpack.c.bf16 %v7891, %v7890
    %v9241 = vpack.c.bf16 %v7893, %v7892
    %v9242 = vpack.c.bf16 %v7895, %v7894
    %v9243 = vld [vmem:[#allocation31] sm:$0xf]
    %v9244 = vld [vmem:[#allocation31 + $0x4] sm:$0xf]
    %v9245 = vld [vmem:[#allocation31 + $0x8] sm:$0xf]
    %v9246 = vld [vmem:[#allocation31 + $0xc] sm:$0xf]
    %v9247 = vld [vmem:[#allocation31 + $0x10] sm:$0xf]
    %v9248 = vld [vmem:[#allocation31 + $0x14] sm:$0xf]
    %v9249 = vld [vmem:[#allocation31 + $0x18] sm:$0xf]
    %v9250 = vld [vmem:[#allocation31 + $0x1c] sm:$0xf]
    %v9251 = vld [vmem:[#allocation31 + $0x20] sm:$0xf]
    %v9252 = vld [vmem:[#allocation31 + $0x24] sm:$0xf]
    %v9253 = vld [vmem:[#allocation31 + $0x28] sm:$0xf]
    %v9254 = vld [vmem:[#allocation31 + $0x2c] sm:$0xf]
    %v9255 = vld [vmem:[#allocation31 + $0x30] sm:$0xf]
    %v9256 = vld [vmem:[#allocation31 + $0x34] sm:$0xf]
    %v9257 = vld [vmem:[#allocation31 + $0x38] sm:$0xf]
    %v9258 = vld [vmem:[#allocation31 + $0x3c] sm:$0xf]
    %v9275 = vunpack.c.l.b16 %v9243
    %v9276 = vunpack.c.l.b16 %v9244
    %v9277 = vunpack.c.l.b16 %v9245
    %v9278 = vunpack.c.l.b16 %v9246
    %v9279 = vunpack.c.l.b16 %v9247
    %v9280 = vunpack.c.l.b16 %v9248
    %v9281 = vunpack.c.l.b16 %v9249
    %v9282 = vunpack.c.l.b16 %v9250
    %v9283 = vunpack.c.l.b16 %v9251
    %v9284 = vunpack.c.l.b16 %v9252
    %v9285 = vunpack.c.l.b16 %v9253
    %v9286 = vunpack.c.l.b16 %v9254
    %v9287 = vunpack.c.l.b16 %v9255
    %v9288 = vunpack.c.l.b16 %v9256
    %v9289 = vunpack.c.l.b16 %v9257
    %v9290 = vunpack.c.l.b16 %v9258
    %v9291 = vpack.c.b16 %v9276, %v9275
    %v9292 = vpack.c.b16 %v9278, %v9277
    %v9293 = vpack.c.b16 %v9280, %v9279
    %v9294 = vpack.c.b16 %v9282, %v9281
    %v9295 = vpack.c.b16 %v9284, %v9283
    %v9296 = vpack.c.b16 %v9286, %v9285
    %v9297 = vpack.c.b16 %v9288, %v9287
    %v9298 = vpack.c.b16 %v9290, %v9289
    %9307 = vmatprep.subr.bf16.mxu0 0
    %9308 = vmatpush1.bf16.msra.mxu0 %v9298
    %9309 = vmatprep.subr.bf16.mxu0 0
    %9310 = vmatpush1.bf16.msra.mxu0 %v9297
    %9311 = vmatprep.subr.bf16.mxu0 0
    %9312 = vmatpush1.bf16.msra.mxu0 %v9296
    %9313 = vmatprep.subr.bf16.mxu0 0
    %9314 = vmatpush1.bf16.msra.mxu0 %v9295
    %9315 = vmatprep.subr.bf16.mxu0 0
    %9316 = vmatpush1.bf16.msra.mxu0 %v9294
    %9317 = vmatprep.subr.bf16.mxu0 0
    %9318 = vmatpush1.bf16.msra.mxu0 %v9293
    %9319 = vmatprep.subr.bf16.mxu0 0
    %9320 = vmatpush1.bf16.msra.mxu0 %v9292
    %9321 = vmatprep.subr.bf16.mxu0 0
    %9322 = vmatpush1.bf16.msra.mxu0 %v9291
    %9323 = vmatprep.subr.bf16.mxu0 0
    %9324 = vmatpush2.bf16.msra.mxu0 0
    %9325 = vmatprep.subr.bf16.mxu0 0
    %9326 = vmatpush2.bf16.msra.mxu0 0
    %9327 = vmatprep.subr.bf16.mxu0 0
    %9328 = vmatpush2.bf16.msra.mxu0 0
    %9329 = vmatprep.subr.bf16.mxu0 0
    %9330 = vmatpush2.bf16.msra.mxu0 0
    %9331 = vmatprep.subr.bf16.mxu0 0
    %9332 = vmatpush2.bf16.msra.mxu0 0
    %9333 = vmatprep.subr.bf16.mxu0 0
    %9334 = vmatpush2.bf16.msra.mxu0 0
    %9335 = vmatprep.subr.bf16.mxu0 0
    %9336 = vmatpush2.bf16.msra.mxu0 0
    %9337 = vmatprep.subr.bf16.mxu0 0
    %9338 = vmatpush2.bf16.msra.mxu0 0
    %9339 = vmatprep.mubr.bf16.mxu0 0
    %9340 = vmatmul.mubr.bf16.gmra.mxu0 %v9211
    %v9341 = vpop.f32.mrf.mxu0
    %v9342 = vadd.f32 0.0, %v9341
    %v9343 = vpop.f32.mrf.mxu0
    %v9344 = vpop.f32.mrf.mxu0
    %v9345 = vadd.f32 0.0, %v9344
    %v9346 = vpop.f32.mrf.mxu0
    %9347 = vmatprep.mubr.bf16.mxu0 0
    %9348 = vmatmul.mubr.bf16.gmra.mxu0 %v9212
    %v9349 = vpop.f32.mrf.mxu0
    %v9350 = vadd.f32 0.0, %v9349
    %v9351 = vpop.f32.mrf.mxu0
    %v9352 = vpop.f32.mrf.mxu0
    %v9353 = vadd.f32 0.0, %v9352
    %v9354 = vpop.f32.mrf.mxu0
    %9355 = vmatprep.mubr.bf16.mxu0 0
    %9356 = vmatmul.mubr.bf16.gmra.mxu0 %v9213
    %v9357 = vpop.f32.mrf.mxu0
    %v9358 = vadd.f32 0.0, %v9357
    %v9359 = vpop.f32.mrf.mxu0
    %v9360 = vpop.f32.mrf.mxu0
    %v9361 = vadd.f32 0.0, %v9360
    %v9362 = vpop.f32.mrf.mxu0
    %9363 = vmatprep.mubr.bf16.mxu0 0
    %9364 = vmatmul.mubr.bf16.gmra.mxu0 %v9214
    %v9365 = vpop.f32.mrf.mxu0
    %v9366 = vadd.f32 0.0, %v9365
    %v9367 = vpop.f32.mrf.mxu0
    %v9368 = vpop.f32.mrf.mxu0
    %v9369 = vadd.f32 0.0, %v9368
    %v9370 = vpop.f32.mrf.mxu0
    %9371 = vmatprep.mubr.bf16.mxu0 0
    %9372 = vmatmul.mubr.bf16.gmra.mxu0 %v9215
    %v9373 = vpop.f32.mrf.mxu0
    %v9374 = vadd.f32 0.0, %v9373
    %v9375 = vpop.f32.mrf.mxu0
    %v9376 = vpop.f32.mrf.mxu0
    %v9377 = vadd.f32 0.0, %v9376
    %v9378 = vpop.f32.mrf.mxu0
    %9379 = vmatprep.mubr.bf16.mxu0 0
    %9380 = vmatmul.mubr.bf16.gmra.mxu0 %v9216
    %v9381 = vpop.f32.mrf.mxu0
    %v9382 = vadd.f32 0.0, %v9381
    %v9383 = vpop.f32.mrf.mxu0
    %v9384 = vpop.f32.mrf.mxu0
    %v9385 = vadd.f32 0.0, %v9384
    %v9386 = vpop.f32.mrf.mxu0
    %9387 = vmatprep.mubr.bf16.mxu0 0
    %9388 = vmatmul.mubr.bf16.gmra.mxu0 %v9217
    %v9389 = vpop.f32.mrf.mxu0
    %v9390 = vadd.f32 0.0, %v9389
    %v9391 = vpop.f32.mrf.mxu0
    %v9392 = vpop.f32.mrf.mxu0
    %v9393 = vadd.f32 0.0, %v9392
    %v9394 = vpop.f32.mrf.mxu0
    %9395 = vmatprep.mubr.bf16.mxu0 0
    %9396 = vmatmul.mubr.bf16.gmra.mxu0 %v9218
    %v9397 = vpop.f32.mrf.mxu0
    %v9398 = vadd.f32 0.0, %v9397
    %v9399 = vpop.f32.mrf.mxu0
    %v9400 = vpop.f32.mrf.mxu0
    %v9401 = vadd.f32 0.0, %v9400
    %v9402 = vpop.f32.mrf.mxu0
    %9403 = vmatprep.mubr.bf16.mxu0 0
    %9404 = vmatmul.mubr.bf16.gmra.mxu0 %v9219
    %v9405 = vpop.f32.mrf.mxu0
    %v9406 = vadd.f32 0.0, %v9405
    %v9407 = vpop.f32.mrf.mxu0
    %v9408 = vpop.f32.mrf.mxu0
    %v9409 = vadd.f32 0.0, %v9408
    %v9410 = vpop.f32.mrf.mxu0
    %9411 = vmatprep.mubr.bf16.mxu0 0
    %9412 = vmatmul.mubr.bf16.gmra.mxu0 %v9220
    %v9413 = vpop.f32.mrf.mxu0
    %v9414 = vadd.f32 0.0, %v9413
    %v9415 = vpop.f32.mrf.mxu0
    %v9416 = vpop.f32.mrf.mxu0
    %v9417 = vadd.f32 0.0, %v9416
    %v9418 = vpop.f32.mrf.mxu0
    %9419 = vmatprep.mubr.bf16.mxu0 0
    %9420 = vmatmul.mubr.bf16.gmra.mxu0 %v9221
    %v9421 = vpop.f32.mrf.mxu0
    %v9422 = vadd.f32 0.0, %v9421
    %v9423 = vpop.f32.mrf.mxu0
    %v9424 = vpop.f32.mrf.mxu0
    %v9425 = vadd.f32 0.0, %v9424
    %v9426 = vpop.f32.mrf.mxu0
    %9427 = vmatprep.mubr.bf16.mxu0 0
    %9428 = vmatmul.mubr.bf16.gmra.mxu0 %v9222
    %v9429 = vpop.f32.mrf.mxu0
    %v9430 = vadd.f32 0.0, %v9429
    %v9431 = vpop.f32.mrf.mxu0
    %v9432 = vpop.f32.mrf.mxu0
    %v9433 = vadd.f32 0.0, %v9432
    %v9434 = vpop.f32.mrf.mxu0
    %9435 = vmatprep.mubr.bf16.mxu0 0
    %9436 = vmatmul.mubr.bf16.gmra.mxu0 %v9223
    %v9437 = vpop.f32.mrf.mxu0
    %v9438 = vadd.f32 0.0, %v9437
    %v9439 = vpop.f32.mrf.mxu0
    %v9440 = vpop.f32.mrf.mxu0
    %v9441 = vadd.f32 0.0, %v9440
    %v9442 = vpop.f32.mrf.mxu0
    %9443 = vmatprep.mubr.bf16.mxu0 0
    %9444 = vmatmul.mubr.bf16.gmra.mxu0 %v9224
    %v9445 = vpop.f32.mrf.mxu0
    %v9446 = vadd.f32 0.0, %v9445
    %v9447 = vpop.f32.mrf.mxu0
    %v9448 = vpop.f32.mrf.mxu0
    %v9449 = vadd.f32 0.0, %v9448
    %v9450 = vpop.f32.mrf.mxu0
    %9451 = vmatprep.mubr.bf16.mxu0 0
    %9452 = vmatmul.mubr.bf16.gmra.mxu0 %v9225
    %v9453 = vpop.f32.mrf.mxu0
    %v9454 = vadd.f32 0.0, %v9453
    %v9455 = vpop.f32.mrf.mxu0
    %v9456 = vpop.f32.mrf.mxu0
    %v9457 = vadd.f32 0.0, %v9456
    %v9458 = vpop.f32.mrf.mxu0
    %9459 = vmatprep.mubr.bf16.mxu0 0
    %9460 = vmatmul.mubr.bf16.gmra.mxu0 %v9226
    %v9461 = vpop.f32.mrf.mxu0
    %v9462 = vadd.f32 0.0, %v9461
    %v9463 = vpop.f32.mrf.mxu0
    %v9464 = vpop.f32.mrf.mxu0
    %v9465 = vadd.f32 0.0, %v9464
    %v9466 = vpop.f32.mrf.mxu0
    %9467 = vmatprep.mubr.bf16.mxu0 0
    %9468 = vmatmul.mubr.bf16.gmra.mxu0 %v9227
    %v9469 = vpop.f32.mrf.mxu0
    %v9470 = vadd.f32 0.0, %v9469
    %v9471 = vpop.f32.mrf.mxu0
    %v9472 = vpop.f32.mrf.mxu0
    %v9473 = vadd.f32 0.0, %v9472
    %v9474 = vpop.f32.mrf.mxu0
    %9475 = vmatprep.mubr.bf16.mxu0 0
    %9476 = vmatmul.mubr.bf16.gmra.mxu0 %v9228
    %v9477 = vpop.f32.mrf.mxu0
    %v9478 = vadd.f32 0.0, %v9477
    %v9479 = vpop.f32.mrf.mxu0
    %v9480 = vpop.f32.mrf.mxu0
    %v9481 = vadd.f32 0.0, %v9480
    %v9482 = vpop.f32.mrf.mxu0
    %9483 = vmatprep.mubr.bf16.mxu0 0
    %9484 = vmatmul.mubr.bf16.gmra.mxu0 %v9229
    %v9485 = vpop.f32.mrf.mxu0
    %v9486 = vadd.f32 0.0, %v9485
    %v9487 = vpop.f32.mrf.mxu0
    %v9488 = vpop.f32.mrf.mxu0
    %v9489 = vadd.f32 0.0, %v9488
    %v9490 = vpop.f32.mrf.mxu0
    %9491 = vmatprep.mubr.bf16.mxu0 0
    %9492 = vmatmul.mubr.bf16.gmra.mxu0 %v9230
    %v9493 = vpop.f32.mrf.mxu0
    %v9494 = vadd.f32 0.0, %v9493
    %v9495 = vpop.f32.mrf.mxu0
    %v9496 = vpop.f32.mrf.mxu0
    %v9497 = vadd.f32 0.0, %v9496
    %v9498 = vpop.f32.mrf.mxu0
    %9499 = vmatprep.mubr.bf16.mxu0 0
    %9500 = vmatmul.mubr.bf16.gmra.mxu0 %v9231
    %v9501 = vpop.f32.mrf.mxu0
    %v9502 = vadd.f32 0.0, %v9501
    %v9503 = vpop.f32.mrf.mxu0
    %v9504 = vpop.f32.mrf.mxu0
    %v9505 = vadd.f32 0.0, %v9504
    %v9506 = vpop.f32.mrf.mxu0
    %9507 = vmatprep.mubr.bf16.mxu0 0
    %9508 = vmatmul.mubr.bf16.gmra.mxu0 %v9232
    %v9509 = vpop.f32.mrf.mxu0
    %v9510 = vadd.f32 0.0, %v9509
    %v9511 = vpop.f32.mrf.mxu0
    %v9512 = vpop.f32.mrf.mxu0
    %v9513 = vadd.f32 0.0, %v9512
    %v9514 = vpop.f32.mrf.mxu0
    %9515 = vmatprep.mubr.bf16.mxu0 0
    %9516 = vmatmul.mubr.bf16.gmra.mxu0 %v9233
    %v9517 = vpop.f32.mrf.mxu0
    %v9518 = vadd.f32 0.0, %v9517
    %v9519 = vpop.f32.mrf.mxu0
    %v9520 = vpop.f32.mrf.mxu0
    %v9521 = vadd.f32 0.0, %v9520
    %v9522 = vpop.f32.mrf.mxu0
    %9523 = vmatprep.mubr.bf16.mxu0 0
    %9524 = vmatmul.mubr.bf16.gmra.mxu0 %v9234
    %v9525 = vpop.f32.mrf.mxu0
    %v9526 = vadd.f32 0.0, %v9525
    %v9527 = vpop.f32.mrf.mxu0
    %v9528 = vpop.f32.mrf.mxu0
    %v9529 = vadd.f32 0.0, %v9528
    %v9530 = vpop.f32.mrf.mxu0
    %9531 = vmatprep.mubr.bf16.mxu0 0
    %9532 = vmatmul.mubr.bf16.gmra.mxu0 %v9235
    %v9533 = vpop.f32.mrf.mxu0
    %v9534 = vadd.f32 0.0, %v9533
    %v9535 = vpop.f32.mrf.mxu0
    %v9536 = vpop.f32.mrf.mxu0
    %v9537 = vadd.f32 0.0, %v9536
    %v9538 = vpop.f32.mrf.mxu0
    %9539 = vmatprep.mubr.bf16.mxu0 0
    %9540 = vmatmul.mubr.bf16.gmra.mxu0 %v9236
    %v9541 = vpop.f32.mrf.mxu0
    %v9542 = vadd.f32 0.0, %v9541
    %v9543 = vpop.f32.mrf.mxu0
    %v9544 = vpop.f32.mrf.mxu0
    %v9545 = vadd.f32 0.0, %v9544
    %v9546 = vpop.f32.mrf.mxu0
    %9547 = vmatprep.mubr.bf16.mxu0 0
    %9548 = vmatmul.mubr.bf16.gmra.mxu0 %v9237
    %v9549 = vpop.f32.mrf.mxu0
    %v9550 = vadd.f32 0.0, %v9549
    %v9551 = vpop.f32.mrf.mxu0
    %v9552 = vpop.f32.mrf.mxu0
    %v9553 = vadd.f32 0.0, %v9552
    %v9554 = vpop.f32.mrf.mxu0
    %9555 = vmatprep.mubr.bf16.mxu0 0
    %9556 = vmatmul.mubr.bf16.gmra.mxu0 %v9238
    %v9557 = vpop.f32.mrf.mxu0
    %v9558 = vadd.f32 0.0, %v9557
    %v9559 = vpop.f32.mrf.mxu0
    %v9560 = vpop.f32.mrf.mxu0
    %v9561 = vadd.f32 0.0, %v9560
    %v9562 = vpop.f32.mrf.mxu0
    %9563 = vmatprep.mubr.bf16.mxu0 0
    %9564 = vmatmul.mubr.bf16.gmra.mxu0 %v9239
    %v9565 = vpop.f32.mrf.mxu0
    %v9566 = vadd.f32 0.0, %v9565
    %v9567 = vpop.f32.mrf.mxu0
    %v9568 = vpop.f32.mrf.mxu0
    %v9569 = vadd.f32 0.0, %v9568
    %v9570 = vpop.f32.mrf.mxu0
    %9571 = vmatprep.mubr.bf16.mxu0 0
    %9572 = vmatmul.mubr.bf16.gmra.mxu0 %v9240
    %v9573 = vpop.f32.mrf.mxu0
    %v9574 = vadd.f32 0.0, %v9573
    %v9575 = vpop.f32.mrf.mxu0
    %v9576 = vpop.f32.mrf.mxu0
    %v9577 = vadd.f32 0.0, %v9576
    %v9578 = vpop.f32.mrf.mxu0
    %9579 = vmatprep.mubr.bf16.mxu0 0
    %9580 = vmatmul.mubr.bf16.gmra.mxu0 %v9241
    %v9581 = vpop.f32.mrf.mxu0
    %v9582 = vadd.f32 0.0, %v9581
    %v9583 = vpop.f32.mrf.mxu0
    %v9584 = vpop.f32.mrf.mxu0
    %v9585 = vadd.f32 0.0, %v9584
    %v9586 = vpop.f32.mrf.mxu0
    %9587 = vmatprep.mubr.bf16.mxu0 0
    %9588 = vmatmul.mubr.bf16.gmra.mxu0 %v9242
    %v9589 = vpop.f32.mrf.mxu0
    %v9590 = vadd.f32 0.0, %v9589
    %v9591 = vpop.f32.mrf.mxu0
    %v9592 = vpop.f32.mrf.mxu0
    %v9593 = vadd.f32 0.0, %v9592
    %v9594 = vpop.f32.mrf.mxu0
    %9595 = vdwg.mxu0
    %v9596 = vpack.c.bf16 %v7908, %v7908
    %v9597 = vpack.c.bf16 %v7921, %v7921
    %v9598 = vpack.c.bf16 %v7934, %v7934
    %v9599 = vpack.c.bf16 %v7947, %v7947
    %v9600 = vpack.c.bf16 %v7960, %v7960
    %v9601 = vpack.c.bf16 %v7973, %v7973
    %v9602 = vpack.c.bf16 %v7986, %v7986
    %v9603 = vpack.c.bf16 %v7999, %v7999
    %v9604 = vld [vmem:[%s57] sm:$0xf]
    %v9605 = vld [vmem:[%s57 + $0x4] sm:$0xf]
    %v9606 = vld [vmem:[%s57 + $0x8] sm:$0xf]
    %v9607 = vld [vmem:[%s57 + $0xc] sm:$0xf]
    %v9608 = vld [vmem:[%s57 + $0x10] sm:$0xf]
    %v9609 = vld [vmem:[%s57 + $0x14] sm:$0xf]
    %v9610 = vld [vmem:[%s57 + $0x18] sm:$0xf]
    %v9611 = vld [vmem:[%s57 + $0x1c] sm:$0xf]
    %v9612 = vld [vmem:[%s57 + $0x20] sm:$0xf]
    %v9613 = vld [vmem:[%s57 + $0x24] sm:$0xf]
    %v9614 = vld [vmem:[%s57 + $0x28] sm:$0xf]
    %v9615 = vld [vmem:[%s57 + $0x2c] sm:$0xf]
    %v9616 = vld [vmem:[%s57 + $0x30] sm:$0xf]
    %v9617 = vld [vmem:[%s57 + $0x34] sm:$0xf]
    %v9618 = vld [vmem:[%s57 + $0x38] sm:$0xf]
    %v9619 = vld [vmem:[%s57 + $0x3c] sm:$0xf]
    %v9628 = vunpack.c.l.b16 %v9596
    %v9629 = vunpack.c.l.b16 %v9597
    %v9630 = vunpack.c.l.b16 %v9598
    %v9631 = vunpack.c.l.b16 %v9599
    %v9632 = vunpack.c.l.b16 %v9600
    %v9633 = vunpack.c.l.b16 %v9601
    %v9634 = vunpack.c.l.b16 %v9602
    %v9635 = vunpack.c.l.b16 %v9603
    %v9636 = vsel %vm4387, %v9629, %v9628
    %v9637 = vsel %vm4389, %v9630, %v9636
    %v9638 = vsel %vm4391, %v9631, %v9637
    %v9639 = vsel %vm4393, %v9632, %v9638
    %v9640 = vsel %vm4395, %v9633, %v9639
    %v9641 = vsel %vm4397, %v9634, %v9640
    %v9642 = vsel %vm4399, %v9635, %v9641
    %v9643 = vpack.c.b16 %v9642, %v9642
    %v9661 = vunpack.c.l.b16 %v9604
    %v9662 = vunpack.c.l.b16 %v9605
    %v9663 = vunpack.c.l.b16 %v9606
    %v9664 = vunpack.c.l.b16 %v9607
    %v9665 = vunpack.c.l.b16 %v9608
    %v9666 = vunpack.c.l.b16 %v9609
    %v9667 = vunpack.c.l.b16 %v9610
    %v9668 = vunpack.c.l.b16 %v9611
    %v9669 = vunpack.c.l.b16 %v9612
    %v9670 = vunpack.c.l.b16 %v9613
    %v9671 = vunpack.c.l.b16 %v9614
    %v9672 = vunpack.c.l.b16 %v9615
    %v9673 = vunpack.c.l.b16 %v9616
    %v9674 = vunpack.c.l.b16 %v9617
    %v9675 = vunpack.c.l.b16 %v9618
    %v9676 = vunpack.c.l.b16 %v9619
    %v9677 = vpack.c.b16 %v9662, %v9661
    %v9678 = vpack.c.b16 %v9664, %v9663
    %v9679 = vpack.c.b16 %v9666, %v9665
    %v9680 = vpack.c.b16 %v9668, %v9667
    %v9681 = vpack.c.b16 %v9670, %v9669
    %v9682 = vpack.c.b16 %v9672, %v9671
    %v9683 = vpack.c.b16 %v9674, %v9673
    %v9684 = vpack.c.b16 %v9676, %v9675
    %9693 = vmatprep.subr.bf16.mxu0 0
    %9694 = vmatpush1.bf16.msra.mxu0 %v9684
    %9695 = vmatprep.subr.bf16.mxu0 0
    %9696 = vmatpush1.bf16.msra.mxu0 %v9683
    %9697 = vmatprep.subr.bf16.mxu0 0
    %9698 = vmatpush1.bf16.msra.mxu0 %v9682
    %9699 = vmatprep.subr.bf16.mxu0 0
    %9700 = vmatpush1.bf16.msra.mxu0 %v9681
    %9701 = vmatprep.subr.bf16.mxu0 0
    %9702 = vmatpush1.bf16.msra.mxu0 %v9680
    %9703 = vmatprep.subr.bf16.mxu0 0
    %9704 = vmatpush1.bf16.msra.mxu0 %v9679
    %9705 = vmatprep.subr.bf16.mxu0 0
    %9706 = vmatpush1.bf16.msra.mxu0 %v9678
    %9707 = vmatprep.subr.bf16.mxu0 0
    %9708 = vmatpush1.bf16.msra.mxu0 %v9677
    %9709 = vmatprep.subr.bf16.mxu0 0
    %9710 = vmatpush2.bf16.msra.mxu0 0
    %9711 = vmatprep.subr.bf16.mxu0 0
    %9712 = vmatpush2.bf16.msra.mxu0 0
    %9713 = vmatprep.subr.bf16.mxu0 0
    %9714 = vmatpush2.bf16.msra.mxu0 0
    %9715 = vmatprep.subr.bf16.mxu0 0
    %9716 = vmatpush2.bf16.msra.mxu0 0
    %9717 = vmatprep.subr.bf16.mxu0 0
    %9718 = vmatpush2.bf16.msra.mxu0 0
    %9719 = vmatprep.subr.bf16.mxu0 0
    %9720 = vmatpush2.bf16.msra.mxu0 0
    %9721 = vmatprep.subr.bf16.mxu0 0
    %9722 = vmatpush2.bf16.msra.mxu0 0
    %9723 = vmatprep.subr.bf16.mxu0 0
    %9724 = vmatpush2.bf16.msra.mxu0 0
    %9725 = vmatprep.mubr.bf16.mxu0 0
    %9726 = vmatmul.mubr.bf16.gmra.mxu0 %v9643
    %v9727 = vpop.f32.mrf.mxu0
    %v9728 = vadd.f32 0.0, %v9727
    %v9729 = vpop.f32.mrf.mxu0
    %v9730 = vpop.f32.mrf.mxu0
    %v9731 = vpop.f32.mrf.mxu0
    %9732 = vdwg.mxu0
    %v9734 = vcombine.high %v9728, %v9728
    %v9736 = vunpack.c.l.s4 1966171168
    %v9737 = vunpack.c.0.s8 %v9736
    %v9738 = vlaneseq
    %v9739 = vshrl.u32 %v9738, 7
    %v9740 = vsub.s32 %v9737, %v9739
    %v9741 = vrot.slane %v9728, %v9740
    %v9743 = vunpack.c.l.s4 1966171168
    %v9744 = vunpack.c.0.s8 %v9743
    %v9745 = vlaneseq
    %v9746 = vshrl.u32 %v9745, 7
    %v9747 = vsub.s32 %v9744, %v9746
    %v9748 = vrot.slane %v9734, %v9747
    %v9749 = vcombine.high %v9741, %v9741
    %v9750 = vcombine.high %v9748, %v9748
    %v9752 = vunpack.c.l.s4 1966171168
    %v9753 = vunpack.c.0.s8 %v9752
    %v9754 = vlaneseq
    %v9755 = vshrl.u32 %v9754, 7
    %v9756 = vsub.s32 %v9753, %v9755
    %v9757 = vrot.slane %v9741, %v9756
    %v9759 = vunpack.c.l.s4 1966171168
    %v9760 = vunpack.c.0.s8 %v9759
    %v9761 = vlaneseq
    %v9762 = vshrl.u32 %v9761, 7
    %v9763 = vsub.s32 %v9760, %v9762
    %v9764 = vrot.slane %v9748, %v9763
    %v9766 = vunpack.c.l.s4 1966171168
    %v9767 = vunpack.c.0.s8 %v9766
    %v9768 = vlaneseq
    %v9769 = vshrl.u32 %v9768, 7
    %v9770 = vsub.s32 %v9767, %v9769
    %v9771 = vrot.slane %v9749, %v9770
    %v9773 = vunpack.c.l.s4 1966171168
    %v9774 = vunpack.c.0.s8 %v9773
    %v9775 = vlaneseq
    %v9776 = vshrl.u32 %v9775, 7
    %v9777 = vsub.s32 %v9774, %v9776
    %v9778 = vrot.slane %v9750, %v9777
    %v9779 = vcombine.high %v9757, %v9757
    %v9780 = vcombine.high %v9764, %v9764
    %v9781 = vcombine.high %v9771, %v9771
    %v9782 = vcombine.high %v9778, %v9778
    %v9783 = vlaneseq
    %v9784 = vshrl.u32 %v9783, 7
    %v9785 = vsub.s32 0, %v9784
    %v9786 = vrot.slane %v9757, %v9785
    %v9787 = vlaneseq
    %v9788 = vshrl.u32 %v9787, 7
    %v9789 = vsub.s32 0, %v9788
    %v9790 = vrot.slane %v9771, %v9789
    %v9791 = vlaneseq
    %v9792 = vshrl.u32 %v9791, 7
    %v9793 = vsub.s32 0, %v9792
    %v9794 = vrot.slane %v9779, %v9793
    %v9795 = vlaneseq
    %v9796 = vshrl.u32 %v9795, 7
    %v9797 = vsub.s32 0, %v9796
    %v9798 = vrot.slane %v9781, %v9797
    %v9799 = vlaneseq
    %v9800 = vshrl.u32 %v9799, 7
    %v9801 = vsub.s32 0, %v9800
    %v9802 = vrot.slane %v9764, %v9801
    %v9803 = vlaneseq
    %v9804 = vshrl.u32 %v9803, 7
    %v9805 = vsub.s32 0, %v9804
    %v9806 = vrot.slane %v9778, %v9805
    %v9807 = vlaneseq
    %v9808 = vshrl.u32 %v9807, 7
    %v9809 = vsub.s32 0, %v9808
    %v9810 = vrot.slane %v9780, %v9809
    %v9811 = vlaneseq
    %v9812 = vshrl.u32 %v9811, 7
    %v9813 = vsub.s32 0, %v9812
    %v9814 = vrot.slane %v9782, %v9813
    %v9823 = vadd.f32 %v9342, %v9786
    %v9824 = vadd.f32 %v9345, %v9786
    %v9825 = vadd.f32 %v9350, %v9786
    %v9826 = vadd.f32 %v9353, %v9786
    %v9827 = vadd.f32 %v9358, %v9786
    %v9828 = vadd.f32 %v9361, %v9786
    %v9829 = vadd.f32 %v9366, %v9786
    %v9830 = vadd.f32 %v9369, %v9786
    %v9831 = vadd.f32 %v9374, %v9790
    %v9832 = vadd.f32 %v9377, %v9790
    %v9833 = vadd.f32 %v9382, %v9790
    %v9834 = vadd.f32 %v9385, %v9790
    %v9835 = vadd.f32 %v9390, %v9790
    %v9836 = vadd.f32 %v9393, %v9790
    %v9837 = vadd.f32 %v9398, %v9790
    %v9838 = vadd.f32 %v9401, %v9790
    %v9839 = vadd.f32 %v9406, %v9794
    %v9840 = vadd.f32 %v9409, %v9794
    %v9841 = vadd.f32 %v9414, %v9794
    %v9842 = vadd.f32 %v9417, %v9794
    %v9843 = vadd.f32 %v9422, %v9794
    %v9844 = vadd.f32 %v9425, %v9794
    %v9845 = vadd.f32 %v9430, %v9794
    %v9846 = vadd.f32 %v9433, %v9794
    %v9847 = vadd.f32 %v9438, %v9798
    %v9848 = vadd.f32 %v9441, %v9798
    %v9849 = vadd.f32 %v9446, %v9798
    %v9850 = vadd.f32 %v9449, %v9798
    %v9851 = vadd.f32 %v9454, %v9798
    %v9852 = vadd.f32 %v9457, %v9798
    %v9853 = vadd.f32 %v9462, %v9798
    %v9854 = vadd.f32 %v9465, %v9798
    %v9855 = vadd.f32 %v9470, %v9802
    %v9856 = vadd.f32 %v9473, %v9802
    %v9857 = vadd.f32 %v9478, %v9802
    %v9858 = vadd.f32 %v9481, %v9802
    %v9859 = vadd.f32 %v9486, %v9802
    %v9860 = vadd.f32 %v9489, %v9802
    %v9861 = vadd.f32 %v9494, %v9802
    %v9862 = vadd.f32 %v9497, %v9802
    %v9863 = vadd.f32 %v9502, %v9806
    %v9864 = vadd.f32 %v9505, %v9806
    %v9865 = vadd.f32 %v9510, %v9806
    %v9866 = vadd.f32 %v9513, %v9806
    %v9867 = vadd.f32 %v9518, %v9806
    %v9868 = vadd.f32 %v9521, %v9806
    %v9869 = vadd.f32 %v9526, %v9806
    %v9870 = vadd.f32 %v9529, %v9806
    %v9871 = vadd.f32 %v9534, %v9810
    %v9872 = vadd.f32 %v9537, %v9810
    %v9873 = vadd.f32 %v9542, %v9810
    %v9874 = vadd.f32 %v9545, %v9810
    %v9875 = vadd.f32 %v9550, %v9810
    %v9876 = vadd.f32 %v9553, %v9810
    %v9877 = vadd.f32 %v9558, %v9810
    %v9878 = vadd.f32 %v9561, %v9810
    %v9879 = vadd.f32 %v9566, %v9814
    %v9880 = vadd.f32 %v9569, %v9814
    %v9881 = vadd.f32 %v9574, %v9814
    %v9882 = vadd.f32 %v9577, %v9814
    %v9883 = vadd.f32 %v9582, %v9814
    %v9884 = vadd.f32 %v9585, %v9814
    %v9885 = vadd.f32 %v9590, %v9814
    %v9886 = vadd.f32 %v9593, %v9814
    %v9887 = vadd.f32 %v9823, %v8957
    %v9888 = vadd.f32 %v9824, %v8960
    %v9889 = vadd.f32 %v9825, %v8965
    %v9890 = vadd.f32 %v9826, %v8968
    %v9891 = vadd.f32 %v9827, %v8973
    %v9892 = vadd.f32 %v9828, %v8976
    %v9893 = vadd.f32 %v9829, %v8981
    %v9894 = vadd.f32 %v9830, %v8984
    %v9895 = vadd.f32 %v9831, %v8989
    %v9896 = vadd.f32 %v9832, %v8992
    %v9897 = vadd.f32 %v9833, %v8997
    %v9898 = vadd.f32 %v9834, %v9000
    %v9899 = vadd.f32 %v9835, %v9005
    %v9900 = vadd.f32 %v9836, %v9008
    %v9901 = vadd.f32 %v9837, %v9013
    %v9902 = vadd.f32 %v9838, %v9016
    %v9903 = vadd.f32 %v9839, %v9021
    %v9904 = vadd.f32 %v9840, %v9024
    %v9905 = vadd.f32 %v9841, %v9029
    %v9906 = vadd.f32 %v9842, %v9032
    %v9907 = vadd.f32 %v9843, %v9037
    %v9908 = vadd.f32 %v9844, %v9040
    %v9909 = vadd.f32 %v9845, %v9045
    %v9910 = vadd.f32 %v9846, %v9048
    %v9911 = vadd.f32 %v9847, %v9053
    %v9912 = vadd.f32 %v9848, %v9056
    %v9913 = vadd.f32 %v9849, %v9061
    %v9914 = vadd.f32 %v9850, %v9064
    %v9915 = vadd.f32 %v9851, %v9069
    %v9916 = vadd.f32 %v9852, %v9072
    %v9917 = vadd.f32 %v9853, %v9077
    %v9918 = vadd.f32 %v9854, %v9080
    %v9919 = vadd.f32 %v9855, %v9085
    %v9920 = vadd.f32 %v9856, %v9088
    %v9921 = vadd.f32 %v9857, %v9093
    %v9922 = vadd.f32 %v9858, %v9096
    %v9923 = vadd.f32 %v9859, %v9101
    %v9924 = vadd.f32 %v9860, %v9104
    %v9925 = vadd.f32 %v9861, %v9109
    %v9926 = vadd.f32 %v9862, %v9112
    %v9927 = vadd.f32 %v9863, %v9117
    %v9928 = vadd.f32 %v9864, %v9120
    %v9929 = vadd.f32 %v9865, %v9125
    %v9930 = vadd.f32 %v9866, %v9128
    %v9931 = vadd.f32 %v9867, %v9133
    %v9932 = vadd.f32 %v9868, %v9136
    %v9933 = vadd.f32 %v9869, %v9141
    %v9934 = vadd.f32 %v9870, %v9144
    %v9935 = vadd.f32 %v9871, %v9149
    %v9936 = vadd.f32 %v9872, %v9152
    %v9937 = vadd.f32 %v9873, %v9157
    %v9938 = vadd.f32 %v9874, %v9160
    %v9939 = vadd.f32 %v9875, %v9165
    %v9940 = vadd.f32 %v9876, %v9168
    %v9941 = vadd.f32 %v9877, %v9173
    %v9942 = vadd.f32 %v9878, %v9176
    %v9943 = vadd.f32 %v9879, %v9181
    %v9944 = vadd.f32 %v9880, %v9184
    %v9945 = vadd.f32 %v9881, %v9189
    %v9946 = vadd.f32 %v9882, %v9192
    %v9947 = vadd.f32 %v9883, %v9197
    %v9948 = vadd.f32 %v9884, %v9200
    %v9949 = vadd.f32 %v9885, %v9205
    %v9950 = vadd.f32 %v9886, %v9208
    %v9951 = vmax.f32 %v9887, %v9888
    %v9952 = vmax.f32 %v9951, %v9889
    %v9953 = vmax.f32 %v9952, %v9890
    %v9954 = vmax.f32 %v9953, %v9891
    %v9955 = vmax.f32 %v9954, %v9892
    %v9956 = vmax.f32 %v9955, %v9893
    %v9957 = vmax.f32 %v9956, %v9894
    %v9958 = vrot.slane %v9957, 4
    %v9959 = vmax.f32 %v9957, %v9958
    %v9960 = vrot.slane %v9959, 2
    %v9961 = vmax.f32 %v9959, %v9960
    %v9962 = vrot.slane %v9961, 1
    %v9963 = vmax.f32 %v9961, %v9962
    %v9964 = vmax.f32 %v9895, %v9896
    %v9965 = vmax.f32 %v9964, %v9897
    %v9966 = vmax.f32 %v9965, %v9898
    %v9967 = vmax.f32 %v9966, %v9899
    %v9968 = vmax.f32 %v9967, %v9900
    %v9969 = vmax.f32 %v9968, %v9901
    %v9970 = vmax.f32 %v9969, %v9902
    %v9971 = vrot.slane %v9970, 4
    %v9972 = vmax.f32 %v9970, %v9971
    %v9973 = vrot.slane %v9972, 2
    %v9974 = vmax.f32 %v9972, %v9973
    %v9975 = vrot.slane %v9974, 1
    %v9976 = vmax.f32 %v9974, %v9975
    %v9977 = vmax.f32 %v9903, %v9904
    %v9978 = vmax.f32 %v9977, %v9905
    %v9979 = vmax.f32 %v9978, %v9906
    %v9980 = vmax.f32 %v9979, %v9907
    %v9981 = vmax.f32 %v9980, %v9908
    %v9982 = vmax.f32 %v9981, %v9909
    %v9983 = vmax.f32 %v9982, %v9910
    %v9984 = vrot.slane %v9983, 4
    %v9985 = vmax.f32 %v9983, %v9984
    %v9986 = vrot.slane %v9985, 2
    %v9987 = vmax.f32 %v9985, %v9986
    %v9988 = vrot.slane %v9987, 1
    %v9989 = vmax.f32 %v9987, %v9988
    %v9990 = vmax.f32 %v9911, %v9912
    %v9991 = vmax.f32 %v9990, %v9913
    %v9992 = vmax.f32 %v9991, %v9914
    %v9993 = vmax.f32 %v9992, %v9915
    %v9994 = vmax.f32 %v9993, %v9916
    %v9995 = vmax.f32 %v9994, %v9917
    %v9996 = vmax.f32 %v9995, %v9918
    %v9997 = vrot.slane %v9996, 4
    %v9998 = vmax.f32 %v9996, %v9997
    %v9999 = vrot.slane %v9998, 2
    %v10000 = vmax.f32 %v9998, %v9999
    %v10001 = vrot.slane %v10000, 1
    %v10002 = vmax.f32 %v10000, %v10001
    %v10003 = vmax.f32 %v9919, %v9920
    %v10004 = vmax.f32 %v10003, %v9921
    %v10005 = vmax.f32 %v10004, %v9922
    %v10006 = vmax.f32 %v10005, %v9923
    %v10007 = vmax.f32 %v10006, %v9924
    %v10008 = vmax.f32 %v10007, %v9925
    %v10009 = vmax.f32 %v10008, %v9926
    %v10010 = vrot.slane %v10009, 4
    %v10011 = vmax.f32 %v10009, %v10010
    %v10012 = vrot.slane %v10011, 2
    %v10013 = vmax.f32 %v10011, %v10012
    %v10014 = vrot.slane %v10013, 1
    %v10015 = vmax.f32 %v10013, %v10014
    %v10016 = vmax.f32 %v9927, %v9928
    %v10017 = vmax.f32 %v10016, %v9929
    %v10018 = vmax.f32 %v10017, %v9930
    %v10019 = vmax.f32 %v10018, %v9931
    %v10020 = vmax.f32 %v10019, %v9932
    %v10021 = vmax.f32 %v10020, %v9933
    %v10022 = vmax.f32 %v10021, %v9934
    %v10023 = vrot.slane %v10022, 4
    %v10024 = vmax.f32 %v10022, %v10023
    %v10025 = vrot.slane %v10024, 2
    %v10026 = vmax.f32 %v10024, %v10025
    %v10027 = vrot.slane %v10026, 1
    %v10028 = vmax.f32 %v10026, %v10027
    %v10029 = vmax.f32 %v9935, %v9936
    %v10030 = vmax.f32 %v10029, %v9937
    %v10031 = vmax.f32 %v10030, %v9938
    %v10032 = vmax.f32 %v10031, %v9939
    %v10033 = vmax.f32 %v10032, %v9940
    %v10034 = vmax.f32 %v10033, %v9941
    %v10035 = vmax.f32 %v10034, %v9942
    %v10036 = vrot.slane %v10035, 4
    %v10037 = vmax.f32 %v10035, %v10036
    %v10038 = vrot.slane %v10037, 2
    %v10039 = vmax.f32 %v10037, %v10038
    %v10040 = vrot.slane %v10039, 1
    %v10041 = vmax.f32 %v10039, %v10040
    %v10042 = vmax.f32 %v9943, %v9944
    %v10043 = vmax.f32 %v10042, %v9945
    %v10044 = vmax.f32 %v10043, %v9946
    %v10045 = vmax.f32 %v10044, %v9947
    %v10046 = vmax.f32 %v10045, %v9948
    %v10047 = vmax.f32 %v10046, %v9949
    %v10048 = vmax.f32 %v10047, %v9950
    %v10049 = vrot.slane %v10048, 4
    %v10050 = vmax.f32 %v10048, %v10049
    %v10051 = vrot.slane %v10050, 2
    %v10052 = vmax.f32 %v10050, %v10051
    %v10053 = vrot.slane %v10052, 1
    %v10054 = vmax.f32 %v10052, %v10053
    %v10055 = vmax.f32 %v9887, 0.0
    %v10056 = vmax.f32 %v9888, 0.0
    %v10057 = vmax.f32 %v9889, 0.0
    %v10058 = vmax.f32 %v9890, 0.0
    %v10059 = vmax.f32 %v9891, 0.0
    %v10060 = vmax.f32 %v9892, 0.0
    %v10061 = vmax.f32 %v9893, 0.0
    %v10062 = vmax.f32 %v9894, 0.0
    %v10063 = vmax.f32 %v9895, 0.0
    %v10064 = vmax.f32 %v9896, 0.0
    %v10065 = vmax.f32 %v9897, 0.0
    %v10066 = vmax.f32 %v9898, 0.0
    %v10067 = vmax.f32 %v9899, 0.0
    %v10068 = vmax.f32 %v9900, 0.0
    %v10069 = vmax.f32 %v9901, 0.0
    %v10070 = vmax.f32 %v9902, 0.0
    %v10071 = vmax.f32 %v9903, 0.0
    %v10072 = vmax.f32 %v9904, 0.0
    %v10073 = vmax.f32 %v9905, 0.0
    %v10074 = vmax.f32 %v9906, 0.0
    %v10075 = vmax.f32 %v9907, 0.0
    %v10076 = vmax.f32 %v9908, 0.0
    %v10077 = vmax.f32 %v9909, 0.0
    %v10078 = vmax.f32 %v9910, 0.0
    %v10079 = vmax.f32 %v9911, 0.0
    %v10080 = vmax.f32 %v9912, 0.0
    %v10081 = vmax.f32 %v9913, 0.0
    %v10082 = vmax.f32 %v9914, 0.0
    %v10083 = vmax.f32 %v9915, 0.0
    %v10084 = vmax.f32 %v9916, 0.0
    %v10085 = vmax.f32 %v9917, 0.0
    %v10086 = vmax.f32 %v9918, 0.0
    %v10087 = vmax.f32 %v9919, 0.0
    %v10088 = vmax.f32 %v9920, 0.0
    %v10089 = vmax.f32 %v9921, 0.0
    %v10090 = vmax.f32 %v9922, 0.0
    %v10091 = vmax.f32 %v9923, 0.0
    %v10092 = vmax.f32 %v9924, 0.0
    %v10093 = vmax.f32 %v9925, 0.0
    %v10094 = vmax.f32 %v9926, 0.0
    %v10095 = vmax.f32 %v9927, 0.0
    %v10096 = vmax.f32 %v9928, 0.0
    %v10097 = vmax.f32 %v9929, 0.0
    %v10098 = vmax.f32 %v9930, 0.0
    %v10099 = vmax.f32 %v9931, 0.0
    %v10100 = vmax.f32 %v9932, 0.0
    %v10101 = vmax.f32 %v9933, 0.0
    %v10102 = vmax.f32 %v9934, 0.0
    %v10103 = vmax.f32 %v9935, 0.0
    %v10104 = vmax.f32 %v9936, 0.0
    %v10105 = vmax.f32 %v9937, 0.0
    %v10106 = vmax.f32 %v9938, 0.0
    %v10107 = vmax.f32 %v9939, 0.0
    %v10108 = vmax.f32 %v9940, 0.0
    %v10109 = vmax.f32 %v9941, 0.0
    %v10110 = vmax.f32 %v9942, 0.0
    %v10111 = vmax.f32 %v9943, 0.0
    %v10112 = vmax.f32 %v9944, 0.0
    %v10113 = vmax.f32 %v9945, 0.0
    %v10114 = vmax.f32 %v9946, 0.0
    %v10115 = vmax.f32 %v9947, 0.0
    %v10116 = vmax.f32 %v9948, 0.0
    %v10117 = vmax.f32 %v9949, 0.0
    %v10118 = vmax.f32 %v9950, 0.0
    %v10119 = vmax.f32 %v9963, 0.0
    %v10120 = vmax.f32 %v9976, 0.0
    %v10121 = vmax.f32 %v9989, 0.0
    %v10122 = vmax.f32 %v10002, 0.0
    %v10123 = vmax.f32 %v10015, 0.0
    %v10124 = vmax.f32 %v10028, 0.0
    %v10125 = vmax.f32 %v10041, 0.0
    %v10126 = vmax.f32 %v10054, 0.0
    %v10127 = vpack.c.bf16 %v10056, %v10055
    %v10128 = vpack.c.bf16 %v10058, %v10057
    %v10129 = vpack.c.bf16 %v10060, %v10059
    %v10130 = vpack.c.bf16 %v10062, %v10061
    %v10131 = vpack.c.bf16 %v10064, %v10063
    %v10132 = vpack.c.bf16 %v10066, %v10065
    %v10133 = vpack.c.bf16 %v10068, %v10067
    %v10134 = vpack.c.bf16 %v10070, %v10069
    %v10135 = vpack.c.bf16 %v10072, %v10071
    %v10136 = vpack.c.bf16 %v10074, %v10073
    %v10137 = vpack.c.bf16 %v10076, %v10075
    %v10138 = vpack.c.bf16 %v10078, %v10077
    %v10139 = vpack.c.bf16 %v10080, %v10079
    %v10140 = vpack.c.bf16 %v10082, %v10081
    %v10141 = vpack.c.bf16 %v10084, %v10083
    %v10142 = vpack.c.bf16 %v10086, %v10085
    %v10143 = vpack.c.bf16 %v10088, %v10087
    %v10144 = vpack.c.bf16 %v10090, %v10089
    %v10145 = vpack.c.bf16 %v10092, %v10091
    %v10146 = vpack.c.bf16 %v10094, %v10093
    %v10147 = vpack.c.bf16 %v10096, %v10095
    %v10148 = vpack.c.bf16 %v10098, %v10097
    %v10149 = vpack.c.bf16 %v10100, %v10099
    %v10150 = vpack.c.bf16 %v10102, %v10101
    %v10151 = vpack.c.bf16 %v10104, %v10103
    %v10152 = vpack.c.bf16 %v10106, %v10105
    %v10153 = vpack.c.bf16 %v10108, %v10107
    %v10154 = vpack.c.bf16 %v10110, %v10109
    %v10155 = vpack.c.bf16 %v10112, %v10111
    %v10156 = vpack.c.bf16 %v10114, %v10113
    %v10157 = vpack.c.bf16 %v10116, %v10115
    %v10158 = vpack.c.bf16 %v10118, %v10117
    %v10159 = vld [vmem:[#allocation32] sm:$0xf]
    %v10160 = vld [vmem:[#allocation32 + $0x4] sm:$0xf]
    %v10161 = vld [vmem:[#allocation32 + $0x8] sm:$0xf]
    %v10162 = vld [vmem:[#allocation32 + $0xc] sm:$0xf]
    %v10163 = vld [vmem:[#allocation32 + $0x10] sm:$0xf]
    %v10164 = vld [vmem:[#allocation32 + $0x14] sm:$0xf]
    %v10165 = vld [vmem:[#allocation32 + $0x18] sm:$0xf]
    %v10166 = vld [vmem:[#allocation32 + $0x1c] sm:$0xf]
    %v10167 = vld [vmem:[#allocation32 + $0x20] sm:$0xf]
    %v10168 = vld [vmem:[#allocation32 + $0x24] sm:$0xf]
    %v10169 = vld [vmem:[#allocation32 + $0x28] sm:$0xf]
    %v10170 = vld [vmem:[#allocation32 + $0x2c] sm:$0xf]
    %v10171 = vld [vmem:[#allocation32 + $0x30] sm:$0xf]
    %v10172 = vld [vmem:[#allocation32 + $0x34] sm:$0xf]
    %v10173 = vld [vmem:[#allocation32 + $0x38] sm:$0xf]
    %v10174 = vld [vmem:[#allocation32 + $0x3c] sm:$0xf]
    %v10175 = vld [vmem:[#allocation35] sm:$0x1]
    %v10177 = vlaneseq
    %v10178 = vshrl.u32 %v10177, 7
    %v10179 = vsub.s32 0, %v10178
    %v10180 = vrot.slane %v10175, %v10179
    %v10198 = vunpack.c.l.b16 %v10159
    %v10199 = vunpack.c.l.b16 %v10160
    %v10200 = vunpack.c.l.b16 %v10161
    %v10201 = vunpack.c.l.b16 %v10162
    %v10202 = vunpack.c.l.b16 %v10163
    %v10203 = vunpack.c.l.b16 %v10164
    %v10204 = vunpack.c.l.b16 %v10165
    %v10205 = vunpack.c.l.b16 %v10166
    %v10206 = vunpack.c.l.b16 %v10167
    %v10207 = vunpack.c.l.b16 %v10168
    %v10208 = vunpack.c.l.b16 %v10169
    %v10209 = vunpack.c.l.b16 %v10170
    %v10210 = vunpack.c.l.b16 %v10171
    %v10211 = vunpack.c.l.b16 %v10172
    %v10212 = vunpack.c.l.b16 %v10173
    %v10213 = vunpack.c.l.b16 %v10174
    %v10214 = vpack.c.b16 %v10199, %v10198
    %v10215 = vpack.c.b16 %v10201, %v10200
    %v10216 = vpack.c.b16 %v10203, %v10202
    %v10217 = vpack.c.b16 %v10205, %v10204
    %v10218 = vpack.c.b16 %v10207, %v10206
    %v10219 = vpack.c.b16 %v10209, %v10208
    %v10220 = vpack.c.b16 %v10211, %v10210
    %v10221 = vpack.c.b16 %v10213, %v10212
    %10230 = vmatprep.subr.bf16.mxu0 0
    %10231 = vmatpush1.bf16.msra.mxu0 %v10221
    %10232 = vmatprep.subr.bf16.mxu0 0
    %10233 = vmatpush1.bf16.msra.mxu0 %v10220
    %10234 = vmatprep.subr.bf16.mxu0 0
    %10235 = vmatpush1.bf16.msra.mxu0 %v10219
    %10236 = vmatprep.subr.bf16.mxu0 0
    %10237 = vmatpush1.bf16.msra.mxu0 %v10218
    %10238 = vmatprep.subr.bf16.mxu0 0
    %10239 = vmatpush1.bf16.msra.mxu0 %v10217
    %10240 = vmatprep.subr.bf16.mxu0 0
    %10241 = vmatpush1.bf16.msra.mxu0 %v10216
    %10242 = vmatprep.subr.bf16.mxu0 0
    %10243 = vmatpush1.bf16.msra.mxu0 %v10215
    %10244 = vmatprep.subr.bf16.mxu0 0
    %10245 = vmatpush1.bf16.msra.mxu0 %v10214
    %10246 = vmatprep.subr.bf16.mxu0 0
    %10247 = vmatpush2.bf16.msra.mxu0 0
    %10248 = vmatprep.subr.bf16.mxu0 0
    %10249 = vmatpush2.bf16.msra.mxu0 0
    %10250 = vmatprep.subr.bf16.mxu0 0
    %10251 = vmatpush2.bf16.msra.mxu0 0
    %10252 = vmatprep.subr.bf16.mxu0 0
    %10253 = vmatpush2.bf16.msra.mxu0 0
    %10254 = vmatprep.subr.bf16.mxu0 0
    %10255 = vmatpush2.bf16.msra.mxu0 0
    %10256 = vmatprep.subr.bf16.mxu0 0
    %10257 = vmatpush2.bf16.msra.mxu0 0
    %10258 = vmatprep.subr.bf16.mxu0 0
    %10259 = vmatpush2.bf16.msra.mxu0 0
    %10260 = vmatprep.subr.bf16.mxu0 0
    %10261 = vmatpush2.bf16.msra.mxu0 0
    %10262 = vmatprep.mubr.bf16.mxu0 0
    %10263 = vmatmul.mubr.bf16.gmra.mxu0 %v10127
    %v10264 = vpop.f32.mrf.mxu0
    %v10265 = vadd.f32 %v10180, %v10264
    %v10266 = vpop.f32.mrf.mxu0
    %v10267 = vpop.f32.mrf.mxu0
    %v10268 = vadd.f32 %v10180, %v10267
    %v10269 = vpop.f32.mrf.mxu0
    %10270 = vmatprep.mubr.bf16.mxu0 0
    %10271 = vmatmul.mubr.bf16.gmra.mxu0 %v10128
    %v10272 = vpop.f32.mrf.mxu0
    %v10273 = vadd.f32 %v10180, %v10272
    %v10274 = vpop.f32.mrf.mxu0
    %v10275 = vpop.f32.mrf.mxu0
    %v10276 = vadd.f32 %v10180, %v10275
    %v10277 = vpop.f32.mrf.mxu0
    %10278 = vmatprep.mubr.bf16.mxu0 0
    %10279 = vmatmul.mubr.bf16.gmra.mxu0 %v10129
    %v10280 = vpop.f32.mrf.mxu0
    %v10281 = vadd.f32 %v10180, %v10280
    %v10282 = vpop.f32.mrf.mxu0
    %v10283 = vpop.f32.mrf.mxu0
    %v10284 = vadd.f32 %v10180, %v10283
    %v10285 = vpop.f32.mrf.mxu0
    %10286 = vmatprep.mubr.bf16.mxu0 0
    %10287 = vmatmul.mubr.bf16.gmra.mxu0 %v10130
    %v10288 = vpop.f32.mrf.mxu0
    %v10289 = vadd.f32 %v10180, %v10288
    %v10290 = vpop.f32.mrf.mxu0
    %v10291 = vpop.f32.mrf.mxu0
    %v10292 = vadd.f32 %v10180, %v10291
    %v10293 = vpop.f32.mrf.mxu0
    %10294 = vmatprep.mubr.bf16.mxu0 0
    %10295 = vmatmul.mubr.bf16.gmra.mxu0 %v10131
    %v10296 = vpop.f32.mrf.mxu0
    %v10297 = vadd.f32 %v10180, %v10296
    %v10298 = vpop.f32.mrf.mxu0
    %v10299 = vpop.f32.mrf.mxu0
    %v10300 = vadd.f32 %v10180, %v10299
    %v10301 = vpop.f32.mrf.mxu0
    %10302 = vmatprep.mubr.bf16.mxu0 0
    %10303 = vmatmul.mubr.bf16.gmra.mxu0 %v10132
    %v10304 = vpop.f32.mrf.mxu0
    %v10305 = vadd.f32 %v10180, %v10304
    %v10306 = vpop.f32.mrf.mxu0
    %v10307 = vpop.f32.mrf.mxu0
    %v10308 = vadd.f32 %v10180, %v10307
    %v10309 = vpop.f32.mrf.mxu0
    %10310 = vmatprep.mubr.bf16.mxu0 0
    %10311 = vmatmul.mubr.bf16.gmra.mxu0 %v10133
    %v10312 = vpop.f32.mrf.mxu0
    %v10313 = vadd.f32 %v10180, %v10312
    %v10314 = vpop.f32.mrf.mxu0
    %v10315 = vpop.f32.mrf.mxu0
    %v10316 = vadd.f32 %v10180, %v10315
    %v10317 = vpop.f32.mrf.mxu0
    %10318 = vmatprep.mubr.bf16.mxu0 0
    %10319 = vmatmul.mubr.bf16.gmra.mxu0 %v10134
    %v10320 = vpop.f32.mrf.mxu0
    %v10321 = vadd.f32 %v10180, %v10320
    %v10322 = vpop.f32.mrf.mxu0
    %v10323 = vpop.f32.mrf.mxu0
    %v10324 = vadd.f32 %v10180, %v10323
    %v10325 = vpop.f32.mrf.mxu0
    %10326 = vmatprep.mubr.bf16.mxu0 0
    %10327 = vmatmul.mubr.bf16.gmra.mxu0 %v10135
    %v10328 = vpop.f32.mrf.mxu0
    %v10329 = vadd.f32 %v10180, %v10328
    %v10330 = vpop.f32.mrf.mxu0
    %v10331 = vpop.f32.mrf.mxu0
    %v10332 = vadd.f32 %v10180, %v10331
    %v10333 = vpop.f32.mrf.mxu0
    %10334 = vmatprep.mubr.bf16.mxu0 0
    %10335 = vmatmul.mubr.bf16.gmra.mxu0 %v10136
    %v10336 = vpop.f32.mrf.mxu0
    %v10337 = vadd.f32 %v10180, %v10336
    %v10338 = vpop.f32.mrf.mxu0
    %v10339 = vpop.f32.mrf.mxu0
    %v10340 = vadd.f32 %v10180, %v10339
    %v10341 = vpop.f32.mrf.mxu0
    %10342 = vmatprep.mubr.bf16.mxu0 0
    %10343 = vmatmul.mubr.bf16.gmra.mxu0 %v10137
    %v10344 = vpop.f32.mrf.mxu0
    %v10345 = vadd.f32 %v10180, %v10344
    %v10346 = vpop.f32.mrf.mxu0
    %v10347 = vpop.f32.mrf.mxu0
    %v10348 = vadd.f32 %v10180, %v10347
    %v10349 = vpop.f32.mrf.mxu0
    %10350 = vmatprep.mubr.bf16.mxu0 0
    %10351 = vmatmul.mubr.bf16.gmra.mxu0 %v10138
    %v10352 = vpop.f32.mrf.mxu0
    %v10353 = vadd.f32 %v10180, %v10352
    %v10354 = vpop.f32.mrf.mxu0
    %v10355 = vpop.f32.mrf.mxu0
    %v10356 = vadd.f32 %v10180, %v10355
    %v10357 = vpop.f32.mrf.mxu0
    %10358 = vmatprep.mubr.bf16.mxu0 0
    %10359 = vmatmul.mubr.bf16.gmra.mxu0 %v10139
    %v10360 = vpop.f32.mrf.mxu0
    %v10361 = vadd.f32 %v10180, %v10360
    %v10362 = vpop.f32.mrf.mxu0
    %v10363 = vpop.f32.mrf.mxu0
    %v10364 = vadd.f32 %v10180, %v10363
    %v10365 = vpop.f32.mrf.mxu0
    %10366 = vmatprep.mubr.bf16.mxu0 0
    %10367 = vmatmul.mubr.bf16.gmra.mxu0 %v10140
    %v10368 = vpop.f32.mrf.mxu0
    %v10369 = vadd.f32 %v10180, %v10368
    %v10370 = vpop.f32.mrf.mxu0
    %v10371 = vpop.f32.mrf.mxu0
    %v10372 = vadd.f32 %v10180, %v10371
    %v10373 = vpop.f32.mrf.mxu0
    %10374 = vmatprep.mubr.bf16.mxu0 0
    %10375 = vmatmul.mubr.bf16.gmra.mxu0 %v10141
    %v10376 = vpop.f32.mrf.mxu0
    %v10377 = vadd.f32 %v10180, %v10376
    %v10378 = vpop.f32.mrf.mxu0
    %v10379 = vpop.f32.mrf.mxu0
    %v10380 = vadd.f32 %v10180, %v10379
    %v10381 = vpop.f32.mrf.mxu0
    %10382 = vmatprep.mubr.bf16.mxu0 0
    %10383 = vmatmul.mubr.bf16.gmra.mxu0 %v10142
    %v10384 = vpop.f32.mrf.mxu0
    %v10385 = vadd.f32 %v10180, %v10384
    %v10386 = vpop.f32.mrf.mxu0
    %v10387 = vpop.f32.mrf.mxu0
    %v10388 = vadd.f32 %v10180, %v10387
    %v10389 = vpop.f32.mrf.mxu0
    %10390 = vmatprep.mubr.bf16.mxu0 0
    %10391 = vmatmul.mubr.bf16.gmra.mxu0 %v10143
    %v10392 = vpop.f32.mrf.mxu0
    %v10393 = vadd.f32 %v10180, %v10392
    %v10394 = vpop.f32.mrf.mxu0
    %v10395 = vpop.f32.mrf.mxu0
    %v10396 = vadd.f32 %v10180, %v10395
    %v10397 = vpop.f32.mrf.mxu0
    %10398 = vmatprep.mubr.bf16.mxu0 0
    %10399 = vmatmul.mubr.bf16.gmra.mxu0 %v10144
    %v10400 = vpop.f32.mrf.mxu0
    %v10401 = vadd.f32 %v10180, %v10400
    %v10402 = vpop.f32.mrf.mxu0
    %v10403 = vpop.f32.mrf.mxu0
    %v10404 = vadd.f32 %v10180, %v10403
    %v10405 = vpop.f32.mrf.mxu0
    %10406 = vmatprep.mubr.bf16.mxu0 0
    %10407 = vmatmul.mubr.bf16.gmra.mxu0 %v10145
    %v10408 = vpop.f32.mrf.mxu0
    %v10409 = vadd.f32 %v10180, %v10408
    %v10410 = vpop.f32.mrf.mxu0
    %v10411 = vpop.f32.mrf.mxu0
    %v10412 = vadd.f32 %v10180, %v10411
    %v10413 = vpop.f32.mrf.mxu0
    %10414 = vmatprep.mubr.bf16.mxu0 0
    %10415 = vmatmul.mubr.bf16.gmra.mxu0 %v10146
    %v10416 = vpop.f32.mrf.mxu0
    %v10417 = vadd.f32 %v10180, %v10416
    %v10418 = vpop.f32.mrf.mxu0
    %v10419 = vpop.f32.mrf.mxu0
    %v10420 = vadd.f32 %v10180, %v10419
    %v10421 = vpop.f32.mrf.mxu0
    %10422 = vmatprep.mubr.bf16.mxu0 0
    %10423 = vmatmul.mubr.bf16.gmra.mxu0 %v10147
    %v10424 = vpop.f32.mrf.mxu0
    %v10425 = vadd.f32 %v10180, %v10424
    %v10426 = vpop.f32.mrf.mxu0
    %v10427 = vpop.f32.mrf.mxu0
    %v10428 = vadd.f32 %v10180, %v10427
    %v10429 = vpop.f32.mrf.mxu0
    %10430 = vmatprep.mubr.bf16.mxu0 0
    %10431 = vmatmul.mubr.bf16.gmra.mxu0 %v10148
    %v10432 = vpop.f32.mrf.mxu0
    %v10433 = vadd.f32 %v10180, %v10432
    %v10434 = vpop.f32.mrf.mxu0
    %v10435 = vpop.f32.mrf.mxu0
    %v10436 = vadd.f32 %v10180, %v10435
    %v10437 = vpop.f32.mrf.mxu0
    %10438 = vmatprep.mubr.bf16.mxu0 0
    %10439 = vmatmul.mubr.bf16.gmra.mxu0 %v10149
    %v10440 = vpop.f32.mrf.mxu0
    %v10441 = vadd.f32 %v10180, %v10440
    %v10442 = vpop.f32.mrf.mxu0
    %v10443 = vpop.f32.mrf.mxu0
    %v10444 = vadd.f32 %v10180, %v10443
    %v10445 = vpop.f32.mrf.mxu0
    %10446 = vmatprep.mubr.bf16.mxu0 0
    %10447 = vmatmul.mubr.bf16.gmra.mxu0 %v10150
    %v10448 = vpop.f32.mrf.mxu0
    %v10449 = vadd.f32 %v10180, %v10448
    %v10450 = vpop.f32.mrf.mxu0
    %v10451 = vpop.f32.mrf.mxu0
    %v10452 = vadd.f32 %v10180, %v10451
    %v10453 = vpop.f32.mrf.mxu0
    %10454 = vmatprep.mubr.bf16.mxu0 0
    %10455 = vmatmul.mubr.bf16.gmra.mxu0 %v10151
    %v10456 = vpop.f32.mrf.mxu0
    %v10457 = vadd.f32 %v10180, %v10456
    %v10458 = vpop.f32.mrf.mxu0
    %v10459 = vpop.f32.mrf.mxu0
    %v10460 = vadd.f32 %v10180, %v10459
    %v10461 = vpop.f32.mrf.mxu0
    %10462 = vmatprep.mubr.bf16.mxu0 0
    %10463 = vmatmul.mubr.bf16.gmra.mxu0 %v10152
    %v10464 = vpop.f32.mrf.mxu0
    %v10465 = vadd.f32 %v10180, %v10464
    %v10466 = vpop.f32.mrf.mxu0
    %v10467 = vpop.f32.mrf.mxu0
    %v10468 = vadd.f32 %v10180, %v10467
    %v10469 = vpop.f32.mrf.mxu0
    %10470 = vmatprep.mubr.bf16.mxu0 0
    %10471 = vmatmul.mubr.bf16.gmra.mxu0 %v10153
    %v10472 = vpop.f32.mrf.mxu0
    %v10473 = vadd.f32 %v10180, %v10472
    %v10474 = vpop.f32.mrf.mxu0
    %v10475 = vpop.f32.mrf.mxu0
    %v10476 = vadd.f32 %v10180, %v10475
    %v10477 = vpop.f32.mrf.mxu0
    %10478 = vmatprep.mubr.bf16.mxu0 0
    %10479 = vmatmul.mubr.bf16.gmra.mxu0 %v10154
    %v10480 = vpop.f32.mrf.mxu0
    %v10481 = vadd.f32 %v10180, %v10480
    %v10482 = vpop.f32.mrf.mxu0
    %v10483 = vpop.f32.mrf.mxu0
    %v10484 = vadd.f32 %v10180, %v10483
    %v10485 = vpop.f32.mrf.mxu0
    %10486 = vmatprep.mubr.bf16.mxu0 0
    %10487 = vmatmul.mubr.bf16.gmra.mxu0 %v10155
    %v10488 = vpop.f32.mrf.mxu0
    %v10489 = vadd.f32 %v10180, %v10488
    %v10490 = vpop.f32.mrf.mxu0
    %v10491 = vpop.f32.mrf.mxu0
    %v10492 = vadd.f32 %v10180, %v10491
    %v10493 = vpop.f32.mrf.mxu0
    %10494 = vmatprep.mubr.bf16.mxu0 0
    %10495 = vmatmul.mubr.bf16.gmra.mxu0 %v10156
    %v10496 = vpop.f32.mrf.mxu0
    %v10497 = vadd.f32 %v10180, %v10496
    %v10498 = vpop.f32.mrf.mxu0
    %v10499 = vpop.f32.mrf.mxu0
    %v10500 = vadd.f32 %v10180, %v10499
    %v10501 = vpop.f32.mrf.mxu0
    %10502 = vmatprep.mubr.bf16.mxu0 0
    %10503 = vmatmul.mubr.bf16.gmra.mxu0 %v10157
    %v10504 = vpop.f32.mrf.mxu0
    %v10505 = vadd.f32 %v10180, %v10504
    %v10506 = vpop.f32.mrf.mxu0
    %v10507 = vpop.f32.mrf.mxu0
    %v10508 = vadd.f32 %v10180, %v10507
    %v10509 = vpop.f32.mrf.mxu0
    %10510 = vmatprep.mubr.bf16.mxu0 0
    %10511 = vmatmul.mubr.bf16.gmra.mxu0 %v10158
    %v10512 = vpop.f32.mrf.mxu0
    %v10513 = vadd.f32 %v10180, %v10512
    %v10514 = vpop.f32.mrf.mxu0
    %v10515 = vpop.f32.mrf.mxu0
    %v10516 = vadd.f32 %v10180, %v10515
    %v10517 = vpop.f32.mrf.mxu0
    %10518 = vdwg.mxu0
    %v10519 = vpack.c.bf16 %v10119, %v10119
    %v10520 = vpack.c.bf16 %v10120, %v10120
    %v10521 = vpack.c.bf16 %v10121, %v10121
    %v10522 = vpack.c.bf16 %v10122, %v10122
    %v10523 = vpack.c.bf16 %v10123, %v10123
    %v10524 = vpack.c.bf16 %v10124, %v10124
    %v10525 = vpack.c.bf16 %v10125, %v10125
    %v10526 = vpack.c.bf16 %v10126, %v10126
    %v10527 = vld [vmem:[#allocation34] sm:$0xf]
    %v10528 = vld [vmem:[#allocation34 + $0x4] sm:$0xf]
    %v10529 = vld [vmem:[#allocation34 + $0x8] sm:$0xf]
    %v10530 = vld [vmem:[#allocation34 + $0xc] sm:$0xf]
    %v10531 = vld [vmem:[#allocation34 + $0x10] sm:$0xf]
    %v10532 = vld [vmem:[#allocation34 + $0x14] sm:$0xf]
    %v10533 = vld [vmem:[#allocation34 + $0x18] sm:$0xf]
    %v10534 = vld [vmem:[#allocation34 + $0x1c] sm:$0xf]
    %v10535 = vld [vmem:[#allocation34 + $0x20] sm:$0xf]
    %v10536 = vld [vmem:[#allocation34 + $0x24] sm:$0xf]
    %v10537 = vld [vmem:[#allocation34 + $0x28] sm:$0xf]
    %v10538 = vld [vmem:[#allocation34 + $0x2c] sm:$0xf]
    %v10539 = vld [vmem:[#allocation34 + $0x30] sm:$0xf]
    %v10540 = vld [vmem:[#allocation34 + $0x34] sm:$0xf]
    %v10541 = vld [vmem:[#allocation34 + $0x38] sm:$0xf]
    %v10542 = vld [vmem:[#allocation34 + $0x3c] sm:$0xf]
    %v10551 = vunpack.c.l.b16 %v10519
    %v10552 = vunpack.c.l.b16 %v10520
    %v10553 = vunpack.c.l.b16 %v10521
    %v10554 = vunpack.c.l.b16 %v10522
    %v10555 = vunpack.c.l.b16 %v10523
    %v10556 = vunpack.c.l.b16 %v10524
    %v10557 = vunpack.c.l.b16 %v10525
    %v10558 = vunpack.c.l.b16 %v10526
    %v10559 = vsel %vm4387, %v10552, %v10551
    %v10560 = vsel %vm4389, %v10553, %v10559
    %v10561 = vsel %vm4391, %v10554, %v10560
    %v10562 = vsel %vm4393, %v10555, %v10561
    %v10563 = vsel %vm4395, %v10556, %v10562
    %v10564 = vsel %vm4397, %v10557, %v10563
    %v10565 = vsel %vm4399, %v10558, %v10564
    %v10566 = vpack.c.b16 %v10565, %v10565
    %v10584 = vunpack.c.l.b16 %v10527
    %v10585 = vunpack.c.l.b16 %v10528
    %v10586 = vunpack.c.l.b16 %v10529
    %v10587 = vunpack.c.l.b16 %v10530
    %v10588 = vunpack.c.l.b16 %v10531
    %v10589 = vunpack.c.l.b16 %v10532
    %v10590 = vunpack.c.l.b16 %v10533
    %v10591 = vunpack.c.l.b16 %v10534
    %v10592 = vunpack.c.l.b16 %v10535
    %v10593 = vunpack.c.l.b16 %v10536
    %v10594 = vunpack.c.l.b16 %v10537
    %v10595 = vunpack.c.l.b16 %v10538
    %v10596 = vunpack.c.l.b16 %v10539
    %v10597 = vunpack.c.l.b16 %v10540
    %v10598 = vunpack.c.l.b16 %v10541
    %v10599 = vunpack.c.l.b16 %v10542
    %v10600 = vpack.c.b16 %v10585, %v10584
    %v10601 = vpack.c.b16 %v10587, %v10586
    %v10602 = vpack.c.b16 %v10589, %v10588
    %v10603 = vpack.c.b16 %v10591, %v10590
    %v10604 = vpack.c.b16 %v10593, %v10592
    %v10605 = vpack.c.b16 %v10595, %v10594
    %v10606 = vpack.c.b16 %v10597, %v10596
    %v10607 = vpack.c.b16 %v10599, %v10598
    %10616 = vmatprep.subr.bf16.mxu0 0
    %10617 = vmatpush1.bf16.msra.mxu0 %v10607
    %10618 = vmatprep.subr.bf16.mxu0 0
    %10619 = vmatpush1.bf16.msra.mxu0 %v10606
    %10620 = vmatprep.subr.bf16.mxu0 0
    %10621 = vmatpush1.bf16.msra.mxu0 %v10605
    %10622 = vmatprep.subr.bf16.mxu0 0
    %10623 = vmatpush1.bf16.msra.mxu0 %v10604
    %10624 = vmatprep.subr.bf16.mxu0 0
    %10625 = vmatpush1.bf16.msra.mxu0 %v10603
    %10626 = vmatprep.subr.bf16.mxu0 0
    %10627 = vmatpush1.bf16.msra.mxu0 %v10602
    %10628 = vmatprep.subr.bf16.mxu0 0
    %10629 = vmatpush1.bf16.msra.mxu0 %v10601
    %10630 = vmatprep.subr.bf16.mxu0 0
    %10631 = vmatpush1.bf16.msra.mxu0 %v10600
    %10632 = vmatprep.subr.bf16.mxu0 0
    %10633 = vmatpush2.bf16.msra.mxu0 0
    %10634 = vmatprep.subr.bf16.mxu0 0
    %10635 = vmatpush2.bf16.msra.mxu0 0
    %10636 = vmatprep.subr.bf16.mxu0 0
    %10637 = vmatpush2.bf16.msra.mxu0 0
    %10638 = vmatprep.subr.bf16.mxu0 0
    %10639 = vmatpush2.bf16.msra.mxu0 0
    %10640 = vmatprep.subr.bf16.mxu0 0
    %10641 = vmatpush2.bf16.msra.mxu0 0
    %10642 = vmatprep.subr.bf16.mxu0 0
    %10643 = vmatpush2.bf16.msra.mxu0 0
    %10644 = vmatprep.subr.bf16.mxu0 0
    %10645 = vmatpush2.bf16.msra.mxu0 0
    %10646 = vmatprep.subr.bf16.mxu0 0
    %10647 = vmatpush2.bf16.msra.mxu0 0
    %10648 = vmatprep.mubr.bf16.mxu0 0
    %10649 = vmatmul.mubr.bf16.gmra.mxu0 %v10566
    %v10650 = vpop.f32.mrf.mxu0
    %v10651 = vadd.f32 0.0, %v10650
    %v10652 = vpop.f32.mrf.mxu0
    %v10653 = vpop.f32.mrf.mxu0
    %v10654 = vpop.f32.mrf.mxu0
    %10655 = vdwg.mxu0
    %v10657 = vcombine.high %v10651, %v10651
    %v10659 = vunpack.c.l.s4 1966171168
    %v10660 = vunpack.c.0.s8 %v10659
    %v10661 = vlaneseq
    %v10662 = vshrl.u32 %v10661, 7
    %v10663 = vsub.s32 %v10660, %v10662
    %v10664 = vrot.slane %v10651, %v10663
    %v10666 = vunpack.c.l.s4 1966171168
    %v10667 = vunpack.c.0.s8 %v10666
    %v10668 = vlaneseq
    %v10669 = vshrl.u32 %v10668, 7
    %v10670 = vsub.s32 %v10667, %v10669
    %v10671 = vrot.slane %v10657, %v10670
    %v10672 = vcombine.high %v10664, %v10664
    %v10673 = vcombine.high %v10671, %v10671
    %v10675 = vunpack.c.l.s4 1966171168
    %v10676 = vunpack.c.0.s8 %v10675
    %v10677 = vlaneseq
    %v10678 = vshrl.u32 %v10677, 7
    %v10679 = vsub.s32 %v10676, %v10678
    %v10680 = vrot.slane %v10664, %v10679
    %v10682 = vunpack.c.l.s4 1966171168
    %v10683 = vunpack.c.0.s8 %v10682
    %v10684 = vlaneseq
    %v10685 = vshrl.u32 %v10684, 7
    %v10686 = vsub.s32 %v10683, %v10685
    %v10687 = vrot.slane %v10671, %v10686
    %v10689 = vunpack.c.l.s4 1966171168
    %v10690 = vunpack.c.0.s8 %v10689
    %v10691 = vlaneseq
    %v10692 = vshrl.u32 %v10691, 7
    %v10693 = vsub.s32 %v10690, %v10692
    %v10694 = vrot.slane %v10672, %v10693
    %v10696 = vunpack.c.l.s4 1966171168
    %v10697 = vunpack.c.0.s8 %v10696
    %v10698 = vlaneseq
    %v10699 = vshrl.u32 %v10698, 7
    %v10700 = vsub.s32 %v10697, %v10699
    %v10701 = vrot.slane %v10673, %v10700
    %v10702 = vcombine.high %v10680, %v10680
    %v10703 = vcombine.high %v10687, %v10687
    %v10704 = vcombine.high %v10694, %v10694
    %v10705 = vcombine.high %v10701, %v10701
    %v10706 = vlaneseq
    %v10707 = vshrl.u32 %v10706, 7
    %v10708 = vsub.s32 0, %v10707
    %v10709 = vrot.slane %v10680, %v10708
    %v10710 = vlaneseq
    %v10711 = vshrl.u32 %v10710, 7
    %v10712 = vsub.s32 0, %v10711
    %v10713 = vrot.slane %v10694, %v10712
    %v10714 = vlaneseq
    %v10715 = vshrl.u32 %v10714, 7
    %v10716 = vsub.s32 0, %v10715
    %v10717 = vrot.slane %v10702, %v10716
    %v10718 = vlaneseq
    %v10719 = vshrl.u32 %v10718, 7
    %v10720 = vsub.s32 0, %v10719
    %v10721 = vrot.slane %v10704, %v10720
    %v10722 = vlaneseq
    %v10723 = vshrl.u32 %v10722, 7
    %v10724 = vsub.s32 0, %v10723
    %v10725 = vrot.slane %v10687, %v10724
    %v10726 = vlaneseq
    %v10727 = vshrl.u32 %v10726, 7
    %v10728 = vsub.s32 0, %v10727
    %v10729 = vrot.slane %v10701, %v10728
    %v10730 = vlaneseq
    %v10731 = vshrl.u32 %v10730, 7
    %v10732 = vsub.s32 0, %v10731
    %v10733 = vrot.slane %v10703, %v10732
    %v10734 = vlaneseq
    %v10735 = vshrl.u32 %v10734, 7
    %v10736 = vsub.s32 0, %v10735
    %v10737 = vrot.slane %v10705, %v10736
    %v10746 = vadd.f32 %v10265, %v10709
    %v10747 = vadd.f32 %v10268, %v10709
    %v10748 = vadd.f32 %v10273, %v10709
    %v10749 = vadd.f32 %v10276, %v10709
    %v10750 = vadd.f32 %v10281, %v10709
    %v10751 = vadd.f32 %v10284, %v10709
    %v10752 = vadd.f32 %v10289, %v10709
    %v10753 = vadd.f32 %v10292, %v10709
    %v10754 = vadd.f32 %v10297, %v10713
    %v10755 = vadd.f32 %v10300, %v10713
    %v10756 = vadd.f32 %v10305, %v10713
    %v10757 = vadd.f32 %v10308, %v10713
    %v10758 = vadd.f32 %v10313, %v10713
    %v10759 = vadd.f32 %v10316, %v10713
    %v10760 = vadd.f32 %v10321, %v10713
    %v10761 = vadd.f32 %v10324, %v10713
    %v10762 = vadd.f32 %v10329, %v10717
    %v10763 = vadd.f32 %v10332, %v10717
    %v10764 = vadd.f32 %v10337, %v10717
    %v10765 = vadd.f32 %v10340, %v10717
    %v10766 = vadd.f32 %v10345, %v10717
    %v10767 = vadd.f32 %v10348, %v10717
    %v10768 = vadd.f32 %v10353, %v10717
    %v10769 = vadd.f32 %v10356, %v10717
    %v10770 = vadd.f32 %v10361, %v10721
    %v10771 = vadd.f32 %v10364, %v10721
    %v10772 = vadd.f32 %v10369, %v10721
    %v10773 = vadd.f32 %v10372, %v10721
    %v10774 = vadd.f32 %v10377, %v10721
    %v10775 = vadd.f32 %v10380, %v10721
    %v10776 = vadd.f32 %v10385, %v10721
    %v10777 = vadd.f32 %v10388, %v10721
    %v10778 = vadd.f32 %v10393, %v10725
    %v10779 = vadd.f32 %v10396, %v10725
    %v10780 = vadd.f32 %v10401, %v10725
    %v10781 = vadd.f32 %v10404, %v10725
    %v10782 = vadd.f32 %v10409, %v10725
    %v10783 = vadd.f32 %v10412, %v10725
    %v10784 = vadd.f32 %v10417, %v10725
    %v10785 = vadd.f32 %v10420, %v10725
    %v10786 = vadd.f32 %v10425, %v10729
    %v10787 = vadd.f32 %v10428, %v10729
    %v10788 = vadd.f32 %v10433, %v10729
    %v10789 = vadd.f32 %v10436, %v10729
    %v10790 = vadd.f32 %v10441, %v10729
    %v10791 = vadd.f32 %v10444, %v10729
    %v10792 = vadd.f32 %v10449, %v10729
    %v10793 = vadd.f32 %v10452, %v10729
    %v10794 = vadd.f32 %v10457, %v10733
    %v10795 = vadd.f32 %v10460, %v10733
    %v10796 = vadd.f32 %v10465, %v10733
    %v10797 = vadd.f32 %v10468, %v10733
    %v10798 = vadd.f32 %v10473, %v10733
    %v10799 = vadd.f32 %v10476, %v10733
    %v10800 = vadd.f32 %v10481, %v10733
    %v10801 = vadd.f32 %v10484, %v10733
    %v10802 = vadd.f32 %v10489, %v10737
    %v10803 = vadd.f32 %v10492, %v10737
    %v10804 = vadd.f32 %v10497, %v10737
    %v10805 = vadd.f32 %v10500, %v10737
    %v10806 = vadd.f32 %v10505, %v10737
    %v10807 = vadd.f32 %v10508, %v10737
    %v10808 = vadd.f32 %v10513, %v10737
    %v10809 = vadd.f32 %v10516, %v10737
    %v10810 = vmax.f32 %v10746, 0.0
    %v10811 = vmax.f32 %v10747, 0.0
    %v10812 = vmax.f32 %v10748, 0.0
    %v10813 = vmax.f32 %v10749, 0.0
    %v10814 = vmax.f32 %v10750, 0.0
    %v10815 = vmax.f32 %v10751, 0.0
    %v10816 = vmax.f32 %v10752, 0.0
    %v10817 = vmax.f32 %v10753, 0.0
    %v10818 = vmax.f32 %v10754, 0.0
    %v10819 = vmax.f32 %v10755, 0.0
    %v10820 = vmax.f32 %v10756, 0.0
    %v10821 = vmax.f32 %v10757, 0.0
    %v10822 = vmax.f32 %v10758, 0.0
    %v10823 = vmax.f32 %v10759, 0.0
    %v10824 = vmax.f32 %v10760, 0.0
    %v10825 = vmax.f32 %v10761, 0.0
    %v10826 = vmax.f32 %v10762, 0.0
    %v10827 = vmax.f32 %v10763, 0.0
    %v10828 = vmax.f32 %v10764, 0.0
    %v10829 = vmax.f32 %v10765, 0.0
    %v10830 = vmax.f32 %v10766, 0.0
    %v10831 = vmax.f32 %v10767, 0.0
    %v10832 = vmax.f32 %v10768, 0.0
    %v10833 = vmax.f32 %v10769, 0.0
    %v10834 = vmax.f32 %v10770, 0.0
    %v10835 = vmax.f32 %v10771, 0.0
    %v10836 = vmax.f32 %v10772, 0.0
    %v10837 = vmax.f32 %v10773, 0.0
    %v10838 = vmax.f32 %v10774, 0.0
    %v10839 = vmax.f32 %v10775, 0.0
    %v10840 = vmax.f32 %v10776, 0.0
    %v10841 = vmax.f32 %v10777, 0.0
    %v10842 = vmax.f32 %v10778, 0.0
    %v10843 = vmax.f32 %v10779, 0.0
    %v10844 = vmax.f32 %v10780, 0.0
    %v10845 = vmax.f32 %v10781, 0.0
    %v10846 = vmax.f32 %v10782, 0.0
    %v10847 = vmax.f32 %v10783, 0.0
    %v10848 = vmax.f32 %v10784, 0.0
    %v10849 = vmax.f32 %v10785, 0.0
    %v10850 = vmax.f32 %v10786, 0.0
    %v10851 = vmax.f32 %v10787, 0.0
    %v10852 = vmax.f32 %v10788, 0.0
    %v10853 = vmax.f32 %v10789, 0.0
    %v10854 = vmax.f32 %v10790, 0.0
    %v10855 = vmax.f32 %v10791, 0.0
    %v10856 = vmax.f32 %v10792, 0.0
    %v10857 = vmax.f32 %v10793, 0.0
    %v10858 = vmax.f32 %v10794, 0.0
    %v10859 = vmax.f32 %v10795, 0.0
    %v10860 = vmax.f32 %v10796, 0.0
    %v10861 = vmax.f32 %v10797, 0.0
    %v10862 = vmax.f32 %v10798, 0.0
    %v10863 = vmax.f32 %v10799, 0.0
    %v10864 = vmax.f32 %v10800, 0.0
    %v10865 = vmax.f32 %v10801, 0.0
    %v10866 = vmax.f32 %v10802, 0.0
    %v10867 = vmax.f32 %v10803, 0.0
    %v10868 = vmax.f32 %v10804, 0.0
    %v10869 = vmax.f32 %v10805, 0.0
    %v10870 = vmax.f32 %v10806, 0.0
    %v10871 = vmax.f32 %v10807, 0.0
    %v10872 = vmax.f32 %v10808, 0.0
    %v10873 = vmax.f32 %v10809, 0.0
    %v10874 = vpack.c.bf16 %v10811, %v10810
    %v10875 = vpack.c.bf16 %v10813, %v10812
    %v10876 = vpack.c.bf16 %v10815, %v10814
    %v10877 = vpack.c.bf16 %v10817, %v10816
    %v10878 = vpack.c.bf16 %v10819, %v10818
    %v10879 = vpack.c.bf16 %v10821, %v10820
    %v10880 = vpack.c.bf16 %v10823, %v10822
    %v10881 = vpack.c.bf16 %v10825, %v10824
    %v10882 = vpack.c.bf16 %v10827, %v10826
    %v10883 = vpack.c.bf16 %v10829, %v10828
    %v10884 = vpack.c.bf16 %v10831, %v10830
    %v10885 = vpack.c.bf16 %v10833, %v10832
    %v10886 = vpack.c.bf16 %v10835, %v10834
    %v10887 = vpack.c.bf16 %v10837, %v10836
    %v10888 = vpack.c.bf16 %v10839, %v10838
    %v10889 = vpack.c.bf16 %v10841, %v10840
    %v10890 = vpack.c.bf16 %v10843, %v10842
    %v10891 = vpack.c.bf16 %v10845, %v10844
    %v10892 = vpack.c.bf16 %v10847, %v10846
    %v10893 = vpack.c.bf16 %v10849, %v10848
    %v10894 = vpack.c.bf16 %v10851, %v10850
    %v10895 = vpack.c.bf16 %v10853, %v10852
    %v10896 = vpack.c.bf16 %v10855, %v10854
    %v10897 = vpack.c.bf16 %v10857, %v10856
    %v10898 = vpack.c.bf16 %v10859, %v10858
    %v10899 = vpack.c.bf16 %v10861, %v10860
    %v10900 = vpack.c.bf16 %v10863, %v10862
    %v10901 = vpack.c.bf16 %v10865, %v10864
    %v10902 = vpack.c.bf16 %v10867, %v10866
    %v10903 = vpack.c.bf16 %v10869, %v10868
    %v10904 = vpack.c.bf16 %v10871, %v10870
    %v10905 = vpack.c.bf16 %v10873, %v10872
    %v10906 = vld [vmem:[#allocation37] sm:$0xf]
    %v10907 = vld [vmem:[#allocation37 + $0x4] sm:$0xf]
    %v10908 = vld [vmem:[#allocation37 + $0x8] sm:$0xf]
    %v10909 = vld [vmem:[#allocation37 + $0xc] sm:$0xf]
    %v10910 = vld [vmem:[#allocation37 + $0x10] sm:$0xf]
    %v10911 = vld [vmem:[#allocation37 + $0x14] sm:$0xf]
    %v10912 = vld [vmem:[#allocation37 + $0x18] sm:$0xf]
    %v10913 = vld [vmem:[#allocation37 + $0x1c] sm:$0xf]
    %v10914 = vld [vmem:[#allocation37 + $0x20] sm:$0xf]
    %v10915 = vld [vmem:[#allocation37 + $0x24] sm:$0xf]
    %v10916 = vld [vmem:[#allocation37 + $0x28] sm:$0xf]
    %v10917 = vld [vmem:[#allocation37 + $0x2c] sm:$0xf]
    %v10918 = vld [vmem:[#allocation37 + $0x30] sm:$0xf]
    %v10919 = vld [vmem:[#allocation37 + $0x34] sm:$0xf]
    %v10920 = vld [vmem:[#allocation37 + $0x38] sm:$0xf]
    %v10921 = vld [vmem:[#allocation37 + $0x3c] sm:$0xf]
    %v10922 = vld [vmem:[%s67] sm:$0x1]
    %v10924 = vlaneseq
    %v10925 = vshrl.u32 %v10924, 7
    %v10926 = vsub.s32 0, %v10925
    %v10927 = vrot.slane %v10922, %v10926
    %v10945 = vunpack.c.l.b16 %v10906
    %v10946 = vunpack.c.l.b16 %v10907
    %v10947 = vunpack.c.l.b16 %v10908
    %v10948 = vunpack.c.l.b16 %v10909
    %v10949 = vunpack.c.l.b16 %v10910
    %v10950 = vunpack.c.l.b16 %v10911
    %v10951 = vunpack.c.l.b16 %v10912
    %v10952 = vunpack.c.l.b16 %v10913
    %v10953 = vunpack.c.l.b16 %v10914
    %v10954 = vunpack.c.l.b16 %v10915
    %v10955 = vunpack.c.l.b16 %v10916
    %v10956 = vunpack.c.l.b16 %v10917
    %v10957 = vunpack.c.l.b16 %v10918
    %v10958 = vunpack.c.l.b16 %v10919
    %v10959 = vunpack.c.l.b16 %v10920
    %v10960 = vunpack.c.l.b16 %v10921
    %v10961 = vpack.c.b16 %v10946, %v10945
    %v10962 = vpack.c.b16 %v10948, %v10947
    %v10963 = vpack.c.b16 %v10950, %v10949
    %v10964 = vpack.c.b16 %v10952, %v10951
    %v10965 = vpack.c.b16 %v10954, %v10953
    %v10966 = vpack.c.b16 %v10956, %v10955
    %v10967 = vpack.c.b16 %v10958, %v10957
    %v10968 = vpack.c.b16 %v10960, %v10959
    %10977 = vmatprep.subr.bf16.mxu0 0
    %10978 = vmatpush1.bf16.msra.mxu0 %v10968
    %10979 = vmatprep.subr.bf16.mxu0 0
    %10980 = vmatpush1.bf16.msra.mxu0 %v10967
    %10981 = vmatprep.subr.bf16.mxu0 0
    %10982 = vmatpush1.bf16.msra.mxu0 %v10966
    %10983 = vmatprep.subr.bf16.mxu0 0
    %10984 = vmatpush1.bf16.msra.mxu0 %v10965
    %10985 = vmatprep.subr.bf16.mxu0 0
    %10986 = vmatpush1.bf16.msra.mxu0 %v10964
    %10987 = vmatprep.subr.bf16.mxu0 0
    %10988 = vmatpush1.bf16.msra.mxu0 %v10963
    %10989 = vmatprep.subr.bf16.mxu0 0
    %10990 = vmatpush1.bf16.msra.mxu0 %v10962
    %10991 = vmatprep.subr.bf16.mxu0 0
    %10992 = vmatpush1.bf16.msra.mxu0 %v10961
    %10993 = vmatprep.subr.bf16.mxu0 0
    %10994 = vmatpush2.bf16.msra.mxu0 0
    %10995 = vmatprep.subr.bf16.mxu0 0
    %10996 = vmatpush2.bf16.msra.mxu0 0
    %10997 = vmatprep.subr.bf16.mxu0 0
    %10998 = vmatpush2.bf16.msra.mxu0 0
    %10999 = vmatprep.subr.bf16.mxu0 0
    %11000 = vmatpush2.bf16.msra.mxu0 0
    %11001 = vmatprep.subr.bf16.mxu0 0
    %11002 = vmatpush2.bf16.msra.mxu0 0
    %11003 = vmatprep.subr.bf16.mxu0 0
    %11004 = vmatpush2.bf16.msra.mxu0 0
    %11005 = vmatprep.subr.bf16.mxu0 0
    %11006 = vmatpush2.bf16.msra.mxu0 0
    %11007 = vmatprep.subr.bf16.mxu0 0
    %11008 = vmatpush2.bf16.msra.mxu0 0
    %11009 = vmatprep.mubr.bf16.mxu0 0
    %11010 = vmatmul.mubr.bf16.gmra.mxu0 %v10874
    %v11011 = vpop.f32.mrf.mxu0
    %v11012 = vadd.f32 %v10927, %v11011
    %v11013 = vpop.f32.mrf.mxu0
    %v11014 = vpop.f32.mrf.mxu0
    %v11015 = vadd.f32 %v10927, %v11014
    %v11016 = vpop.f32.mrf.mxu0
    %11017 = vmatprep.mubr.bf16.mxu0 0
    %11018 = vmatmul.mubr.bf16.gmra.mxu0 %v10875
    %v11019 = vpop.f32.mrf.mxu0
    %v11020 = vadd.f32 %v10927, %v11019
    %v11021 = vpop.f32.mrf.mxu0
    %v11022 = vpop.f32.mrf.mxu0
    %v11023 = vadd.f32 %v10927, %v11022
    %v11024 = vpop.f32.mrf.mxu0
    %11025 = vmatprep.mubr.bf16.mxu0 0
    %11026 = vmatmul.mubr.bf16.gmra.mxu0 %v10876
    %v11027 = vpop.f32.mrf.mxu0
    %v11028 = vadd.f32 %v10927, %v11027
    %v11029 = vpop.f32.mrf.mxu0
    %v11030 = vpop.f32.mrf.mxu0
    %v11031 = vadd.f32 %v10927, %v11030
    %v11032 = vpop.f32.mrf.mxu0
    %11033 = vmatprep.mubr.bf16.mxu0 0
    %11034 = vmatmul.mubr.bf16.gmra.mxu0 %v10877
    %v11035 = vpop.f32.mrf.mxu0
    %v11036 = vadd.f32 %v10927, %v11035
    %v11037 = vpop.f32.mrf.mxu0
    %v11038 = vpop.f32.mrf.mxu0
    %v11039 = vadd.f32 %v10927, %v11038
    %v11040 = vpop.f32.mrf.mxu0
    %11041 = vmatprep.mubr.bf16.mxu0 0
    %11042 = vmatmul.mubr.bf16.gmra.mxu0 %v10878
    %v11043 = vpop.f32.mrf.mxu0
    %v11044 = vadd.f32 %v10927, %v11043
    %v11045 = vpop.f32.mrf.mxu0
    %v11046 = vpop.f32.mrf.mxu0
    %v11047 = vadd.f32 %v10927, %v11046
    %v11048 = vpop.f32.mrf.mxu0
    %11049 = vmatprep.mubr.bf16.mxu0 0
    %11050 = vmatmul.mubr.bf16.gmra.mxu0 %v10879
    %v11051 = vpop.f32.mrf.mxu0
    %v11052 = vadd.f32 %v10927, %v11051
    %v11053 = vpop.f32.mrf.mxu0
    %v11054 = vpop.f32.mrf.mxu0
    %v11055 = vadd.f32 %v10927, %v11054
    %v11056 = vpop.f32.mrf.mxu0
    %11057 = vmatprep.mubr.bf16.mxu0 0
    %11058 = vmatmul.mubr.bf16.gmra.mxu0 %v10880
    %v11059 = vpop.f32.mrf.mxu0
    %v11060 = vadd.f32 %v10927, %v11059
    %v11061 = vpop.f32.mrf.mxu0
    %v11062 = vpop.f32.mrf.mxu0
    %v11063 = vadd.f32 %v10927, %v11062
    %v11064 = vpop.f32.mrf.mxu0
    %11065 = vmatprep.mubr.bf16.mxu0 0
    %11066 = vmatmul.mubr.bf16.gmra.mxu0 %v10881
    %v11067 = vpop.f32.mrf.mxu0
    %v11068 = vadd.f32 %v10927, %v11067
    %v11069 = vpop.f32.mrf.mxu0
    %v11070 = vpop.f32.mrf.mxu0
    %v11071 = vadd.f32 %v10927, %v11070
    %v11072 = vpop.f32.mrf.mxu0
    %11073 = vmatprep.mubr.bf16.mxu0 0
    %11074 = vmatmul.mubr.bf16.gmra.mxu0 %v10882
    %v11075 = vpop.f32.mrf.mxu0
    %v11076 = vadd.f32 %v10927, %v11075
    %v11077 = vpop.f32.mrf.mxu0
    %v11078 = vpop.f32.mrf.mxu0
    %v11079 = vadd.f32 %v10927, %v11078
    %v11080 = vpop.f32.mrf.mxu0
    %11081 = vmatprep.mubr.bf16.mxu0 0
    %11082 = vmatmul.mubr.bf16.gmra.mxu0 %v10883
    %v11083 = vpop.f32.mrf.mxu0
    %v11084 = vadd.f32 %v10927, %v11083
    %v11085 = vpop.f32.mrf.mxu0
    %v11086 = vpop.f32.mrf.mxu0
    %v11087 = vadd.f32 %v10927, %v11086
    %v11088 = vpop.f32.mrf.mxu0
    %11089 = vmatprep.mubr.bf16.mxu0 0
    %11090 = vmatmul.mubr.bf16.gmra.mxu0 %v10884
    %v11091 = vpop.f32.mrf.mxu0
    %v11092 = vadd.f32 %v10927, %v11091
    %v11093 = vpop.f32.mrf.mxu0
    %v11094 = vpop.f32.mrf.mxu0
    %v11095 = vadd.f32 %v10927, %v11094
    %v11096 = vpop.f32.mrf.mxu0
    %11097 = vmatprep.mubr.bf16.mxu0 0
    %11098 = vmatmul.mubr.bf16.gmra.mxu0 %v10885
    %v11099 = vpop.f32.mrf.mxu0
    %v11100 = vadd.f32 %v10927, %v11099
    %v11101 = vpop.f32.mrf.mxu0
    %v11102 = vpop.f32.mrf.mxu0
    %v11103 = vadd.f32 %v10927, %v11102
    %v11104 = vpop.f32.mrf.mxu0
    %11105 = vmatprep.mubr.bf16.mxu0 0
    %11106 = vmatmul.mubr.bf16.gmra.mxu0 %v10886
    %v11107 = vpop.f32.mrf.mxu0
    %v11108 = vadd.f32 %v10927, %v11107
    %v11109 = vpop.f32.mrf.mxu0
    %v11110 = vpop.f32.mrf.mxu0
    %v11111 = vadd.f32 %v10927, %v11110
    %v11112 = vpop.f32.mrf.mxu0
    %11113 = vmatprep.mubr.bf16.mxu0 0
    %11114 = vmatmul.mubr.bf16.gmra.mxu0 %v10887
    %v11115 = vpop.f32.mrf.mxu0
    %v11116 = vadd.f32 %v10927, %v11115
    %v11117 = vpop.f32.mrf.mxu0
    %v11118 = vpop.f32.mrf.mxu0
    %v11119 = vadd.f32 %v10927, %v11118
    %v11120 = vpop.f32.mrf.mxu0
    %11121 = vmatprep.mubr.bf16.mxu0 0
    %11122 = vmatmul.mubr.bf16.gmra.mxu0 %v10888
    %v11123 = vpop.f32.mrf.mxu0
    %v11124 = vadd.f32 %v10927, %v11123
    %v11125 = vpop.f32.mrf.mxu0
    %v11126 = vpop.f32.mrf.mxu0
    %v11127 = vadd.f32 %v10927, %v11126
    %v11128 = vpop.f32.mrf.mxu0
    %11129 = vmatprep.mubr.bf16.mxu0 0
    %11130 = vmatmul.mubr.bf16.gmra.mxu0 %v10889
    %v11131 = vpop.f32.mrf.mxu0
    %v11132 = vadd.f32 %v10927, %v11131
    %v11133 = vpop.f32.mrf.mxu0
    %v11134 = vpop.f32.mrf.mxu0
    %v11135 = vadd.f32 %v10927, %v11134
    %v11136 = vpop.f32.mrf.mxu0
    %11137 = vmatprep.mubr.bf16.mxu0 0
    %11138 = vmatmul.mubr.bf16.gmra.mxu0 %v10890
    %v11139 = vpop.f32.mrf.mxu0
    %v11140 = vadd.f32 %v10927, %v11139
    %v11141 = vpop.f32.mrf.mxu0
    %v11142 = vpop.f32.mrf.mxu0
    %v11143 = vadd.f32 %v10927, %v11142
    %v11144 = vpop.f32.mrf.mxu0
    %11145 = vmatprep.mubr.bf16.mxu0 0
    %11146 = vmatmul.mubr.bf16.gmra.mxu0 %v10891
    %v11147 = vpop.f32.mrf.mxu0
    %v11148 = vadd.f32 %v10927, %v11147
    %v11149 = vpop.f32.mrf.mxu0
    %v11150 = vpop.f32.mrf.mxu0
    %v11151 = vadd.f32 %v10927, %v11150
    %v11152 = vpop.f32.mrf.mxu0
    %11153 = vmatprep.mubr.bf16.mxu0 0
    %11154 = vmatmul.mubr.bf16.gmra.mxu0 %v10892
    %v11155 = vpop.f32.mrf.mxu0
    %v11156 = vadd.f32 %v10927, %v11155
    %v11157 = vpop.f32.mrf.mxu0
    %v11158 = vpop.f32.mrf.mxu0
    %v11159 = vadd.f32 %v10927, %v11158
    %v11160 = vpop.f32.mrf.mxu0
    %11161 = vmatprep.mubr.bf16.mxu0 0
    %11162 = vmatmul.mubr.bf16.gmra.mxu0 %v10893
    %v11163 = vpop.f32.mrf.mxu0
    %v11164 = vadd.f32 %v10927, %v11163
    %v11165 = vpop.f32.mrf.mxu0
    %v11166 = vpop.f32.mrf.mxu0
    %v11167 = vadd.f32 %v10927, %v11166
    %v11168 = vpop.f32.mrf.mxu0
    %11169 = vmatprep.mubr.bf16.mxu0 0
    %11170 = vmatmul.mubr.bf16.gmra.mxu0 %v10894
    %v11171 = vpop.f32.mrf.mxu0
    %v11172 = vadd.f32 %v10927, %v11171
    %v11173 = vpop.f32.mrf.mxu0
    %v11174 = vpop.f32.mrf.mxu0
    %v11175 = vadd.f32 %v10927, %v11174
    %v11176 = vpop.f32.mrf.mxu0
    %11177 = vmatprep.mubr.bf16.mxu0 0
    %11178 = vmatmul.mubr.bf16.gmra.mxu0 %v10895
    %v11179 = vpop.f32.mrf.mxu0
    %v11180 = vadd.f32 %v10927, %v11179
    %v11181 = vpop.f32.mrf.mxu0
    %v11182 = vpop.f32.mrf.mxu0
    %v11183 = vadd.f32 %v10927, %v11182
    %v11184 = vpop.f32.mrf.mxu0
    %11185 = vmatprep.mubr.bf16.mxu0 0
    %11186 = vmatmul.mubr.bf16.gmra.mxu0 %v10896
    %v11187 = vpop.f32.mrf.mxu0
    %v11188 = vadd.f32 %v10927, %v11187
    %v11189 = vpop.f32.mrf.mxu0
    %v11190 = vpop.f32.mrf.mxu0
    %v11191 = vadd.f32 %v10927, %v11190
    %v11192 = vpop.f32.mrf.mxu0
    %11193 = vmatprep.mubr.bf16.mxu0 0
    %11194 = vmatmul.mubr.bf16.gmra.mxu0 %v10897
    %v11195 = vpop.f32.mrf.mxu0
    %v11196 = vadd.f32 %v10927, %v11195
    %v11197 = vpop.f32.mrf.mxu0
    %v11198 = vpop.f32.mrf.mxu0
    %v11199 = vadd.f32 %v10927, %v11198
    %v11200 = vpop.f32.mrf.mxu0
    %11201 = vmatprep.mubr.bf16.mxu0 0
    %11202 = vmatmul.mubr.bf16.gmra.mxu0 %v10898
    %v11203 = vpop.f32.mrf.mxu0
    %v11204 = vadd.f32 %v10927, %v11203
    %v11205 = vpop.f32.mrf.mxu0
    %v11206 = vpop.f32.mrf.mxu0
    %v11207 = vadd.f32 %v10927, %v11206
    %v11208 = vpop.f32.mrf.mxu0
    %11209 = vmatprep.mubr.bf16.mxu0 0
    %11210 = vmatmul.mubr.bf16.gmra.mxu0 %v10899
    %v11211 = vpop.f32.mrf.mxu0
    %v11212 = vadd.f32 %v10927, %v11211
    %v11213 = vpop.f32.mrf.mxu0
    %v11214 = vpop.f32.mrf.mxu0
    %v11215 = vadd.f32 %v10927, %v11214
    %v11216 = vpop.f32.mrf.mxu0
    %11217 = vmatprep.mubr.bf16.mxu0 0
    %11218 = vmatmul.mubr.bf16.gmra.mxu0 %v10900
    %v11219 = vpop.f32.mrf.mxu0
    %v11220 = vadd.f32 %v10927, %v11219
    %v11221 = vpop.f32.mrf.mxu0
    %v11222 = vpop.f32.mrf.mxu0
    %v11223 = vadd.f32 %v10927, %v11222
    %v11224 = vpop.f32.mrf.mxu0
    %11225 = vmatprep.mubr.bf16.mxu0 0
    %11226 = vmatmul.mubr.bf16.gmra.mxu0 %v10901
    %v11227 = vpop.f32.mrf.mxu0
    %v11228 = vadd.f32 %v10927, %v11227
    %v11229 = vpop.f32.mrf.mxu0
    %v11230 = vpop.f32.mrf.mxu0
    %v11231 = vadd.f32 %v10927, %v11230
    %v11232 = vpop.f32.mrf.mxu0
    %11233 = vmatprep.mubr.bf16.mxu0 0
    %11234 = vmatmul.mubr.bf16.gmra.mxu0 %v10902
    %v11235 = vpop.f32.mrf.mxu0
    %v11236 = vadd.f32 %v10927, %v11235
    %v11237 = vpop.f32.mrf.mxu0
    %v11238 = vpop.f32.mrf.mxu0
    %v11239 = vadd.f32 %v10927, %v11238
    %v11240 = vpop.f32.mrf.mxu0
    %11241 = vmatprep.mubr.bf16.mxu0 0
    %11242 = vmatmul.mubr.bf16.gmra.mxu0 %v10903
    %v11243 = vpop.f32.mrf.mxu0
    %v11244 = vadd.f32 %v10927, %v11243
    %v11245 = vpop.f32.mrf.mxu0
    %v11246 = vpop.f32.mrf.mxu0
    %v11247 = vadd.f32 %v10927, %v11246
    %v11248 = vpop.f32.mrf.mxu0
    %11249 = vmatprep.mubr.bf16.mxu0 0
    %11250 = vmatmul.mubr.bf16.gmra.mxu0 %v10904
    %v11251 = vpop.f32.mrf.mxu0
    %v11252 = vadd.f32 %v10927, %v11251
    %v11253 = vpop.f32.mrf.mxu0
    %v11254 = vpop.f32.mrf.mxu0
    %v11255 = vadd.f32 %v10927, %v11254
    %v11256 = vpop.f32.mrf.mxu0
    %11257 = vmatprep.mubr.bf16.mxu0 0
    %11258 = vmatmul.mubr.bf16.gmra.mxu0 %v10905
    %v11259 = vpop.f32.mrf.mxu0
    %v11260 = vadd.f32 %v10927, %v11259
    %v11261 = vpop.f32.mrf.mxu0
    %v11262 = vpop.f32.mrf.mxu0
    %v11263 = vadd.f32 %v10927, %v11262
    %v11264 = vpop.f32.mrf.mxu0
    %11265 = vdwg.mxu0
    %v11266 = vpack.c.bf16 %v9888, %v9887
    %v11267 = vpack.c.bf16 %v9890, %v9889
    %v11268 = vpack.c.bf16 %v9892, %v9891
    %v11269 = vpack.c.bf16 %v9894, %v9893
    %v11270 = vpack.c.bf16 %v9896, %v9895
    %v11271 = vpack.c.bf16 %v9898, %v9897
    %v11272 = vpack.c.bf16 %v9900, %v9899
    %v11273 = vpack.c.bf16 %v9902, %v9901
    %v11274 = vpack.c.bf16 %v9904, %v9903
    %v11275 = vpack.c.bf16 %v9906, %v9905
    %v11276 = vpack.c.bf16 %v9908, %v9907
    %v11277 = vpack.c.bf16 %v9910, %v9909
    %v11278 = vpack.c.bf16 %v9912, %v9911
    %v11279 = vpack.c.bf16 %v9914, %v9913
    %v11280 = vpack.c.bf16 %v9916, %v9915
    %v11281 = vpack.c.bf16 %v9918, %v9917
    %v11282 = vpack.c.bf16 %v9920, %v9919
    %v11283 = vpack.c.bf16 %v9922, %v9921
    %v11284 = vpack.c.bf16 %v9924, %v9923
    %v11285 = vpack.c.bf16 %v9926, %v9925
    %v11286 = vpack.c.bf16 %v9928, %v9927
    %v11287 = vpack.c.bf16 %v9930, %v9929
    %v11288 = vpack.c.bf16 %v9932, %v9931
    %v11289 = vpack.c.bf16 %v9934, %v9933
    %v11290 = vpack.c.bf16 %v9936, %v9935
    %v11291 = vpack.c.bf16 %v9938, %v9937
    %v11292 = vpack.c.bf16 %v9940, %v9939
    %v11293 = vpack.c.bf16 %v9942, %v9941
    %v11294 = vpack.c.bf16 %v9944, %v9943
    %v11295 = vpack.c.bf16 %v9946, %v9945
    %v11296 = vpack.c.bf16 %v9948, %v9947
    %v11297 = vpack.c.bf16 %v9950, %v9949
    %v11298 = vld [vmem:[#allocation38] sm:$0xf]
    %v11299 = vld [vmem:[#allocation38 + $0x4] sm:$0xf]
    %v11300 = vld [vmem:[#allocation38 + $0x8] sm:$0xf]
    %v11301 = vld [vmem:[#allocation38 + $0xc] sm:$0xf]
    %v11302 = vld [vmem:[#allocation38 + $0x10] sm:$0xf]
    %v11303 = vld [vmem:[#allocation38 + $0x14] sm:$0xf]
    %v11304 = vld [vmem:[#allocation38 + $0x18] sm:$0xf]
    %v11305 = vld [vmem:[#allocation38 + $0x1c] sm:$0xf]
    %v11306 = vld [vmem:[#allocation38 + $0x20] sm:$0xf]
    %v11307 = vld [vmem:[#allocation38 + $0x24] sm:$0xf]
    %v11308 = vld [vmem:[#allocation38 + $0x28] sm:$0xf]
    %v11309 = vld [vmem:[#allocation38 + $0x2c] sm:$0xf]
    %v11310 = vld [vmem:[#allocation38 + $0x30] sm:$0xf]
    %v11311 = vld [vmem:[#allocation38 + $0x34] sm:$0xf]
    %v11312 = vld [vmem:[#allocation38 + $0x38] sm:$0xf]
    %v11313 = vld [vmem:[#allocation38 + $0x3c] sm:$0xf]
    %v11330 = vunpack.c.l.b16 %v11298
    %v11331 = vunpack.c.l.b16 %v11299
    %v11332 = vunpack.c.l.b16 %v11300
    %v11333 = vunpack.c.l.b16 %v11301
    %v11334 = vunpack.c.l.b16 %v11302
    %v11335 = vunpack.c.l.b16 %v11303
    %v11336 = vunpack.c.l.b16 %v11304
    %v11337 = vunpack.c.l.b16 %v11305
    %v11338 = vunpack.c.l.b16 %v11306
    %v11339 = vunpack.c.l.b16 %v11307
    %v11340 = vunpack.c.l.b16 %v11308
    %v11341 = vunpack.c.l.b16 %v11309
    %v11342 = vunpack.c.l.b16 %v11310
    %v11343 = vunpack.c.l.b16 %v11311
    %v11344 = vunpack.c.l.b16 %v11312
    %v11345 = vunpack.c.l.b16 %v11313
    %v11346 = vpack.c.b16 %v11331, %v11330
    %v11347 = vpack.c.b16 %v11333, %v11332
    %v11348 = vpack.c.b16 %v11335, %v11334
    %v11349 = vpack.c.b16 %v11337, %v11336
    %v11350 = vpack.c.b16 %v11339, %v11338
    %v11351 = vpack.c.b16 %v11341, %v11340
    %v11352 = vpack.c.b16 %v11343, %v11342
    %v11353 = vpack.c.b16 %v11345, %v11344
    %11362 = vmatprep.subr.bf16.mxu0 0
    %11363 = vmatpush1.bf16.msra.mxu0 %v11353
    %11364 = vmatprep.subr.bf16.mxu0 0
    %11365 = vmatpush1.bf16.msra.mxu0 %v11352
    %11366 = vmatprep.subr.bf16.mxu0 0
    %11367 = vmatpush1.bf16.msra.mxu0 %v11351
    %11368 = vmatprep.subr.bf16.mxu0 0
    %11369 = vmatpush1.bf16.msra.mxu0 %v11350
    %11370 = vmatprep.subr.bf16.mxu0 0
    %11371 = vmatpush1.bf16.msra.mxu0 %v11349
    %11372 = vmatprep.subr.bf16.mxu0 0
    %11373 = vmatpush1.bf16.msra.mxu0 %v11348
    %11374 = vmatprep.subr.bf16.mxu0 0
    %11375 = vmatpush1.bf16.msra.mxu0 %v11347
    %11376 = vmatprep.subr.bf16.mxu0 0
    %11377 = vmatpush1.bf16.msra.mxu0 %v11346
    %11378 = vmatprep.subr.bf16.mxu0 0
    %11379 = vmatpush2.bf16.msra.mxu0 0
    %11380 = vmatprep.subr.bf16.mxu0 0
    %11381 = vmatpush2.bf16.msra.mxu0 0
    %11382 = vmatprep.subr.bf16.mxu0 0
    %11383 = vmatpush2.bf16.msra.mxu0 0
    %11384 = vmatprep.subr.bf16.mxu0 0
    %11385 = vmatpush2.bf16.msra.mxu0 0
    %11386 = vmatprep.subr.bf16.mxu0 0
    %11387 = vmatpush2.bf16.msra.mxu0 0
    %11388 = vmatprep.subr.bf16.mxu0 0
    %11389 = vmatpush2.bf16.msra.mxu0 0
    %11390 = vmatprep.subr.bf16.mxu0 0
    %11391 = vmatpush2.bf16.msra.mxu0 0
    %11392 = vmatprep.subr.bf16.mxu0 0
    %11393 = vmatpush2.bf16.msra.mxu0 0
    %11394 = vmatprep.mubr.bf16.mxu0 0
    %11395 = vmatmul.mubr.bf16.gmra.mxu0 %v11266
    %v11396 = vpop.f32.mrf.mxu0
    %v11397 = vadd.f32 0.0, %v11396
    %v11398 = vpop.f32.mrf.mxu0
    %v11399 = vpop.f32.mrf.mxu0
    %v11400 = vadd.f32 0.0, %v11399
    %v11401 = vpop.f32.mrf.mxu0
    %11402 = vmatprep.mubr.bf16.mxu0 0
    %11403 = vmatmul.mubr.bf16.gmra.mxu0 %v11267
    %v11404 = vpop.f32.mrf.mxu0
    %v11405 = vadd.f32 0.0, %v11404
    %v11406 = vpop.f32.mrf.mxu0
    %v11407 = vpop.f32.mrf.mxu0
    %v11408 = vadd.f32 0.0, %v11407
    %v11409 = vpop.f32.mrf.mxu0
    %11410 = vmatprep.mubr.bf16.mxu0 0
    %11411 = vmatmul.mubr.bf16.gmra.mxu0 %v11268
    %v11412 = vpop.f32.mrf.mxu0
    %v11413 = vadd.f32 0.0, %v11412
    %v11414 = vpop.f32.mrf.mxu0
    %v11415 = vpop.f32.mrf.mxu0
    %v11416 = vadd.f32 0.0, %v11415
    %v11417 = vpop.f32.mrf.mxu0
    %11418 = vmatprep.mubr.bf16.mxu0 0
    %11419 = vmatmul.mubr.bf16.gmra.mxu0 %v11269
    %v11420 = vpop.f32.mrf.mxu0
    %v11421 = vadd.f32 0.0, %v11420
    %v11422 = vpop.f32.mrf.mxu0
    %v11423 = vpop.f32.mrf.mxu0
    %v11424 = vadd.f32 0.0, %v11423
    %v11425 = vpop.f32.mrf.mxu0
    %11426 = vmatprep.mubr.bf16.mxu0 0
    %11427 = vmatmul.mubr.bf16.gmra.mxu0 %v11270
    %v11428 = vpop.f32.mrf.mxu0
    %v11429 = vadd.f32 0.0, %v11428
    %v11430 = vpop.f32.mrf.mxu0
    %v11431 = vpop.f32.mrf.mxu0
    %v11432 = vadd.f32 0.0, %v11431
    %v11433 = vpop.f32.mrf.mxu0
    %11434 = vmatprep.mubr.bf16.mxu0 0
    %11435 = vmatmul.mubr.bf16.gmra.mxu0 %v11271
    %v11436 = vpop.f32.mrf.mxu0
    %v11437 = vadd.f32 0.0, %v11436
    %v11438 = vpop.f32.mrf.mxu0
    %v11439 = vpop.f32.mrf.mxu0
    %v11440 = vadd.f32 0.0, %v11439
    %v11441 = vpop.f32.mrf.mxu0
    %11442 = vmatprep.mubr.bf16.mxu0 0
    %11443 = vmatmul.mubr.bf16.gmra.mxu0 %v11272
    %v11444 = vpop.f32.mrf.mxu0
    %v11445 = vadd.f32 0.0, %v11444
    %v11446 = vpop.f32.mrf.mxu0
    %v11447 = vpop.f32.mrf.mxu0
    %v11448 = vadd.f32 0.0, %v11447
    %v11449 = vpop.f32.mrf.mxu0
    %11450 = vmatprep.mubr.bf16.mxu0 0
    %11451 = vmatmul.mubr.bf16.gmra.mxu0 %v11273
    %v11452 = vpop.f32.mrf.mxu0
    %v11453 = vadd.f32 0.0, %v11452
    %v11454 = vpop.f32.mrf.mxu0
    %v11455 = vpop.f32.mrf.mxu0
    %v11456 = vadd.f32 0.0, %v11455
    %v11457 = vpop.f32.mrf.mxu0
    %11458 = vmatprep.mubr.bf16.mxu0 0
    %11459 = vmatmul.mubr.bf16.gmra.mxu0 %v11274
    %v11460 = vpop.f32.mrf.mxu0
    %v11461 = vadd.f32 0.0, %v11460
    %v11462 = vpop.f32.mrf.mxu0
    %v11463 = vpop.f32.mrf.mxu0
    %v11464 = vadd.f32 0.0, %v11463
    %v11465 = vpop.f32.mrf.mxu0
    %11466 = vmatprep.mubr.bf16.mxu0 0
    %11467 = vmatmul.mubr.bf16.gmra.mxu0 %v11275
    %v11468 = vpop.f32.mrf.mxu0
    %v11469 = vadd.f32 0.0, %v11468
    %v11470 = vpop.f32.mrf.mxu0
    %v11471 = vpop.f32.mrf.mxu0
    %v11472 = vadd.f32 0.0, %v11471
    %v11473 = vpop.f32.mrf.mxu0
    %11474 = vmatprep.mubr.bf16.mxu0 0
    %11475 = vmatmul.mubr.bf16.gmra.mxu0 %v11276
    %v11476 = vpop.f32.mrf.mxu0
    %v11477 = vadd.f32 0.0, %v11476
    %v11478 = vpop.f32.mrf.mxu0
    %v11479 = vpop.f32.mrf.mxu0
    %v11480 = vadd.f32 0.0, %v11479
    %v11481 = vpop.f32.mrf.mxu0
    %11482 = vmatprep.mubr.bf16.mxu0 0
    %11483 = vmatmul.mubr.bf16.gmra.mxu0 %v11277
    %v11484 = vpop.f32.mrf.mxu0
    %v11485 = vadd.f32 0.0, %v11484
    %v11486 = vpop.f32.mrf.mxu0
    %v11487 = vpop.f32.mrf.mxu0
    %v11488 = vadd.f32 0.0, %v11487
    %v11489 = vpop.f32.mrf.mxu0
    %11490 = vmatprep.mubr.bf16.mxu0 0
    %11491 = vmatmul.mubr.bf16.gmra.mxu0 %v11278
    %v11492 = vpop.f32.mrf.mxu0
    %v11493 = vadd.f32 0.0, %v11492
    %v11494 = vpop.f32.mrf.mxu0
    %v11495 = vpop.f32.mrf.mxu0
    %v11496 = vadd.f32 0.0, %v11495
    %v11497 = vpop.f32.mrf.mxu0
    %11498 = vmatprep.mubr.bf16.mxu0 0
    %11499 = vmatmul.mubr.bf16.gmra.mxu0 %v11279
    %v11500 = vpop.f32.mrf.mxu0
    %v11501 = vadd.f32 0.0, %v11500
    %v11502 = vpop.f32.mrf.mxu0
    %v11503 = vpop.f32.mrf.mxu0
    %v11504 = vadd.f32 0.0, %v11503
    %v11505 = vpop.f32.mrf.mxu0
    %11506 = vmatprep.mubr.bf16.mxu0 0
    %11507 = vmatmul.mubr.bf16.gmra.mxu0 %v11280
    %v11508 = vpop.f32.mrf.mxu0
    %v11509 = vadd.f32 0.0, %v11508
    %v11510 = vpop.f32.mrf.mxu0
    %v11511 = vpop.f32.mrf.mxu0
    %v11512 = vadd.f32 0.0, %v11511
    %v11513 = vpop.f32.mrf.mxu0
    %11514 = vmatprep.mubr.bf16.mxu0 0
    %11515 = vmatmul.mubr.bf16.gmra.mxu0 %v11281
    %v11516 = vpop.f32.mrf.mxu0
    %v11517 = vadd.f32 0.0, %v11516
    %v11518 = vpop.f32.mrf.mxu0
    %v11519 = vpop.f32.mrf.mxu0
    %v11520 = vadd.f32 0.0, %v11519
    %v11521 = vpop.f32.mrf.mxu0
    %11522 = vmatprep.mubr.bf16.mxu0 0
    %11523 = vmatmul.mubr.bf16.gmra.mxu0 %v11282
    %v11524 = vpop.f32.mrf.mxu0
    %v11525 = vadd.f32 0.0, %v11524
    %v11526 = vpop.f32.mrf.mxu0
    %v11527 = vpop.f32.mrf.mxu0
    %v11528 = vadd.f32 0.0, %v11527
    %v11529 = vpop.f32.mrf.mxu0
    %11530 = vmatprep.mubr.bf16.mxu0 0
    %11531 = vmatmul.mubr.bf16.gmra.mxu0 %v11283
    %v11532 = vpop.f32.mrf.mxu0
    %v11533 = vadd.f32 0.0, %v11532
    %v11534 = vpop.f32.mrf.mxu0
    %v11535 = vpop.f32.mrf.mxu0
    %v11536 = vadd.f32 0.0, %v11535
    %v11537 = vpop.f32.mrf.mxu0
    %11538 = vmatprep.mubr.bf16.mxu0 0
    %11539 = vmatmul.mubr.bf16.gmra.mxu0 %v11284
    %v11540 = vpop.f32.mrf.mxu0
    %v11541 = vadd.f32 0.0, %v11540
    %v11542 = vpop.f32.mrf.mxu0
    %v11543 = vpop.f32.mrf.mxu0
    %v11544 = vadd.f32 0.0, %v11543
    %v11545 = vpop.f32.mrf.mxu0
    %11546 = vmatprep.mubr.bf16.mxu0 0
    %11547 = vmatmul.mubr.bf16.gmra.mxu0 %v11285
    %v11548 = vpop.f32.mrf.mxu0
    %v11549 = vadd.f32 0.0, %v11548
    %v11550 = vpop.f32.mrf.mxu0
    %v11551 = vpop.f32.mrf.mxu0
    %v11552 = vadd.f32 0.0, %v11551
    %v11553 = vpop.f32.mrf.mxu0
    %11554 = vmatprep.mubr.bf16.mxu0 0
    %11555 = vmatmul.mubr.bf16.gmra.mxu0 %v11286
    %v11556 = vpop.f32.mrf.mxu0
    %v11557 = vadd.f32 0.0, %v11556
    %v11558 = vpop.f32.mrf.mxu0
    %v11559 = vpop.f32.mrf.mxu0
    %v11560 = vadd.f32 0.0, %v11559
    %v11561 = vpop.f32.mrf.mxu0
    %11562 = vmatprep.mubr.bf16.mxu0 0
    %11563 = vmatmul.mubr.bf16.gmra.mxu0 %v11287
    %v11564 = vpop.f32.mrf.mxu0
    %v11565 = vadd.f32 0.0, %v11564
    %v11566 = vpop.f32.mrf.mxu0
    %v11567 = vpop.f32.mrf.mxu0
    %v11568 = vadd.f32 0.0, %v11567
    %v11569 = vpop.f32.mrf.mxu0
    %11570 = vmatprep.mubr.bf16.mxu0 0
    %11571 = vmatmul.mubr.bf16.gmra.mxu0 %v11288
    %v11572 = vpop.f32.mrf.mxu0
    %v11573 = vadd.f32 0.0, %v11572
    %v11574 = vpop.f32.mrf.mxu0
    %v11575 = vpop.f32.mrf.mxu0
    %v11576 = vadd.f32 0.0, %v11575
    %v11577 = vpop.f32.mrf.mxu0
    %11578 = vmatprep.mubr.bf16.mxu0 0
    %11579 = vmatmul.mubr.bf16.gmra.mxu0 %v11289
    %v11580 = vpop.f32.mrf.mxu0
    %v11581 = vadd.f32 0.0, %v11580
    %v11582 = vpop.f32.mrf.mxu0
    %v11583 = vpop.f32.mrf.mxu0
    %v11584 = vadd.f32 0.0, %v11583
    %v11585 = vpop.f32.mrf.mxu0
    %11586 = vmatprep.mubr.bf16.mxu0 0
    %11587 = vmatmul.mubr.bf16.gmra.mxu0 %v11290
    %v11588 = vpop.f32.mrf.mxu0
    %v11589 = vadd.f32 0.0, %v11588
    %v11590 = vpop.f32.mrf.mxu0
    %v11591 = vpop.f32.mrf.mxu0
    %v11592 = vadd.f32 0.0, %v11591
    %v11593 = vpop.f32.mrf.mxu0
    %11594 = vmatprep.mubr.bf16.mxu0 0
    %11595 = vmatmul.mubr.bf16.gmra.mxu0 %v11291
    %v11596 = vpop.f32.mrf.mxu0
    %v11597 = vadd.f32 0.0, %v11596
    %v11598 = vpop.f32.mrf.mxu0
    %v11599 = vpop.f32.mrf.mxu0
    %v11600 = vadd.f32 0.0, %v11599
    %v11601 = vpop.f32.mrf.mxu0
    %11602 = vmatprep.mubr.bf16.mxu0 0
    %11603 = vmatmul.mubr.bf16.gmra.mxu0 %v11292
    %v11604 = vpop.f32.mrf.mxu0
    %v11605 = vadd.f32 0.0, %v11604
    %v11606 = vpop.f32.mrf.mxu0
    %v11607 = vpop.f32.mrf.mxu0
    %v11608 = vadd.f32 0.0, %v11607
    %v11609 = vpop.f32.mrf.mxu0
    %11610 = vmatprep.mubr.bf16.mxu0 0
    %11611 = vmatmul.mubr.bf16.gmra.mxu0 %v11293
    %v11612 = vpop.f32.mrf.mxu0
    %v11613 = vadd.f32 0.0, %v11612
    %v11614 = vpop.f32.mrf.mxu0
    %v11615 = vpop.f32.mrf.mxu0
    %v11616 = vadd.f32 0.0, %v11615
    %v11617 = vpop.f32.mrf.mxu0
    %11618 = vmatprep.mubr.bf16.mxu0 0
    %11619 = vmatmul.mubr.bf16.gmra.mxu0 %v11294
    %v11620 = vpop.f32.mrf.mxu0
    %v11621 = vadd.f32 0.0, %v11620
    %v11622 = vpop.f32.mrf.mxu0
    %v11623 = vpop.f32.mrf.mxu0
    %v11624 = vadd.f32 0.0, %v11623
    %v11625 = vpop.f32.mrf.mxu0
    %11626 = vmatprep.mubr.bf16.mxu0 0
    %11627 = vmatmul.mubr.bf16.gmra.mxu0 %v11295
    %v11628 = vpop.f32.mrf.mxu0
    %v11629 = vadd.f32 0.0, %v11628
    %v11630 = vpop.f32.mrf.mxu0
    %v11631 = vpop.f32.mrf.mxu0
    %v11632 = vadd.f32 0.0, %v11631
    %v11633 = vpop.f32.mrf.mxu0
    %11634 = vmatprep.mubr.bf16.mxu0 0
    %11635 = vmatmul.mubr.bf16.gmra.mxu0 %v11296
    %v11636 = vpop.f32.mrf.mxu0
    %v11637 = vadd.f32 0.0, %v11636
    %v11638 = vpop.f32.mrf.mxu0
    %v11639 = vpop.f32.mrf.mxu0
    %v11640 = vadd.f32 0.0, %v11639
    %v11641 = vpop.f32.mrf.mxu0
    %11642 = vmatprep.mubr.bf16.mxu0 0
    %11643 = vmatmul.mubr.bf16.gmra.mxu0 %v11297
    %v11644 = vpop.f32.mrf.mxu0
    %v11645 = vadd.f32 0.0, %v11644
    %v11646 = vpop.f32.mrf.mxu0
    %v11647 = vpop.f32.mrf.mxu0
    %v11648 = vadd.f32 0.0, %v11647
    %v11649 = vpop.f32.mrf.mxu0
    %11650 = vdwg.mxu0
    %v11651 = vpack.c.bf16 %v9963, %v9963
    %v11652 = vpack.c.bf16 %v9976, %v9976
    %v11653 = vpack.c.bf16 %v9989, %v9989
    %v11654 = vpack.c.bf16 %v10002, %v10002
    %v11655 = vpack.c.bf16 %v10015, %v10015
    %v11656 = vpack.c.bf16 %v10028, %v10028
    %v11657 = vpack.c.bf16 %v10041, %v10041
    %v11658 = vpack.c.bf16 %v10054, %v10054
    %v11659 = vld [vmem:[#allocation40] sm:$0xf]
    %v11660 = vld [vmem:[#allocation40 + $0x4] sm:$0xf]
    %v11661 = vld [vmem:[#allocation40 + $0x8] sm:$0xf]
    %v11662 = vld [vmem:[#allocation40 + $0xc] sm:$0xf]
    %v11663 = vld [vmem:[#allocation40 + $0x10] sm:$0xf]
    %v11664 = vld [vmem:[#allocation40 + $0x14] sm:$0xf]
    %v11665 = vld [vmem:[#allocation40 + $0x18] sm:$0xf]
    %v11666 = vld [vmem:[#allocation40 + $0x1c] sm:$0xf]
    %v11667 = vld [vmem:[#allocation40 + $0x20] sm:$0xf]
    %v11668 = vld [vmem:[#allocation40 + $0x24] sm:$0xf]
    %v11669 = vld [vmem:[#allocation40 + $0x28] sm:$0xf]
    %v11670 = vld [vmem:[#allocation40 + $0x2c] sm:$0xf]
    %v11671 = vld [vmem:[#allocation40 + $0x30] sm:$0xf]
    %v11672 = vld [vmem:[#allocation40 + $0x34] sm:$0xf]
    %v11673 = vld [vmem:[#allocation40 + $0x38] sm:$0xf]
    %v11674 = vld [vmem:[#allocation40 + $0x3c] sm:$0xf]
    %v11683 = vunpack.c.l.b16 %v11651
    %v11684 = vunpack.c.l.b16 %v11652
    %v11685 = vunpack.c.l.b16 %v11653
    %v11686 = vunpack.c.l.b16 %v11654
    %v11687 = vunpack.c.l.b16 %v11655
    %v11688 = vunpack.c.l.b16 %v11656
    %v11689 = vunpack.c.l.b16 %v11657
    %v11690 = vunpack.c.l.b16 %v11658
    %v11691 = vsel %vm4387, %v11684, %v11683
    %v11692 = vsel %vm4389, %v11685, %v11691
    %v11693 = vsel %vm4391, %v11686, %v11692
    %v11694 = vsel %vm4393, %v11687, %v11693
    %v11695 = vsel %vm4395, %v11688, %v11694
    %v11696 = vsel %vm4397, %v11689, %v11695
    %v11697 = vsel %vm4399, %v11690, %v11696
    %v11698 = vpack.c.b16 %v11697, %v11697
    %v11716 = vunpack.c.l.b16 %v11659
    %v11717 = vunpack.c.l.b16 %v11660
    %v11718 = vunpack.c.l.b16 %v11661
    %v11719 = vunpack.c.l.b16 %v11662
    %v11720 = vunpack.c.l.b16 %v11663
    %v11721 = vunpack.c.l.b16 %v11664
    %v11722 = vunpack.c.l.b16 %v11665
    %v11723 = vunpack.c.l.b16 %v11666
    %v11724 = vunpack.c.l.b16 %v11667
    %v11725 = vunpack.c.l.b16 %v11668
    %v11726 = vunpack.c.l.b16 %v11669
    %v11727 = vunpack.c.l.b16 %v11670
    %v11728 = vunpack.c.l.b16 %v11671
    %v11729 = vunpack.c.l.b16 %v11672
    %v11730 = vunpack.c.l.b16 %v11673
    %v11731 = vunpack.c.l.b16 %v11674
    %v11732 = vpack.c.b16 %v11717, %v11716
    %v11733 = vpack.c.b16 %v11719, %v11718
    %v11734 = vpack.c.b16 %v11721, %v11720
    %v11735 = vpack.c.b16 %v11723, %v11722
    %v11736 = vpack.c.b16 %v11725, %v11724
    %v11737 = vpack.c.b16 %v11727, %v11726
    %v11738 = vpack.c.b16 %v11729, %v11728
    %v11739 = vpack.c.b16 %v11731, %v11730
    %11748 = vmatprep.subr.bf16.mxu0 0
    %11749 = vmatpush1.bf16.msra.mxu0 %v11739
    %11750 = vmatprep.subr.bf16.mxu0 0
    %11751 = vmatpush1.bf16.msra.mxu0 %v11738
    %11752 = vmatprep.subr.bf16.mxu0 0
    %11753 = vmatpush1.bf16.msra.mxu0 %v11737
    %11754 = vmatprep.subr.bf16.mxu0 0
    %11755 = vmatpush1.bf16.msra.mxu0 %v11736
    %11756 = vmatprep.subr.bf16.mxu0 0
    %11757 = vmatpush1.bf16.msra.mxu0 %v11735
    %11758 = vmatprep.subr.bf16.mxu0 0
    %11759 = vmatpush1.bf16.msra.mxu0 %v11734
    %11760 = vmatprep.subr.bf16.mxu0 0
    %11761 = vmatpush1.bf16.msra.mxu0 %v11733
    %11762 = vmatprep.subr.bf16.mxu0 0
    %11763 = vmatpush1.bf16.msra.mxu0 %v11732
    %11764 = vmatprep.subr.bf16.mxu0 0
    %11765 = vmatpush2.bf16.msra.mxu0 0
    %11766 = vmatprep.subr.bf16.mxu0 0
    %11767 = vmatpush2.bf16.msra.mxu0 0
    %11768 = vmatprep.subr.bf16.mxu0 0
    %11769 = vmatpush2.bf16.msra.mxu0 0
    %11770 = vmatprep.subr.bf16.mxu0 0
    %11771 = vmatpush2.bf16.msra.mxu0 0
    %11772 = vmatprep.subr.bf16.mxu0 0
    %11773 = vmatpush2.bf16.msra.mxu0 0
    %11774 = vmatprep.subr.bf16.mxu0 0
    %11775 = vmatpush2.bf16.msra.mxu0 0
    %11776 = vmatprep.subr.bf16.mxu0 0
    %11777 = vmatpush2.bf16.msra.mxu0 0
    %11778 = vmatprep.subr.bf16.mxu0 0
    %11779 = vmatpush2.bf16.msra.mxu0 0
    %11780 = vmatprep.mubr.bf16.mxu0 0
    %11781 = vmatmul.mubr.bf16.gmra.mxu0 %v11698
    %v11782 = vpop.f32.mrf.mxu0
    %v11783 = vadd.f32 0.0, %v11782
    %v11784 = vpop.f32.mrf.mxu0
    %v11785 = vpop.f32.mrf.mxu0
    %v11786 = vpop.f32.mrf.mxu0
    %11787 = vdwg.mxu0
    %v11789 = vcombine.high %v11783, %v11783
    %v11791 = vunpack.c.l.s4 1966171168
    %v11792 = vunpack.c.0.s8 %v11791
    %v11793 = vlaneseq
    %v11794 = vshrl.u32 %v11793, 7
    %v11795 = vsub.s32 %v11792, %v11794
    %v11796 = vrot.slane %v11783, %v11795
    %v11798 = vunpack.c.l.s4 1966171168
    %v11799 = vunpack.c.0.s8 %v11798
    %v11800 = vlaneseq
    %v11801 = vshrl.u32 %v11800, 7
    %v11802 = vsub.s32 %v11799, %v11801
    %v11803 = vrot.slane %v11789, %v11802
    %v11804 = vcombine.high %v11796, %v11796
    %v11805 = vcombine.high %v11803, %v11803
    %v11807 = vunpack.c.l.s4 1966171168
    %v11808 = vunpack.c.0.s8 %v11807
    %v11809 = vlaneseq
    %v11810 = vshrl.u32 %v11809, 7
    %v11811 = vsub.s32 %v11808, %v11810
    %v11812 = vrot.slane %v11796, %v11811
    %v11814 = vunpack.c.l.s4 1966171168
    %v11815 = vunpack.c.0.s8 %v11814
    %v11816 = vlaneseq
    %v11817 = vshrl.u32 %v11816, 7
    %v11818 = vsub.s32 %v11815, %v11817
    %v11819 = vrot.slane %v11803, %v11818
    %v11821 = vunpack.c.l.s4 1966171168
    %v11822 = vunpack.c.0.s8 %v11821
    %v11823 = vlaneseq
    %v11824 = vshrl.u32 %v11823, 7
    %v11825 = vsub.s32 %v11822, %v11824
    %v11826 = vrot.slane %v11804, %v11825
    %v11828 = vunpack.c.l.s4 1966171168
    %v11829 = vunpack.c.0.s8 %v11828
    %v11830 = vlaneseq
    %v11831 = vshrl.u32 %v11830, 7
    %v11832 = vsub.s32 %v11829, %v11831
    %v11833 = vrot.slane %v11805, %v11832
    %v11834 = vcombine.high %v11812, %v11812
    %v11835 = vcombine.high %v11819, %v11819
    %v11836 = vcombine.high %v11826, %v11826
    %v11837 = vcombine.high %v11833, %v11833
    %v11838 = vlaneseq
    %v11839 = vshrl.u32 %v11838, 7
    %v11840 = vsub.s32 0, %v11839
    %v11841 = vrot.slane %v11812, %v11840
    %v11842 = vlaneseq
    %v11843 = vshrl.u32 %v11842, 7
    %v11844 = vsub.s32 0, %v11843
    %v11845 = vrot.slane %v11826, %v11844
    %v11846 = vlaneseq
    %v11847 = vshrl.u32 %v11846, 7
    %v11848 = vsub.s32 0, %v11847
    %v11849 = vrot.slane %v11834, %v11848
    %v11850 = vlaneseq
    %v11851 = vshrl.u32 %v11850, 7
    %v11852 = vsub.s32 0, %v11851
    %v11853 = vrot.slane %v11836, %v11852
    %v11854 = vlaneseq
    %v11855 = vshrl.u32 %v11854, 7
    %v11856 = vsub.s32 0, %v11855
    %v11857 = vrot.slane %v11819, %v11856
    %v11858 = vlaneseq
    %v11859 = vshrl.u32 %v11858, 7
    %v11860 = vsub.s32 0, %v11859
    %v11861 = vrot.slane %v11833, %v11860
    %v11862 = vlaneseq
    %v11863 = vshrl.u32 %v11862, 7
    %v11864 = vsub.s32 0, %v11863
    %v11865 = vrot.slane %v11835, %v11864
    %v11866 = vlaneseq
    %v11867 = vshrl.u32 %v11866, 7
    %v11868 = vsub.s32 0, %v11867
    %v11869 = vrot.slane %v11837, %v11868
    %v11878 = vadd.f32 %v11397, %v11841
    %v11879 = vadd.f32 %v11400, %v11841
    %v11880 = vadd.f32 %v11405, %v11841
    %v11881 = vadd.f32 %v11408, %v11841
    %v11882 = vadd.f32 %v11413, %v11841
    %v11883 = vadd.f32 %v11416, %v11841
    %v11884 = vadd.f32 %v11421, %v11841
    %v11885 = vadd.f32 %v11424, %v11841
    %v11886 = vadd.f32 %v11429, %v11845
    %v11887 = vadd.f32 %v11432, %v11845
    %v11888 = vadd.f32 %v11437, %v11845
    %v11889 = vadd.f32 %v11440, %v11845
    %v11890 = vadd.f32 %v11445, %v11845
    %v11891 = vadd.f32 %v11448, %v11845
    %v11892 = vadd.f32 %v11453, %v11845
    %v11893 = vadd.f32 %v11456, %v11845
    %v11894 = vadd.f32 %v11461, %v11849
    %v11895 = vadd.f32 %v11464, %v11849
    %v11896 = vadd.f32 %v11469, %v11849
    %v11897 = vadd.f32 %v11472, %v11849
    %v11898 = vadd.f32 %v11477, %v11849
    %v11899 = vadd.f32 %v11480, %v11849
    %v11900 = vadd.f32 %v11485, %v11849
    %v11901 = vadd.f32 %v11488, %v11849
    %v11902 = vadd.f32 %v11493, %v11853
    %v11903 = vadd.f32 %v11496, %v11853
    %v11904 = vadd.f32 %v11501, %v11853
    %v11905 = vadd.f32 %v11504, %v11853
    %v11906 = vadd.f32 %v11509, %v11853
    %v11907 = vadd.f32 %v11512, %v11853
    %v11908 = vadd.f32 %v11517, %v11853
    %v11909 = vadd.f32 %v11520, %v11853
    %v11910 = vadd.f32 %v11525, %v11857
    %v11911 = vadd.f32 %v11528, %v11857
    %v11912 = vadd.f32 %v11533, %v11857
    %v11913 = vadd.f32 %v11536, %v11857
    %v11914 = vadd.f32 %v11541, %v11857
    %v11915 = vadd.f32 %v11544, %v11857
    %v11916 = vadd.f32 %v11549, %v11857
    %v11917 = vadd.f32 %v11552, %v11857
    %v11918 = vadd.f32 %v11557, %v11861
    %v11919 = vadd.f32 %v11560, %v11861
    %v11920 = vadd.f32 %v11565, %v11861
    %v11921 = vadd.f32 %v11568, %v11861
    %v11922 = vadd.f32 %v11573, %v11861
    %v11923 = vadd.f32 %v11576, %v11861
    %v11924 = vadd.f32 %v11581, %v11861
    %v11925 = vadd.f32 %v11584, %v11861
    %v11926 = vadd.f32 %v11589, %v11865
    %v11927 = vadd.f32 %v11592, %v11865
    %v11928 = vadd.f32 %v11597, %v11865
    %v11929 = vadd.f32 %v11600, %v11865
    %v11930 = vadd.f32 %v11605, %v11865
    %v11931 = vadd.f32 %v11608, %v11865
    %v11932 = vadd.f32 %v11613, %v11865
    %v11933 = vadd.f32 %v11616, %v11865
    %v11934 = vadd.f32 %v11621, %v11869
    %v11935 = vadd.f32 %v11624, %v11869
    %v11936 = vadd.f32 %v11629, %v11869
    %v11937 = vadd.f32 %v11632, %v11869
    %v11938 = vadd.f32 %v11637, %v11869
    %v11939 = vadd.f32 %v11640, %v11869
    %v11940 = vadd.f32 %v11645, %v11869
    %v11941 = vadd.f32 %v11648, %v11869
    %v11942 = vadd.f32 %v11878, %v11012
    %v11943 = vadd.f32 %v11879, %v11015
    %v11944 = vadd.f32 %v11880, %v11020
    %v11945 = vadd.f32 %v11881, %v11023
    %v11946 = vadd.f32 %v11882, %v11028
    %v11947 = vadd.f32 %v11883, %v11031
    %v11948 = vadd.f32 %v11884, %v11036
    %v11949 = vadd.f32 %v11885, %v11039
    %v11950 = vadd.f32 %v11886, %v11044
    %v11951 = vadd.f32 %v11887, %v11047
    %v11952 = vadd.f32 %v11888, %v11052
    %v11953 = vadd.f32 %v11889, %v11055
    %v11954 = vadd.f32 %v11890, %v11060
    %v11955 = vadd.f32 %v11891, %v11063
    %v11956 = vadd.f32 %v11892, %v11068
    %v11957 = vadd.f32 %v11893, %v11071
    %v11958 = vadd.f32 %v11894, %v11076
    %v11959 = vadd.f32 %v11895, %v11079
    %v11960 = vadd.f32 %v11896, %v11084
    %v11961 = vadd.f32 %v11897, %v11087
    %v11962 = vadd.f32 %v11898, %v11092
    %v11963 = vadd.f32 %v11899, %v11095
    %v11964 = vadd.f32 %v11900, %v11100
    %v11965 = vadd.f32 %v11901, %v11103
    %v11966 = vadd.f32 %v11902, %v11108
    %v11967 = vadd.f32 %v11903, %v11111
    %v11968 = vadd.f32 %v11904, %v11116
    %v11969 = vadd.f32 %v11905, %v11119
    %v11970 = vadd.f32 %v11906, %v11124
    %v11971 = vadd.f32 %v11907, %v11127
    %v11972 = vadd.f32 %v11908, %v11132
    %v11973 = vadd.f32 %v11909, %v11135
    %v11974 = vadd.f32 %v11910, %v11140
    %v11975 = vadd.f32 %v11911, %v11143
    %v11976 = vadd.f32 %v11912, %v11148
    %v11977 = vadd.f32 %v11913, %v11151
    %v11978 = vadd.f32 %v11914, %v11156
    %v11979 = vadd.f32 %v11915, %v11159
    %v11980 = vadd.f32 %v11916, %v11164
    %v11981 = vadd.f32 %v11917, %v11167
    %v11982 = vadd.f32 %v11918, %v11172
    %v11983 = vadd.f32 %v11919, %v11175
    %v11984 = vadd.f32 %v11920, %v11180
    %v11985 = vadd.f32 %v11921, %v11183
    %v11986 = vadd.f32 %v11922, %v11188
    %v11987 = vadd.f32 %v11923, %v11191
    %v11988 = vadd.f32 %v11924, %v11196
    %v11989 = vadd.f32 %v11925, %v11199
    %v11990 = vadd.f32 %v11926, %v11204
    %v11991 = vadd.f32 %v11927, %v11207
    %v11992 = vadd.f32 %v11928, %v11212
    %v11993 = vadd.f32 %v11929, %v11215
    %v11994 = vadd.f32 %v11930, %v11220
    %v11995 = vadd.f32 %v11931, %v11223
    %v11996 = vadd.f32 %v11932, %v11228
    %v11997 = vadd.f32 %v11933, %v11231
    %v11998 = vadd.f32 %v11934, %v11236
    %v11999 = vadd.f32 %v11935, %v11239
    %v12000 = vadd.f32 %v11936, %v11244
    %v12001 = vadd.f32 %v11937, %v11247
    %v12002 = vadd.f32 %v11938, %v11252
    %v12003 = vadd.f32 %v11939, %v11255
    %v12004 = vadd.f32 %v11940, %v11260
    %v12005 = vadd.f32 %v11941, %v11263
    %v12006 = vmax.f32 %v11942, %v11943
    %v12007 = vmax.f32 %v12006, %v11944
    %v12008 = vmax.f32 %v12007, %v11945
    %v12009 = vmax.f32 %v12008, %v11946
    %v12010 = vmax.f32 %v12009, %v11947
    %v12011 = vmax.f32 %v12010, %v11948
    %v12012 = vmax.f32 %v12011, %v11949
    %v12013 = vrot.slane %v12012, 4
    %v12014 = vmax.f32 %v12012, %v12013
    %v12015 = vrot.slane %v12014, 2
    %v12016 = vmax.f32 %v12014, %v12015
    %v12017 = vrot.slane %v12016, 1
    %v12018 = vmax.f32 %v12016, %v12017
    %v12019 = vmax.f32 %v11950, %v11951
    %v12020 = vmax.f32 %v12019, %v11952
    %v12021 = vmax.f32 %v12020, %v11953
    %v12022 = vmax.f32 %v12021, %v11954
    %v12023 = vmax.f32 %v12022, %v11955
    %v12024 = vmax.f32 %v12023, %v11956
    %v12025 = vmax.f32 %v12024, %v11957
    %v12026 = vrot.slane %v12025, 4
    %v12027 = vmax.f32 %v12025, %v12026
    %v12028 = vrot.slane %v12027, 2
    %v12029 = vmax.f32 %v12027, %v12028
    %v12030 = vrot.slane %v12029, 1
    %v12031 = vmax.f32 %v12029, %v12030
    %v12032 = vmax.f32 %v11958, %v11959
    %v12033 = vmax.f32 %v12032, %v11960
    %v12034 = vmax.f32 %v12033, %v11961
    %v12035 = vmax.f32 %v12034, %v11962
    %v12036 = vmax.f32 %v12035, %v11963
    %v12037 = vmax.f32 %v12036, %v11964
    %v12038 = vmax.f32 %v12037, %v11965
    %v12039 = vrot.slane %v12038, 4
    %v12040 = vmax.f32 %v12038, %v12039
    %v12041 = vrot.slane %v12040, 2
    %v12042 = vmax.f32 %v12040, %v12041
    %v12043 = vrot.slane %v12042, 1
    %v12044 = vmax.f32 %v12042, %v12043
    %v12045 = vmax.f32 %v11966, %v11967
    %v12046 = vmax.f32 %v12045, %v11968
    %v12047 = vmax.f32 %v12046, %v11969
    %v12048 = vmax.f32 %v12047, %v11970
    %v12049 = vmax.f32 %v12048, %v11971
    %v12050 = vmax.f32 %v12049, %v11972
    %v12051 = vmax.f32 %v12050, %v11973
    %v12052 = vrot.slane %v12051, 4
    %v12053 = vmax.f32 %v12051, %v12052
    %v12054 = vrot.slane %v12053, 2
    %v12055 = vmax.f32 %v12053, %v12054
    %v12056 = vrot.slane %v12055, 1
    %v12057 = vmax.f32 %v12055, %v12056
    %v12058 = vmax.f32 %v11974, %v11975
    %v12059 = vmax.f32 %v12058, %v11976
    %v12060 = vmax.f32 %v12059, %v11977
    %v12061 = vmax.f32 %v12060, %v11978
    %v12062 = vmax.f32 %v12061, %v11979
    %v12063 = vmax.f32 %v12062, %v11980
    %v12064 = vmax.f32 %v12063, %v11981
    %v12065 = vrot.slane %v12064, 4
    %v12066 = vmax.f32 %v12064, %v12065
    %v12067 = vrot.slane %v12066, 2
    %v12068 = vmax.f32 %v12066, %v12067
    %v12069 = vrot.slane %v12068, 1
    %v12070 = vmax.f32 %v12068, %v12069
    %v12071 = vmax.f32 %v11982, %v11983
    %v12072 = vmax.f32 %v12071, %v11984
    %v12073 = vmax.f32 %v12072, %v11985
    %v12074 = vmax.f32 %v12073, %v11986
    %v12075 = vmax.f32 %v12074, %v11987
    %v12076 = vmax.f32 %v12075, %v11988
    %v12077 = vmax.f32 %v12076, %v11989
    %v12078 = vrot.slane %v12077, 4
    %v12079 = vmax.f32 %v12077, %v12078
    %v12080 = vrot.slane %v12079, 2
    %v12081 = vmax.f32 %v12079, %v12080
    %v12082 = vrot.slane %v12081, 1
    %v12083 = vmax.f32 %v12081, %v12082
    %v12084 = vmax.f32 %v11990, %v11991
    %v12085 = vmax.f32 %v12084, %v11992
    %v12086 = vmax.f32 %v12085, %v11993
    %v12087 = vmax.f32 %v12086, %v11994
    %v12088 = vmax.f32 %v12087, %v11995
    %v12089 = vmax.f32 %v12088, %v11996
    %v12090 = vmax.f32 %v12089, %v11997
    %v12091 = vrot.slane %v12090, 4
    %v12092 = vmax.f32 %v12090, %v12091
    %v12093 = vrot.slane %v12092, 2
    %v12094 = vmax.f32 %v12092, %v12093
    %v12095 = vrot.slane %v12094, 1
    %v12096 = vmax.f32 %v12094, %v12095
    %v12097 = vmax.f32 %v11998, %v11999
    %v12098 = vmax.f32 %v12097, %v12000
    %v12099 = vmax.f32 %v12098, %v12001
    %v12100 = vmax.f32 %v12099, %v12002
    %v12101 = vmax.f32 %v12100, %v12003
    %v12102 = vmax.f32 %v12101, %v12004
    %v12103 = vmax.f32 %v12102, %v12005
    %v12104 = vrot.slane %v12103, 4
    %v12105 = vmax.f32 %v12103, %v12104
    %v12106 = vrot.slane %v12105, 2
    %v12107 = vmax.f32 %v12105, %v12106
    %v12108 = vrot.slane %v12107, 1
    %v12109 = vmax.f32 %v12107, %v12108
    %vm12110 = vcmp.gt.f32.partialorder %v12018, 0.0
    %vm12111 = vcmp.gt.f32.partialorder %v12031, 0.0
    %vm12112 = vcmp.gt.f32.partialorder %v12044, 0.0
    %vm12113 = vcmp.gt.f32.partialorder %v12057, 0.0
    %vm12114 = vcmp.gt.f32.partialorder %v12070, 0.0
    %vm12115 = vcmp.gt.f32.partialorder %v12083, 0.0
    %vm12116 = vcmp.gt.f32.partialorder %v12096, 0.0
    %vm12117 = vcmp.gt.f32.partialorder %v12109, 0.0
    %v12118 = vmul.f32 %v12018, 0.2
    %v12119 = vmul.f32 %v12031, 0.2
    %v12120 = vmul.f32 %v12044, 0.2
    %v12121 = vmul.f32 %v12057, 0.2
    %v12122 = vmul.f32 %v12070, 0.2
    %v12123 = vmul.f32 %v12083, 0.2
    %v12124 = vmul.f32 %v12096, 0.2
    %v12125 = vmul.f32 %v12109, 0.2
    %v12126 = vsel %vm12110, %v12018, %v12118
    %v12127 = vsel %vm12111, %v12031, %v12119
    %v12128 = vsel %vm12112, %v12044, %v12120
    %v12129 = vsel %vm12113, %v12057, %v12121
    %v12130 = vsel %vm12114, %v12070, %v12122
    %v12131 = vsel %vm12115, %v12083, %v12123
    %v12132 = vsel %vm12116, %v12096, %v12124
    %v12133 = vsel %vm12117, %v12109, %v12125
    %v12134 = vpack.c.bf16 %v12126, %v12126
    %v12135 = vpack.c.bf16 %v12127, %v12127
    %v12136 = vpack.c.bf16 %v12128, %v12128
    %v12137 = vpack.c.bf16 %v12129, %v12129
    %v12138 = vpack.c.bf16 %v12130, %v12130
    %v12139 = vpack.c.bf16 %v12131, %v12131
    %v12140 = vpack.c.bf16 %v12132, %v12132
    %v12141 = vpack.c.bf16 %v12133, %v12133
    %v12142 = vld [vmem:[#allocation41] sm:$0xf]
    %v12143 = vld [vmem:[#allocation41 + $0x4] sm:$0xf]
    %v12144 = vld [vmem:[#allocation41 + $0x8] sm:$0xf]
    %v12145 = vld [vmem:[#allocation41 + $0xc] sm:$0xf]
    %v12146 = vld [vmem:[#allocation41 + $0x10] sm:$0xf]
    %v12147 = vld [vmem:[#allocation41 + $0x14] sm:$0xf]
    %v12148 = vld [vmem:[#allocation41 + $0x18] sm:$0xf]
    %v12149 = vld [vmem:[#allocation41 + $0x1c] sm:$0xf]
    %v12150 = vld [vmem:[#allocation41 + $0x20] sm:$0xf]
    %v12151 = vld [vmem:[#allocation41 + $0x24] sm:$0xf]
    %v12152 = vld [vmem:[#allocation41 + $0x28] sm:$0xf]
    %v12153 = vld [vmem:[#allocation41 + $0x2c] sm:$0xf]
    %v12154 = vld [vmem:[#allocation41 + $0x30] sm:$0xf]
    %v12155 = vld [vmem:[#allocation41 + $0x34] sm:$0xf]
    %v12156 = vld [vmem:[#allocation41 + $0x38] sm:$0xf]
    %v12157 = vld [vmem:[#allocation41 + $0x3c] sm:$0xf]
    %v12158 = vld [vmem:[%s75] sm:$0x1]
    %v12160 = vlaneseq
    %v12161 = vshrl.u32 %v12160, 7
    %v12162 = vsub.s32 0, %v12161
    %v12163 = vrot.slane %v12158, %v12162
    %v12173 = vunpack.c.l.b16 %v12134
    %v12174 = vunpack.c.l.b16 %v12135
    %v12175 = vunpack.c.l.b16 %v12136
    %v12176 = vunpack.c.l.b16 %v12137
    %v12177 = vunpack.c.l.b16 %v12138
    %v12178 = vunpack.c.l.b16 %v12139
    %v12179 = vunpack.c.l.b16 %v12140
    %v12180 = vunpack.c.l.b16 %v12141
    %v12181 = vsel %vm4387, %v12174, %v12173
    %v12182 = vsel %vm4389, %v12175, %v12181
    %v12183 = vsel %vm4391, %v12176, %v12182
    %v12184 = vsel %vm4393, %v12177, %v12183
    %v12185 = vsel %vm4395, %v12178, %v12184
    %v12186 = vsel %vm4397, %v12179, %v12185
    %v12187 = vsel %vm4399, %v12180, %v12186
    %v12188 = vpack.c.b16 %v12187, %v12187
    %v12206 = vunpack.c.l.b16 %v12142
    %v12207 = vunpack.c.l.b16 %v12143
    %v12208 = vunpack.c.l.b16 %v12144
    %v12209 = vunpack.c.l.b16 %v12145
    %v12210 = vunpack.c.l.b16 %v12146
    %v12211 = vunpack.c.l.b16 %v12147
    %v12212 = vunpack.c.l.b16 %v12148
    %v12213 = vunpack.c.l.b16 %v12149
    %v12214 = vunpack.c.l.b16 %v12150
    %v12215 = vunpack.c.l.b16 %v12151
    %v12216 = vunpack.c.l.b16 %v12152
    %v12217 = vunpack.c.l.b16 %v12153
    %v12218 = vunpack.c.l.b16 %v12154
    %v12219 = vunpack.c.l.b16 %v12155
    %v12220 = vunpack.c.l.b16 %v12156
    %v12221 = vunpack.c.l.b16 %v12157
    %v12222 = vpack.c.b16 %v12207, %v12206
    %v12223 = vpack.c.b16 %v12209, %v12208
    %v12224 = vpack.c.b16 %v12211, %v12210
    %v12225 = vpack.c.b16 %v12213, %v12212
    %v12226 = vpack.c.b16 %v12215, %v12214
    %v12227 = vpack.c.b16 %v12217, %v12216
    %v12228 = vpack.c.b16 %v12219, %v12218
    %v12229 = vpack.c.b16 %v12221, %v12220
    %12238 = vmatprep.subr.bf16.mxu0 0
    %12239 = vmatpush1.bf16.msra.mxu0 %v12229
    %12240 = vmatprep.subr.bf16.mxu0 0
    %12241 = vmatpush1.bf16.msra.mxu0 %v12228
    %12242 = vmatprep.subr.bf16.mxu0 0
    %12243 = vmatpush1.bf16.msra.mxu0 %v12227
    %12244 = vmatprep.subr.bf16.mxu0 0
    %12245 = vmatpush1.bf16.msra.mxu0 %v12226
    %12246 = vmatprep.subr.bf16.mxu0 0
    %12247 = vmatpush1.bf16.msra.mxu0 %v12225
    %12248 = vmatprep.subr.bf16.mxu0 0
    %12249 = vmatpush1.bf16.msra.mxu0 %v12224
    %12250 = vmatprep.subr.bf16.mxu0 0
    %12251 = vmatpush1.bf16.msra.mxu0 %v12223
    %12252 = vmatprep.subr.bf16.mxu0 0
    %12253 = vmatpush1.bf16.msra.mxu0 %v12222
    %12254 = vmatprep.subr.bf16.mxu0 0
    %12255 = vmatpush2.bf16.msra.mxu0 0
    %12256 = vmatprep.subr.bf16.mxu0 0
    %12257 = vmatpush2.bf16.msra.mxu0 0
    %12258 = vmatprep.subr.bf16.mxu0 0
    %12259 = vmatpush2.bf16.msra.mxu0 0
    %12260 = vmatprep.subr.bf16.mxu0 0
    %12261 = vmatpush2.bf16.msra.mxu0 0
    %12262 = vmatprep.subr.bf16.mxu0 0
    %12263 = vmatpush2.bf16.msra.mxu0 0
    %12264 = vmatprep.subr.bf16.mxu0 0
    %12265 = vmatpush2.bf16.msra.mxu0 0
    %12266 = vmatprep.subr.bf16.mxu0 0
    %12267 = vmatpush2.bf16.msra.mxu0 0
    %12268 = vmatprep.subr.bf16.mxu0 0
    %12269 = vmatpush2.bf16.msra.mxu0 0
    %12270 = vmatprep.mubr.bf16.mxu0 0
    %12271 = vmatmul.mubr.bf16.gmra.mxu0 %v12188
    %v12272 = vpop.f32.mrf.mxu0
    %v12273 = vadd.f32 %v12163, %v12272
    %v12274 = vpop.f32.mrf.mxu0
    %v12275 = vpop.f32.mrf.mxu0
    %v12276 = vpop.f32.mrf.mxu0
    %12277 = vdwg.mxu0
    %12278 = vst [vmem:[#allocation43] sm:$0xff] %v12273
    // Predicated region
    $region258: #{tpu_custom_call.1} parent=1 // pred_check
      _
    $region259: #{tpu_custom_call.1} parent=1 // pred_check_branch
      %12280 = sbr.rel (0) target = $region261
    $region260: #{tpu_custom_call.1} parent=1 // pred_region
      %s12282 = ssub.s32 128, 128
      %12283 = vsyncadd [#allocation4], %s12282
      %s12285 = sshll.u32 [#allocation43], 4
      %s12286 = int_to_ptr.vmem [resolvable:$true] %s12285
      %12288 = dma.vmem_to_hbm [thread:$0]  %s12286, 128, %s77, [#allocation4]
    $region261: #{tpu_custom_call.1} parent=1 // pred_fallthru
      _
    // Predicated region
    $region262: #{tpu_custom_call.1} parent=1 // pred_check
      _
    $region263: #{tpu_custom_call.1} parent=1 // pred_check_branch
      %12290 = sbr.rel (0) target = $region265
    $region264: #{tpu_custom_call.1} parent=1 // pred_region
      %12291 = dma.done [#allocation4], 128
    $region265: #{tpu_custom_call.1} parent=1 // pred_fallthru
      _
    %12292 = vsyncpa [#allocation3], 1
    %12293 = vsyncpa [#allocation6], 1
    %12294 = vsyncpa [#allocation9], 1
    %12295 = vsyncpa [#allocation12], 1
    %12296 = vsyncpa [#allocation15], 1
    %12297 = vsyncpa [#allocation18], 1
    %12298 = vsyncpa [#allocation21], 1
    %12299 = vsyncpa [#allocation24], 1
    %12300 = vsyncpa [#allocation27], 1
    %12301 = vsyncpa [#allocation30], 1
    %12302 = vsyncpa [#allocation33], 1
    %12303 = vsyncpa [#allocation36], 1
    %12304 = vsyncpa [#allocation39], 1
    %12305 = vsyncpa [#allocation42], 1
    %12306 = vsyncpa [#allocation4], 1

</llo_original>
